<compile_context>
chip_gen: v6e
topology: v6e:2x2x1
jax: 0.10.0
libtpu: 0.0.40
codegen_flags: <defaults>
</compile_context>

<pallas_src>
import functools

import numpy as np

import jax
import jax.numpy as jnp
from jax.experimental import pallas as pl
from jax.experimental.pallas import tpu as pltpu

LANE = 128
_VMEM_LIMIT = 32 * 1024 * 1024


# ----------------------------------------------------------------------------
# Small helpers
# ----------------------------------------------------------------------------
def _round_up(x, m):
    return (x + m - 1) // m * m


@functools.lru_cache(maxsize=None)
def _wide_mxu():
    """True on chips with a 256-wide MXU (v6e / v7x); False on v2-v5."""
    try:
        kind = jax.devices()[0].device_kind.lower()
    except Exception:
        return False
    return not any(t in kind for t in ("v2", "v3", "v4", "v5"))


def _mosaic_params(dims):
    return pltpu.CompilerParams(dimension_semantics=dims,
                                vmem_limit_bytes=_VMEM_LIMIT)


def _choose_tm(M):
    """Row tile: divide M exactly when possible; >=2 steps when M >= 256
    so the v7x megacore 'parallel' axis actually shards across both TCs."""
    if M <= 256:
        for c in (256, 128, 64, 32, 16, 8):
            if M % c == 0:
                return c
        return _round_up(min(M, 256), 8)
    for c in (512, 256, 128):
        if M % c == 0 and M // c >= 2:
            return c
    return 256


# ----------------------------------------------------------------------------
# Pallas kernels
# ----------------------------------------------------------------------------
def _mm_single_k_kernel(*refs, post_relu, has_residual):
    """out = A @ W + b [, ReLU][, + residual]; single K block, no scratch."""
    if has_residual:
        a_ref, w_ref, b_ref, r_ref, o_ref = refs
    else:
        a_ref, w_ref, b_ref, o_ref = refs
        r_ref = None
    out = jnp.dot(a_ref[...], w_ref[...], preferred_element_type=jnp.float32)
    out = out + b_ref[...]                     # (tm,tn) + (1,tn) broadcast
    if post_relu:
        out = jnp.maximum(out, 0.0)
    if r_ref is not None:
        out = out + r_ref[...].astype(jnp.float32)
    o_ref[...] = out.astype(o_ref.dtype)


def _mm_multi_k_kernel(*refs, post_relu, has_residual):
    """Gridded-K matmul with f32 VMEM accumulator (only for very large K)."""
    if has_residual:
        a_ref, w_ref, b_ref, r_ref, o_ref, acc_ref = refs
    else:
        a_ref, w_ref, b_ref, o_ref, acc_ref = refs
        r_ref = None
    k = pl.program_id(2)

    @pl.when(k == 0)
    def _init():
        acc_ref[...] = jnp.zeros_like(acc_ref)

    acc_ref[...] += jnp.dot(a_ref[...], w_ref[...],
                            preferred_element_type=jnp.float32)

    @pl.when(k == pl.num_programs(2) - 1)
    def _finalize():
        out = acc_ref[...] + b_ref[...]
        if post_relu:
            out = jnp.maximum(out, 0.0)
        if r_ref is not None:
            out = out + r_ref[...].astype(jnp.float32)
        o_ref[...] = out.astype(o_ref.dtype)


def _vq_kernel(ze_ref, emb_ref, e2_ref, zq_ref):
    """Nearest-codebook lookup for one tile of rows; codebook resident once."""
    ze = ze_ref[...].astype(jnp.float32)                        # (tr, Cp)
    ze2 = jnp.sum(ze * ze, axis=1, keepdims=True)               # (tr, 1)
    cross = jax.lax.dot_general(                                # ze @ emb.T
        ze, emb_ref[...],
        dimension_numbers=(((1,), (1,)), ((), ())),
        preferred_element_type=jnp.float32)                     # (tr, Kp)
    dist = ze2 - 2.0 * cross + e2_ref[...]                      # (tr, Kp)
    Kp = dist.shape[1]
    iota = jax.lax.broadcasted_iota(jnp.int32, dist.shape, 1)
    dmin = jnp.min(dist, axis=1, keepdims=True)
    # first index attaining the minimum (matches torch.argmin tie-breaking)
    idx = jnp.min(jnp.where(dist == dmin, iota, Kp), axis=1, keepdims=True)
    onehot = (iota == idx).astype(jnp.float32)                  # (tr, Kp)
    # TODO(synk): for large codebooks emit indices and gather instead of the
    # one-hot matmul; for this small n_e the matmul is cheaper than a gather.
    zq_ref[...] = jnp.dot(onehot, emb_ref[...],
                          preferred_element_type=jnp.float32)


# ----------------------------------------------------------------------------
# Pallas call wrappers
# ----------------------------------------------------------------------------
def fused_matmul(a, w, b, residual=None, post_relu=False):
    """out = a @ w + b [, ReLU][, + residual].

    a:        (M, K)  bf16 activations (channels already padded by the caller)
    w:        (K, Np) bf16 prepared weight (Np multiple of 128, pads zero)
    b:        (1, Np) f32 prepared bias (pads zero)
    residual: (M, Np) bf16 or None
    returns   (M, Np) bf16
    """
    M, K = a.shape
    Np = w.shape[1]
    assert w.shape[0] == K, (a.shape, w.shape)

    if a.dtype != jnp.bfloat16:
        a = a.astype(jnp.bfloat16)

    tm = _choose_tm(M)
    Mp = _round_up(M, tm)
    if Np % 128 == 0:
        tn = 256 if (_wide_mxu() and Np % 256 == 0) else 128
    else:
        tn = Np                                  # full-dim block (rare fallback)

    if Mp != M:
        a = jnp.pad(a, ((0, Mp - M), (0, 0)))
        if residual is not None:
            residual = jnp.pad(residual, ((0, Mp - M), (0, 0)))

    args = [a, w, b]
    has_res = residual is not None
    if has_res:
        args.append(residual)

    use_fast = (K <= 2048) or (K % 128 != 0)
    if use_fast:
        # Single K block: no accumulator scratch, no init/finalize branches.
        kern = functools.partial(_mm_single_k_kernel,
                                 post_relu=post_relu, has_residual=has_res)
        in_specs = [
            pl.BlockSpec((tm, K), lambda i, j: (i, 0)),
            pl.BlockSpec((K, tn), lambda i, j: (0, j)),
            pl.BlockSpec((1, tn), lambda i, j: (0, j)),
        ]
        if has_res:
            in_specs.append(pl.BlockSpec((tm, tn), lambda i, j: (i, j)))
        out = pl.pallas_call(
            kern,
            out_shape=jax.ShapeDtypeStruct((Mp, Np), jnp.bfloat16),
            grid=(Mp // tm, Np // tn),
            in_specs=in_specs,
            out_specs=pl.BlockSpec((tm, tn), lambda i, j: (i, j)),
            compiler_params=_mosaic_params(("parallel", "parallel")),
        )(*args)
    else:
        tk = 256 if (_wide_mxu() and K % 256 == 0) else 128
        kern = functools.partial(_mm_multi_k_kernel,
                                 post_relu=post_relu, has_residual=has_res)
        in_specs = [
            pl.BlockSpec((tm, tk), lambda i, j, k: (i, k)),
            pl.BlockSpec((tk, tn), lambda i, j, k: (k, j)),
            pl.BlockSpec((1, tn), lambda i, j, k: (0, j)),
        ]
        if has_res:
            in_specs.append(pl.BlockSpec((tm, tn), lambda i, j, k: (i, j)))
        out = pl.pallas_call(
            kern,
            out_shape=jax.ShapeDtypeStruct((Mp, Np), jnp.bfloat16),
            grid=(Mp // tm, Np // tn, K // tk),
            in_specs=in_specs,
            out_specs=pl.BlockSpec((tm, tn), lambda i, j, k: (i, j)),
            scratch_shapes=[pltpu.VMEM((tm, tn), jnp.float32)],
            compiler_params=_mosaic_params(("parallel", "parallel", "arbitrary")),
        )(*args)

    return out if Mp == M else out[:M]


def vq_lookup(ze_flat, emb_p, e2):
    """zq[n] = emb[argmin_k ||ze[n]-emb[k]||^2], tiled over rows.

    ze_flat: (N, Cp) bf16; emb_p: (Kp, Cp) f32 pre-padded codebook;
    e2: (1, Kp) f32 precomputed row norms (+1e30 on padded codes).
    Returns (N, Cp) f32 (exact codebook rows, padded lanes zero).
    """
    N, Cp = ze_flat.shape
    Kp = emb_p.shape[0]
    tr = _round_up(N, 8) if N <= 256 else 256
    Nr = _round_up(N, tr)
    if Nr != N:
        ze_flat = jnp.pad(ze_flat, ((0, Nr - N), (0, 0)))

    out = pl.pallas_call(
        _vq_kernel,
        out_shape=jax.ShapeDtypeStruct((Nr, Cp), jnp.float32),
        grid=(Nr // tr,),
        in_specs=[
            pl.BlockSpec((tr, Cp), lambda i: (i, 0)),
            pl.BlockSpec((Kp, Cp), lambda i: (0, 0)),   # resident, passed once
            pl.BlockSpec((1, Kp), lambda i: (0, 0)),    # resident
        ],
        out_specs=pl.BlockSpec((tr, Cp), lambda i: (i, 0)),
        compiler_params=_mosaic_params(("parallel",)),
    )(ze_flat, emb_p, e2)
    return out if Nr == N else out[:N]


# ----------------------------------------------------------------------------
# Conv / conv-transpose via im2col (glue) + Pallas matmul (hot path)
# ----------------------------------------------------------------------------
def _extract_patches(x, kh, kw, stride, pad):
    """x: (B,H,W,Cp) bf16 NHWC -> (B*Ho*Wo, kh*kw*Cp) patch matrix."""
    if pad:
        x = jnp.pad(x, ((0, 0), (pad, pad), (pad, pad), (0, 0)))
    B, H, W, C = x.shape
    Ho = (H - kh) // stride + 1
    Wo = (W - kw) // stride + 1
    slabs = []
    for i in range(kh):
        for j in range(kw):
            slabs.append(x[:, i:i + stride * Ho:stride, j:j + stride * Wo:stride, :])
    patches = jnp.concatenate(slabs, axis=-1)          # (B, Ho, Wo, kh*kw*Cp)
    return patches.reshape(B * Ho * Wo, kh * kw * C), (B, Ho, Wo)


def conv2d(x, w_mat, b_row, ksize, stride, pad, post_relu=False):
    """Prepared-weight conv: x NHWC (channels pre-padded), w_mat (k*k*Cp, Ncp)."""
    patches, (B, Ho, Wo) = _extract_patches(x, ksize, ksize, stride, pad)
    out = fused_matmul(patches, w_mat, b_row, post_relu=post_relu)
    return out.reshape(B, Ho, Wo, w_mat.shape[1])


def conv_transpose2d(x, w_fused, b_fused, post_relu=False):
    """PyTorch ConvTranspose2d(k=4, s=2, p=1) as ONE fused matmul.

    A single 3x3 patch matrix of the (H+2,W+2)-padded input is shared by all
    four output phases: the prepared weight has 4*Ncp output columns (one
    group per phase, unused taps zeroed), and the phase outputs are
    interleaved with a reshape/transpose instead of strided scatters.
    """
    B, H, W, Cp = x.shape
    Ncp = w_fused.shape[1] // 4
    patches, _ = _extract_patches(x, 3, 3, 1, 1)               # (B*H*W, 9*Cp)
    out = fused_matmul(patches, w_fused, b_fused, post_relu=post_relu)
    out = out.reshape(B, H, W, 2, 2, Ncp)                      # (..., ph, pw, c)
    out = jnp.transpose(out, (0, 1, 3, 2, 4, 5)).reshape(B, 2 * H, 2 * W, Ncp)
    return out


def residual_block(x, w1, b1, w2, b2):
    """relu -> conv3x3(pad1) -> relu -> conv1x1 -> + x.

    relu1 is applied once on the activation (not on 9x-replicated patches);
    relu2 is fused into conv1's matmul epilogue; the residual add is fused
    into conv2's (1x1) matmul epilogue.
    """
    B, H, W, Cp = x.shape
    xr = jnp.maximum(x, 0).astype(x.dtype)
    h = conv2d(xr, w1, b1, 3, 1, 1, post_relu=True)
    out = fused_matmul(h.reshape(-1, Cp), w2, b2, residual=x.reshape(-1, Cp))
    return out.reshape(B, H, W, Cp)


# ----------------------------------------------------------------------------
# One-time parameter preprocessing (all weight glue lives here, outside jit)
# ----------------------------------------------------------------------------
def _prep_conv(w, cin_pad):
    """PyTorch Conv2d weight (C_out, C_in, kh, kw) -> (kh*kw*cin_pad, Ncp) bf16."""
    w = np.asarray(w, np.float32)
    C_out, C_in, kh, kw = w.shape
    Ncp = _round_up(C_out, LANE)
    m = np.zeros((kh, kw, cin_pad, Ncp), np.float32)
    m[:, :, :C_in, :C_out] = w.transpose(2, 3, 1, 0)
    return jnp.asarray(m.reshape(kh * kw * cin_pad, Ncp), jnp.bfloat16)


def _prep_bias(b, Ncp):
    b = np.asarray(b, np.float32)
    row = np.zeros((1, Ncp), np.float32)
    row[0, :b.shape[0]] = b
    return jnp.asarray(row)


def _prep_convT_fused(w, cin_pad):
    """PyTorch ConvTranspose2d weight (C_in, C_out, 4, 4) -> (9*cin_pad, 4*Ncp).

    Phase (ph, pw) of the stride-2 transpose conv equals a 2x2 stride-1 conv
    reading taps {ph,ph+1}x{pw,pw+1} of a shared 3x3 patch of the
    (H+2,W+2)-padded input, with kernel index ky = 3 - 2*ty + ph (kx alike).
    Unused taps of each phase column group are zero.
    """
    w = np.asarray(w, np.float32)
    C_in, C_out = w.shape[:2]
    Ncp = _round_up(C_out, LANE)
    out = np.zeros((2, 2, 3, 3, cin_pad, Ncp), np.float32)
    for ph in range(2):
        for pw in range(2):
            for ty in range(3):
                for tx in range(3):
                    if not (0 <= ty - ph <= 1 and 0 <= tx - pw <= 1):
                        continue
                    ky = 3 - 2 * ty + ph
                    kx = 3 - 2 * tx + pw
                    out[ph, pw, ty, tx, :C_in, :C_out] = w[:, :, ky, kx]
    # rows ordered (ty, tx, ci); columns grouped by phase (ph, pw) then co.
    out = out.transpose(2, 3, 4, 0, 1, 5).reshape(9 * cin_pad, 4 * Ncp)
    return jnp.asarray(out, jnp.bfloat16)


def _prep_bias_fused(b, Ncp):
    b = np.asarray(b, np.float32)
    row = np.zeros((Ncp,), np.float32)
    row[:b.shape[0]] = b
    return jnp.asarray(np.tile(row, 4).reshape(1, 4 * Ncp))


def _prep_codebook(emb, Cp):
    emb = np.asarray(emb, np.float32)                # (n_e, h_dim)
    n_e, C = emb.shape
    Kp = _round_up(n_e, LANE)
    e = np.zeros((Kp, Cp), np.float32)
    e[:n_e, :C] = emb
    e2 = np.full((1, Kp), 1e30, np.float32)
    e2[0, :n_e] = (emb * emb).sum(axis=1)
    return jnp.asarray(e), jnp.asarray(e2)


def prepare_params(p, in_dim, h_dim):
    """Convert PyTorch-layout params into padded bf16/f32 matmul operands (once)."""
    cp_img = max(8, _round_up(in_dim, 8))
    cp_h = _round_up(h_dim, LANE)
    cp_h2 = _round_up(h_dim // 2, LANE)
    cp_in = _round_up(in_dim, LANE)

    pp = {
        "e0_w": _prep_conv(p["e0_w"], cp_img), "e0_b": _prep_bias(p["e0_b"], cp_h2),
        "e1_w": _prep_conv(p["e1_w"], cp_h2), "e1_b": _prep_bias(p["e1_b"], cp_h),
        "e2_w": _prep_conv(p["e2_w"], cp_h), "e2_b": _prep_bias(p["e2_b"], cp_h),
        "d0_w": _prep_conv(p["d0_w"], cp_h), "d0_b": _prep_bias(p["d0_b"], cp_h),
        "dt0_w": _prep_convT_fused(p["dt0_w"], cp_h),
        "dt0_b": _prep_bias_fused(p["dt0_b"], cp_h2),
        "dt1_w": _prep_convT_fused(p["dt1_w"], cp_h2),
        "dt1_b": _prep_bias_fused(p["dt1_b"], cp_in),
    }
    for name in ("er1", "er2", "dr1", "dr2"):
        pp[f"{name}_w1"] = _prep_conv(p[f"{name}_w1"], cp_h)
        pp[f"{name}_b1"] = _prep_bias(p[f"{name}_b1"], cp_h)
        pp[f"{name}_w2"] = _prep_conv(p[f"{name}_w2"], cp_h)
        pp[f"{name}_b2"] = _prep_bias(p[f"{name}_b2"], cp_h)
    pp["emb"], pp["emb_e2"] = _prep_codebook(p["emb"], cp_h)
    return pp


# ----------------------------------------------------------------------------
# VQVAE forward
# ----------------------------------------------------------------------------
def vqvae_forward(x_nchw, pp, *, in_dim, h_dim):
    cp_img = max(8, _round_up(in_dim, 8))

    x = jnp.transpose(x_nchw, (0, 2, 3, 1))              # NCHW -> NHWC
    x = jnp.pad(x, ((0, 0), (0, 0), (0, 0), (0, cp_img - in_dim)))
    x = x.astype(jnp.bfloat16)

    # encoder
    h = conv2d(x, pp["e0_w"], pp["e0_b"], 4, 2, 1, post_relu=True)
    h = conv2d(h, pp["e1_w"], pp["e1_b"], 4, 2, 1, post_relu=True)
    h = conv2d(h, pp["e2_w"], pp["e2_b"], 3, 1, 1)
    h = residual_block(h, pp["er1_w1"], pp["er1_b1"], pp["er1_w2"], pp["er1_b2"])
    ze_p = residual_block(h, pp["er2_w1"], pp["er2_b1"], pp["er2_w2"], pp["er2_b2"])

    # vector quantization (padded channels are exactly zero on both sides)
    B, Hh, Ww, Cp = ze_p.shape
    zq_p = vq_lookup(ze_p.reshape(B * Hh * Ww, Cp), pp["emb"], pp["emb_e2"])
    zq_p = zq_p.reshape(B, Hh, Ww, Cp)

    # decoder_input = ze + (zq - ze).detach() == zq in the forward pass
    # TODO(synk): straight-through estimator / VQ losses only affect gradients.
    d = zq_p.astype(jnp.bfloat16)
    d = conv2d(d, pp["d0_w"], pp["d0_b"], 3, 1, 1)
    d = residual_block(d, pp["dr1_w1"], pp["dr1_b1"], pp["dr1_w2"], pp["dr1_b2"])
    d = residual_block(d, pp["dr2_w1"], pp["dr2_b1"], pp["dr2_w2"], pp["dr2_b2"])
    d = conv_transpose2d(d, pp["dt0_w"], pp["dt0_b"], post_relu=True)
    xh = conv_transpose2d(d, pp["dt1_w"], pp["dt1_b"])

    ze = ze_p[..., :h_dim].astype(jnp.float32)
    zq = zq_p[..., :h_dim]
    x_hat = xh[..., :in_dim].astype(jnp.float32)
    to_nchw = lambda t: jnp.transpose(t, (0, 3, 1, 2))
    return to_nchw(ze), to_nchw(zq), to_nchw(x_hat)


# ----------------------------------------------------------------------------
# Deterministic parameter construction (PyTorch layouts)
# ----------------------------------------------------------------------------
def init_params(in_dim, h_dim, n_e, key):
    keys = iter(jax.random.split(key, 64))

    def w(shape, scale=0.05):
        return (scale * jax.random.normal(next(keys), shape)).astype(jnp.float32)

    def b(n):
        return (0.01 * jax.random.normal(next(keys), (n,))).astype(jnp.float32)

    hd2 = h_dim // 2
    p = {
        # encoder
        "e0_w": w((hd2, in_dim, 4, 4)), "e0_b": b(hd2),
        "e1_w": w((h_dim, hd2, 4, 4)), "e1_b": b(h_dim),
        "e2_w": w((h_dim, h_dim, 3, 3)), "e2_b": b(h_dim),
        "er1_w1": w((h_dim, h_dim, 3, 3)), "er1_b1": b(h_dim),
        "er1_w2": w((h_dim, h_dim, 1, 1)), "er1_b2": b(h_dim),
        "er2_w1": w((h_dim, h_dim, 3, 3)), "er2_b1": b(h_dim),
        "er2_w2": w((h_dim, h_dim, 1, 1)), "er2_b2": b(h_dim),
        # codebook: uniform(-1/n_e, 1/n_e) like the PyTorch init
        "emb": jax.random.uniform(next(keys), (n_e, h_dim),
                                  minval=-1.0 / n_e, maxval=1.0 / n_e
                                  ).astype(jnp.float32),
        # decoder
        "d0_w": w((h_dim, h_dim, 3, 3)), "d0_b": b(h_dim),
        "dr1_w1": w((h_dim, h_dim, 3, 3)), "dr1_b1": b(h_dim),
        "dr1_w2": w((h_dim, h_dim, 1, 1)), "dr1_b2": b(h_dim),
        "dr2_w1": w((h_dim, h_dim, 3, 3)), "dr2_b1": b(h_dim),
        "dr2_w2": w((h_dim, h_dim, 1, 1)), "dr2_b2": b(h_dim),
        "dt0_w": w((h_dim, hd2, 4, 4)), "dt0_b": b(hd2),   # ConvTranspose: (C_in, C_out, kh, kw)
        "dt1_w": w((hd2, in_dim, 4, 4)), "dt1_b": b(in_dim),
    }
    return p


# ----------------------------------------------------------------------------
if __name__ == "__main__":
    in_dim, h_dim, n_e = 3, 32, 16
    B, H, W = 2, 16, 16

    key = jax.random.PRNGKey(0)
    k_x, k_p = jax.random.split(key)
    x = jax.random.normal(k_x, (B, in_dim, H, W), dtype=jnp.float32)
    params = init_params(in_dim, h_dim, n_e, k_p)

    # One-time weight preprocessing: pad/transpose/cast outside the hot path.
    pp = prepare_params(params, in_dim, h_dim)

    fwd = jax.jit(functools.partial(vqvae_forward, in_dim=in_dim, h_dim=h_dim))
    ze, zq, x_hat = fwd(x, pp)
    jax.block_until_ready((ze, zq, x_hat))

    assert ze.shape == (B, h_dim, H // 4, W // 4), ze.shape
    assert zq.shape == (B, h_dim, H // 4, W // 4), zq.shape
    assert x_hat.shape == (B, in_dim, H, W), x_hat.shape
    print("KERNEL_OK")
</pallas_src>

<mosaic_0001>
module attributes {stable_mosaic.version = 11 : i64} {
  func.func @_mm_single_k_kernel(%arg0: i32, %arg1: i32, %arg2: memref<128x128xbf16, #tpu.memory_space<vmem>>, %arg3: memref<128x128xbf16, #tpu.memory_space<vmem>>, %arg4: memref<1x128xf32, #tpu.memory_space<vmem>>, %arg5: memref<128x128xbf16, #tpu.memory_space<vmem>>) attributes {dimension_semantics = [#tpu.dimension_semantics<parallel>, #tpu.dimension_semantics<parallel>], iteration_bounds = array<i64: 1, 1>, scalar_prefetch = 0 : i64, scratch_operands = 0 : i64, tpu.core_type = #tpu.core_type<tc>, window_params = [{transform_indices = @transform_0, window_bounds = array<i64: 128, 128>}, {transform_indices = @transform_1, window_bounds = array<i64: 128, 128>}, {transform_indices = @transform_2, window_bounds = array<i64: 1, 128>}, {transform_indices = @transform_3, window_bounds = array<i64: 128, 128>}]} {
    %c0 = arith.constant 0 : index
    %c0_0 = arith.constant 0 : index
    %0 = vector.load %arg2[%c0, %c0_0] : memref<128x128xbf16, #tpu.memory_space<vmem>>, vector<128x128xbf16>
    %c0_1 = arith.constant 0 : index
    %c0_2 = arith.constant 0 : index
    %1 = vector.load %arg3[%c0_1, %c0_2] : memref<128x128xbf16, #tpu.memory_space<vmem>>, vector<128x128xbf16>
    %cst = arith.constant dense<0.000000e+00> : vector<128x128xf32>
    %2 = tpu.matmul %0, %1, %cst {dimension_numbers = #tpu.dot_dimension_numbers<[1], [0], [0], [1], [0, 0, 1, 1], [], []>} : vector<128x128xbf16>, vector<128x128xbf16>, vector<128x128xf32> -> vector<128x128xf32>
    %c0_3 = arith.constant 0 : index
    %c0_4 = arith.constant 0 : index
    %3 = vector.load %arg4[%c0_3, %c0_4] : memref<1x128xf32, #tpu.memory_space<vmem>>, vector<1x128xf32>
    %4 = vector.broadcast %3 : vector<1x128xf32> to vector<128x128xf32>
    %5 = arith.addf %2, %4 : vector<128x128xf32>
    %cst_5 = arith.constant 0.000000e+00 : f32
    %6 = vector.broadcast %cst_5 : f32 to vector<128x128xf32>
    %7 = arith.maximumf %5, %6 : vector<128x128xf32>
    %8 = arith.truncf %7 : vector<128x128xf32> to vector<128x128xbf16>
    %c0_6 = arith.constant 0 : index
    %c0_7 = arith.constant 0 : index
    %9 = vector.load %arg5[%c0_6, %c0_7] : memref<128x128xbf16, #tpu.memory_space<vmem>>, vector<128x128xbf16>
    tpu.vector_store %arg5[%c0_6, %c0_7], %8 {strides = array<i32>} : memref<128x128xbf16, #tpu.memory_space<vmem>>, vector<128x128xbf16>,
    return
  }
  func.func @transform_0(%arg0: i32, %arg1: i32) -> (i32, i32) {
    %c0_i32 = arith.constant 0 : i32
    %c0_i32_0 = arith.constant 0 : i32
    return %arg0, %c0_i32 : i32, i32
  }
  func.func @transform_1(%arg0: i32, %arg1: i32) -> (i32, i32) {
    %c0_i32 = arith.constant 0 : i32
    %c0_i32_0 = arith.constant 0 : i32
    return %c0_i32, %arg1 : i32, i32
  }
  func.func @transform_2(%arg0: i32, %arg1: i32) -> (i32, i32) {
    %c0_i32 = arith.constant 0 : i32
    %c0_i32_0 = arith.constant 0 : i32
    return %c0_i32, %arg1 : i32, i32
  }
  func.func @transform_3(%arg0: i32, %arg1: i32) -> (i32, i32) {
    %c0_i32 = arith.constant 0 : i32
    return %arg0, %arg1 : i32, i32
  }
}

module attributes {stable_mosaic.version = 11 : i64} {
  func.func @_mm_single_k_kernel(%arg0: i32, %arg1: i32, %arg2: memref<32x2048xbf16, #tpu.memory_space<vmem>>, %arg3: memref<2048x128xbf16, #tpu.memory_space<vmem>>, %arg4: memref<1x128xf32, #tpu.memory_space<vmem>>, %arg5: memref<32x128xbf16, #tpu.memory_space<vmem>>) attributes {dimension_semantics = [#tpu.dimension_semantics<parallel>, #tpu.dimension_semantics<parallel>], iteration_bounds = array<i64: 1, 1>, scalar_prefetch = 0 : i64, scratch_operands = 0 : i64, tpu.core_type = #tpu.core_type<tc>, window_params = [{transform_indices = @transform_0, window_bounds = array<i64: 32, 2048>}, {transform_indices = @transform_1, window_bounds = array<i64: 2048, 128>}, {transform_indices = @transform_2, window_bounds = array<i64: 1, 128>}, {transform_indices = @transform_3, window_bounds = array<i64: 32, 128>}]} {
    %c0 = arith.constant 0 : index
    %c0_0 = arith.constant 0 : index
    %0 = vector.load %arg2[%c0, %c0_0] : memref<32x2048xbf16, #tpu.memory_space<vmem>>, vector<32x2048xbf16>
    %c0_1 = arith.constant 0 : index
    %c0_2 = arith.constant 0 : index
    %1 = vector.load %arg3[%c0_1, %c0_2] : memref<2048x128xbf16, #tpu.memory_space<vmem>>, vector<2048x128xbf16>
    %cst = arith.constant dense<0.000000e+00> : vector<32x128xf32>
    %2 = tpu.matmul %0, %1, %cst {dimension_numbers = #tpu.dot_dimension_numbers<[1], [0], [0], [1], [0, 0, 1, 1], [], []>} : vector<32x2048xbf16>, vector<2048x128xbf16>, vector<32x128xf32> -> vector<32x128xf32>
    %c0_3 = arith.constant 0 : index
    %c0_4 = arith.constant 0 : index
    %3 = vector.load %arg4[%c0_3, %c0_4] : memref<1x128xf32, #tpu.memory_space<vmem>>, vector<1x128xf32>
    %4 = vector.broadcast %3 : vector<1x128xf32> to vector<32x128xf32>
    %5 = arith.addf %2, %4 : vector<32x128xf32>
    %cst_5 = arith.constant 0.000000e+00 : f32
    %6 = vector.broadcast %cst_5 : f32 to vector<32x128xf32>
    %7 = arith.maximumf %5, %6 : vector<32x128xf32>
    %8 = arith.truncf %7 : vector<32x128xf32> to vector<32x128xbf16>
    %c0_6 = arith.constant 0 : index
    %c0_7 = arith.constant 0 : index
    %9 = vector.load %arg5[%c0_6, %c0_7] : memref<32x128xbf16, #tpu.memory_space<vmem>>, vector<32x128xbf16>
    tpu.vector_store %arg5[%c0_6, %c0_7], %8 {strides = array<i32>} : memref<32x128xbf16, #tpu.memory_space<vmem>>, vector<32x128xbf16>,
    return
  }
  func.func @transform_0(%arg0: i32, %arg1: i32) -> (i32, i32) {
    %c0_i32 = arith.constant 0 : i32
    %c0_i32_0 = arith.constant 0 : i32
    return %arg0, %c0_i32 : i32, i32
  }
  func.func @transform_1(%arg0: i32, %arg1: i32) -> (i32, i32) {
    %c0_i32 = arith.constant 0 : i32
    %c0_i32_0 = arith.constant 0 : i32
    return %c0_i32, %arg1 : i32, i32
  }
  func.func @transform_2(%arg0: i32, %arg1: i32) -> (i32, i32) {
    %c0_i32 = arith.constant 0 : i32
    %c0_i32_0 = arith.constant 0 : i32
    return %c0_i32, %arg1 : i32, i32
  }
  func.func @transform_3(%arg0: i32, %arg1: i32) -> (i32, i32) {
    %c0_i32 = arith.constant 0 : i32
    return %arg0, %arg1 : i32, i32
  }
}

module attributes {stable_mosaic.version = 11 : i64} {
  func.func @_mm_single_k_kernel(%arg0: i32, %arg1: i32, %arg2: memref<32x1152xbf16, #tpu.memory_space<vmem>>, %arg3: memref<1152x128xbf16, #tpu.memory_space<vmem>>, %arg4: memref<1x128xf32, #tpu.memory_space<vmem>>, %arg5: memref<32x128xbf16, #tpu.memory_space<vmem>>) attributes {dimension_semantics = [#tpu.dimension_semantics<parallel>, #tpu.dimension_semantics<parallel>], iteration_bounds = array<i64: 1, 1>, scalar_prefetch = 0 : i64, scratch_operands = 0 : i64, tpu.core_type = #tpu.core_type<tc>, window_params = [{transform_indices = @transform_0, window_bounds = array<i64: 32, 1152>}, {transform_indices = @transform_1, window_bounds = array<i64: 1152, 128>}, {transform_indices = @transform_2, window_bounds = array<i64: 1, 128>}, {transform_indices = @transform_3, window_bounds = array<i64: 32, 128>}]} {
    %c0 = arith.constant 0 : index
    %c0_0 = arith.constant 0 : index
    %0 = vector.load %arg2[%c0, %c0_0] : memref<32x1152xbf16, #tpu.memory_space<vmem>>, vector<32x1152xbf16>
    %c0_1 = arith.constant 0 : index
    %c0_2 = arith.constant 0 : index
    %1 = vector.load %arg3[%c0_1, %c0_2] : memref<1152x128xbf16, #tpu.memory_space<vmem>>, vector<1152x128xbf16>
    %cst = arith.constant dense<0.000000e+00> : vector<32x128xf32>
    %2 = tpu.matmul %0, %1, %cst {dimension_numbers = #tpu.dot_dimension_numbers<[1], [0], [0], [1], [0, 0, 1, 1], [], []>} : vector<32x1152xbf16>, vector<1152x128xbf16>, vector<32x128xf32> -> vector<32x128xf32>
    %c0_3 = arith.constant 0 : index
    %c0_4 = arith.constant 0 : index
    %3 = vector.load %arg4[%c0_3, %c0_4] : memref<1x128xf32, #tpu.memory_space<vmem>>, vector<1x128xf32>
    %4 = vector.broadcast %3 : vector<1x128xf32> to vector<32x128xf32>
    %5 = arith.addf %2, %4 : vector<32x128xf32>
    %6 = arith.truncf %5 : vector<32x128xf32> to vector<32x128xbf16>
    %c0_5 = arith.constant 0 : index
    %c0_6 = arith.constant 0 : index
    %7 = vector.load %arg5[%c0_5, %c0_6] : memref<32x128xbf16, #tpu.memory_space<vmem>>, vector<32x128xbf16>
    tpu.vector_store %arg5[%c0_5, %c0_6], %6 {strides = array<i32>} : memref<32x128xbf16, #tpu.memory_space<vmem>>, vector<32x128xbf16>,
    return
  }
  func.func @transform_0(%arg0: i32, %arg1: i32) -> (i32, i32) {
    %c0_i32 = arith.constant 0 : i32
    %c0_i32_0 = arith.constant 0 : i32
    return %arg0, %c0_i32 : i32, i32
  }
  func.func @transform_1(%arg0: i32, %arg1: i32) -> (i32, i32) {
    %c0_i32 = arith.constant 0 : i32
    %c0_i32_0 = arith.constant 0 : i32
    return %c0_i32, %arg1 : i32, i32
  }
  func.func @transform_2(%arg0: i32, %arg1: i32) -> (i32, i32) {
    %c0_i32 = arith.constant 0 : i32
    %c0_i32_0 = arith.constant 0 : i32
    return %c0_i32, %arg1 : i32, i32
  }
  func.func @transform_3(%arg0: i32, %arg1: i32) -> (i32, i32) {
    %c0_i32 = arith.constant 0 : i32
    return %arg0, %arg1 : i32, i32
  }
}

module attributes {stable_mosaic.version = 11 : i64} {
  func.func @_mm_single_k_kernel(%arg0: i32, %arg1: i32, %arg2: memref<32x1152xbf16, #tpu.memory_space<vmem>>, %arg3: memref<1152x128xbf16, #tpu.memory_space<vmem>>, %arg4: memref<1x128xf32, #tpu.memory_space<vmem>>, %arg5: memref<32x128xbf16, #tpu.memory_space<vmem>>) attributes {dimension_semantics = [#tpu.dimension_semantics<parallel>, #tpu.dimension_semantics<parallel>], iteration_bounds = array<i64: 1, 1>, scalar_prefetch = 0 : i64, scratch_operands = 0 : i64, tpu.core_type = #tpu.core_type<tc>, window_params = [{transform_indices = @transform_0, window_bounds = array<i64: 32, 1152>}, {transform_indices = @transform_1, window_bounds = array<i64: 1152, 128>}, {transform_indices = @transform_2, window_bounds = array<i64: 1, 128>}, {transform_indices = @transform_3, window_bounds = array<i64: 32, 128>}]} {
    %c0 = arith.constant 0 : index
    %c0_0 = arith.constant 0 : index
    %0 = vector.load %arg2[%c0, %c0_0] : memref<32x1152xbf16, #tpu.memory_space<vmem>>, vector<32x1152xbf16>
    %c0_1 = arith.constant 0 : index
    %c0_2 = arith.constant 0 : index
    %1 = vector.load %arg3[%c0_1, %c0_2] : memref<1152x128xbf16, #tpu.memory_space<vmem>>, vector<1152x128xbf16>
    %cst = arith.constant dense<0.000000e+00> : vector<32x128xf32>
    %2 = tpu.matmul %0, %1, %cst {dimension_numbers = #tpu.dot_dimension_numbers<[1], [0], [0], [1], [0, 0, 1, 1], [], []>} : vector<32x1152xbf16>, vector<1152x128xbf16>, vector<32x128xf32> -> vector<32x128xf32>
    %c0_3 = arith.constant 0 : index
    %c0_4 = arith.constant 0 : index
    %3 = vector.load %arg4[%c0_3, %c0_4] : memref<1x128xf32, #tpu.memory_space<vmem>>, vector<1x128xf32>
    %4 = vector.broadcast %3 : vector<1x128xf32> to vector<32x128xf32>
    %5 = arith.addf %2, %4 : vector<32x128xf32>
    %cst_5 = arith.constant 0.000000e+00 : f32
    %6 = vector.broadcast %cst_5 : f32 to vector<32x128xf32>
    %7 = arith.maximumf %5, %6 : vector<32x128xf32>
    %8 = arith.truncf %7 : vector<32x128xf32> to vector<32x128xbf16>
    %c0_6 = arith.constant 0 : index
    %c0_7 = arith.constant 0 : index
    %9 = vector.load %arg5[%c0_6, %c0_7] : memref<32x128xbf16, #tpu.memory_space<vmem>>, vector<32x128xbf16>
    tpu.vector_store %arg5[%c0_6, %c0_7], %8 {strides = array<i32>} : memref<32x128xbf16, #tpu.memory_space<vmem>>, vector<32x128xbf16>,
    return
  }
  func.func @transform_0(%arg0: i32, %arg1: i32) -> (i32, i32) {
    %c0_i32 = arith.constant 0 : i32
    %c0_i32_0 = arith.constant 0 : i32
    return %arg0, %c0_i32 : i32, i32
  }
  func.func @transform_1(%arg0: i32, %arg1: i32) -> (i32, i32) {
    %c0_i32 = arith.constant 0 : i32
    %c0_i32_0 = arith.constant 0 : i32
    return %c0_i32, %arg1 : i32, i32
  }
  func.func @transform_2(%arg0: i32, %arg1: i32) -> (i32, i32) {
    %c0_i32 = arith.constant 0 : i32
    %c0_i32_0 = arith.constant 0 : i32
    return %c0_i32, %arg1 : i32, i32
  }
  func.func @transform_3(%arg0: i32, %arg1: i32) -> (i32, i32) {
    %c0_i32 = arith.constant 0 : i32
    return %arg0, %arg1 : i32, i32
  }
}

module attributes {stable_mosaic.version = 11 : i64} {
  func.func @_mm_single_k_kernel(%arg0: i32, %arg1: i32, %arg2: memref<32x128xbf16, #tpu.memory_space<vmem>>, %arg3: memref<128x128xbf16, #tpu.memory_space<vmem>>, %arg4: memref<1x128xf32, #tpu.memory_space<vmem>>, %arg5: memref<32x128xbf16, #tpu.memory_space<vmem>>, %arg6: memref<32x128xbf16, #tpu.memory_space<vmem>>) attributes {dimension_semantics = [#tpu.dimension_semantics<parallel>, #tpu.dimension_semantics<parallel>], iteration_bounds = array<i64: 1, 1>, scalar_prefetch = 0 : i64, scratch_operands = 0 : i64, tpu.core_type = #tpu.core_type<tc>, window_params = [{transform_indices = @transform_0, window_bounds = array<i64: 32, 128>}, {transform_indices = @transform_1, window_bounds = array<i64: 128, 128>}, {transform_indices = @transform_2, window_bounds = array<i64: 1, 128>}, {transform_indices = @transform_3, window_bounds = array<i64: 32, 128>}, {transform_indices = @transform_4, window_bounds = array<i64: 32, 128>}]} {
    %c0 = arith.constant 0 : index
    %c0_0 = arith.constant 0 : index
    %0 = vector.load %arg2[%c0, %c0_0] : memref<32x128xbf16, #tpu.memory_space<vmem>>, vector<32x128xbf16>
    %c0_1 = arith.constant 0 : index
    %c0_2 = arith.constant 0 : index
    %1 = vector.load %arg3[%c0_1, %c0_2] : memref<128x128xbf16, #tpu.memory_space<vmem>>, vector<128x128xbf16>
    %cst = arith.constant dense<0.000000e+00> : vector<32x128xf32>
    %2 = tpu.matmul %0, %1, %cst {dimension_numbers = #tpu.dot_dimension_numbers<[1], [0], [0], [1], [0, 0, 1, 1], [], []>} : vector<32x128xbf16>, vector<128x128xbf16>, vector<32x128xf32> -> vector<32x128xf32>
    %c0_3 = arith.constant 0 : index
    %c0_4 = arith.constant 0 : index
    %3 = vector.load %arg4[%c0_3, %c0_4] : memref<1x128xf32, #tpu.memory_space<vmem>>, vector<1x128xf32>
    %4 = vector.broadcast %3 : vector<1x128xf32> to vector<32x128xf32>
    %5 = arith.addf %2, %4 : vector<32x128xf32>
    %c0_5 = arith.constant 0 : index
    %c0_6 = arith.constant 0 : index
    %6 = vector.load %arg5[%c0_5, %c0_6] : memref<32x128xbf16, #tpu.memory_space<vmem>>, vector<32x128xbf16>
    %7 = arith.extf %6 : vector<32x128xbf16> to vector<32x128xf32>
    %8 = arith.addf %5, %7 : vector<32x128xf32>
    %9 = arith.truncf %8 : vector<32x128xf32> to vector<32x128xbf16>
    %c0_7 = arith.constant 0 : index
    %c0_8 = arith.constant 0 : index
    %10 = vector.load %arg6[%c0_7, %c0_8] : memref<32x128xbf16, #tpu.memory_space<vmem>>, vector<32x128xbf16>
    tpu.vector_store %arg6[%c0_7, %c0_8], %9 {strides = array<i32>} : memref<32x128xbf16, #tpu.memory_space<vmem>>, vector<32x128xbf16>,
    return
  }
  func.func @transform_0(%arg0: i32, %arg1: i32) -> (i32, i32) {
    %c0_i32 = arith.constant 0 : i32
    %c0_i32_0 = arith.constant 0 : i32
    return %arg0, %c0_i32 : i32, i32
  }
  func.func @transform_1(%arg0: i32, %arg1: i32) -> (i32, i32) {
    %c0_i32 = arith.constant 0 : i32
    %c0_i32_0 = arith.constant 0 : i32
    return %c0_i32, %arg1 : i32, i32
  }
  func.func @transform_2(%arg0: i32, %arg1: i32) -> (i32, i32) {
    %c0_i32 = arith.constant 0 : i32
    %c0_i32_0 = arith.constant 0 : i32
    return %c0_i32, %arg1 : i32, i32
  }
  func.func @transform_3(%arg0: i32, %arg1: i32) -> (i32, i32) {
    %c0_i32 = arith.constant 0 : i32
    return %arg0, %arg1 : i32, i32
  }
  func.func @transform_4(%arg0: i32, %arg1: i32) -> (i32, i32) {
    %c0_i32 = arith.constant 0 : i32
    return %arg0, %arg1 : i32, i32
  }
}

module attributes {stable_mosaic.version = 11 : i64} {
  func.func @_vq_kernel(%arg0: i32, %arg1: memref<32x128xbf16, #tpu.memory_space<vmem>>, %arg2: memref<128x128xf32, #tpu.memory_space<vmem>>, %arg3: memref<1x128xf32, #tpu.memory_space<vmem>>, %arg4: memref<32x128xf32, #tpu.memory_space<vmem>>) attributes {dimension_semantics = [#tpu.dimension_semantics<parallel>], iteration_bounds = array<i64: 1>, scalar_prefetch = 0 : i64, scratch_operands = 0 : i64, tpu.core_type = #tpu.core_type<tc>, window_params = [{transform_indices = @transform_0, window_bounds = array<i64: 32, 128>}, {pipeline_mode = #tpu.pipeline_mode<synchronous>, transform_indices = @transform_1, window_bounds = array<i64: 128, 128>}, {pipeline_mode = #tpu.pipeline_mode<synchronous>, transform_indices = @transform_2, window_bounds = array<i64: 1, 128>}, {transform_indices = @transform_3, window_bounds = array<i64: 32, 128>}]} {
    %c0 = arith.constant 0 : index
    %c0_0 = arith.constant 0 : index
    %0 = vector.load %arg1[%c0, %c0_0] : memref<32x128xbf16, #tpu.memory_space<vmem>>, vector<32x128xbf16>
    %1 = arith.extf %0 : vector<32x128xbf16> to vector<32x128xf32>
    %2 = arith.mulf %1, %1 : vector<32x128xf32>
    %cst = arith.constant dense<0.000000e+00> : vector<32xf32>
    %3 = vector.multi_reduction <add>, %2, %cst [1] : vector<32x128xf32> to vector<32xf32>
    %4 = vector.shape_cast %3 : vector<32xf32> to vector<32x1xf32>
    %c0_1 = arith.constant 0 : index
    %c0_2 = arith.constant 0 : index
    %5 = vector.load %arg2[%c0_1, %c0_2] : memref<128x128xf32, #tpu.memory_space<vmem>>, vector<128x128xf32>
    %cst_3 = arith.constant dense<0.000000e+00> : vector<32x128xf32>
    %6 = tpu.matmul %1, %5, %cst_3 {dimension_numbers = #tpu.dot_dimension_numbers<[1], [1], [0], [0], [0, 0, 1, 0], [], []>} : vector<32x128xf32>, vector<128x128xf32>, vector<32x128xf32> -> vector<32x128xf32>
    %cst_4 = arith.constant 2.000000e+00 : f32
    %7 = vector.broadcast %cst_4 : f32 to vector<32x128xf32>
    %8 = arith.mulf %7, %6 : vector<32x128xf32>
    %9 = vector.broadcast %4 : vector<32x1xf32> to vector<32x128xf32>
    %10 = arith.subf %9, %8 : vector<32x128xf32>
    %c0_5 = arith.constant 0 : index
    %c0_6 = arith.constant 0 : index
    %11 = vector.load %arg3[%c0_5, %c0_6] : memref<1x128xf32, #tpu.memory_space<vmem>>, vector<1x128xf32>
    %12 = vector.broadcast %11 : vector<1x128xf32> to vector<32x128xf32>
    %13 = arith.addf %10, %12 : vector<32x128xf32>
    %14 = tpu.iota {dimensions = array<i32: 1>} : vector<32x128xi32>
    %cst_7 = arith.constant dense<0x7F800000> : vector<32xf32>
    %15 = vector.multi_reduction <minimumf>, %13, %cst_7 [1] : vector<32x128xf32> to vector<32xf32>
    %16 = vector.shape_cast %15 : vector<32xf32> to vector<32x1xf32>
    %17 = vector.broadcast %16 : vector<32x1xf32> to vector<32x128xf32>
    %18 = arith.cmpf oeq, %13, %17 : vector<32x128xf32>
    %c128_i32 = arith.constant 128 : i32
    %19 = vector.broadcast %c128_i32 : i32 to vector<32x128xi32>
    %20 = arith.select %18, %14, %19 : vector<32x128xi1>, vector<32x128xi32>
    %cst_8 = arith.constant dense<2147483647> : vector<32xi32>
    %21 = vector.multi_reduction <minsi>, %20, %cst_8 [1] : vector<32x128xi32> to vector<32xi32>
    %22 = vector.shape_cast %21 : vector<32xi32> to vector<32x1xi32>
    %23 = vector.broadcast %22 : vector<32x1xi32> to vector<32x128xi32>
    %24 = arith.cmpi eq, %14, %23 : vector<32x128xi32>
    %25 = arith.extui %24 : vector<32x128xi1> to vector<32x128xi32>
    %26 = arith.sitofp %25 : vector<32x128xi32> to vector<32x128xf32>
    %c0_9 = arith.constant 0 : index
    %c0_10 = arith.constant 0 : index
    %27 = vector.load %arg2[%c0_9, %c0_10] : memref<128x128xf32, #tpu.memory_space<vmem>>, vector<128x128xf32>
    %cst_11 = arith.constant dense<0.000000e+00> : vector<32x128xf32>
    %28 = tpu.matmul %26, %27, %cst_11 {dimension_numbers = #tpu.dot_dimension_numbers<[1], [0], [0], [1], [0, 0, 1, 1], [], []>} : vector<32x128xf32>, vector<128x128xf32>, vector<32x128xf32> -> vector<32x128xf32>
    %c0_12 = arith.constant 0 : index
    %c0_13 = arith.constant 0 : index
    %29 = vector.load %arg4[%c0_12, %c0_13] : memref<32x128xf32, #tpu.memory_space<vmem>>, vector<32x128xf32>
    tpu.vector_store %arg4[%c0_12, %c0_13], %28 {strides = array<i32>} : memref<32x128xf32, #tpu.memory_space<vmem>>, vector<32x128xf32>,
    return
  }
  func.func @transform_0(%arg0: i32) -> (i32, i32) {
    %c0_i32 = arith.constant 0 : i32
    %c0_i32_0 = arith.constant 0 : i32
    return %arg0, %c0_i32 : i32, i32
  }
  func.func @transform_1(%arg0: i32) -> (i32, i32) {
    %c0_i32 = arith.constant 0 : i32
    %c0_i32_0 = arith.constant 0 : i32
    %c0_i32_1 = arith.constant 0 : i32
    return %c0_i32, %c0_i32_0 : i32, i32
  }
  func.func @transform_2(%arg0: i32) -> (i32, i32) {
    %c0_i32 = arith.constant 0 : i32
    %c0_i32_0 = arith.constant 0 : i32
    %c0_i32_1 = arith.constant 0 : i32
    return %c0_i32, %c0_i32_0 : i32, i32
  }
  func.func @transform_3(%arg0: i32) -> (i32, i32) {
    %c0_i32 = arith.constant 0 : i32
    %c0_i32_0 = arith.constant 0 : i32
    return %arg0, %c0_i32 : i32, i32
  }
}

module attributes {stable_mosaic.version = 11 : i64} {
  func.func @_mm_single_k_kernel(%arg0: i32, %arg1: i32, %arg2: memref<32x1152xbf16, #tpu.memory_space<vmem>>, %arg3: memref<1152x256xbf16, #tpu.memory_space<vmem>>, %arg4: memref<1x256xf32, #tpu.memory_space<vmem>>, %arg5: memref<32x256xbf16, #tpu.memory_space<vmem>>) attributes {dimension_semantics = [#tpu.dimension_semantics<parallel>, #tpu.dimension_semantics<parallel>], iteration_bounds = array<i64: 1, 2>, scalar_prefetch = 0 : i64, scratch_operands = 0 : i64, tpu.core_type = #tpu.core_type<tc>, window_params = [{transform_indices = @transform_0, window_bounds = array<i64: 32, 1152>}, {transform_indices = @transform_1, window_bounds = array<i64: 1152, 256>}, {transform_indices = @transform_2, window_bounds = array<i64: 1, 256>}, {transform_indices = @transform_3, window_bounds = array<i64: 32, 256>}]} {
    %c0 = arith.constant 0 : index
    %c0_0 = arith.constant 0 : index
    %0 = vector.load %arg2[%c0, %c0_0] : memref<32x1152xbf16, #tpu.memory_space<vmem>>, vector<32x1152xbf16>
    %c0_1 = arith.constant 0 : index
    %c0_2 = arith.constant 0 : index
    %1 = vector.load %arg3[%c0_1, %c0_2] : memref<1152x256xbf16, #tpu.memory_space<vmem>>, vector<1152x256xbf16>
    %cst = arith.constant dense<0.000000e+00> : vector<32x256xf32>
    %2 = tpu.matmul %0, %1, %cst {dimension_numbers = #tpu.dot_dimension_numbers<[1], [0], [0], [1], [0, 0, 1, 1], [], []>} : vector<32x1152xbf16>, vector<1152x256xbf16>, vector<32x256xf32> -> vector<32x256xf32>
    %c0_3 = arith.constant 0 : index
    %c0_4 = arith.constant 0 : index
    %3 = vector.load %arg4[%c0_3, %c0_4] : memref<1x256xf32, #tpu.memory_space<vmem>>, vector<1x256xf32>
    %4 = vector.broadcast %3 : vector<1x256xf32> to vector<32x256xf32>
    %5 = arith.addf %2, %4 : vector<32x256xf32>
    %cst_5 = arith.constant 0.000000e+00 : f32
    %6 = vector.broadcast %cst_5 : f32 to vector<32x256xf32>
    %7 = arith.maximumf %5, %6 : vector<32x256xf32>
    %8 = arith.truncf %7 : vector<32x256xf32> to vector<32x256xbf16>
    %c0_6 = arith.constant 0 : index
    %c0_7 = arith.constant 0 : index
    %9 = vector.load %arg5[%c0_6, %c0_7] : memref<32x256xbf16, #tpu.memory_space<vmem>>, vector<32x256xbf16>
    tpu.vector_store %arg5[%c0_6, %c0_7], %8 {strides = array<i32>} : memref<32x256xbf16, #tpu.memory_space<vmem>>, vector<32x256xbf16>,
    return
  }
  func.func @transform_0(%arg0: i32, %arg1: i32) -> (i32, i32) {
    %c0_i32 = arith.constant 0 : i32
    %c0_i32_0 = arith.constant 0 : i32
    return %arg0, %c0_i32 : i32, i32
  }
  func.func @transform_1(%arg0: i32, %arg1: i32) -> (i32, i32) {
    %c0_i32 = arith.constant 0 : i32
    %c0_i32_0 = arith.constant 0 : i32
    return %c0_i32, %arg1 : i32, i32
  }
  func.func @transform_2(%arg0: i32, %arg1: i32) -> (i32, i32) {
    %c0_i32 = arith.constant 0 : i32
    %c0_i32_0 = arith.constant 0 : i32
    return %c0_i32, %arg1 : i32, i32
  }
  func.func @transform_3(%arg0: i32, %arg1: i32) -> (i32, i32) {
    %c0_i32 = arith.constant 0 : i32
    return %arg0, %arg1 : i32, i32
  }
}

module attributes {stable_mosaic.version = 11 : i64} {
  func.func @_mm_single_k_kernel(%arg0: i32, %arg1: i32, %arg2: memref<128x1152xbf16, #tpu.memory_space<vmem>>, %arg3: memref<1152x256xbf16, #tpu.memory_space<vmem>>, %arg4: memref<1x256xf32, #tpu.memory_space<vmem>>, %arg5: memref<128x256xbf16, #tpu.memory_space<vmem>>) attributes {dimension_semantics = [#tpu.dimension_semantics<parallel>, #tpu.dimension_semantics<parallel>], iteration_bounds = array<i64: 1, 2>, scalar_prefetch = 0 : i64, scratch_operands = 0 : i64, tpu.core_type = #tpu.core_type<tc>, window_params = [{transform_indices = @transform_0, window_bounds = array<i64: 128, 1152>}, {transform_indices = @transform_1, window_bounds = array<i64: 1152, 256>}, {transform_indices = @transform_2, window_bounds = array<i64: 1, 256>}, {transform_indices = @transform_3, window_bounds = array<i64: 128, 256>}]} {
    %c0 = arith.constant 0 : index
    %c0_0 = arith.constant 0 : index
    %0 = vector.load %arg2[%c0, %c0_0] : memref<128x1152xbf16, #tpu.memory_space<vmem>>, vector<128x1152xbf16>
    %c0_1 = arith.constant 0 : index
    %c0_2 = arith.constant 0 : index
    %1 = vector.load %arg3[%c0_1, %c0_2] : memref<1152x256xbf16, #tpu.memory_space<vmem>>, vector<1152x256xbf16>
    %cst = arith.constant dense<0.000000e+00> : vector<128x256xf32>
    %2 = tpu.matmul %0, %1, %cst {dimension_numbers = #tpu.dot_dimension_numbers<[1], [0], [0], [1], [0, 0, 1, 1], [], []>} : vector<128x1152xbf16>, vector<1152x256xbf16>, vector<128x256xf32> -> vector<128x256xf32>
    %c0_3 = arith.constant 0 : index
    %c0_4 = arith.constant 0 : index
    %3 = vector.load %arg4[%c0_3, %c0_4] : memref<1x256xf32, #tpu.memory_space<vmem>>, vector<1x256xf32>
    %4 = vector.broadcast %3 : vector<1x256xf32> to vector<128x256xf32>
    %5 = arith.addf %2, %4 : vector<128x256xf32>
    %6 = arith.truncf %5 : vector<128x256xf32> to vector<128x256xbf16>
    %c0_5 = arith.constant 0 : index
    %c0_6 = arith.constant 0 : index
    %7 = vector.load %arg5[%c0_5, %c0_6] : memref<128x256xbf16, #tpu.memory_space<vmem>>, vector<128x256xbf16>
    tpu.vector_store %arg5[%c0_5, %c0_6], %6 {strides = array<i32>} : memref<128x256xbf16, #tpu.memory_space<vmem>>, vector<128x256xbf16>,
    return
  }
  func.func @transform_0(%arg0: i32, %arg1: i32) -> (i32, i32) {
    %c0_i32 = arith.constant 0 : i32
    %c0_i32_0 = arith.constant 0 : i32
    return %arg0, %c0_i32 : i32, i32
  }
  func.func @transform_1(%arg0: i32, %arg1: i32) -> (i32, i32) {
    %c0_i32 = arith.constant 0 : i32
    %c0_i32_0 = arith.constant 0 : i32
    return %c0_i32, %arg1 : i32, i32
  }
  func.func @transform_2(%arg0: i32, %arg1: i32) -> (i32, i32) {
    %c0_i32 = arith.constant 0 : i32
    %c0_i32_0 = arith.constant 0 : i32
    return %c0_i32, %arg1 : i32, i32
  }
  func.func @transform_3(%arg0: i32, %arg1: i32) -> (i32, i32) {
    %c0_i32 = arith.constant 0 : i32
    return %arg0, %arg1 : i32, i32
  }
}

</mosaic_0001>

<llo_original>
// kernel: vqvae_forward.15
$region0: #{vqvae_forward.15}
  #allocation0 [shape = 'u32[]', space=smem, size = 0x4, offset = 0x4, fixed_abs, tag = 'smem constant byte address 0x4 - core index']
  #allocation1 [shape = 'u32[144,128]{1,0:T(1,128)}', space=vmem, size = 0x12000, scoped, tag = 'internal scratch']
  %s0 = inlined_call_operand.vmem [shape: bf16[128,128], index: 0, kind: input, shape index: {}]
  %s1 = inlined_call_operand.vmem [shape: bf16[128,128], index: 1, kind: input, shape index: {}]
  %s2 = inlined_call_operand.vmem [shape: f32[1,128], index: 2, kind: input, shape index: {}]
  %s3 = inlined_call_operand.vmem [shape: bf16[128,128], index: 3, kind: output, shape index: {}]
  %s4 = sld [smem:[#allocation0]]
  $region22: #{vqvae_forward.15} parent=0
    _
  %s6 = ssub.s32 1, %s4
  %s7 = scalar_select 0, %s6, %s4
  // Predicated region
  $region2: #{vqvae_forward.15} parent=0 // pred_check
    _
  $region3: #{vqvae_forward.15} parent=0 // pred_check_branch
    %9 = sbr.rel (0) target = $region5
  $region4: #{vqvae_forward.15} parent=0 // pred_region
    _
  $region5: #{vqvae_forward.15} parent=0 // pred_fallthru
    _
  // Predicated region
  $region6: #{vqvae_forward.15} parent=0 // pred_check
    _
  $region7: #{vqvae_forward.15} parent=0 // pred_check_branch
    %11 = sbr.rel (0) target = $region9
  $region8: #{vqvae_forward.15} parent=0 // pred_region
    _
  $region9: #{vqvae_forward.15} parent=0 // pred_fallthru
    _
  // Predicated region
  $region10: #{vqvae_forward.15} parent=0 // pred_check
    _
  $region11: #{vqvae_forward.15} parent=0 // pred_check_branch
    %13 = sbr.rel (0) target = $region13
  $region12: #{vqvae_forward.15} parent=0 // pred_region
    _
  $region13: #{vqvae_forward.15} parent=0 // pred_fallthru
    _
  %v15 = vld [vmem:[%s0] sm:$0xf]
  %v16 = vld [vmem:[%s0 + $0x4] sm:$0xf]
  %v17 = vld [vmem:[%s0 + $0x8] sm:$0xf]
  %v18 = vld [vmem:[%s0 + $0xc] sm:$0xf]
  %v19 = vld [vmem:[%s0 + $0x10] sm:$0xf]
  %v20 = vld [vmem:[%s0 + $0x14] sm:$0xf]
  %v21 = vld [vmem:[%s0 + $0x18] sm:$0xf]
  %v22 = vld [vmem:[%s0 + $0x1c] sm:$0xf]
  %v23 = vld [vmem:[%s0 + $0x20] sm:$0xf]
  %v24 = vld [vmem:[%s0 + $0x24] sm:$0xf]
  %v25 = vld [vmem:[%s0 + $0x28] sm:$0xf]
  %v26 = vld [vmem:[%s0 + $0x2c] sm:$0xf]
  %v27 = vld [vmem:[%s0 + $0x30] sm:$0xf]
  %v28 = vld [vmem:[%s0 + $0x34] sm:$0xf]
  %v29 = vld [vmem:[%s0 + $0x38] sm:$0xf]
  %v30 = vld [vmem:[%s0 + $0x3c] sm:$0xf]
  %v31 = vld [vmem:[%s1] sm:$0xf]
  %v32 = vld [vmem:[%s1 + $0x4] sm:$0xf]
  %v33 = vld [vmem:[%s1 + $0x8] sm:$0xf]
  %v34 = vld [vmem:[%s1 + $0xc] sm:$0xf]
  %v35 = vld [vmem:[%s1 + $0x10] sm:$0xf]
  %v36 = vld [vmem:[%s1 + $0x14] sm:$0xf]
  %v37 = vld [vmem:[%s1 + $0x18] sm:$0xf]
  %v38 = vld [vmem:[%s1 + $0x1c] sm:$0xf]
  %v39 = vld [vmem:[%s1 + $0x20] sm:$0xf]
  %v40 = vld [vmem:[%s1 + $0x24] sm:$0xf]
  %v41 = vld [vmem:[%s1 + $0x28] sm:$0xf]
  %v42 = vld [vmem:[%s1 + $0x2c] sm:$0xf]
  %v43 = vld [vmem:[%s1 + $0x30] sm:$0xf]
  %v44 = vld [vmem:[%s1 + $0x34] sm:$0xf]
  %v45 = vld [vmem:[%s1 + $0x38] sm:$0xf]
  %v46 = vld [vmem:[%s1 + $0x3c] sm:$0xf]
  %v47 = vld [vmem:[%s2] sm:$0x1]
  %v49 = vlaneseq
  %v50 = vshrl.u32 %v49, 7
  %v51 = vsub.s32 0, %v50
  %v52 = vrot.slane %v47, %v51
  %v70 = vunpack.c.l.b16 %v15
  %v71 = vunpack.c.l.b16 %v16
  %v72 = vunpack.c.l.b16 %v17
  %v73 = vunpack.c.l.b16 %v18
  %v74 = vunpack.c.l.b16 %v19
  %v75 = vunpack.c.l.b16 %v20
  %v76 = vunpack.c.l.b16 %v21
  %v77 = vunpack.c.l.b16 %v22
  %v78 = vunpack.c.l.b16 %v23
  %v79 = vunpack.c.l.b16 %v24
  %v80 = vunpack.c.l.b16 %v25
  %v81 = vunpack.c.l.b16 %v26
  %v82 = vunpack.c.l.b16 %v27
  %v83 = vunpack.c.l.b16 %v28
  %v84 = vunpack.c.l.b16 %v29
  %v85 = vunpack.c.l.b16 %v30
  %v86 = vpack.c.b16 %v71, %v70
  %v87 = vpack.c.b16 %v73, %v72
  %v88 = vpack.c.b16 %v75, %v74
  %v89 = vpack.c.b16 %v77, %v76
  %v90 = vpack.c.b16 %v79, %v78
  %v91 = vpack.c.b16 %v81, %v80
  %v92 = vpack.c.b16 %v83, %v82
  %v93 = vpack.c.b16 %v85, %v84
  %v118 = vunpack.c.l.b16 %v31
  %v119 = vunpack.c.l.b16 %v32
  %v120 = vunpack.c.l.b16 %v33
  %v121 = vunpack.c.l.b16 %v34
  %v122 = vunpack.c.l.b16 %v35
  %v123 = vunpack.c.l.b16 %v36
  %v124 = vunpack.c.l.b16 %v37
  %v125 = vunpack.c.l.b16 %v38
  %v126 = vunpack.c.l.b16 %v39
  %v127 = vunpack.c.l.b16 %v40
  %v128 = vunpack.c.l.b16 %v41
  %v129 = vunpack.c.l.b16 %v42
  %v130 = vunpack.c.l.b16 %v43
  %v131 = vunpack.c.l.b16 %v44
  %v132 = vunpack.c.l.b16 %v45
  %v133 = vunpack.c.l.b16 %v46
  %v134 = vpack.c.b16 %v119, %v118
  %v135 = vpack.c.b16 %v121, %v120
  %v136 = vpack.c.b16 %v123, %v122
  %v137 = vpack.c.b16 %v125, %v124
  %v138 = vpack.c.b16 %v127, %v126
  %v139 = vpack.c.b16 %v129, %v128
  %v140 = vpack.c.b16 %v131, %v130
  %v141 = vpack.c.b16 %v133, %v132
  %150 = vmatprep.subr.bf16.mxu0 0
  %151 = vmatpush1.bf16.msra.mxu0 %v141
  %152 = vmatprep.subr.bf16.mxu0 0
  %153 = vmatpush1.bf16.msra.mxu0 %v140
  %154 = vmatprep.subr.bf16.mxu0 0
  %155 = vmatpush1.bf16.msra.mxu0 %v139
  %156 = vmatprep.subr.bf16.mxu0 0
  %157 = vmatpush1.bf16.msra.mxu0 %v138
  %158 = vmatprep.subr.bf16.mxu0 0
  %159 = vmatpush1.bf16.msra.mxu0 %v137
  %160 = vmatprep.subr.bf16.mxu0 0
  %161 = vmatpush1.bf16.msra.mxu0 %v136
  %162 = vmatprep.subr.bf16.mxu0 0
  %163 = vmatpush1.bf16.msra.mxu0 %v135
  %164 = vmatprep.subr.bf16.mxu0 0
  %165 = vmatpush1.bf16.msra.mxu0 %v134
  %166 = vmatprep.subr.bf16.mxu0 0
  %167 = vmatpush2.bf16.msra.mxu0 0
  %168 = vmatprep.subr.bf16.mxu0 0
  %169 = vmatpush2.bf16.msra.mxu0 0
  %170 = vmatprep.subr.bf16.mxu0 0
  %171 = vmatpush2.bf16.msra.mxu0 0
  %172 = vmatprep.subr.bf16.mxu0 0
  %173 = vmatpush2.bf16.msra.mxu0 0
  %174 = vmatprep.subr.bf16.mxu0 0
  %175 = vmatpush2.bf16.msra.mxu0 0
  %176 = vmatprep.subr.bf16.mxu0 0
  %177 = vmatpush2.bf16.msra.mxu0 0
  %178 = vmatprep.subr.bf16.mxu0 0
  %179 = vmatpush2.bf16.msra.mxu0 0
  %180 = vmatprep.subr.bf16.mxu0 0
  %181 = vmatpush2.bf16.msra.mxu0 0
  %182 = vmatprep.mubr.bf16.mxu0 0
  %183 = vmatmul.mubr.bf16.gmra.mxu0 %v86
  %v184 = vpop.f32.mrf.mxu0
  %v185 = vadd.f32 %v52, %v184
  %v186 = vpop.f32.mrf.mxu0
  %v187 = vpop.f32.mrf.mxu0
  %v188 = vadd.f32 %v52, %v187
  %v189 = vpop.f32.mrf.mxu0
  %190 = vmatprep.mubr.bf16.mxu0 0
  %191 = vmatmul.mubr.bf16.gmra.mxu0 %v87
  %v192 = vpop.f32.mrf.mxu0
  %v193 = vadd.f32 %v52, %v192
  %v194 = vpop.f32.mrf.mxu0
  %v195 = vpop.f32.mrf.mxu0
  %v196 = vadd.f32 %v52, %v195
  %v197 = vpop.f32.mrf.mxu0
  %198 = vmatprep.mubr.bf16.mxu0 0
  %199 = vmatmul.mubr.bf16.gmra.mxu0 %v88
  %v200 = vpop.f32.mrf.mxu0
  %v201 = vadd.f32 %v52, %v200
  %v202 = vpop.f32.mrf.mxu0
  %v203 = vpop.f32.mrf.mxu0
  %v204 = vadd.f32 %v52, %v203
  %v205 = vpop.f32.mrf.mxu0
  %206 = vmatprep.mubr.bf16.mxu0 0
  %207 = vmatmul.mubr.bf16.gmra.mxu0 %v89
  %v208 = vpop.f32.mrf.mxu0
  %v209 = vadd.f32 %v52, %v208
  %v210 = vpop.f32.mrf.mxu0
  %v211 = vpop.f32.mrf.mxu0
  %v212 = vadd.f32 %v52, %v211
  %v213 = vpop.f32.mrf.mxu0
  %214 = vmatprep.mubr.bf16.mxu0 0
  %215 = vmatmul.mubr.bf16.gmra.mxu0 %v90
  %v216 = vpop.f32.mrf.mxu0
  %v217 = vadd.f32 %v52, %v216
  %v218 = vpop.f32.mrf.mxu0
  %v219 = vpop.f32.mrf.mxu0
  %v220 = vadd.f32 %v52, %v219
  %v221 = vpop.f32.mrf.mxu0
  %222 = vmatprep.mubr.bf16.mxu0 0
  %223 = vmatmul.mubr.bf16.gmra.mxu0 %v91
  %v224 = vpop.f32.mrf.mxu0
  %v225 = vadd.f32 %v52, %v224
  %v226 = vpop.f32.mrf.mxu0
  %v227 = vpop.f32.mrf.mxu0
  %v228 = vadd.f32 %v52, %v227
  %v229 = vpop.f32.mrf.mxu0
  %230 = vmatprep.mubr.bf16.mxu0 0
  %231 = vmatmul.mubr.bf16.gmra.mxu0 %v92
  %v232 = vpop.f32.mrf.mxu0
  %v233 = vadd.f32 %v52, %v232
  %v234 = vpop.f32.mrf.mxu0
  %v235 = vpop.f32.mrf.mxu0
  %v236 = vadd.f32 %v52, %v235
  %v237 = vpop.f32.mrf.mxu0
  %238 = vmatprep.mubr.bf16.mxu0 0
  %239 = vmatmul.mubr.bf16.gmra.mxu0 %v93
  %v240 = vpop.f32.mrf.mxu0
  %v241 = vadd.f32 %v52, %v240
  %v242 = vpop.f32.mrf.mxu0
  %v243 = vpop.f32.mrf.mxu0
  %v244 = vadd.f32 %v52, %v243
  %v245 = vpop.f32.mrf.mxu0
  %246 = vdwg.mxu0
  %v247 = vmax.f32 %v185, 0.0
  %v248 = vmax.f32 %v188, 0.0
  %v249 = vmax.f32 %v193, 0.0
  %v250 = vmax.f32 %v196, 0.0
  %v251 = vmax.f32 %v201, 0.0
  %v252 = vmax.f32 %v204, 0.0
  %v253 = vmax.f32 %v209, 0.0
  %v254 = vmax.f32 %v212, 0.0
  %v255 = vmax.f32 %v217, 0.0
  %v256 = vmax.f32 %v220, 0.0
  %v257 = vmax.f32 %v225, 0.0
  %v258 = vmax.f32 %v228, 0.0
  %v259 = vmax.f32 %v233, 0.0
  %v260 = vmax.f32 %v236, 0.0
  %v261 = vmax.f32 %v241, 0.0
  %v262 = vmax.f32 %v244, 0.0
  %v263 = vpack.c.bf16 %v248, %v247
  %v264 = vpack.c.bf16 %v250, %v249
  %v265 = vpack.c.bf16 %v252, %v251
  %v266 = vpack.c.bf16 %v254, %v253
  %v267 = vpack.c.bf16 %v256, %v255
  %v268 = vpack.c.bf16 %v258, %v257
  %v269 = vpack.c.bf16 %v260, %v259
  %v270 = vpack.c.bf16 %v262, %v261
  %v279 = vunpack.c.l.b16 %v263
  %v280 = vunpack.c.h.b16 %v263
  %v281 = vunpack.c.l.b16 %v264
  %v282 = vunpack.c.h.b16 %v264
  %v283 = vunpack.c.l.b16 %v265
  %v284 = vunpack.c.h.b16 %v265
  %v285 = vunpack.c.l.b16 %v266
  %v286 = vunpack.c.h.b16 %v266
  %v287 = vunpack.c.l.b16 %v267
  %v288 = vunpack.c.h.b16 %v267
  %v289 = vunpack.c.l.b16 %v268
  %v290 = vunpack.c.h.b16 %v268
  %v291 = vunpack.c.l.b16 %v269
  %v292 = vunpack.c.h.b16 %v269
  %v293 = vunpack.c.l.b16 %v270
  %v294 = vunpack.c.h.b16 %v270
  %v295 = vpack.c.b16 %v279, %v279
  %v296 = vpack.c.b16 %v280, %v280
  %v297 = vpack.c.b16 %v281, %v281
  %v298 = vpack.c.b16 %v282, %v282
  %v299 = vpack.c.b16 %v283, %v283
  %v300 = vpack.c.b16 %v284, %v284
  %v301 = vpack.c.b16 %v285, %v285
  %v302 = vpack.c.b16 %v286, %v286
  %v303 = vpack.c.b16 %v287, %v287
  %v304 = vpack.c.b16 %v288, %v288
  %v305 = vpack.c.b16 %v289, %v289
  %v306 = vpack.c.b16 %v290, %v290
  %v307 = vpack.c.b16 %v291, %v291
  %v308 = vpack.c.b16 %v292, %v292
  %v309 = vpack.c.b16 %v293, %v293
  %v310 = vpack.c.b16 %v294, %v294
  %327 = vst [vmem:[%s3] sm:$0xf] %v295
  %328 = vst [vmem:[%s3 + $0x4] sm:$0xf] %v296
  %329 = vst [vmem:[%s3 + $0x8] sm:$0xf] %v297
  %330 = vst [vmem:[%s3 + $0xc] sm:$0xf] %v298
  %331 = vst [vmem:[%s3 + $0x10] sm:$0xf] %v299
  %332 = vst [vmem:[%s3 + $0x14] sm:$0xf] %v300
  %333 = vst [vmem:[%s3 + $0x18] sm:$0xf] %v301
  %334 = vst [vmem:[%s3 + $0x1c] sm:$0xf] %v302
  %335 = vst [vmem:[%s3 + $0x20] sm:$0xf] %v303
  %336 = vst [vmem:[%s3 + $0x24] sm:$0xf] %v304
  %337 = vst [vmem:[%s3 + $0x28] sm:$0xf] %v305
  %338 = vst [vmem:[%s3 + $0x2c] sm:$0xf] %v306
  %339 = vst [vmem:[%s3 + $0x30] sm:$0xf] %v307
  %340 = vst [vmem:[%s3 + $0x34] sm:$0xf] %v308
  %341 = vst [vmem:[%s3 + $0x38] sm:$0xf] %v309
  %342 = vst [vmem:[%s3 + $0x3c] sm:$0xf] %v310
  // Predicated region
  $region14: #{vqvae_forward.15} parent=0 // pred_check
    _
  $region15: #{vqvae_forward.15} parent=0 // pred_check_branch
    %344 = sbr.rel (0) target = $region17
  $region16: #{vqvae_forward.15} parent=0 // pred_region
    _
  $region17: #{vqvae_forward.15} parent=0 // pred_fallthru
    _
  // Predicated region
  $region18: #{vqvae_forward.15} parent=0 // pred_check
    _
  $region19: #{vqvae_forward.15} parent=0 // pred_check_branch
    %346 = sbr.rel (0) target = $region21
  $region20: #{vqvae_forward.15} parent=0 // pred_region
    _
  $region21: #{vqvae_forward.15} parent=0 // pred_fallthru
    _

// kernel: vqvae_forward.16
$region0: #{vqvae_forward.16}
  #allocation0 [shape = 'u32[]', space=smem, size = 0x4, offset = 0x4, fixed_abs, tag = 'smem constant byte address 0x4 - core index']
  #allocation1 [shape = 'u32[144,128]{1,0:T(1,128)}', space=vmem, size = 0x12000, scoped, tag = 'internal scratch']
  %s0 = inlined_call_operand.vmem [shape: bf16[32,2048], index: 0, kind: input, shape index: {}]
  %s1 = inlined_call_operand.vmem [shape: bf16[2048,128], index: 1, kind: input, shape index: {}]
  %s2 = inlined_call_operand.vmem [shape: f32[1,128], index: 2, kind: input, shape index: {}]
  %s3 = inlined_call_operand.vmem [shape: bf16[32,128], index: 3, kind: output, shape index: {}]
  %s4 = sld [smem:[#allocation0]]
  $region22: #{vqvae_forward.16} parent=0
    _
  %s6 = ssub.s32 1, %s4
  %s7 = scalar_select 0, %s6, %s4
  // Predicated region
  $region2: #{vqvae_forward.16} parent=0 // pred_check
    _
  $region3: #{vqvae_forward.16} parent=0 // pred_check_branch
    %9 = sbr.rel (0) target = $region5
  $region4: #{vqvae_forward.16} parent=0 // pred_region
    _
  $region5: #{vqvae_forward.16} parent=0 // pred_fallthru
    _
  // Predicated region
  $region6: #{vqvae_forward.16} parent=0 // pred_check
    _
  $region7: #{vqvae_forward.16} parent=0 // pred_check_branch
    %11 = sbr.rel (0) target = $region9
  $region8: #{vqvae_forward.16} parent=0 // pred_region
    _
  $region9: #{vqvae_forward.16} parent=0 // pred_fallthru
    _
  // Predicated region
  $region10: #{vqvae_forward.16} parent=0 // pred_check
    _
  $region11: #{vqvae_forward.16} parent=0 // pred_check_branch
    %13 = sbr.rel (0) target = $region13
  $region12: #{vqvae_forward.16} parent=0 // pred_region
    _
  $region13: #{vqvae_forward.16} parent=0 // pred_fallthru
    _
  %v15 = vld [vmem:[%s0] sm:$0xff]
  %v16 = vld [vmem:[%s0 + $0x8] sm:$0xff]
  %v17 = vld [vmem:[%s0 + $0x10] sm:$0xff]
  %v18 = vld [vmem:[%s0 + $0x18] sm:$0xff]
  %v19 = vld [vmem:[%s0 + $0x20] sm:$0xff]
  %v20 = vld [vmem:[%s0 + $0x28] sm:$0xff]
  %v21 = vld [vmem:[%s0 + $0x30] sm:$0xff]
  %v22 = vld [vmem:[%s0 + $0x38] sm:$0xff]
  %v23 = vld [vmem:[%s0 + $0x40] sm:$0xff]
  %v24 = vld [vmem:[%s0 + $0x48] sm:$0xff]
  %v25 = vld [vmem:[%s0 + $0x50] sm:$0xff]
  %v26 = vld [vmem:[%s0 + $0x58] sm:$0xff]
  %v27 = vld [vmem:[%s0 + $0x60] sm:$0xff]
  %v28 = vld [vmem:[%s0 + $0x68] sm:$0xff]
  %v29 = vld [vmem:[%s0 + $0x70] sm:$0xff]
  %v30 = vld [vmem:[%s0 + $0x78] sm:$0xff]
  %v31 = vld [vmem:[%s0 + $0x80] sm:$0xff]
  %v32 = vld [vmem:[%s0 + $0x88] sm:$0xff]
  %v33 = vld [vmem:[%s0 + $0x90] sm:$0xff]
  %v34 = vld [vmem:[%s0 + $0x98] sm:$0xff]
  %v35 = vld [vmem:[%s0 + $0xa0] sm:$0xff]
  %v36 = vld [vmem:[%s0 + $0xa8] sm:$0xff]
  %v37 = vld [vmem:[%s0 + $0xb0] sm:$0xff]
  %v38 = vld [vmem:[%s0 + $0xb8] sm:$0xff]
  %v39 = vld [vmem:[%s0 + $0xc0] sm:$0xff]
  %v40 = vld [vmem:[%s0 + $0xc8] sm:$0xff]
  %v41 = vld [vmem:[%s0 + $0xd0] sm:$0xff]
  %v42 = vld [vmem:[%s0 + $0xd8] sm:$0xff]
  %v43 = vld [vmem:[%s0 + $0xe0] sm:$0xff]
  %v44 = vld [vmem:[%s0 + $0xe8] sm:$0xff]
  %v45 = vld [vmem:[%s0 + $0xf0] sm:$0xff]
  %v46 = vld [vmem:[%s0 + $0xf8] sm:$0xff]
  %v47 = vld [vmem:[%s1] sm:$0xf]
  %v48 = vld [vmem:[%s1 + $0x4] sm:$0xf]
  %v49 = vld [vmem:[%s1 + $0x8] sm:$0xf]
  %v50 = vld [vmem:[%s1 + $0xc] sm:$0xf]
  %v51 = vld [vmem:[%s1 + $0x10] sm:$0xf]
  %v52 = vld [vmem:[%s1 + $0x14] sm:$0xf]
  %v53 = vld [vmem:[%s1 + $0x18] sm:$0xf]
  %v54 = vld [vmem:[%s1 + $0x1c] sm:$0xf]
  %v55 = vld [vmem:[%s1 + $0x20] sm:$0xf]
  %v56 = vld [vmem:[%s1 + $0x24] sm:$0xf]
  %v57 = vld [vmem:[%s1 + $0x28] sm:$0xf]
  %v58 = vld [vmem:[%s1 + $0x2c] sm:$0xf]
  %v59 = vld [vmem:[%s1 + $0x30] sm:$0xf]
  %v60 = vld [vmem:[%s1 + $0x34] sm:$0xf]
  %v61 = vld [vmem:[%s1 + $0x38] sm:$0xf]
  %v62 = vld [vmem:[%s1 + $0x3c] sm:$0xf]
  %v63 = vld [vmem:[%s1 + $0x40] sm:$0xf]
  %v64 = vld [vmem:[%s1 + $0x44] sm:$0xf]
  %v65 = vld [vmem:[%s1 + $0x48] sm:$0xf]
  %v66 = vld [vmem:[%s1 + $0x4c] sm:$0xf]
  %v67 = vld [vmem:[%s1 + $0x50] sm:$0xf]
  %v68 = vld [vmem:[%s1 + $0x54] sm:$0xf]
  %v69 = vld [vmem:[%s1 + $0x58] sm:$0xf]
  %v70 = vld [vmem:[%s1 + $0x5c] sm:$0xf]
  %v71 = vld [vmem:[%s1 + $0x60] sm:$0xf]
  %v72 = vld [vmem:[%s1 + $0x64] sm:$0xf]
  %v73 = vld [vmem:[%s1 + $0x68] sm:$0xf]
  %v74 = vld [vmem:[%s1 + $0x6c] sm:$0xf]
  %v75 = vld [vmem:[%s1 + $0x70] sm:$0xf]
  %v76 = vld [vmem:[%s1 + $0x74] sm:$0xf]
  %v77 = vld [vmem:[%s1 + $0x78] sm:$0xf]
  %v78 = vld [vmem:[%s1 + $0x7c] sm:$0xf]
  %v79 = vld [vmem:[%s1 + $0x80] sm:$0xf]
  %v80 = vld [vmem:[%s1 + $0x84] sm:$0xf]
  %v81 = vld [vmem:[%s1 + $0x88] sm:$0xf]
  %v82 = vld [vmem:[%s1 + $0x8c] sm:$0xf]
  %v83 = vld [vmem:[%s1 + $0x90] sm:$0xf]
  %v84 = vld [vmem:[%s1 + $0x94] sm:$0xf]
  %v85 = vld [vmem:[%s1 + $0x98] sm:$0xf]
  %v86 = vld [vmem:[%s1 + $0x9c] sm:$0xf]
  %v87 = vld [vmem:[%s1 + $0xa0] sm:$0xf]
  %v88 = vld [vmem:[%s1 + $0xa4] sm:$0xf]
  %v89 = vld [vmem:[%s1 + $0xa8] sm:$0xf]
  %v90 = vld [vmem:[%s1 + $0xac] sm:$0xf]
  %v91 = vld [vmem:[%s1 + $0xb0] sm:$0xf]
  %v92 = vld [vmem:[%s1 + $0xb4] sm:$0xf]
  %v93 = vld [vmem:[%s1 + $0xb8] sm:$0xf]
  %v94 = vld [vmem:[%s1 + $0xbc] sm:$0xf]
  %v95 = vld [vmem:[%s1 + $0xc0] sm:$0xf]
  %v96 = vld [vmem:[%s1 + $0xc4] sm:$0xf]
  %v97 = vld [vmem:[%s1 + $0xc8] sm:$0xf]
  %v98 = vld [vmem:[%s1 + $0xcc] sm:$0xf]
  %v99 = vld [vmem:[%s1 + $0xd0] sm:$0xf]
  %v100 = vld [vmem:[%s1 + $0xd4] sm:$0xf]
  %v101 = vld [vmem:[%s1 + $0xd8] sm:$0xf]
  %v102 = vld [vmem:[%s1 + $0xdc] sm:$0xf]
  %v103 = vld [vmem:[%s1 + $0xe0] sm:$0xf]
  %v104 = vld [vmem:[%s1 + $0xe4] sm:$0xf]
  %v105 = vld [vmem:[%s1 + $0xe8] sm:$0xf]
  %v106 = vld [vmem:[%s1 + $0xec] sm:$0xf]
  %v107 = vld [vmem:[%s1 + $0xf0] sm:$0xf]
  %v108 = vld [vmem:[%s1 + $0xf4] sm:$0xf]
  %v109 = vld [vmem:[%s1 + $0xf8] sm:$0xf]
  %v110 = vld [vmem:[%s1 + $0xfc] sm:$0xf]
  %v111 = vld [vmem:[%s1 + $0x100] sm:$0xf]
  %v112 = vld [vmem:[%s1 + $0x104] sm:$0xf]
  %v113 = vld [vmem:[%s1 + $0x108] sm:$0xf]
  %v114 = vld [vmem:[%s1 + $0x10c] sm:$0xf]
  %v115 = vld [vmem:[%s1 + $0x110] sm:$0xf]
  %v116 = vld [vmem:[%s1 + $0x114] sm:$0xf]
  %v117 = vld [vmem:[%s1 + $0x118] sm:$0xf]
  %v118 = vld [vmem:[%s1 + $0x11c] sm:$0xf]
  %v119 = vld [vmem:[%s1 + $0x120] sm:$0xf]
  %v120 = vld [vmem:[%s1 + $0x124] sm:$0xf]
  %v121 = vld [vmem:[%s1 + $0x128] sm:$0xf]
  %v122 = vld [vmem:[%s1 + $0x12c] sm:$0xf]
  %v123 = vld [vmem:[%s1 + $0x130] sm:$0xf]
  %v124 = vld [vmem:[%s1 + $0x134] sm:$0xf]
  %v125 = vld [vmem:[%s1 + $0x138] sm:$0xf]
  %v126 = vld [vmem:[%s1 + $0x13c] sm:$0xf]
  %v127 = vld [vmem:[%s1 + $0x140] sm:$0xf]
  %v128 = vld [vmem:[%s1 + $0x144] sm:$0xf]
  %v129 = vld [vmem:[%s1 + $0x148] sm:$0xf]
  %v130 = vld [vmem:[%s1 + $0x14c] sm:$0xf]
  %v131 = vld [vmem:[%s1 + $0x150] sm:$0xf]
  %v132 = vld [vmem:[%s1 + $0x154] sm:$0xf]
  %v133 = vld [vmem:[%s1 + $0x158] sm:$0xf]
  %v134 = vld [vmem:[%s1 + $0x15c] sm:$0xf]
  %v135 = vld [vmem:[%s1 + $0x160] sm:$0xf]
  %v136 = vld [vmem:[%s1 + $0x164] sm:$0xf]
  %v137 = vld [vmem:[%s1 + $0x168] sm:$0xf]
  %v138 = vld [vmem:[%s1 + $0x16c] sm:$0xf]
  %v139 = vld [vmem:[%s1 + $0x170] sm:$0xf]
  %v140 = vld [vmem:[%s1 + $0x174] sm:$0xf]
  %v141 = vld [vmem:[%s1 + $0x178] sm:$0xf]
  %v142 = vld [vmem:[%s1 + $0x17c] sm:$0xf]
  %v143 = vld [vmem:[%s1 + $0x180] sm:$0xf]
  %v144 = vld [vmem:[%s1 + $0x184] sm:$0xf]
  %v145 = vld [vmem:[%s1 + $0x188] sm:$0xf]
  %v146 = vld [vmem:[%s1 + $0x18c] sm:$0xf]
  %v147 = vld [vmem:[%s1 + $0x190] sm:$0xf]
  %v148 = vld [vmem:[%s1 + $0x194] sm:$0xf]
  %v149 = vld [vmem:[%s1 + $0x198] sm:$0xf]
  %v150 = vld [vmem:[%s1 + $0x19c] sm:$0xf]
  %v151 = vld [vmem:[%s1 + $0x1a0] sm:$0xf]
  %v152 = vld [vmem:[%s1 + $0x1a4] sm:$0xf]
  %v153 = vld [vmem:[%s1 + $0x1a8] sm:$0xf]
  %v154 = vld [vmem:[%s1 + $0x1ac] sm:$0xf]
  %v155 = vld [vmem:[%s1 + $0x1b0] sm:$0xf]
  %v156 = vld [vmem:[%s1 + $0x1b4] sm:$0xf]
  %v157 = vld [vmem:[%s1 + $0x1b8] sm:$0xf]
  %v158 = vld [vmem:[%s1 + $0x1bc] sm:$0xf]
  %v159 = vld [vmem:[%s1 + $0x1c0] sm:$0xf]
  %v160 = vld [vmem:[%s1 + $0x1c4] sm:$0xf]
  %v161 = vld [vmem:[%s1 + $0x1c8] sm:$0xf]
  %v162 = vld [vmem:[%s1 + $0x1cc] sm:$0xf]
  %v163 = vld [vmem:[%s1 + $0x1d0] sm:$0xf]
  %v164 = vld [vmem:[%s1 + $0x1d4] sm:$0xf]
  %v165 = vld [vmem:[%s1 + $0x1d8] sm:$0xf]
  %v166 = vld [vmem:[%s1 + $0x1dc] sm:$0xf]
  %v167 = vld [vmem:[%s1 + $0x1e0] sm:$0xf]
  %v168 = vld [vmem:[%s1 + $0x1e4] sm:$0xf]
  %v169 = vld [vmem:[%s1 + $0x1e8] sm:$0xf]
  %v170 = vld [vmem:[%s1 + $0x1ec] sm:$0xf]
  %v171 = vld [vmem:[%s1 + $0x1f0] sm:$0xf]
  %v172 = vld [vmem:[%s1 + $0x1f4] sm:$0xf]
  %v173 = vld [vmem:[%s1 + $0x1f8] sm:$0xf]
  %v174 = vld [vmem:[%s1 + $0x1fc] sm:$0xf]
  %v175 = vld [vmem:[%s1 + $0x200] sm:$0xf]
  %v176 = vld [vmem:[%s1 + $0x204] sm:$0xf]
  %v177 = vld [vmem:[%s1 + $0x208] sm:$0xf]
  %v178 = vld [vmem:[%s1 + $0x20c] sm:$0xf]
  %v179 = vld [vmem:[%s1 + $0x210] sm:$0xf]
  %v180 = vld [vmem:[%s1 + $0x214] sm:$0xf]
  %v181 = vld [vmem:[%s1 + $0x218] sm:$0xf]
  %v182 = vld [vmem:[%s1 + $0x21c] sm:$0xf]
  %v183 = vld [vmem:[%s1 + $0x220] sm:$0xf]
  %v184 = vld [vmem:[%s1 + $0x224] sm:$0xf]
  %v185 = vld [vmem:[%s1 + $0x228] sm:$0xf]
  %v186 = vld [vmem:[%s1 + $0x22c] sm:$0xf]
  %v187 = vld [vmem:[%s1 + $0x230] sm:$0xf]
  %v188 = vld [vmem:[%s1 + $0x234] sm:$0xf]
  %v189 = vld [vmem:[%s1 + $0x238] sm:$0xf]
  %v190 = vld [vmem:[%s1 + $0x23c] sm:$0xf]
  %v191 = vld [vmem:[%s1 + $0x240] sm:$0xf]
  %v192 = vld [vmem:[%s1 + $0x244] sm:$0xf]
  %v193 = vld [vmem:[%s1 + $0x248] sm:$0xf]
  %v194 = vld [vmem:[%s1 + $0x24c] sm:$0xf]
  %v195 = vld [vmem:[%s1 + $0x250] sm:$0xf]
  %v196 = vld [vmem:[%s1 + $0x254] sm:$0xf]
  %v197 = vld [vmem:[%s1 + $0x258] sm:$0xf]
  %v198 = vld [vmem:[%s1 + $0x25c] sm:$0xf]
  %v199 = vld [vmem:[%s1 + $0x260] sm:$0xf]
  %v200 = vld [vmem:[%s1 + $0x264] sm:$0xf]
  %v201 = vld [vmem:[%s1 + $0x268] sm:$0xf]
  %v202 = vld [vmem:[%s1 + $0x26c] sm:$0xf]
  %v203 = vld [vmem:[%s1 + $0x270] sm:$0xf]
  %v204 = vld [vmem:[%s1 + $0x274] sm:$0xf]
  %v205 = vld [vmem:[%s1 + $0x278] sm:$0xf]
  %v206 = vld [vmem:[%s1 + $0x27c] sm:$0xf]
  %v207 = vld [vmem:[%s1 + $0x280] sm:$0xf]
  %v208 = vld [vmem:[%s1 + $0x284] sm:$0xf]
  %v209 = vld [vmem:[%s1 + $0x288] sm:$0xf]
  %v210 = vld [vmem:[%s1 + $0x28c] sm:$0xf]
  %v211 = vld [vmem:[%s1 + $0x290] sm:$0xf]
  %v212 = vld [vmem:[%s1 + $0x294] sm:$0xf]
  %v213 = vld [vmem:[%s1 + $0x298] sm:$0xf]
  %v214 = vld [vmem:[%s1 + $0x29c] sm:$0xf]
  %v215 = vld [vmem:[%s1 + $0x2a0] sm:$0xf]
  %v216 = vld [vmem:[%s1 + $0x2a4] sm:$0xf]
  %v217 = vld [vmem:[%s1 + $0x2a8] sm:$0xf]
  %v218 = vld [vmem:[%s1 + $0x2ac] sm:$0xf]
  %v219 = vld [vmem:[%s1 + $0x2b0] sm:$0xf]
  %v220 = vld [vmem:[%s1 + $0x2b4] sm:$0xf]
  %v221 = vld [vmem:[%s1 + $0x2b8] sm:$0xf]
  %v222 = vld [vmem:[%s1 + $0x2bc] sm:$0xf]
  %v223 = vld [vmem:[%s1 + $0x2c0] sm:$0xf]
  %v224 = vld [vmem:[%s1 + $0x2c4] sm:$0xf]
  %v225 = vld [vmem:[%s1 + $0x2c8] sm:$0xf]
  %v226 = vld [vmem:[%s1 + $0x2cc] sm:$0xf]
  %v227 = vld [vmem:[%s1 + $0x2d0] sm:$0xf]
  %v228 = vld [vmem:[%s1 + $0x2d4] sm:$0xf]
  %v229 = vld [vmem:[%s1 + $0x2d8] sm:$0xf]
  %v230 = vld [vmem:[%s1 + $0x2dc] sm:$0xf]
  %v231 = vld [vmem:[%s1 + $0x2e0] sm:$0xf]
  %v232 = vld [vmem:[%s1 + $0x2e4] sm:$0xf]
  %v233 = vld [vmem:[%s1 + $0x2e8] sm:$0xf]
  %v234 = vld [vmem:[%s1 + $0x2ec] sm:$0xf]
  %v235 = vld [vmem:[%s1 + $0x2f0] sm:$0xf]
  %v236 = vld [vmem:[%s1 + $0x2f4] sm:$0xf]
  %v237 = vld [vmem:[%s1 + $0x2f8] sm:$0xf]
  %v238 = vld [vmem:[%s1 + $0x2fc] sm:$0xf]
  %v239 = vld [vmem:[%s1 + $0x300] sm:$0xf]
  %v240 = vld [vmem:[%s1 + $0x304] sm:$0xf]
  %v241 = vld [vmem:[%s1 + $0x308] sm:$0xf]
  %v242 = vld [vmem:[%s1 + $0x30c] sm:$0xf]
  %v243 = vld [vmem:[%s1 + $0x310] sm:$0xf]
  %v244 = vld [vmem:[%s1 + $0x314] sm:$0xf]
  %v245 = vld [vmem:[%s1 + $0x318] sm:$0xf]
  %v246 = vld [vmem:[%s1 + $0x31c] sm:$0xf]
  %v247 = vld [vmem:[%s1 + $0x320] sm:$0xf]
  %v248 = vld [vmem:[%s1 + $0x324] sm:$0xf]
  %v249 = vld [vmem:[%s1 + $0x328] sm:$0xf]
  %v250 = vld [vmem:[%s1 + $0x32c] sm:$0xf]
  %v251 = vld [vmem:[%s1 + $0x330] sm:$0xf]
  %v252 = vld [vmem:[%s1 + $0x334] sm:$0xf]
  %v253 = vld [vmem:[%s1 + $0x338] sm:$0xf]
  %v254 = vld [vmem:[%s1 + $0x33c] sm:$0xf]
  %v255 = vld [vmem:[%s1 + $0x340] sm:$0xf]
  %v256 = vld [vmem:[%s1 + $0x344] sm:$0xf]
  %v257 = vld [vmem:[%s1 + $0x348] sm:$0xf]
  %v258 = vld [vmem:[%s1 + $0x34c] sm:$0xf]
  %v259 = vld [vmem:[%s1 + $0x350] sm:$0xf]
  %v260 = vld [vmem:[%s1 + $0x354] sm:$0xf]
  %v261 = vld [vmem:[%s1 + $0x358] sm:$0xf]
  %v262 = vld [vmem:[%s1 + $0x35c] sm:$0xf]
  %v263 = vld [vmem:[%s1 + $0x360] sm:$0xf]
  %v264 = vld [vmem:[%s1 + $0x364] sm:$0xf]
  %v265 = vld [vmem:[%s1 + $0x368] sm:$0xf]
  %v266 = vld [vmem:[%s1 + $0x36c] sm:$0xf]
  %v267 = vld [vmem:[%s1 + $0x370] sm:$0xf]
  %v268 = vld [vmem:[%s1 + $0x374] sm:$0xf]
  %v269 = vld [vmem:[%s1 + $0x378] sm:$0xf]
  %v270 = vld [vmem:[%s1 + $0x37c] sm:$0xf]
  %v271 = vld [vmem:[%s1 + $0x380] sm:$0xf]
  %v272 = vld [vmem:[%s1 + $0x384] sm:$0xf]
  %v273 = vld [vmem:[%s1 + $0x388] sm:$0xf]
  %v274 = vld [vmem:[%s1 + $0x38c] sm:$0xf]
  %v275 = vld [vmem:[%s1 + $0x390] sm:$0xf]
  %v276 = vld [vmem:[%s1 + $0x394] sm:$0xf]
  %v277 = vld [vmem:[%s1 + $0x398] sm:$0xf]
  %v278 = vld [vmem:[%s1 + $0x39c] sm:$0xf]
  %v279 = vld [vmem:[%s1 + $0x3a0] sm:$0xf]
  %v280 = vld [vmem:[%s1 + $0x3a4] sm:$0xf]
  %v281 = vld [vmem:[%s1 + $0x3a8] sm:$0xf]
  %v282 = vld [vmem:[%s1 + $0x3ac] sm:$0xf]
  %v283 = vld [vmem:[%s1 + $0x3b0] sm:$0xf]
  %v284 = vld [vmem:[%s1 + $0x3b4] sm:$0xf]
  %v285 = vld [vmem:[%s1 + $0x3b8] sm:$0xf]
  %v286 = vld [vmem:[%s1 + $0x3bc] sm:$0xf]
  %v287 = vld [vmem:[%s1 + $0x3c0] sm:$0xf]
  %v288 = vld [vmem:[%s1 + $0x3c4] sm:$0xf]
  %v289 = vld [vmem:[%s1 + $0x3c8] sm:$0xf]
  %v290 = vld [vmem:[%s1 + $0x3cc] sm:$0xf]
  %v291 = vld [vmem:[%s1 + $0x3d0] sm:$0xf]
  %v292 = vld [vmem:[%s1 + $0x3d4] sm:$0xf]
  %v293 = vld [vmem:[%s1 + $0x3d8] sm:$0xf]
  %v294 = vld [vmem:[%s1 + $0x3dc] sm:$0xf]
  %v295 = vld [vmem:[%s1 + $0x3e0] sm:$0xf]
  %v296 = vld [vmem:[%s1 + $0x3e4] sm:$0xf]
  %v297 = vld [vmem:[%s1 + $0x3e8] sm:$0xf]
  %v298 = vld [vmem:[%s1 + $0x3ec] sm:$0xf]
  %v299 = vld [vmem:[%s1 + $0x3f0] sm:$0xf]
  %v300 = vld [vmem:[%s1 + $0x3f4] sm:$0xf]
  %v301 = vld [vmem:[%s1 + $0x3f8] sm:$0xf]
  %v302 = vld [vmem:[%s1 + $0x3fc] sm:$0xf]
  %v303 = vld [vmem:[%s2] sm:$0x1]
  %v305 = vlaneseq
  %v306 = vshrl.u32 %v305, 7
  %v307 = vsub.s32 0, %v306
  %v308 = vrot.slane %v303, %v307
  %v342 = vunpack.c.l.b16 %v15
  %v343 = vunpack.c.h.b16 %v15
  %v344 = vunpack.c.l.b16 %v16
  %v345 = vunpack.c.h.b16 %v16
  %v346 = vunpack.c.l.b16 %v17
  %v347 = vunpack.c.h.b16 %v17
  %v348 = vunpack.c.l.b16 %v18
  %v349 = vunpack.c.h.b16 %v18
  %v350 = vunpack.c.l.b16 %v19
  %v351 = vunpack.c.h.b16 %v19
  %v352 = vunpack.c.l.b16 %v20
  %v353 = vunpack.c.h.b16 %v20
  %v354 = vunpack.c.l.b16 %v21
  %v355 = vunpack.c.h.b16 %v21
  %v356 = vunpack.c.l.b16 %v22
  %v357 = vunpack.c.h.b16 %v22
  %v358 = vunpack.c.l.b16 %v23
  %v359 = vunpack.c.h.b16 %v23
  %v360 = vunpack.c.l.b16 %v24
  %v361 = vunpack.c.h.b16 %v24
  %v362 = vunpack.c.l.b16 %v25
  %v363 = vunpack.c.h.b16 %v25
  %v364 = vunpack.c.l.b16 %v26
  %v365 = vunpack.c.h.b16 %v26
  %v366 = vunpack.c.l.b16 %v27
  %v367 = vunpack.c.h.b16 %v27
  %v368 = vunpack.c.l.b16 %v28
  %v369 = vunpack.c.h.b16 %v28
  %v370 = vunpack.c.l.b16 %v29
  %v371 = vunpack.c.h.b16 %v29
  %v372 = vunpack.c.l.b16 %v30
  %v373 = vunpack.c.h.b16 %v30
  %v374 = vunpack.c.l.b16 %v31
  %v375 = vunpack.c.h.b16 %v31
  %v376 = vunpack.c.l.b16 %v32
  %v377 = vunpack.c.h.b16 %v32
  %v378 = vunpack.c.l.b16 %v33
  %v379 = vunpack.c.h.b16 %v33
  %v380 = vunpack.c.l.b16 %v34
  %v381 = vunpack.c.h.b16 %v34
  %v382 = vunpack.c.l.b16 %v35
  %v383 = vunpack.c.h.b16 %v35
  %v384 = vunpack.c.l.b16 %v36
  %v385 = vunpack.c.h.b16 %v36
  %v386 = vunpack.c.l.b16 %v37
  %v387 = vunpack.c.h.b16 %v37
  %v388 = vunpack.c.l.b16 %v38
  %v389 = vunpack.c.h.b16 %v38
  %v390 = vunpack.c.l.b16 %v39
  %v391 = vunpack.c.h.b16 %v39
  %v392 = vunpack.c.l.b16 %v40
  %v393 = vunpack.c.h.b16 %v40
  %v394 = vunpack.c.l.b16 %v41
  %v395 = vunpack.c.h.b16 %v41
  %v396 = vunpack.c.l.b16 %v42
  %v397 = vunpack.c.h.b16 %v42
  %v398 = vunpack.c.l.b16 %v43
  %v399 = vunpack.c.h.b16 %v43
  %v400 = vunpack.c.l.b16 %v44
  %v401 = vunpack.c.h.b16 %v44
  %v402 = vunpack.c.l.b16 %v45
  %v403 = vunpack.c.h.b16 %v45
  %v404 = vunpack.c.l.b16 %v46
  %v405 = vunpack.c.h.b16 %v46
  %v406 = vpack.c.b16 %v358, %v342
  %v407 = vpack.c.b16 %v359, %v343
  %v408 = vpack.c.b16 %v360, %v344
  %v409 = vpack.c.b16 %v361, %v345
  %v410 = vpack.c.b16 %v362, %v346
  %v411 = vpack.c.b16 %v363, %v347
  %v412 = vpack.c.b16 %v364, %v348
  %v413 = vpack.c.b16 %v365, %v349
  %v414 = vpack.c.b16 %v366, %v350
  %v415 = vpack.c.b16 %v367, %v351
  %v416 = vpack.c.b16 %v368, %v352
  %v417 = vpack.c.b16 %v369, %v353
  %v418 = vpack.c.b16 %v370, %v354
  %v419 = vpack.c.b16 %v371, %v355
  %v420 = vpack.c.b16 %v372, %v356
  %v421 = vpack.c.b16 %v373, %v357
  %v422 = vpack.c.b16 %v390, %v374
  %v423 = vpack.c.b16 %v391, %v375
  %v424 = vpack.c.b16 %v392, %v376
  %v425 = vpack.c.b16 %v393, %v377
  %v426 = vpack.c.b16 %v394, %v378
  %v427 = vpack.c.b16 %v395, %v379
  %v428 = vpack.c.b16 %v396, %v380
  %v429 = vpack.c.b16 %v397, %v381
  %v430 = vpack.c.b16 %v398, %v382
  %v431 = vpack.c.b16 %v399, %v383
  %v432 = vpack.c.b16 %v400, %v384
  %v433 = vpack.c.b16 %v401, %v385
  %v434 = vpack.c.b16 %v402, %v386
  %v435 = vpack.c.b16 %v403, %v387
  %v436 = vpack.c.b16 %v404, %v388
  %v437 = vpack.c.b16 %v405, %v389
  %v726 = vunpack.c.l.b16 %v47
  %v727 = vunpack.c.l.b16 %v48
  %v728 = vunpack.c.l.b16 %v49
  %v729 = vunpack.c.l.b16 %v50
  %v730 = vunpack.c.l.b16 %v51
  %v731 = vunpack.c.l.b16 %v52
  %v732 = vunpack.c.l.b16 %v53
  %v733 = vunpack.c.l.b16 %v54
  %v734 = vunpack.c.l.b16 %v55
  %v735 = vunpack.c.l.b16 %v56
  %v736 = vunpack.c.l.b16 %v57
  %v737 = vunpack.c.l.b16 %v58
  %v738 = vunpack.c.l.b16 %v59
  %v739 = vunpack.c.l.b16 %v60
  %v740 = vunpack.c.l.b16 %v61
  %v741 = vunpack.c.l.b16 %v62
  %v742 = vunpack.c.l.b16 %v63
  %v743 = vunpack.c.l.b16 %v64
  %v744 = vunpack.c.l.b16 %v65
  %v745 = vunpack.c.l.b16 %v66
  %v746 = vunpack.c.l.b16 %v67
  %v747 = vunpack.c.l.b16 %v68
  %v748 = vunpack.c.l.b16 %v69
  %v749 = vunpack.c.l.b16 %v70
  %v750 = vunpack.c.l.b16 %v71
  %v751 = vunpack.c.l.b16 %v72
  %v752 = vunpack.c.l.b16 %v73
  %v753 = vunpack.c.l.b16 %v74
  %v754 = vunpack.c.l.b16 %v75
  %v755 = vunpack.c.l.b16 %v76
  %v756 = vunpack.c.l.b16 %v77
  %v757 = vunpack.c.l.b16 %v78
  %v758 = vunpack.c.l.b16 %v79
  %v759 = vunpack.c.l.b16 %v80
  %v760 = vunpack.c.l.b16 %v81
  %v761 = vunpack.c.l.b16 %v82
  %v762 = vunpack.c.l.b16 %v83
  %v763 = vunpack.c.l.b16 %v84
  %v764 = vunpack.c.l.b16 %v85
  %v765 = vunpack.c.l.b16 %v86
  %v766 = vunpack.c.l.b16 %v87
  %v767 = vunpack.c.l.b16 %v88
  %v768 = vunpack.c.l.b16 %v89
  %v769 = vunpack.c.l.b16 %v90
  %v770 = vunpack.c.l.b16 %v91
  %v771 = vunpack.c.l.b16 %v92
  %v772 = vunpack.c.l.b16 %v93
  %v773 = vunpack.c.l.b16 %v94
  %v774 = vunpack.c.l.b16 %v95
  %v775 = vunpack.c.l.b16 %v96
  %v776 = vunpack.c.l.b16 %v97
  %v777 = vunpack.c.l.b16 %v98
  %v778 = vunpack.c.l.b16 %v99
  %v779 = vunpack.c.l.b16 %v100
  %v780 = vunpack.c.l.b16 %v101
  %v781 = vunpack.c.l.b16 %v102
  %v782 = vunpack.c.l.b16 %v103
  %v783 = vunpack.c.l.b16 %v104
  %v784 = vunpack.c.l.b16 %v105
  %v785 = vunpack.c.l.b16 %v106
  %v786 = vunpack.c.l.b16 %v107
  %v787 = vunpack.c.l.b16 %v108
  %v788 = vunpack.c.l.b16 %v109
  %v789 = vunpack.c.l.b16 %v110
  %v790 = vunpack.c.l.b16 %v111
  %v791 = vunpack.c.l.b16 %v112
  %v792 = vunpack.c.l.b16 %v113
  %v793 = vunpack.c.l.b16 %v114
  %v794 = vunpack.c.l.b16 %v115
  %v795 = vunpack.c.l.b16 %v116
  %v796 = vunpack.c.l.b16 %v117
  %v797 = vunpack.c.l.b16 %v118
  %v798 = vunpack.c.l.b16 %v119
  %v799 = vunpack.c.l.b16 %v120
  %v800 = vunpack.c.l.b16 %v121
  %v801 = vunpack.c.l.b16 %v122
  %v802 = vunpack.c.l.b16 %v123
  %v803 = vunpack.c.l.b16 %v124
  %v804 = vunpack.c.l.b16 %v125
  %v805 = vunpack.c.l.b16 %v126
  %v806 = vunpack.c.l.b16 %v127
  %v807 = vunpack.c.l.b16 %v128
  %v808 = vunpack.c.l.b16 %v129
  %v809 = vunpack.c.l.b16 %v130
  %v810 = vunpack.c.l.b16 %v131
  %v811 = vunpack.c.l.b16 %v132
  %v812 = vunpack.c.l.b16 %v133
  %v813 = vunpack.c.l.b16 %v134
  %v814 = vunpack.c.l.b16 %v135
  %v815 = vunpack.c.l.b16 %v136
  %v816 = vunpack.c.l.b16 %v137
  %v817 = vunpack.c.l.b16 %v138
  %v818 = vunpack.c.l.b16 %v139
  %v819 = vunpack.c.l.b16 %v140
  %v820 = vunpack.c.l.b16 %v141
  %v821 = vunpack.c.l.b16 %v142
  %v822 = vunpack.c.l.b16 %v143
  %v823 = vunpack.c.l.b16 %v144
  %v824 = vunpack.c.l.b16 %v145
  %v825 = vunpack.c.l.b16 %v146
  %v826 = vunpack.c.l.b16 %v147
  %v827 = vunpack.c.l.b16 %v148
  %v828 = vunpack.c.l.b16 %v149
  %v829 = vunpack.c.l.b16 %v150
  %v830 = vunpack.c.l.b16 %v151
  %v831 = vunpack.c.l.b16 %v152
  %v832 = vunpack.c.l.b16 %v153
  %v833 = vunpack.c.l.b16 %v154
  %v834 = vunpack.c.l.b16 %v155
  %v835 = vunpack.c.l.b16 %v156
  %v836 = vunpack.c.l.b16 %v157
  %v837 = vunpack.c.l.b16 %v158
  %v838 = vunpack.c.l.b16 %v159
  %v839 = vunpack.c.l.b16 %v160
  %v840 = vunpack.c.l.b16 %v161
  %v841 = vunpack.c.l.b16 %v162
  %v842 = vunpack.c.l.b16 %v163
  %v843 = vunpack.c.l.b16 %v164
  %v844 = vunpack.c.l.b16 %v165
  %v845 = vunpack.c.l.b16 %v166
  %v846 = vunpack.c.l.b16 %v167
  %v847 = vunpack.c.l.b16 %v168
  %v848 = vunpack.c.l.b16 %v169
  %v849 = vunpack.c.l.b16 %v170
  %v850 = vunpack.c.l.b16 %v171
  %v851 = vunpack.c.l.b16 %v172
  %v852 = vunpack.c.l.b16 %v173
  %v853 = vunpack.c.l.b16 %v174
  %v854 = vunpack.c.l.b16 %v175
  %v855 = vunpack.c.l.b16 %v176
  %v856 = vunpack.c.l.b16 %v177
  %v857 = vunpack.c.l.b16 %v178
  %v858 = vunpack.c.l.b16 %v179
  %v859 = vunpack.c.l.b16 %v180
  %v860 = vunpack.c.l.b16 %v181
  %v861 = vunpack.c.l.b16 %v182
  %v862 = vunpack.c.l.b16 %v183
  %v863 = vunpack.c.l.b16 %v184
  %v864 = vunpack.c.l.b16 %v185
  %v865 = vunpack.c.l.b16 %v186
  %v866 = vunpack.c.l.b16 %v187
  %v867 = vunpack.c.l.b16 %v188
  %v868 = vunpack.c.l.b16 %v189
  %v869 = vunpack.c.l.b16 %v190
  %v870 = vunpack.c.l.b16 %v191
  %v871 = vunpack.c.l.b16 %v192
  %v872 = vunpack.c.l.b16 %v193
  %v873 = vunpack.c.l.b16 %v194
  %v874 = vunpack.c.l.b16 %v195
  %v875 = vunpack.c.l.b16 %v196
  %v876 = vunpack.c.l.b16 %v197
  %v877 = vunpack.c.l.b16 %v198
  %v878 = vunpack.c.l.b16 %v199
  %v879 = vunpack.c.l.b16 %v200
  %v880 = vunpack.c.l.b16 %v201
  %v881 = vunpack.c.l.b16 %v202
  %v882 = vunpack.c.l.b16 %v203
  %v883 = vunpack.c.l.b16 %v204
  %v884 = vunpack.c.l.b16 %v205
  %v885 = vunpack.c.l.b16 %v206
  %v886 = vunpack.c.l.b16 %v207
  %v887 = vunpack.c.l.b16 %v208
  %v888 = vunpack.c.l.b16 %v209
  %v889 = vunpack.c.l.b16 %v210
  %v890 = vunpack.c.l.b16 %v211
  %v891 = vunpack.c.l.b16 %v212
  %v892 = vunpack.c.l.b16 %v213
  %v893 = vunpack.c.l.b16 %v214
  %v894 = vunpack.c.l.b16 %v215
  %v895 = vunpack.c.l.b16 %v216
  %v896 = vunpack.c.l.b16 %v217
  %v897 = vunpack.c.l.b16 %v218
  %v898 = vunpack.c.l.b16 %v219
  %v899 = vunpack.c.l.b16 %v220
  %v900 = vunpack.c.l.b16 %v221
  %v901 = vunpack.c.l.b16 %v222
  %v902 = vunpack.c.l.b16 %v223
  %v903 = vunpack.c.l.b16 %v224
  %v904 = vunpack.c.l.b16 %v225
  %v905 = vunpack.c.l.b16 %v226
  %v906 = vunpack.c.l.b16 %v227
  %v907 = vunpack.c.l.b16 %v228
  %v908 = vunpack.c.l.b16 %v229
  %v909 = vunpack.c.l.b16 %v230
  %v910 = vunpack.c.l.b16 %v231
  %v911 = vunpack.c.l.b16 %v232
  %v912 = vunpack.c.l.b16 %v233
  %v913 = vunpack.c.l.b16 %v234
  %v914 = vunpack.c.l.b16 %v235
  %v915 = vunpack.c.l.b16 %v236
  %v916 = vunpack.c.l.b16 %v237
  %v917 = vunpack.c.l.b16 %v238
  %v918 = vunpack.c.l.b16 %v239
  %v919 = vunpack.c.l.b16 %v240
  %v920 = vunpack.c.l.b16 %v241
  %v921 = vunpack.c.l.b16 %v242
  %v922 = vunpack.c.l.b16 %v243
  %v923 = vunpack.c.l.b16 %v244
  %v924 = vunpack.c.l.b16 %v245
  %v925 = vunpack.c.l.b16 %v246
  %v926 = vunpack.c.l.b16 %v247
  %v927 = vunpack.c.l.b16 %v248
  %v928 = vunpack.c.l.b16 %v249
  %v929 = vunpack.c.l.b16 %v250
  %v930 = vunpack.c.l.b16 %v251
  %v931 = vunpack.c.l.b16 %v252
  %v932 = vunpack.c.l.b16 %v253
  %v933 = vunpack.c.l.b16 %v254
  %v934 = vunpack.c.l.b16 %v255
  %v935 = vunpack.c.l.b16 %v256
  %v936 = vunpack.c.l.b16 %v257
  %v937 = vunpack.c.l.b16 %v258
  %v938 = vunpack.c.l.b16 %v259
  %v939 = vunpack.c.l.b16 %v260
  %v940 = vunpack.c.l.b16 %v261
  %v941 = vunpack.c.l.b16 %v262
  %v942 = vunpack.c.l.b16 %v263
  %v943 = vunpack.c.l.b16 %v264
  %v944 = vunpack.c.l.b16 %v265
  %v945 = vunpack.c.l.b16 %v266
  %v946 = vunpack.c.l.b16 %v267
  %v947 = vunpack.c.l.b16 %v268
  %v948 = vunpack.c.l.b16 %v269
  %v949 = vunpack.c.l.b16 %v270
  %v950 = vunpack.c.l.b16 %v271
  %v951 = vunpack.c.l.b16 %v272
  %v952 = vunpack.c.l.b16 %v273
  %v953 = vunpack.c.l.b16 %v274
  %v954 = vunpack.c.l.b16 %v275
  %v955 = vunpack.c.l.b16 %v276
  %v956 = vunpack.c.l.b16 %v277
  %v957 = vunpack.c.l.b16 %v278
  %v958 = vunpack.c.l.b16 %v279
  %v959 = vunpack.c.l.b16 %v280
  %v960 = vunpack.c.l.b16 %v281
  %v961 = vunpack.c.l.b16 %v282
  %v962 = vunpack.c.l.b16 %v283
  %v963 = vunpack.c.l.b16 %v284
  %v964 = vunpack.c.l.b16 %v285
  %v965 = vunpack.c.l.b16 %v286
  %v966 = vunpack.c.l.b16 %v287
  %v967 = vunpack.c.l.b16 %v288
  %v968 = vunpack.c.l.b16 %v289
  %v969 = vunpack.c.l.b16 %v290
  %v970 = vunpack.c.l.b16 %v291
  %v971 = vunpack.c.l.b16 %v292
  %v972 = vunpack.c.l.b16 %v293
  %v973 = vunpack.c.l.b16 %v294
  %v974 = vunpack.c.l.b16 %v295
  %v975 = vunpack.c.l.b16 %v296
  %v976 = vunpack.c.l.b16 %v297
  %v977 = vunpack.c.l.b16 %v298
  %v978 = vunpack.c.l.b16 %v299
  %v979 = vunpack.c.l.b16 %v300
  %v980 = vunpack.c.l.b16 %v301
  %v981 = vunpack.c.l.b16 %v302
  %v982 = vpack.c.b16 %v727, %v726
  %v983 = vpack.c.b16 %v729, %v728
  %v984 = vpack.c.b16 %v731, %v730
  %v985 = vpack.c.b16 %v733, %v732
  %v986 = vpack.c.b16 %v735, %v734
  %v987 = vpack.c.b16 %v737, %v736
  %v988 = vpack.c.b16 %v739, %v738
  %v989 = vpack.c.b16 %v741, %v740
  %v990 = vpack.c.b16 %v743, %v742
  %v991 = vpack.c.b16 %v745, %v744
  %v992 = vpack.c.b16 %v747, %v746
  %v993 = vpack.c.b16 %v749, %v748
  %v994 = vpack.c.b16 %v751, %v750
  %v995 = vpack.c.b16 %v753, %v752
  %v996 = vpack.c.b16 %v755, %v754
  %v997 = vpack.c.b16 %v757, %v756
  %v998 = vpack.c.b16 %v759, %v758
  %v999 = vpack.c.b16 %v761, %v760
  %v1000 = vpack.c.b16 %v763, %v762
  %v1001 = vpack.c.b16 %v765, %v764
  %v1002 = vpack.c.b16 %v767, %v766
  %v1003 = vpack.c.b16 %v769, %v768
  %v1004 = vpack.c.b16 %v771, %v770
  %v1005 = vpack.c.b16 %v773, %v772
  %v1006 = vpack.c.b16 %v775, %v774
  %v1007 = vpack.c.b16 %v777, %v776
  %v1008 = vpack.c.b16 %v779, %v778
  %v1009 = vpack.c.b16 %v781, %v780
  %v1010 = vpack.c.b16 %v783, %v782
  %v1011 = vpack.c.b16 %v785, %v784
  %v1012 = vpack.c.b16 %v787, %v786
  %v1013 = vpack.c.b16 %v789, %v788
  %v1014 = vpack.c.b16 %v791, %v790
  %v1015 = vpack.c.b16 %v793, %v792
  %v1016 = vpack.c.b16 %v795, %v794
  %v1017 = vpack.c.b16 %v797, %v796
  %v1018 = vpack.c.b16 %v799, %v798
  %v1019 = vpack.c.b16 %v801, %v800
  %v1020 = vpack.c.b16 %v803, %v802
  %v1021 = vpack.c.b16 %v805, %v804
  %v1022 = vpack.c.b16 %v807, %v806
  %v1023 = vpack.c.b16 %v809, %v808
  %v1024 = vpack.c.b16 %v811, %v810
  %v1025 = vpack.c.b16 %v813, %v812
  %v1026 = vpack.c.b16 %v815, %v814
  %v1027 = vpack.c.b16 %v817, %v816
  %v1028 = vpack.c.b16 %v819, %v818
  %v1029 = vpack.c.b16 %v821, %v820
  %v1030 = vpack.c.b16 %v823, %v822
  %v1031 = vpack.c.b16 %v825, %v824
  %v1032 = vpack.c.b16 %v827, %v826
  %v1033 = vpack.c.b16 %v829, %v828
  %v1034 = vpack.c.b16 %v831, %v830
  %v1035 = vpack.c.b16 %v833, %v832
  %v1036 = vpack.c.b16 %v835, %v834
  %v1037 = vpack.c.b16 %v837, %v836
  %v1038 = vpack.c.b16 %v839, %v838
  %v1039 = vpack.c.b16 %v841, %v840
  %v1040 = vpack.c.b16 %v843, %v842
  %v1041 = vpack.c.b16 %v845, %v844
  %v1042 = vpack.c.b16 %v847, %v846
  %v1043 = vpack.c.b16 %v849, %v848
  %v1044 = vpack.c.b16 %v851, %v850
  %v1045 = vpack.c.b16 %v853, %v852
  %v1046 = vpack.c.b16 %v855, %v854
  %v1047 = vpack.c.b16 %v857, %v856
  %v1048 = vpack.c.b16 %v859, %v858
  %v1049 = vpack.c.b16 %v861, %v860
  %v1050 = vpack.c.b16 %v863, %v862
  %v1051 = vpack.c.b16 %v865, %v864
  %v1052 = vpack.c.b16 %v867, %v866
  %v1053 = vpack.c.b16 %v869, %v868
  %v1054 = vpack.c.b16 %v871, %v870
  %v1055 = vpack.c.b16 %v873, %v872
  %v1056 = vpack.c.b16 %v875, %v874
  %v1057 = vpack.c.b16 %v877, %v876
  %v1058 = vpack.c.b16 %v879, %v878
  %v1059 = vpack.c.b16 %v881, %v880
  %v1060 = vpack.c.b16 %v883, %v882
  %v1061 = vpack.c.b16 %v885, %v884
  %v1062 = vpack.c.b16 %v887, %v886
  %v1063 = vpack.c.b16 %v889, %v888
  %v1064 = vpack.c.b16 %v891, %v890
  %v1065 = vpack.c.b16 %v893, %v892
  %v1066 = vpack.c.b16 %v895, %v894
  %v1067 = vpack.c.b16 %v897, %v896
  %v1068 = vpack.c.b16 %v899, %v898
  %v1069 = vpack.c.b16 %v901, %v900
  %v1070 = vpack.c.b16 %v903, %v902
  %v1071 = vpack.c.b16 %v905, %v904
  %v1072 = vpack.c.b16 %v907, %v906
  %v1073 = vpack.c.b16 %v909, %v908
  %v1074 = vpack.c.b16 %v911, %v910
  %v1075 = vpack.c.b16 %v913, %v912
  %v1076 = vpack.c.b16 %v915, %v914
  %v1077 = vpack.c.b16 %v917, %v916
  %v1078 = vpack.c.b16 %v919, %v918
  %v1079 = vpack.c.b16 %v921, %v920
  %v1080 = vpack.c.b16 %v923, %v922
  %v1081 = vpack.c.b16 %v925, %v924
  %v1082 = vpack.c.b16 %v927, %v926
  %v1083 = vpack.c.b16 %v929, %v928
  %v1084 = vpack.c.b16 %v931, %v930
  %v1085 = vpack.c.b16 %v933, %v932
  %v1086 = vpack.c.b16 %v935, %v934
  %v1087 = vpack.c.b16 %v937, %v936
  %v1088 = vpack.c.b16 %v939, %v938
  %v1089 = vpack.c.b16 %v941, %v940
  %v1090 = vpack.c.b16 %v943, %v942
  %v1091 = vpack.c.b16 %v945, %v944
  %v1092 = vpack.c.b16 %v947, %v946
  %v1093 = vpack.c.b16 %v949, %v948
  %v1094 = vpack.c.b16 %v951, %v950
  %v1095 = vpack.c.b16 %v953, %v952
  %v1096 = vpack.c.b16 %v955, %v954
  %v1097 = vpack.c.b16 %v957, %v956
  %v1098 = vpack.c.b16 %v959, %v958
  %v1099 = vpack.c.b16 %v961, %v960
  %v1100 = vpack.c.b16 %v963, %v962
  %v1101 = vpack.c.b16 %v965, %v964
  %v1102 = vpack.c.b16 %v967, %v966
  %v1103 = vpack.c.b16 %v969, %v968
  %v1104 = vpack.c.b16 %v971, %v970
  %v1105 = vpack.c.b16 %v973, %v972
  %v1106 = vpack.c.b16 %v975, %v974
  %v1107 = vpack.c.b16 %v977, %v976
  %v1108 = vpack.c.b16 %v979, %v978
  %v1109 = vpack.c.b16 %v981, %v980
  %1238 = vmatprep.subr.bf16.mxu0 0
  %1239 = vmatpush1.bf16.msra.mxu0 %v989
  %1240 = vmatprep.subr.bf16.mxu0 0
  %1241 = vmatpush1.bf16.msra.mxu0 %v988
  %1242 = vmatprep.subr.bf16.mxu0 0
  %1243 = vmatpush1.bf16.msra.mxu0 %v987
  %1244 = vmatprep.subr.bf16.mxu0 0
  %1245 = vmatpush1.bf16.msra.mxu0 %v986
  %1246 = vmatprep.subr.bf16.mxu0 0
  %1247 = vmatpush1.bf16.msra.mxu0 %v985
  %1248 = vmatprep.subr.bf16.mxu0 0
  %1249 = vmatpush1.bf16.msra.mxu0 %v984
  %1250 = vmatprep.subr.bf16.mxu0 0
  %1251 = vmatpush1.bf16.msra.mxu0 %v983
  %1252 = vmatprep.subr.bf16.mxu0 0
  %1253 = vmatpush1.bf16.msra.mxu0 %v982
  %1254 = vmatprep.subr.bf16.mxu0 0
  %1255 = vmatpush2.bf16.msra.mxu0 %v997
  %1256 = vmatprep.subr.bf16.mxu0 0
  %1257 = vmatpush2.bf16.msra.mxu0 %v996
  %1258 = vmatprep.subr.bf16.mxu0 0
  %1259 = vmatpush2.bf16.msra.mxu0 %v995
  %1260 = vmatprep.subr.bf16.mxu0 0
  %1261 = vmatpush2.bf16.msra.mxu0 %v994
  %1262 = vmatprep.subr.bf16.mxu0 0
  %1263 = vmatpush2.bf16.msra.mxu0 %v993
  %1264 = vmatprep.subr.bf16.mxu0 0
  %1265 = vmatpush2.bf16.msra.mxu0 %v992
  %1266 = vmatprep.subr.bf16.mxu0 0
  %1267 = vmatpush2.bf16.msra.mxu0 %v991
  %1268 = vmatprep.subr.bf16.mxu0 0
  %1269 = vmatpush2.bf16.msra.mxu0 %v990
  %1270 = vmatprep.mubr.bf16.mxu0 %v407
  %1271 = vmatmul.mubr.bf16.gmra.mxu0 %v406
  %v1272 = vpop.f32.mrf.mxu0
  %v1273 = vadd.f32 %v308, %v1272
  %v1274 = vpop.f32.mrf.mxu0
  %v1275 = vpop.f32.mrf.mxu0
  %v1276 = vadd.f32 %v308, %v1275
  %v1277 = vpop.f32.mrf.mxu0
  %1278 = vmatprep.mubr.bf16.mxu0 %v423
  %1279 = vmatmul.mubr.bf16.gmra.mxu0 %v422
  %v1280 = vpop.f32.mrf.mxu0
  %v1281 = vadd.f32 %v308, %v1280
  %v1282 = vpop.f32.mrf.mxu0
  %v1283 = vpop.f32.mrf.mxu0
  %v1284 = vadd.f32 %v308, %v1283
  %v1285 = vpop.f32.mrf.mxu0
  %1286 = vdwg.mxu0
  %1287 = vmatprep.subr.bf16.mxu0 0
  %1288 = vmatpush1.bf16.msra.mxu0 %v1005
  %1289 = vmatprep.subr.bf16.mxu0 0
  %1290 = vmatpush1.bf16.msra.mxu0 %v1004
  %1291 = vmatprep.subr.bf16.mxu0 0
  %1292 = vmatpush1.bf16.msra.mxu0 %v1003
  %1293 = vmatprep.subr.bf16.mxu0 0
  %1294 = vmatpush1.bf16.msra.mxu0 %v1002
  %1295 = vmatprep.subr.bf16.mxu0 0
  %1296 = vmatpush1.bf16.msra.mxu0 %v1001
  %1297 = vmatprep.subr.bf16.mxu0 0
  %1298 = vmatpush1.bf16.msra.mxu0 %v1000
  %1299 = vmatprep.subr.bf16.mxu0 0
  %1300 = vmatpush1.bf16.msra.mxu0 %v999
  %1301 = vmatprep.subr.bf16.mxu0 0
  %1302 = vmatpush1.bf16.msra.mxu0 %v998
  %1303 = vmatprep.subr.bf16.mxu0 0
  %1304 = vmatpush2.bf16.msra.mxu0 %v1013
  %1305 = vmatprep.subr.bf16.mxu0 0
  %1306 = vmatpush2.bf16.msra.mxu0 %v1012
  %1307 = vmatprep.subr.bf16.mxu0 0
  %1308 = vmatpush2.bf16.msra.mxu0 %v1011
  %1309 = vmatprep.subr.bf16.mxu0 0
  %1310 = vmatpush2.bf16.msra.mxu0 %v1010
  %1311 = vmatprep.subr.bf16.mxu0 0
  %1312 = vmatpush2.bf16.msra.mxu0 %v1009
  %1313 = vmatprep.subr.bf16.mxu0 0
  %1314 = vmatpush2.bf16.msra.mxu0 %v1008
  %1315 = vmatprep.subr.bf16.mxu0 0
  %1316 = vmatpush2.bf16.msra.mxu0 %v1007
  %1317 = vmatprep.subr.bf16.mxu0 0
  %1318 = vmatpush2.bf16.msra.mxu0 %v1006
  %1319 = vmatprep.mubr.bf16.mxu0 %v409
  %1320 = vmatmul.mubr.bf16.gmra.mxu0 %v408
  %v1321 = vpop.f32.mrf.mxu0
  %v1322 = vadd.f32 %v1273, %v1321
  %v1323 = vpop.f32.mrf.mxu0
  %v1324 = vpop.f32.mrf.mxu0
  %v1325 = vadd.f32 %v1276, %v1324
  %v1326 = vpop.f32.mrf.mxu0
  %1327 = vmatprep.mubr.bf16.mxu0 %v425
  %1328 = vmatmul.mubr.bf16.gmra.mxu0 %v424
  %v1329 = vpop.f32.mrf.mxu0
  %v1330 = vadd.f32 %v1281, %v1329
  %v1331 = vpop.f32.mrf.mxu0
  %v1332 = vpop.f32.mrf.mxu0
  %v1333 = vadd.f32 %v1284, %v1332
  %v1334 = vpop.f32.mrf.mxu0
  %1335 = vdwg.mxu0
  %1336 = vmatprep.subr.bf16.mxu0 0
  %1337 = vmatpush1.bf16.msra.mxu0 %v1021
  %1338 = vmatprep.subr.bf16.mxu0 0
  %1339 = vmatpush1.bf16.msra.mxu0 %v1020
  %1340 = vmatprep.subr.bf16.mxu0 0
  %1341 = vmatpush1.bf16.msra.mxu0 %v1019
  %1342 = vmatprep.subr.bf16.mxu0 0
  %1343 = vmatpush1.bf16.msra.mxu0 %v1018
  %1344 = vmatprep.subr.bf16.mxu0 0
  %1345 = vmatpush1.bf16.msra.mxu0 %v1017
  %1346 = vmatprep.subr.bf16.mxu0 0
  %1347 = vmatpush1.bf16.msra.mxu0 %v1016
  %1348 = vmatprep.subr.bf16.mxu0 0
  %1349 = vmatpush1.bf16.msra.mxu0 %v1015
  %1350 = vmatprep.subr.bf16.mxu0 0
  %1351 = vmatpush1.bf16.msra.mxu0 %v1014
  %1352 = vmatprep.subr.bf16.mxu0 0
  %1353 = vmatpush2.bf16.msra.mxu0 %v1029
  %1354 = vmatprep.subr.bf16.mxu0 0
  %1355 = vmatpush2.bf16.msra.mxu0 %v1028
  %1356 = vmatprep.subr.bf16.mxu0 0
  %1357 = vmatpush2.bf16.msra.mxu0 %v1027
  %1358 = vmatprep.subr.bf16.mxu0 0
  %1359 = vmatpush2.bf16.msra.mxu0 %v1026
  %1360 = vmatprep.subr.bf16.mxu0 0
  %1361 = vmatpush2.bf16.msra.mxu0 %v1025
  %1362 = vmatprep.subr.bf16.mxu0 0
  %1363 = vmatpush2.bf16.msra.mxu0 %v1024
  %1364 = vmatprep.subr.bf16.mxu0 0
  %1365 = vmatpush2.bf16.msra.mxu0 %v1023
  %1366 = vmatprep.subr.bf16.mxu0 0
  %1367 = vmatpush2.bf16.msra.mxu0 %v1022
  %1368 = vmatprep.mubr.bf16.mxu0 %v411
  %1369 = vmatmul.mubr.bf16.gmra.mxu0 %v410
  %v1370 = vpop.f32.mrf.mxu0
  %v1371 = vadd.f32 %v1322, %v1370
  %v1372 = vpop.f32.mrf.mxu0
  %v1373 = vpop.f32.mrf.mxu0
  %v1374 = vadd.f32 %v1325, %v1373
  %v1375 = vpop.f32.mrf.mxu0
  %1376 = vmatprep.mubr.bf16.mxu0 %v427
  %1377 = vmatmul.mubr.bf16.gmra.mxu0 %v426
  %v1378 = vpop.f32.mrf.mxu0
  %v1379 = vadd.f32 %v1330, %v1378
  %v1380 = vpop.f32.mrf.mxu0
  %v1381 = vpop.f32.mrf.mxu0
  %v1382 = vadd.f32 %v1333, %v1381
  %v1383 = vpop.f32.mrf.mxu0
  %1384 = vdwg.mxu0
  %1385 = vmatprep.subr.bf16.mxu0 0
  %1386 = vmatpush1.bf16.msra.mxu0 %v1037
  %1387 = vmatprep.subr.bf16.mxu0 0
  %1388 = vmatpush1.bf16.msra.mxu0 %v1036
  %1389 = vmatprep.subr.bf16.mxu0 0
  %1390 = vmatpush1.bf16.msra.mxu0 %v1035
  %1391 = vmatprep.subr.bf16.mxu0 0
  %1392 = vmatpush1.bf16.msra.mxu0 %v1034
  %1393 = vmatprep.subr.bf16.mxu0 0
  %1394 = vmatpush1.bf16.msra.mxu0 %v1033
  %1395 = vmatprep.subr.bf16.mxu0 0
  %1396 = vmatpush1.bf16.msra.mxu0 %v1032
  %1397 = vmatprep.subr.bf16.mxu0 0
  %1398 = vmatpush1.bf16.msra.mxu0 %v1031
  %1399 = vmatprep.subr.bf16.mxu0 0
  %1400 = vmatpush1.bf16.msra.mxu0 %v1030
  %1401 = vmatprep.subr.bf16.mxu0 0
  %1402 = vmatpush2.bf16.msra.mxu0 %v1045
  %1403 = vmatprep.subr.bf16.mxu0 0
  %1404 = vmatpush2.bf16.msra.mxu0 %v1044
  %1405 = vmatprep.subr.bf16.mxu0 0
  %1406 = vmatpush2.bf16.msra.mxu0 %v1043
  %1407 = vmatprep.subr.bf16.mxu0 0
  %1408 = vmatpush2.bf16.msra.mxu0 %v1042
  %1409 = vmatprep.subr.bf16.mxu0 0
  %1410 = vmatpush2.bf16.msra.mxu0 %v1041
  %1411 = vmatprep.subr.bf16.mxu0 0
  %1412 = vmatpush2.bf16.msra.mxu0 %v1040
  %1413 = vmatprep.subr.bf16.mxu0 0
  %1414 = vmatpush2.bf16.msra.mxu0 %v1039
  %1415 = vmatprep.subr.bf16.mxu0 0
  %1416 = vmatpush2.bf16.msra.mxu0 %v1038
  %1417 = vmatprep.mubr.bf16.mxu0 %v413
  %1418 = vmatmul.mubr.bf16.gmra.mxu0 %v412
  %v1419 = vpop.f32.mrf.mxu0
  %v1420 = vadd.f32 %v1371, %v1419
  %v1421 = vpop.f32.mrf.mxu0
  %v1422 = vpop.f32.mrf.mxu0
  %v1423 = vadd.f32 %v1374, %v1422
  %v1424 = vpop.f32.mrf.mxu0
  %1425 = vmatprep.mubr.bf16.mxu0 %v429
  %1426 = vmatmul.mubr.bf16.gmra.mxu0 %v428
  %v1427 = vpop.f32.mrf.mxu0
  %v1428 = vadd.f32 %v1379, %v1427
  %v1429 = vpop.f32.mrf.mxu0
  %v1430 = vpop.f32.mrf.mxu0
  %v1431 = vadd.f32 %v1382, %v1430
  %v1432 = vpop.f32.mrf.mxu0
  %1433 = vdwg.mxu0
  %1434 = vmatprep.subr.bf16.mxu0 0
  %1435 = vmatpush1.bf16.msra.mxu0 %v1053
  %1436 = vmatprep.subr.bf16.mxu0 0
  %1437 = vmatpush1.bf16.msra.mxu0 %v1052
  %1438 = vmatprep.subr.bf16.mxu0 0
  %1439 = vmatpush1.bf16.msra.mxu0 %v1051
  %1440 = vmatprep.subr.bf16.mxu0 0
  %1441 = vmatpush1.bf16.msra.mxu0 %v1050
  %1442 = vmatprep.subr.bf16.mxu0 0
  %1443 = vmatpush1.bf16.msra.mxu0 %v1049
  %1444 = vmatprep.subr.bf16.mxu0 0
  %1445 = vmatpush1.bf16.msra.mxu0 %v1048
  %1446 = vmatprep.subr.bf16.mxu0 0
  %1447 = vmatpush1.bf16.msra.mxu0 %v1047
  %1448 = vmatprep.subr.bf16.mxu0 0
  %1449 = vmatpush1.bf16.msra.mxu0 %v1046
  %1450 = vmatprep.subr.bf16.mxu0 0
  %1451 = vmatpush2.bf16.msra.mxu0 %v1061
  %1452 = vmatprep.subr.bf16.mxu0 0
  %1453 = vmatpush2.bf16.msra.mxu0 %v1060
  %1454 = vmatprep.subr.bf16.mxu0 0
  %1455 = vmatpush2.bf16.msra.mxu0 %v1059
  %1456 = vmatprep.subr.bf16.mxu0 0
  %1457 = vmatpush2.bf16.msra.mxu0 %v1058
  %1458 = vmatprep.subr.bf16.mxu0 0
  %1459 = vmatpush2.bf16.msra.mxu0 %v1057
  %1460 = vmatprep.subr.bf16.mxu0 0
  %1461 = vmatpush2.bf16.msra.mxu0 %v1056
  %1462 = vmatprep.subr.bf16.mxu0 0
  %1463 = vmatpush2.bf16.msra.mxu0 %v1055
  %1464 = vmatprep.subr.bf16.mxu0 0
  %1465 = vmatpush2.bf16.msra.mxu0 %v1054
  %1466 = vmatprep.mubr.bf16.mxu0 %v415
  %1467 = vmatmul.mubr.bf16.gmra.mxu0 %v414
  %v1468 = vpop.f32.mrf.mxu0
  %v1469 = vadd.f32 %v1420, %v1468
  %v1470 = vpop.f32.mrf.mxu0
  %v1471 = vpop.f32.mrf.mxu0
  %v1472 = vadd.f32 %v1423, %v1471
  %v1473 = vpop.f32.mrf.mxu0
  %1474 = vmatprep.mubr.bf16.mxu0 %v431
  %1475 = vmatmul.mubr.bf16.gmra.mxu0 %v430
  %v1476 = vpop.f32.mrf.mxu0
  %v1477 = vadd.f32 %v1428, %v1476
  %v1478 = vpop.f32.mrf.mxu0
  %v1479 = vpop.f32.mrf.mxu0
  %v1480 = vadd.f32 %v1431, %v1479
  %v1481 = vpop.f32.mrf.mxu0
  %1482 = vdwg.mxu0
  %1483 = vmatprep.subr.bf16.mxu0 0
  %1484 = vmatpush1.bf16.msra.mxu0 %v1069
  %1485 = vmatprep.subr.bf16.mxu0 0
  %1486 = vmatpush1.bf16.msra.mxu0 %v1068
  %1487 = vmatprep.subr.bf16.mxu0 0
  %1488 = vmatpush1.bf16.msra.mxu0 %v1067
  %1489 = vmatprep.subr.bf16.mxu0 0
  %1490 = vmatpush1.bf16.msra.mxu0 %v1066
  %1491 = vmatprep.subr.bf16.mxu0 0
  %1492 = vmatpush1.bf16.msra.mxu0 %v1065
  %1493 = vmatprep.subr.bf16.mxu0 0
  %1494 = vmatpush1.bf16.msra.mxu0 %v1064
  %1495 = vmatprep.subr.bf16.mxu0 0
  %1496 = vmatpush1.bf16.msra.mxu0 %v1063
  %1497 = vmatprep.subr.bf16.mxu0 0
  %1498 = vmatpush1.bf16.msra.mxu0 %v1062
  %1499 = vmatprep.subr.bf16.mxu0 0
  %1500 = vmatpush2.bf16.msra.mxu0 %v1077
  %1501 = vmatprep.subr.bf16.mxu0 0
  %1502 = vmatpush2.bf16.msra.mxu0 %v1076
  %1503 = vmatprep.subr.bf16.mxu0 0
  %1504 = vmatpush2.bf16.msra.mxu0 %v1075
  %1505 = vmatprep.subr.bf16.mxu0 0
  %1506 = vmatpush2.bf16.msra.mxu0 %v1074
  %1507 = vmatprep.subr.bf16.mxu0 0
  %1508 = vmatpush2.bf16.msra.mxu0 %v1073
  %1509 = vmatprep.subr.bf16.mxu0 0
  %1510 = vmatpush2.bf16.msra.mxu0 %v1072
  %1511 = vmatprep.subr.bf16.mxu0 0
  %1512 = vmatpush2.bf16.msra.mxu0 %v1071
  %1513 = vmatprep.subr.bf16.mxu0 0
  %1514 = vmatpush2.bf16.msra.mxu0 %v1070
  %1515 = vmatprep.mubr.bf16.mxu0 %v417
  %1516 = vmatmul.mubr.bf16.gmra.mxu0 %v416
  %v1517 = vpop.f32.mrf.mxu0
  %v1518 = vadd.f32 %v1469, %v1517
  %v1519 = vpop.f32.mrf.mxu0
  %v1520 = vpop.f32.mrf.mxu0
  %v1521 = vadd.f32 %v1472, %v1520
  %v1522 = vpop.f32.mrf.mxu0
  %1523 = vmatprep.mubr.bf16.mxu0 %v433
  %1524 = vmatmul.mubr.bf16.gmra.mxu0 %v432
  %v1525 = vpop.f32.mrf.mxu0
  %v1526 = vadd.f32 %v1477, %v1525
  %v1527 = vpop.f32.mrf.mxu0
  %v1528 = vpop.f32.mrf.mxu0
  %v1529 = vadd.f32 %v1480, %v1528
  %v1530 = vpop.f32.mrf.mxu0
  %1531 = vdwg.mxu0
  %1532 = vmatprep.subr.bf16.mxu0 0
  %1533 = vmatpush1.bf16.msra.mxu0 %v1085
  %1534 = vmatprep.subr.bf16.mxu0 0
  %1535 = vmatpush1.bf16.msra.mxu0 %v1084
  %1536 = vmatprep.subr.bf16.mxu0 0
  %1537 = vmatpush1.bf16.msra.mxu0 %v1083
  %1538 = vmatprep.subr.bf16.mxu0 0
  %1539 = vmatpush1.bf16.msra.mxu0 %v1082
  %1540 = vmatprep.subr.bf16.mxu0 0
  %1541 = vmatpush1.bf16.msra.mxu0 %v1081
  %1542 = vmatprep.subr.bf16.mxu0 0
  %1543 = vmatpush1.bf16.msra.mxu0 %v1080
  %1544 = vmatprep.subr.bf16.mxu0 0
  %1545 = vmatpush1.bf16.msra.mxu0 %v1079
  %1546 = vmatprep.subr.bf16.mxu0 0
  %1547 = vmatpush1.bf16.msra.mxu0 %v1078
  %1548 = vmatprep.subr.bf16.mxu0 0
  %1549 = vmatpush2.bf16.msra.mxu0 %v1093
  %1550 = vmatprep.subr.bf16.mxu0 0
  %1551 = vmatpush2.bf16.msra.mxu0 %v1092
  %1552 = vmatprep.subr.bf16.mxu0 0
  %1553 = vmatpush2.bf16.msra.mxu0 %v1091
  %1554 = vmatprep.subr.bf16.mxu0 0
  %1555 = vmatpush2.bf16.msra.mxu0 %v1090
  %1556 = vmatprep.subr.bf16.mxu0 0
  %1557 = vmatpush2.bf16.msra.mxu0 %v1089
  %1558 = vmatprep.subr.bf16.mxu0 0
  %1559 = vmatpush2.bf16.msra.mxu0 %v1088
  %1560 = vmatprep.subr.bf16.mxu0 0
  %1561 = vmatpush2.bf16.msra.mxu0 %v1087
  %1562 = vmatprep.subr.bf16.mxu0 0
  %1563 = vmatpush2.bf16.msra.mxu0 %v1086
  %1564 = vmatprep.mubr.bf16.mxu0 %v419
  %1565 = vmatmul.mubr.bf16.gmra.mxu0 %v418
  %v1566 = vpop.f32.mrf.mxu0
  %v1567 = vadd.f32 %v1518, %v1566
  %v1568 = vpop.f32.mrf.mxu0
  %v1569 = vpop.f32.mrf.mxu0
  %v1570 = vadd.f32 %v1521, %v1569
  %v1571 = vpop.f32.mrf.mxu0
  %1572 = vmatprep.mubr.bf16.mxu0 %v435
  %1573 = vmatmul.mubr.bf16.gmra.mxu0 %v434
  %v1574 = vpop.f32.mrf.mxu0
  %v1575 = vadd.f32 %v1526, %v1574
  %v1576 = vpop.f32.mrf.mxu0
  %v1577 = vpop.f32.mrf.mxu0
  %v1578 = vadd.f32 %v1529, %v1577
  %v1579 = vpop.f32.mrf.mxu0
  %1580 = vdwg.mxu0
  %1581 = vmatprep.subr.bf16.mxu0 0
  %1582 = vmatpush1.bf16.msra.mxu0 %v1101
  %1583 = vmatprep.subr.bf16.mxu0 0
  %1584 = vmatpush1.bf16.msra.mxu0 %v1100
  %1585 = vmatprep.subr.bf16.mxu0 0
  %1586 = vmatpush1.bf16.msra.mxu0 %v1099
  %1587 = vmatprep.subr.bf16.mxu0 0
  %1588 = vmatpush1.bf16.msra.mxu0 %v1098
  %1589 = vmatprep.subr.bf16.mxu0 0
  %1590 = vmatpush1.bf16.msra.mxu0 %v1097
  %1591 = vmatprep.subr.bf16.mxu0 0
  %1592 = vmatpush1.bf16.msra.mxu0 %v1096
  %1593 = vmatprep.subr.bf16.mxu0 0
  %1594 = vmatpush1.bf16.msra.mxu0 %v1095
  %1595 = vmatprep.subr.bf16.mxu0 0
  %1596 = vmatpush1.bf16.msra.mxu0 %v1094
  %1597 = vmatprep.subr.bf16.mxu0 0
  %1598 = vmatpush2.bf16.msra.mxu0 %v1109
  %1599 = vmatprep.subr.bf16.mxu0 0
  %1600 = vmatpush2.bf16.msra.mxu0 %v1108
  %1601 = vmatprep.subr.bf16.mxu0 0
  %1602 = vmatpush2.bf16.msra.mxu0 %v1107
  %1603 = vmatprep.subr.bf16.mxu0 0
  %1604 = vmatpush2.bf16.msra.mxu0 %v1106
  %1605 = vmatprep.subr.bf16.mxu0 0
  %1606 = vmatpush2.bf16.msra.mxu0 %v1105
  %1607 = vmatprep.subr.bf16.mxu0 0
  %1608 = vmatpush2.bf16.msra.mxu0 %v1104
  %1609 = vmatprep.subr.bf16.mxu0 0
  %1610 = vmatpush2.bf16.msra.mxu0 %v1103
  %1611 = vmatprep.subr.bf16.mxu0 0
  %1612 = vmatpush2.bf16.msra.mxu0 %v1102
  %1613 = vmatprep.mubr.bf16.mxu0 %v421
  %1614 = vmatmul.mubr.bf16.gmra.mxu0 %v420
  %v1615 = vpop.f32.mrf.mxu0
  %v1616 = vadd.f32 %v1567, %v1615
  %v1617 = vpop.f32.mrf.mxu0
  %v1618 = vpop.f32.mrf.mxu0
  %v1619 = vadd.f32 %v1570, %v1618
  %v1620 = vpop.f32.mrf.mxu0
  %1621 = vmatprep.mubr.bf16.mxu0 %v437
  %1622 = vmatmul.mubr.bf16.gmra.mxu0 %v436
  %v1623 = vpop.f32.mrf.mxu0
  %v1624 = vadd.f32 %v1575, %v1623
  %v1625 = vpop.f32.mrf.mxu0
  %v1626 = vpop.f32.mrf.mxu0
  %v1627 = vadd.f32 %v1578, %v1626
  %v1628 = vpop.f32.mrf.mxu0
  %1629 = vdwg.mxu0
  %v1630 = vmax.f32 %v1616, 0.0
  %v1631 = vmax.f32 %v1619, 0.0
  %v1632 = vmax.f32 %v1624, 0.0
  %v1633 = vmax.f32 %v1627, 0.0
  %v1634 = vpack.c.bf16 %v1631, %v1630
  %v1635 = vpack.c.bf16 %v1633, %v1632
  %v1638 = vunpack.c.l.b16 %v1634
  %v1639 = vunpack.c.h.b16 %v1634
  %v1640 = vunpack.c.l.b16 %v1635
  %v1641 = vunpack.c.h.b16 %v1635
  %v1642 = vpack.c.b16 %v1638, %v1638
  %v1643 = vpack.c.b16 %v1639, %v1639
  %v1644 = vpack.c.b16 %v1640, %v1640
  %v1645 = vpack.c.b16 %v1641, %v1641
  %1650 = vst [vmem:[%s3] sm:$0xf] %v1642
  %1651 = vst [vmem:[%s3 + $0x4] sm:$0xf] %v1643
  %1652 = vst [vmem:[%s3 + $0x8] sm:$0xf] %v1644
  %1653 = vst [vmem:[%s3 + $0xc] sm:$0xf] %v1645
  // Predicated region
  $region14: #{vqvae_forward.16} parent=0 // pred_check
    _
  $region15: #{vqvae_forward.16} parent=0 // pred_check_branch
    %1655 = sbr.rel (0) target = $region17
  $region16: #{vqvae_forward.16} parent=0 // pred_region
    _
  $region17: #{vqvae_forward.16} parent=0 // pred_fallthru
    _
  // Predicated region
  $region18: #{vqvae_forward.16} parent=0 // pred_check
    _
  $region19: #{vqvae_forward.16} parent=0 // pred_check_branch
    %1657 = sbr.rel (0) target = $region21
  $region20: #{vqvae_forward.16} parent=0 // pred_region
    _
  $region21: #{vqvae_forward.16} parent=0 // pred_fallthru
    _

// kernel: vqvae_forward.17
$region0: #{vqvae_forward.17}
  #allocation0 [shape = 'u32[]', space=smem, size = 0x4, offset = 0x4, fixed_abs, tag = 'smem constant byte address 0x4 - core index']
  #allocation1 [shape = 'u32[144,128]{1,0:T(1,128)}', space=vmem, size = 0x12000, scoped, tag = 'internal scratch']
  %s0 = inlined_call_operand.vmem [shape: bf16[32,1152], index: 0, kind: input, shape index: {}]
  %s1 = inlined_call_operand.vmem [shape: bf16[1152,128], index: 1, kind: input, shape index: {}]
  %s2 = inlined_call_operand.vmem [shape: f32[1,128], index: 2, kind: input, shape index: {}]
  %s3 = inlined_call_operand.vmem [shape: bf16[32,128], index: 3, kind: output, shape index: {}]
  %s4 = sld [smem:[#allocation0]]
  $region22: #{vqvae_forward.17} parent=0
    _
  %s6 = ssub.s32 1, %s4
  %s7 = scalar_select 0, %s6, %s4
  // Predicated region
  $region2: #{vqvae_forward.17} parent=0 // pred_check
    _
  $region3: #{vqvae_forward.17} parent=0 // pred_check_branch
    %9 = sbr.rel (0) target = $region5
  $region4: #{vqvae_forward.17} parent=0 // pred_region
    _
  $region5: #{vqvae_forward.17} parent=0 // pred_fallthru
    _
  // Predicated region
  $region6: #{vqvae_forward.17} parent=0 // pred_check
    _
  $region7: #{vqvae_forward.17} parent=0 // pred_check_branch
    %11 = sbr.rel (0) target = $region9
  $region8: #{vqvae_forward.17} parent=0 // pred_region
    _
  $region9: #{vqvae_forward.17} parent=0 // pred_fallthru
    _
  // Predicated region
  $region10: #{vqvae_forward.17} parent=0 // pred_check
    _
  $region11: #{vqvae_forward.17} parent=0 // pred_check_branch
    %13 = sbr.rel (0) target = $region13
  $region12: #{vqvae_forward.17} parent=0 // pred_region
    _
  $region13: #{vqvae_forward.17} parent=0 // pred_fallthru
    _
  %v15 = vld [vmem:[%s0] sm:$0xff]
  %v16 = vld [vmem:[%s0 + $0x8] sm:$0xff]
  %v17 = vld [vmem:[%s0 + $0x10] sm:$0xff]
  %v18 = vld [vmem:[%s0 + $0x18] sm:$0xff]
  %v19 = vld [vmem:[%s0 + $0x20] sm:$0xf]
  %v20 = vld [vmem:[%s0 + $0x24] sm:$0xff]
  %v21 = vld [vmem:[%s0 + $0x2c] sm:$0xff]
  %v22 = vld [vmem:[%s0 + $0x34] sm:$0xff]
  %v23 = vld [vmem:[%s0 + $0x3c] sm:$0xff]
  %v24 = vld [vmem:[%s0 + $0x44] sm:$0xf]
  %v25 = vld [vmem:[%s0 + $0x48] sm:$0xff]
  %v26 = vld [vmem:[%s0 + $0x50] sm:$0xff]
  %v27 = vld [vmem:[%s0 + $0x58] sm:$0xff]
  %v28 = vld [vmem:[%s0 + $0x60] sm:$0xff]
  %v29 = vld [vmem:[%s0 + $0x68] sm:$0xf]
  %v30 = vld [vmem:[%s0 + $0x6c] sm:$0xff]
  %v31 = vld [vmem:[%s0 + $0x74] sm:$0xff]
  %v32 = vld [vmem:[%s0 + $0x7c] sm:$0xff]
  %v33 = vld [vmem:[%s0 + $0x84] sm:$0xff]
  %v34 = vld [vmem:[%s0 + $0x8c] sm:$0xf]
  %v35 = vld [vmem:[%s1] sm:$0xf]
  %v36 = vld [vmem:[%s1 + $0x4] sm:$0xf]
  %v37 = vld [vmem:[%s1 + $0x8] sm:$0xf]
  %v38 = vld [vmem:[%s1 + $0xc] sm:$0xf]
  %v39 = vld [vmem:[%s1 + $0x10] sm:$0xf]
  %v40 = vld [vmem:[%s1 + $0x14] sm:$0xf]
  %v41 = vld [vmem:[%s1 + $0x18] sm:$0xf]
  %v42 = vld [vmem:[%s1 + $0x1c] sm:$0xf]
  %v43 = vld [vmem:[%s1 + $0x20] sm:$0xf]
  %v44 = vld [vmem:[%s1 + $0x24] sm:$0xf]
  %v45 = vld [vmem:[%s1 + $0x28] sm:$0xf]
  %v46 = vld [vmem:[%s1 + $0x2c] sm:$0xf]
  %v47 = vld [vmem:[%s1 + $0x30] sm:$0xf]
  %v48 = vld [vmem:[%s1 + $0x34] sm:$0xf]
  %v49 = vld [vmem:[%s1 + $0x38] sm:$0xf]
  %v50 = vld [vmem:[%s1 + $0x3c] sm:$0xf]
  %v51 = vld [vmem:[%s1 + $0x40] sm:$0xf]
  %v52 = vld [vmem:[%s1 + $0x44] sm:$0xf]
  %v53 = vld [vmem:[%s1 + $0x48] sm:$0xf]
  %v54 = vld [vmem:[%s1 + $0x4c] sm:$0xf]
  %v55 = vld [vmem:[%s1 + $0x50] sm:$0xf]
  %v56 = vld [vmem:[%s1 + $0x54] sm:$0xf]
  %v57 = vld [vmem:[%s1 + $0x58] sm:$0xf]
  %v58 = vld [vmem:[%s1 + $0x5c] sm:$0xf]
  %v59 = vld [vmem:[%s1 + $0x60] sm:$0xf]
  %v60 = vld [vmem:[%s1 + $0x64] sm:$0xf]
  %v61 = vld [vmem:[%s1 + $0x68] sm:$0xf]
  %v62 = vld [vmem:[%s1 + $0x6c] sm:$0xf]
  %v63 = vld [vmem:[%s1 + $0x70] sm:$0xf]
  %v64 = vld [vmem:[%s1 + $0x74] sm:$0xf]
  %v65 = vld [vmem:[%s1 + $0x78] sm:$0xf]
  %v66 = vld [vmem:[%s1 + $0x7c] sm:$0xf]
  %v67 = vld [vmem:[%s1 + $0x80] sm:$0xf]
  %v68 = vld [vmem:[%s1 + $0x84] sm:$0xf]
  %v69 = vld [vmem:[%s1 + $0x88] sm:$0xf]
  %v70 = vld [vmem:[%s1 + $0x8c] sm:$0xf]
  %v71 = vld [vmem:[%s1 + $0x90] sm:$0xf]
  %v72 = vld [vmem:[%s1 + $0x94] sm:$0xf]
  %v73 = vld [vmem:[%s1 + $0x98] sm:$0xf]
  %v74 = vld [vmem:[%s1 + $0x9c] sm:$0xf]
  %v75 = vld [vmem:[%s1 + $0xa0] sm:$0xf]
  %v76 = vld [vmem:[%s1 + $0xa4] sm:$0xf]
  %v77 = vld [vmem:[%s1 + $0xa8] sm:$0xf]
  %v78 = vld [vmem:[%s1 + $0xac] sm:$0xf]
  %v79 = vld [vmem:[%s1 + $0xb0] sm:$0xf]
  %v80 = vld [vmem:[%s1 + $0xb4] sm:$0xf]
  %v81 = vld [vmem:[%s1 + $0xb8] sm:$0xf]
  %v82 = vld [vmem:[%s1 + $0xbc] sm:$0xf]
  %v83 = vld [vmem:[%s1 + $0xc0] sm:$0xf]
  %v84 = vld [vmem:[%s1 + $0xc4] sm:$0xf]
  %v85 = vld [vmem:[%s1 + $0xc8] sm:$0xf]
  %v86 = vld [vmem:[%s1 + $0xcc] sm:$0xf]
  %v87 = vld [vmem:[%s1 + $0xd0] sm:$0xf]
  %v88 = vld [vmem:[%s1 + $0xd4] sm:$0xf]
  %v89 = vld [vmem:[%s1 + $0xd8] sm:$0xf]
  %v90 = vld [vmem:[%s1 + $0xdc] sm:$0xf]
  %v91 = vld [vmem:[%s1 + $0xe0] sm:$0xf]
  %v92 = vld [vmem:[%s1 + $0xe4] sm:$0xf]
  %v93 = vld [vmem:[%s1 + $0xe8] sm:$0xf]
  %v94 = vld [vmem:[%s1 + $0xec] sm:$0xf]
  %v95 = vld [vmem:[%s1 + $0xf0] sm:$0xf]
  %v96 = vld [vmem:[%s1 + $0xf4] sm:$0xf]
  %v97 = vld [vmem:[%s1 + $0xf8] sm:$0xf]
  %v98 = vld [vmem:[%s1 + $0xfc] sm:$0xf]
  %v99 = vld [vmem:[%s1 + $0x100] sm:$0xf]
  %v100 = vld [vmem:[%s1 + $0x104] sm:$0xf]
  %v101 = vld [vmem:[%s1 + $0x108] sm:$0xf]
  %v102 = vld [vmem:[%s1 + $0x10c] sm:$0xf]
  %v103 = vld [vmem:[%s1 + $0x110] sm:$0xf]
  %v104 = vld [vmem:[%s1 + $0x114] sm:$0xf]
  %v105 = vld [vmem:[%s1 + $0x118] sm:$0xf]
  %v106 = vld [vmem:[%s1 + $0x11c] sm:$0xf]
  %v107 = vld [vmem:[%s1 + $0x120] sm:$0xf]
  %v108 = vld [vmem:[%s1 + $0x124] sm:$0xf]
  %v109 = vld [vmem:[%s1 + $0x128] sm:$0xf]
  %v110 = vld [vmem:[%s1 + $0x12c] sm:$0xf]
  %v111 = vld [vmem:[%s1 + $0x130] sm:$0xf]
  %v112 = vld [vmem:[%s1 + $0x134] sm:$0xf]
  %v113 = vld [vmem:[%s1 + $0x138] sm:$0xf]
  %v114 = vld [vmem:[%s1 + $0x13c] sm:$0xf]
  %v115 = vld [vmem:[%s1 + $0x140] sm:$0xf]
  %v116 = vld [vmem:[%s1 + $0x144] sm:$0xf]
  %v117 = vld [vmem:[%s1 + $0x148] sm:$0xf]
  %v118 = vld [vmem:[%s1 + $0x14c] sm:$0xf]
  %v119 = vld [vmem:[%s1 + $0x150] sm:$0xf]
  %v120 = vld [vmem:[%s1 + $0x154] sm:$0xf]
  %v121 = vld [vmem:[%s1 + $0x158] sm:$0xf]
  %v122 = vld [vmem:[%s1 + $0x15c] sm:$0xf]
  %v123 = vld [vmem:[%s1 + $0x160] sm:$0xf]
  %v124 = vld [vmem:[%s1 + $0x164] sm:$0xf]
  %v125 = vld [vmem:[%s1 + $0x168] sm:$0xf]
  %v126 = vld [vmem:[%s1 + $0x16c] sm:$0xf]
  %v127 = vld [vmem:[%s1 + $0x170] sm:$0xf]
  %v128 = vld [vmem:[%s1 + $0x174] sm:$0xf]
  %v129 = vld [vmem:[%s1 + $0x178] sm:$0xf]
  %v130 = vld [vmem:[%s1 + $0x17c] sm:$0xf]
  %v131 = vld [vmem:[%s1 + $0x180] sm:$0xf]
  %v132 = vld [vmem:[%s1 + $0x184] sm:$0xf]
  %v133 = vld [vmem:[%s1 + $0x188] sm:$0xf]
  %v134 = vld [vmem:[%s1 + $0x18c] sm:$0xf]
  %v135 = vld [vmem:[%s1 + $0x190] sm:$0xf]
  %v136 = vld [vmem:[%s1 + $0x194] sm:$0xf]
  %v137 = vld [vmem:[%s1 + $0x198] sm:$0xf]
  %v138 = vld [vmem:[%s1 + $0x19c] sm:$0xf]
  %v139 = vld [vmem:[%s1 + $0x1a0] sm:$0xf]
  %v140 = vld [vmem:[%s1 + $0x1a4] sm:$0xf]
  %v141 = vld [vmem:[%s1 + $0x1a8] sm:$0xf]
  %v142 = vld [vmem:[%s1 + $0x1ac] sm:$0xf]
  %v143 = vld [vmem:[%s1 + $0x1b0] sm:$0xf]
  %v144 = vld [vmem:[%s1 + $0x1b4] sm:$0xf]
  %v145 = vld [vmem:[%s1 + $0x1b8] sm:$0xf]
  %v146 = vld [vmem:[%s1 + $0x1bc] sm:$0xf]
  %v147 = vld [vmem:[%s1 + $0x1c0] sm:$0xf]
  %v148 = vld [vmem:[%s1 + $0x1c4] sm:$0xf]
  %v149 = vld [vmem:[%s1 + $0x1c8] sm:$0xf]
  %v150 = vld [vmem:[%s1 + $0x1cc] sm:$0xf]
  %v151 = vld [vmem:[%s1 + $0x1d0] sm:$0xf]
  %v152 = vld [vmem:[%s1 + $0x1d4] sm:$0xf]
  %v153 = vld [vmem:[%s1 + $0x1d8] sm:$0xf]
  %v154 = vld [vmem:[%s1 + $0x1dc] sm:$0xf]
  %v155 = vld [vmem:[%s1 + $0x1e0] sm:$0xf]
  %v156 = vld [vmem:[%s1 + $0x1e4] sm:$0xf]
  %v157 = vld [vmem:[%s1 + $0x1e8] sm:$0xf]
  %v158 = vld [vmem:[%s1 + $0x1ec] sm:$0xf]
  %v159 = vld [vmem:[%s1 + $0x1f0] sm:$0xf]
  %v160 = vld [vmem:[%s1 + $0x1f4] sm:$0xf]
  %v161 = vld [vmem:[%s1 + $0x1f8] sm:$0xf]
  %v162 = vld [vmem:[%s1 + $0x1fc] sm:$0xf]
  %v163 = vld [vmem:[%s1 + $0x200] sm:$0xf]
  %v164 = vld [vmem:[%s1 + $0x204] sm:$0xf]
  %v165 = vld [vmem:[%s1 + $0x208] sm:$0xf]
  %v166 = vld [vmem:[%s1 + $0x20c] sm:$0xf]
  %v167 = vld [vmem:[%s1 + $0x210] sm:$0xf]
  %v168 = vld [vmem:[%s1 + $0x214] sm:$0xf]
  %v169 = vld [vmem:[%s1 + $0x218] sm:$0xf]
  %v170 = vld [vmem:[%s1 + $0x21c] sm:$0xf]
  %v171 = vld [vmem:[%s1 + $0x220] sm:$0xf]
  %v172 = vld [vmem:[%s1 + $0x224] sm:$0xf]
  %v173 = vld [vmem:[%s1 + $0x228] sm:$0xf]
  %v174 = vld [vmem:[%s1 + $0x22c] sm:$0xf]
  %v175 = vld [vmem:[%s1 + $0x230] sm:$0xf]
  %v176 = vld [vmem:[%s1 + $0x234] sm:$0xf]
  %v177 = vld [vmem:[%s1 + $0x238] sm:$0xf]
  %v178 = vld [vmem:[%s1 + $0x23c] sm:$0xf]
  %v179 = vld [vmem:[%s2] sm:$0x1]
  %v181 = vlaneseq
  %v182 = vshrl.u32 %v181, 7
  %v183 = vsub.s32 0, %v182
  %v184 = vrot.slane %v179, %v183
  %v206 = vunpack.c.l.b16 %v15
  %v207 = vunpack.c.h.b16 %v15
  %v208 = vunpack.c.l.b16 %v16
  %v209 = vunpack.c.h.b16 %v16
  %v210 = vunpack.c.l.b16 %v17
  %v211 = vunpack.c.h.b16 %v17
  %v212 = vunpack.c.l.b16 %v18
  %v213 = vunpack.c.h.b16 %v18
  %v214 = vunpack.c.l.b16 %v19
  %v215 = vunpack.c.l.b16 %v20
  %v216 = vunpack.c.h.b16 %v20
  %v217 = vunpack.c.l.b16 %v21
  %v218 = vunpack.c.h.b16 %v21
  %v219 = vunpack.c.l.b16 %v22
  %v220 = vunpack.c.h.b16 %v22
  %v221 = vunpack.c.l.b16 %v23
  %v222 = vunpack.c.h.b16 %v23
  %v223 = vunpack.c.l.b16 %v24
  %v224 = vunpack.c.l.b16 %v25
  %v225 = vunpack.c.h.b16 %v25
  %v226 = vunpack.c.l.b16 %v26
  %v227 = vunpack.c.h.b16 %v26
  %v228 = vunpack.c.l.b16 %v27
  %v229 = vunpack.c.h.b16 %v27
  %v230 = vunpack.c.l.b16 %v28
  %v231 = vunpack.c.h.b16 %v28
  %v232 = vunpack.c.l.b16 %v29
  %v233 = vunpack.c.l.b16 %v30
  %v234 = vunpack.c.h.b16 %v30
  %v235 = vunpack.c.l.b16 %v31
  %v236 = vunpack.c.h.b16 %v31
  %v237 = vunpack.c.l.b16 %v32
  %v238 = vunpack.c.h.b16 %v32
  %v239 = vunpack.c.l.b16 %v33
  %v240 = vunpack.c.h.b16 %v33
  %v241 = vunpack.c.l.b16 %v34
  %v242 = vpack.c.b16 %v215, %v206
  %v243 = vpack.c.b16 %v216, %v207
  %v244 = vpack.c.b16 %v217, %v208
  %v245 = vpack.c.b16 %v218, %v209
  %v246 = vpack.c.b16 %v219, %v210
  %v247 = vpack.c.b16 %v220, %v211
  %v248 = vpack.c.b16 %v221, %v212
  %v249 = vpack.c.b16 %v222, %v213
  %v250 = vpack.c.b16 %v223, %v214
  %v251 = vpack.c.b16 %v233, %v224
  %v252 = vpack.c.b16 %v234, %v225
  %v253 = vpack.c.b16 %v235, %v226
  %v254 = vpack.c.b16 %v236, %v227
  %v255 = vpack.c.b16 %v237, %v228
  %v256 = vpack.c.b16 %v238, %v229
  %v257 = vpack.c.b16 %v239, %v230
  %v258 = vpack.c.b16 %v240, %v231
  %v259 = vpack.c.b16 %v241, %v232
  %v422 = vunpack.c.l.b16 %v35
  %v423 = vunpack.c.l.b16 %v36
  %v424 = vunpack.c.l.b16 %v37
  %v425 = vunpack.c.l.b16 %v38
  %v426 = vunpack.c.l.b16 %v39
  %v427 = vunpack.c.l.b16 %v40
  %v428 = vunpack.c.l.b16 %v41
  %v429 = vunpack.c.l.b16 %v42
  %v430 = vunpack.c.l.b16 %v43
  %v431 = vunpack.c.l.b16 %v44
  %v432 = vunpack.c.l.b16 %v45
  %v433 = vunpack.c.l.b16 %v46
  %v434 = vunpack.c.l.b16 %v47
  %v435 = vunpack.c.l.b16 %v48
  %v436 = vunpack.c.l.b16 %v49
  %v437 = vunpack.c.l.b16 %v50
  %v438 = vunpack.c.l.b16 %v51
  %v439 = vunpack.c.l.b16 %v52
  %v440 = vunpack.c.l.b16 %v53
  %v441 = vunpack.c.l.b16 %v54
  %v442 = vunpack.c.l.b16 %v55
  %v443 = vunpack.c.l.b16 %v56
  %v444 = vunpack.c.l.b16 %v57
  %v445 = vunpack.c.l.b16 %v58
  %v446 = vunpack.c.l.b16 %v59
  %v447 = vunpack.c.l.b16 %v60
  %v448 = vunpack.c.l.b16 %v61
  %v449 = vunpack.c.l.b16 %v62
  %v450 = vunpack.c.l.b16 %v63
  %v451 = vunpack.c.l.b16 %v64
  %v452 = vunpack.c.l.b16 %v65
  %v453 = vunpack.c.l.b16 %v66
  %v454 = vunpack.c.l.b16 %v67
  %v455 = vunpack.c.l.b16 %v68
  %v456 = vunpack.c.l.b16 %v69
  %v457 = vunpack.c.l.b16 %v70
  %v458 = vunpack.c.l.b16 %v71
  %v459 = vunpack.c.l.b16 %v72
  %v460 = vunpack.c.l.b16 %v73
  %v461 = vunpack.c.l.b16 %v74
  %v462 = vunpack.c.l.b16 %v75
  %v463 = vunpack.c.l.b16 %v76
  %v464 = vunpack.c.l.b16 %v77
  %v465 = vunpack.c.l.b16 %v78
  %v466 = vunpack.c.l.b16 %v79
  %v467 = vunpack.c.l.b16 %v80
  %v468 = vunpack.c.l.b16 %v81
  %v469 = vunpack.c.l.b16 %v82
  %v470 = vunpack.c.l.b16 %v83
  %v471 = vunpack.c.l.b16 %v84
  %v472 = vunpack.c.l.b16 %v85
  %v473 = vunpack.c.l.b16 %v86
  %v474 = vunpack.c.l.b16 %v87
  %v475 = vunpack.c.l.b16 %v88
  %v476 = vunpack.c.l.b16 %v89
  %v477 = vunpack.c.l.b16 %v90
  %v478 = vunpack.c.l.b16 %v91
  %v479 = vunpack.c.l.b16 %v92
  %v480 = vunpack.c.l.b16 %v93
  %v481 = vunpack.c.l.b16 %v94
  %v482 = vunpack.c.l.b16 %v95
  %v483 = vunpack.c.l.b16 %v96
  %v484 = vunpack.c.l.b16 %v97
  %v485 = vunpack.c.l.b16 %v98
  %v486 = vunpack.c.l.b16 %v99
  %v487 = vunpack.c.l.b16 %v100
  %v488 = vunpack.c.l.b16 %v101
  %v489 = vunpack.c.l.b16 %v102
  %v490 = vunpack.c.l.b16 %v103
  %v491 = vunpack.c.l.b16 %v104
  %v492 = vunpack.c.l.b16 %v105
  %v493 = vunpack.c.l.b16 %v106
  %v494 = vunpack.c.l.b16 %v107
  %v495 = vunpack.c.l.b16 %v108
  %v496 = vunpack.c.l.b16 %v109
  %v497 = vunpack.c.l.b16 %v110
  %v498 = vunpack.c.l.b16 %v111
  %v499 = vunpack.c.l.b16 %v112
  %v500 = vunpack.c.l.b16 %v113
  %v501 = vunpack.c.l.b16 %v114
  %v502 = vunpack.c.l.b16 %v115
  %v503 = vunpack.c.l.b16 %v116
  %v504 = vunpack.c.l.b16 %v117
  %v505 = vunpack.c.l.b16 %v118
  %v506 = vunpack.c.l.b16 %v119
  %v507 = vunpack.c.l.b16 %v120
  %v508 = vunpack.c.l.b16 %v121
  %v509 = vunpack.c.l.b16 %v122
  %v510 = vunpack.c.l.b16 %v123
  %v511 = vunpack.c.l.b16 %v124
  %v512 = vunpack.c.l.b16 %v125
  %v513 = vunpack.c.l.b16 %v126
  %v514 = vunpack.c.l.b16 %v127
  %v515 = vunpack.c.l.b16 %v128
  %v516 = vunpack.c.l.b16 %v129
  %v517 = vunpack.c.l.b16 %v130
  %v518 = vunpack.c.l.b16 %v131
  %v519 = vunpack.c.l.b16 %v132
  %v520 = vunpack.c.l.b16 %v133
  %v521 = vunpack.c.l.b16 %v134
  %v522 = vunpack.c.l.b16 %v135
  %v523 = vunpack.c.l.b16 %v136
  %v524 = vunpack.c.l.b16 %v137
  %v525 = vunpack.c.l.b16 %v138
  %v526 = vunpack.c.l.b16 %v139
  %v527 = vunpack.c.l.b16 %v140
  %v528 = vunpack.c.l.b16 %v141
  %v529 = vunpack.c.l.b16 %v142
  %v530 = vunpack.c.l.b16 %v143
  %v531 = vunpack.c.l.b16 %v144
  %v532 = vunpack.c.l.b16 %v145
  %v533 = vunpack.c.l.b16 %v146
  %v534 = vunpack.c.l.b16 %v147
  %v535 = vunpack.c.l.b16 %v148
  %v536 = vunpack.c.l.b16 %v149
  %v537 = vunpack.c.l.b16 %v150
  %v538 = vunpack.c.l.b16 %v151
  %v539 = vunpack.c.l.b16 %v152
  %v540 = vunpack.c.l.b16 %v153
  %v541 = vunpack.c.l.b16 %v154
  %v542 = vunpack.c.l.b16 %v155
  %v543 = vunpack.c.l.b16 %v156
  %v544 = vunpack.c.l.b16 %v157
  %v545 = vunpack.c.l.b16 %v158
  %v546 = vunpack.c.l.b16 %v159
  %v547 = vunpack.c.l.b16 %v160
  %v548 = vunpack.c.l.b16 %v161
  %v549 = vunpack.c.l.b16 %v162
  %v550 = vunpack.c.l.b16 %v163
  %v551 = vunpack.c.l.b16 %v164
  %v552 = vunpack.c.l.b16 %v165
  %v553 = vunpack.c.l.b16 %v166
  %v554 = vunpack.c.l.b16 %v167
  %v555 = vunpack.c.l.b16 %v168
  %v556 = vunpack.c.l.b16 %v169
  %v557 = vunpack.c.l.b16 %v170
  %v558 = vunpack.c.l.b16 %v171
  %v559 = vunpack.c.l.b16 %v172
  %v560 = vunpack.c.l.b16 %v173
  %v561 = vunpack.c.l.b16 %v174
  %v562 = vunpack.c.l.b16 %v175
  %v563 = vunpack.c.l.b16 %v176
  %v564 = vunpack.c.l.b16 %v177
  %v565 = vunpack.c.l.b16 %v178
  %v566 = vpack.c.b16 %v423, %v422
  %v567 = vpack.c.b16 %v425, %v424
  %v568 = vpack.c.b16 %v427, %v426
  %v569 = vpack.c.b16 %v429, %v428
  %v570 = vpack.c.b16 %v431, %v430
  %v571 = vpack.c.b16 %v433, %v432
  %v572 = vpack.c.b16 %v435, %v434
  %v573 = vpack.c.b16 %v437, %v436
  %v574 = vpack.c.b16 %v439, %v438
  %v575 = vpack.c.b16 %v441, %v440
  %v576 = vpack.c.b16 %v443, %v442
  %v577 = vpack.c.b16 %v445, %v444
  %v578 = vpack.c.b16 %v447, %v446
  %v579 = vpack.c.b16 %v449, %v448
  %v580 = vpack.c.b16 %v451, %v450
  %v581 = vpack.c.b16 %v453, %v452
  %v582 = vpack.c.b16 %v455, %v454
  %v583 = vpack.c.b16 %v457, %v456
  %v584 = vpack.c.b16 %v459, %v458
  %v585 = vpack.c.b16 %v461, %v460
  %v586 = vpack.c.b16 %v463, %v462
  %v587 = vpack.c.b16 %v465, %v464
  %v588 = vpack.c.b16 %v467, %v466
  %v589 = vpack.c.b16 %v469, %v468
  %v590 = vpack.c.b16 %v471, %v470
  %v591 = vpack.c.b16 %v473, %v472
  %v592 = vpack.c.b16 %v475, %v474
  %v593 = vpack.c.b16 %v477, %v476
  %v594 = vpack.c.b16 %v479, %v478
  %v595 = vpack.c.b16 %v481, %v480
  %v596 = vpack.c.b16 %v483, %v482
  %v597 = vpack.c.b16 %v485, %v484
  %v598 = vpack.c.b16 %v487, %v486
  %v599 = vpack.c.b16 %v489, %v488
  %v600 = vpack.c.b16 %v491, %v490
  %v601 = vpack.c.b16 %v493, %v492
  %v602 = vpack.c.b16 %v495, %v494
  %v603 = vpack.c.b16 %v497, %v496
  %v604 = vpack.c.b16 %v499, %v498
  %v605 = vpack.c.b16 %v501, %v500
  %v606 = vpack.c.b16 %v503, %v502
  %v607 = vpack.c.b16 %v505, %v504
  %v608 = vpack.c.b16 %v507, %v506
  %v609 = vpack.c.b16 %v509, %v508
  %v610 = vpack.c.b16 %v511, %v510
  %v611 = vpack.c.b16 %v513, %v512
  %v612 = vpack.c.b16 %v515, %v514
  %v613 = vpack.c.b16 %v517, %v516
  %v614 = vpack.c.b16 %v519, %v518
  %v615 = vpack.c.b16 %v521, %v520
  %v616 = vpack.c.b16 %v523, %v522
  %v617 = vpack.c.b16 %v525, %v524
  %v618 = vpack.c.b16 %v527, %v526
  %v619 = vpack.c.b16 %v529, %v528
  %v620 = vpack.c.b16 %v531, %v530
  %v621 = vpack.c.b16 %v533, %v532
  %v622 = vpack.c.b16 %v535, %v534
  %v623 = vpack.c.b16 %v537, %v536
  %v624 = vpack.c.b16 %v539, %v538
  %v625 = vpack.c.b16 %v541, %v540
  %v626 = vpack.c.b16 %v543, %v542
  %v627 = vpack.c.b16 %v545, %v544
  %v628 = vpack.c.b16 %v547, %v546
  %v629 = vpack.c.b16 %v549, %v548
  %v630 = vpack.c.b16 %v551, %v550
  %v631 = vpack.c.b16 %v553, %v552
  %v632 = vpack.c.b16 %v555, %v554
  %v633 = vpack.c.b16 %v557, %v556
  %v634 = vpack.c.b16 %v559, %v558
  %v635 = vpack.c.b16 %v561, %v560
  %v636 = vpack.c.b16 %v563, %v562
  %v637 = vpack.c.b16 %v565, %v564
  %710 = vmatprep.subr.bf16.mxu0 0
  %711 = vmatpush1.bf16.msra.mxu0 %v573
  %712 = vmatprep.subr.bf16.mxu0 0
  %713 = vmatpush1.bf16.msra.mxu0 %v572
  %714 = vmatprep.subr.bf16.mxu0 0
  %715 = vmatpush1.bf16.msra.mxu0 %v571
  %716 = vmatprep.subr.bf16.mxu0 0
  %717 = vmatpush1.bf16.msra.mxu0 %v570
  %718 = vmatprep.subr.bf16.mxu0 0
  %719 = vmatpush1.bf16.msra.mxu0 %v569
  %720 = vmatprep.subr.bf16.mxu0 0
  %721 = vmatpush1.bf16.msra.mxu0 %v568
  %722 = vmatprep.subr.bf16.mxu0 0
  %723 = vmatpush1.bf16.msra.mxu0 %v567
  %724 = vmatprep.subr.bf16.mxu0 0
  %725 = vmatpush1.bf16.msra.mxu0 %v566
  %726 = vmatprep.subr.bf16.mxu0 0
  %727 = vmatpush2.bf16.msra.mxu0 %v581
  %728 = vmatprep.subr.bf16.mxu0 0
  %729 = vmatpush2.bf16.msra.mxu0 %v580
  %730 = vmatprep.subr.bf16.mxu0 0
  %731 = vmatpush2.bf16.msra.mxu0 %v579
  %732 = vmatprep.subr.bf16.mxu0 0
  %733 = vmatpush2.bf16.msra.mxu0 %v578
  %734 = vmatprep.subr.bf16.mxu0 0
  %735 = vmatpush2.bf16.msra.mxu0 %v577
  %736 = vmatprep.subr.bf16.mxu0 0
  %737 = vmatpush2.bf16.msra.mxu0 %v576
  %738 = vmatprep.subr.bf16.mxu0 0
  %739 = vmatpush2.bf16.msra.mxu0 %v575
  %740 = vmatprep.subr.bf16.mxu0 0
  %741 = vmatpush2.bf16.msra.mxu0 %v574
  %742 = vmatprep.mubr.bf16.mxu0 %v243
  %743 = vmatmul.mubr.bf16.gmra.mxu0 %v242
  %v744 = vpop.f32.mrf.mxu0
  %v745 = vadd.f32 %v184, %v744
  %v746 = vpop.f32.mrf.mxu0
  %v747 = vpop.f32.mrf.mxu0
  %v748 = vadd.f32 %v184, %v747
  %v749 = vpop.f32.mrf.mxu0
  %750 = vmatprep.mubr.bf16.mxu0 %v252
  %751 = vmatmul.mubr.bf16.gmra.mxu0 %v251
  %v752 = vpop.f32.mrf.mxu0
  %v753 = vadd.f32 %v184, %v752
  %v754 = vpop.f32.mrf.mxu0
  %v755 = vpop.f32.mrf.mxu0
  %v756 = vadd.f32 %v184, %v755
  %v757 = vpop.f32.mrf.mxu0
  %758 = vdwg.mxu0
  %759 = vmatprep.subr.bf16.mxu0 0
  %760 = vmatpush1.bf16.msra.mxu0 %v589
  %761 = vmatprep.subr.bf16.mxu0 0
  %762 = vmatpush1.bf16.msra.mxu0 %v588
  %763 = vmatprep.subr.bf16.mxu0 0
  %764 = vmatpush1.bf16.msra.mxu0 %v587
  %765 = vmatprep.subr.bf16.mxu0 0
  %766 = vmatpush1.bf16.msra.mxu0 %v586
  %767 = vmatprep.subr.bf16.mxu0 0
  %768 = vmatpush1.bf16.msra.mxu0 %v585
  %769 = vmatprep.subr.bf16.mxu0 0
  %770 = vmatpush1.bf16.msra.mxu0 %v584
  %771 = vmatprep.subr.bf16.mxu0 0
  %772 = vmatpush1.bf16.msra.mxu0 %v583
  %773 = vmatprep.subr.bf16.mxu0 0
  %774 = vmatpush1.bf16.msra.mxu0 %v582
  %775 = vmatprep.subr.bf16.mxu0 0
  %776 = vmatpush2.bf16.msra.mxu0 %v597
  %777 = vmatprep.subr.bf16.mxu0 0
  %778 = vmatpush2.bf16.msra.mxu0 %v596
  %779 = vmatprep.subr.bf16.mxu0 0
  %780 = vmatpush2.bf16.msra.mxu0 %v595
  %781 = vmatprep.subr.bf16.mxu0 0
  %782 = vmatpush2.bf16.msra.mxu0 %v594
  %783 = vmatprep.subr.bf16.mxu0 0
  %784 = vmatpush2.bf16.msra.mxu0 %v593
  %785 = vmatprep.subr.bf16.mxu0 0
  %786 = vmatpush2.bf16.msra.mxu0 %v592
  %787 = vmatprep.subr.bf16.mxu0 0
  %788 = vmatpush2.bf16.msra.mxu0 %v591
  %789 = vmatprep.subr.bf16.mxu0 0
  %790 = vmatpush2.bf16.msra.mxu0 %v590
  %791 = vmatprep.mubr.bf16.mxu0 %v245
  %792 = vmatmul.mubr.bf16.gmra.mxu0 %v244
  %v793 = vpop.f32.mrf.mxu0
  %v794 = vadd.f32 %v745, %v793
  %v795 = vpop.f32.mrf.mxu0
  %v796 = vpop.f32.mrf.mxu0
  %v797 = vadd.f32 %v748, %v796
  %v798 = vpop.f32.mrf.mxu0
  %799 = vmatprep.mubr.bf16.mxu0 %v254
  %800 = vmatmul.mubr.bf16.gmra.mxu0 %v253
  %v801 = vpop.f32.mrf.mxu0
  %v802 = vadd.f32 %v753, %v801
  %v803 = vpop.f32.mrf.mxu0
  %v804 = vpop.f32.mrf.mxu0
  %v805 = vadd.f32 %v756, %v804
  %v806 = vpop.f32.mrf.mxu0
  %807 = vdwg.mxu0
  %808 = vmatprep.subr.bf16.mxu0 0
  %809 = vmatpush1.bf16.msra.mxu0 %v605
  %810 = vmatprep.subr.bf16.mxu0 0
  %811 = vmatpush1.bf16.msra.mxu0 %v604
  %812 = vmatprep.subr.bf16.mxu0 0
  %813 = vmatpush1.bf16.msra.mxu0 %v603
  %814 = vmatprep.subr.bf16.mxu0 0
  %815 = vmatpush1.bf16.msra.mxu0 %v602
  %816 = vmatprep.subr.bf16.mxu0 0
  %817 = vmatpush1.bf16.msra.mxu0 %v601
  %818 = vmatprep.subr.bf16.mxu0 0
  %819 = vmatpush1.bf16.msra.mxu0 %v600
  %820 = vmatprep.subr.bf16.mxu0 0
  %821 = vmatpush1.bf16.msra.mxu0 %v599
  %822 = vmatprep.subr.bf16.mxu0 0
  %823 = vmatpush1.bf16.msra.mxu0 %v598
  %824 = vmatprep.subr.bf16.mxu0 0
  %825 = vmatpush2.bf16.msra.mxu0 %v613
  %826 = vmatprep.subr.bf16.mxu0 0
  %827 = vmatpush2.bf16.msra.mxu0 %v612
  %828 = vmatprep.subr.bf16.mxu0 0
  %829 = vmatpush2.bf16.msra.mxu0 %v611
  %830 = vmatprep.subr.bf16.mxu0 0
  %831 = vmatpush2.bf16.msra.mxu0 %v610
  %832 = vmatprep.subr.bf16.mxu0 0
  %833 = vmatpush2.bf16.msra.mxu0 %v609
  %834 = vmatprep.subr.bf16.mxu0 0
  %835 = vmatpush2.bf16.msra.mxu0 %v608
  %836 = vmatprep.subr.bf16.mxu0 0
  %837 = vmatpush2.bf16.msra.mxu0 %v607
  %838 = vmatprep.subr.bf16.mxu0 0
  %839 = vmatpush2.bf16.msra.mxu0 %v606
  %840 = vmatprep.mubr.bf16.mxu0 %v247
  %841 = vmatmul.mubr.bf16.gmra.mxu0 %v246
  %v842 = vpop.f32.mrf.mxu0
  %v843 = vadd.f32 %v794, %v842
  %v844 = vpop.f32.mrf.mxu0
  %v845 = vpop.f32.mrf.mxu0
  %v846 = vadd.f32 %v797, %v845
  %v847 = vpop.f32.mrf.mxu0
  %848 = vmatprep.mubr.bf16.mxu0 %v256
  %849 = vmatmul.mubr.bf16.gmra.mxu0 %v255
  %v850 = vpop.f32.mrf.mxu0
  %v851 = vadd.f32 %v802, %v850
  %v852 = vpop.f32.mrf.mxu0
  %v853 = vpop.f32.mrf.mxu0
  %v854 = vadd.f32 %v805, %v853
  %v855 = vpop.f32.mrf.mxu0
  %856 = vdwg.mxu0
  %857 = vmatprep.subr.bf16.mxu0 0
  %858 = vmatpush1.bf16.msra.mxu0 %v621
  %859 = vmatprep.subr.bf16.mxu0 0
  %860 = vmatpush1.bf16.msra.mxu0 %v620
  %861 = vmatprep.subr.bf16.mxu0 0
  %862 = vmatpush1.bf16.msra.mxu0 %v619
  %863 = vmatprep.subr.bf16.mxu0 0
  %864 = vmatpush1.bf16.msra.mxu0 %v618
  %865 = vmatprep.subr.bf16.mxu0 0
  %866 = vmatpush1.bf16.msra.mxu0 %v617
  %867 = vmatprep.subr.bf16.mxu0 0
  %868 = vmatpush1.bf16.msra.mxu0 %v616
  %869 = vmatprep.subr.bf16.mxu0 0
  %870 = vmatpush1.bf16.msra.mxu0 %v615
  %871 = vmatprep.subr.bf16.mxu0 0
  %872 = vmatpush1.bf16.msra.mxu0 %v614
  %873 = vmatprep.subr.bf16.mxu0 0
  %874 = vmatpush2.bf16.msra.mxu0 %v629
  %875 = vmatprep.subr.bf16.mxu0 0
  %876 = vmatpush2.bf16.msra.mxu0 %v628
  %877 = vmatprep.subr.bf16.mxu0 0
  %878 = vmatpush2.bf16.msra.mxu0 %v627
  %879 = vmatprep.subr.bf16.mxu0 0
  %880 = vmatpush2.bf16.msra.mxu0 %v626
  %881 = vmatprep.subr.bf16.mxu0 0
  %882 = vmatpush2.bf16.msra.mxu0 %v625
  %883 = vmatprep.subr.bf16.mxu0 0
  %884 = vmatpush2.bf16.msra.mxu0 %v624
  %885 = vmatprep.subr.bf16.mxu0 0
  %886 = vmatpush2.bf16.msra.mxu0 %v623
  %887 = vmatprep.subr.bf16.mxu0 0
  %888 = vmatpush2.bf16.msra.mxu0 %v622
  %889 = vmatprep.mubr.bf16.mxu0 %v249
  %890 = vmatmul.mubr.bf16.gmra.mxu0 %v248
  %v891 = vpop.f32.mrf.mxu0
  %v892 = vadd.f32 %v843, %v891
  %v893 = vpop.f32.mrf.mxu0
  %v894 = vpop.f32.mrf.mxu0
  %v895 = vadd.f32 %v846, %v894
  %v896 = vpop.f32.mrf.mxu0
  %897 = vmatprep.mubr.bf16.mxu0 %v258
  %898 = vmatmul.mubr.bf16.gmra.mxu0 %v257
  %v899 = vpop.f32.mrf.mxu0
  %v900 = vadd.f32 %v851, %v899
  %v901 = vpop.f32.mrf.mxu0
  %v902 = vpop.f32.mrf.mxu0
  %v903 = vadd.f32 %v854, %v902
  %v904 = vpop.f32.mrf.mxu0
  %905 = vdwg.mxu0
  %906 = vmatprep.subr.bf16.mxu0 0
  %907 = vmatpush1.bf16.msra.mxu0 %v637
  %908 = vmatprep.subr.bf16.mxu0 0
  %909 = vmatpush1.bf16.msra.mxu0 %v636
  %910 = vmatprep.subr.bf16.mxu0 0
  %911 = vmatpush1.bf16.msra.mxu0 %v635
  %912 = vmatprep.subr.bf16.mxu0 0
  %913 = vmatpush1.bf16.msra.mxu0 %v634
  %914 = vmatprep.subr.bf16.mxu0 0
  %915 = vmatpush1.bf16.msra.mxu0 %v633
  %916 = vmatprep.subr.bf16.mxu0 0
  %917 = vmatpush1.bf16.msra.mxu0 %v632
  %918 = vmatprep.subr.bf16.mxu0 0
  %919 = vmatpush1.bf16.msra.mxu0 %v631
  %920 = vmatprep.subr.bf16.mxu0 0
  %921 = vmatpush1.bf16.msra.mxu0 %v630
  %922 = vmatprep.subr.bf16.mxu0 0
  %923 = vmatpush2.bf16.msra.mxu0 0
  %924 = vmatprep.subr.bf16.mxu0 0
  %925 = vmatpush2.bf16.msra.mxu0 0
  %926 = vmatprep.subr.bf16.mxu0 0
  %927 = vmatpush2.bf16.msra.mxu0 0
  %928 = vmatprep.subr.bf16.mxu0 0
  %929 = vmatpush2.bf16.msra.mxu0 0
  %930 = vmatprep.subr.bf16.mxu0 0
  %931 = vmatpush2.bf16.msra.mxu0 0
  %932 = vmatprep.subr.bf16.mxu0 0
  %933 = vmatpush2.bf16.msra.mxu0 0
  %934 = vmatprep.subr.bf16.mxu0 0
  %935 = vmatpush2.bf16.msra.mxu0 0
  %936 = vmatprep.subr.bf16.mxu0 0
  %937 = vmatpush2.bf16.msra.mxu0 0
  %938 = vmatprep.mubr.bf16.mxu0 0
  %939 = vmatmul.mubr.bf16.gmra.mxu0 %v250
  %v940 = vpop.f32.mrf.mxu0
  %v941 = vadd.f32 %v892, %v940
  %v942 = vpop.f32.mrf.mxu0
  %v943 = vpop.f32.mrf.mxu0
  %v944 = vadd.f32 %v895, %v943
  %v945 = vpop.f32.mrf.mxu0
  %946 = vmatprep.mubr.bf16.mxu0 0
  %947 = vmatmul.mubr.bf16.gmra.mxu0 %v259
  %v948 = vpop.f32.mrf.mxu0
  %v949 = vadd.f32 %v900, %v948
  %v950 = vpop.f32.mrf.mxu0
  %v951 = vpop.f32.mrf.mxu0
  %v952 = vadd.f32 %v903, %v951
  %v953 = vpop.f32.mrf.mxu0
  %954 = vdwg.mxu0
  %v955 = vpack.c.bf16 %v944, %v941
  %v956 = vpack.c.bf16 %v952, %v949
  %v959 = vunpack.c.l.b16 %v955
  %v960 = vunpack.c.h.b16 %v955
  %v961 = vunpack.c.l.b16 %v956
  %v962 = vunpack.c.h.b16 %v956
  %v963 = vpack.c.b16 %v959, %v959
  %v964 = vpack.c.b16 %v960, %v960
  %v965 = vpack.c.b16 %v961, %v961
  %v966 = vpack.c.b16 %v962, %v962
  %971 = vst [vmem:[%s3] sm:$0xf] %v963
  %972 = vst [vmem:[%s3 + $0x4] sm:$0xf] %v964
  %973 = vst [vmem:[%s3 + $0x8] sm:$0xf] %v965
  %974 = vst [vmem:[%s3 + $0xc] sm:$0xf] %v966
  // Predicated region
  $region14: #{vqvae_forward.17} parent=0 // pred_check
    _
  $region15: #{vqvae_forward.17} parent=0 // pred_check_branch
    %976 = sbr.rel (0) target = $region17
  $region16: #{vqvae_forward.17} parent=0 // pred_region
    _
  $region17: #{vqvae_forward.17} parent=0 // pred_fallthru
    _
  // Predicated region
  $region18: #{vqvae_forward.17} parent=0 // pred_check
    _
  $region19: #{vqvae_forward.17} parent=0 // pred_check_branch
    %978 = sbr.rel (0) target = $region21
  $region20: #{vqvae_forward.17} parent=0 // pred_region
    _
  $region21: #{vqvae_forward.17} parent=0 // pred_fallthru
    _

// kernel: vqvae_forward.19
$region0: #{vqvae_forward.19}
  #allocation0 [shape = 'u32[]', space=smem, size = 0x4, offset = 0x4, fixed_abs, tag = 'smem constant byte address 0x4 - core index']
  #allocation1 [shape = 'u32[144,128]{1,0:T(1,128)}', space=vmem, size = 0x12000, scoped, tag = 'internal scratch']
  %s0 = inlined_call_operand.vmem [shape: bf16[32,128], index: 0, kind: input, shape index: {}]
  %s1 = inlined_call_operand.vmem [shape: bf16[128,128], index: 1, kind: input, shape index: {}]
  %s2 = inlined_call_operand.vmem [shape: f32[1,128], index: 2, kind: input, shape index: {}]
  %s3 = inlined_call_operand.vmem [shape: bf16[32,128], index: 3, kind: input, shape index: {}]
  %s4 = inlined_call_operand.vmem [shape: bf16[32,128], index: 4, kind: output, shape index: {}]
  %s5 = sld [smem:[#allocation0]]
  $region26: #{vqvae_forward.19} parent=0
    _
  %s7 = ssub.s32 1, %s5
  %s8 = scalar_select 0, %s7, %s5
  // Predicated region
  $region2: #{vqvae_forward.19} parent=0 // pred_check
    _
  $region3: #{vqvae_forward.19} parent=0 // pred_check_branch
    %10 = sbr.rel (0) target = $region5
  $region4: #{vqvae_forward.19} parent=0 // pred_region
    _
  $region5: #{vqvae_forward.19} parent=0 // pred_fallthru
    _
  // Predicated region
  $region6: #{vqvae_forward.19} parent=0 // pred_check
    _
  $region7: #{vqvae_forward.19} parent=0 // pred_check_branch
    %12 = sbr.rel (0) target = $region9
  $region8: #{vqvae_forward.19} parent=0 // pred_region
    _
  $region9: #{vqvae_forward.19} parent=0 // pred_fallthru
    _
  // Predicated region
  $region10: #{vqvae_forward.19} parent=0 // pred_check
    _
  $region11: #{vqvae_forward.19} parent=0 // pred_check_branch
    %14 = sbr.rel (0) target = $region13
  $region12: #{vqvae_forward.19} parent=0 // pred_region
    _
  $region13: #{vqvae_forward.19} parent=0 // pred_fallthru
    _
  // Predicated region
  $region14: #{vqvae_forward.19} parent=0 // pred_check
    _
  $region15: #{vqvae_forward.19} parent=0 // pred_check_branch
    %16 = sbr.rel (0) target = $region17
  $region16: #{vqvae_forward.19} parent=0 // pred_region
    _
  $region17: #{vqvae_forward.19} parent=0 // pred_fallthru
    _
  %v18 = vld [vmem:[%s0] sm:$0xf]
  %v19 = vld [vmem:[%s0 + $0x4] sm:$0xf]
  %v20 = vld [vmem:[%s0 + $0x8] sm:$0xf]
  %v21 = vld [vmem:[%s0 + $0xc] sm:$0xf]
  %v22 = vld [vmem:[%s1] sm:$0xf]
  %v23 = vld [vmem:[%s1 + $0x4] sm:$0xf]
  %v24 = vld [vmem:[%s1 + $0x8] sm:$0xf]
  %v25 = vld [vmem:[%s1 + $0xc] sm:$0xf]
  %v26 = vld [vmem:[%s1 + $0x10] sm:$0xf]
  %v27 = vld [vmem:[%s1 + $0x14] sm:$0xf]
  %v28 = vld [vmem:[%s1 + $0x18] sm:$0xf]
  %v29 = vld [vmem:[%s1 + $0x1c] sm:$0xf]
  %v30 = vld [vmem:[%s1 + $0x20] sm:$0xf]
  %v31 = vld [vmem:[%s1 + $0x24] sm:$0xf]
  %v32 = vld [vmem:[%s1 + $0x28] sm:$0xf]
  %v33 = vld [vmem:[%s1 + $0x2c] sm:$0xf]
  %v34 = vld [vmem:[%s1 + $0x30] sm:$0xf]
  %v35 = vld [vmem:[%s1 + $0x34] sm:$0xf]
  %v36 = vld [vmem:[%s1 + $0x38] sm:$0xf]
  %v37 = vld [vmem:[%s1 + $0x3c] sm:$0xf]
  %v38 = vld [vmem:[%s2] sm:$0x1]
  %v40 = vlaneseq
  %v41 = vshrl.u32 %v40, 7
  %v42 = vsub.s32 0, %v41
  %v43 = vrot.slane %v38, %v42
  %v49 = vunpack.c.l.b16 %v18
  %v50 = vunpack.c.l.b16 %v19
  %v51 = vunpack.c.l.b16 %v20
  %v52 = vunpack.c.l.b16 %v21
  %v53 = vpack.c.b16 %v50, %v49
  %v54 = vpack.c.b16 %v52, %v51
  %v73 = vunpack.c.l.b16 %v22
  %v74 = vunpack.c.l.b16 %v23
  %v75 = vunpack.c.l.b16 %v24
  %v76 = vunpack.c.l.b16 %v25
  %v77 = vunpack.c.l.b16 %v26
  %v78 = vunpack.c.l.b16 %v27
  %v79 = vunpack.c.l.b16 %v28
  %v80 = vunpack.c.l.b16 %v29
  %v81 = vunpack.c.l.b16 %v30
  %v82 = vunpack.c.l.b16 %v31
  %v83 = vunpack.c.l.b16 %v32
  %v84 = vunpack.c.l.b16 %v33
  %v85 = vunpack.c.l.b16 %v34
  %v86 = vunpack.c.l.b16 %v35
  %v87 = vunpack.c.l.b16 %v36
  %v88 = vunpack.c.l.b16 %v37
  %v89 = vpack.c.b16 %v74, %v73
  %v90 = vpack.c.b16 %v76, %v75
  %v91 = vpack.c.b16 %v78, %v77
  %v92 = vpack.c.b16 %v80, %v79
  %v93 = vpack.c.b16 %v82, %v81
  %v94 = vpack.c.b16 %v84, %v83
  %v95 = vpack.c.b16 %v86, %v85
  %v96 = vpack.c.b16 %v88, %v87
  %105 = vmatprep.subr.bf16.mxu0 0
  %106 = vmatpush1.bf16.msra.mxu0 %v96
  %107 = vmatprep.subr.bf16.mxu0 0
  %108 = vmatpush1.bf16.msra.mxu0 %v95
  %109 = vmatprep.subr.bf16.mxu0 0
  %110 = vmatpush1.bf16.msra.mxu0 %v94
  %111 = vmatprep.subr.bf16.mxu0 0
  %112 = vmatpush1.bf16.msra.mxu0 %v93
  %113 = vmatprep.subr.bf16.mxu0 0
  %114 = vmatpush1.bf16.msra.mxu0 %v92
  %115 = vmatprep.subr.bf16.mxu0 0
  %116 = vmatpush1.bf16.msra.mxu0 %v91
  %117 = vmatprep.subr.bf16.mxu0 0
  %118 = vmatpush1.bf16.msra.mxu0 %v90
  %119 = vmatprep.subr.bf16.mxu0 0
  %120 = vmatpush1.bf16.msra.mxu0 %v89
  %121 = vmatprep.subr.bf16.mxu0 0
  %122 = vmatpush2.bf16.msra.mxu0 0
  %123 = vmatprep.subr.bf16.mxu0 0
  %124 = vmatpush2.bf16.msra.mxu0 0
  %125 = vmatprep.subr.bf16.mxu0 0
  %126 = vmatpush2.bf16.msra.mxu0 0
  %127 = vmatprep.subr.bf16.mxu0 0
  %128 = vmatpush2.bf16.msra.mxu0 0
  %129 = vmatprep.subr.bf16.mxu0 0
  %130 = vmatpush2.bf16.msra.mxu0 0
  %131 = vmatprep.subr.bf16.mxu0 0
  %132 = vmatpush2.bf16.msra.mxu0 0
  %133 = vmatprep.subr.bf16.mxu0 0
  %134 = vmatpush2.bf16.msra.mxu0 0
  %135 = vmatprep.subr.bf16.mxu0 0
  %136 = vmatpush2.bf16.msra.mxu0 0
  %137 = vmatprep.mubr.bf16.mxu0 0
  %138 = vmatmul.mubr.bf16.gmra.mxu0 %v53
  %v139 = vpop.f32.mrf.mxu0
  %v140 = vadd.f32 %v43, %v139
  %v141 = vpop.f32.mrf.mxu0
  %v142 = vpop.f32.mrf.mxu0
  %v143 = vadd.f32 %v43, %v142
  %v144 = vpop.f32.mrf.mxu0
  %145 = vmatprep.mubr.bf16.mxu0 0
  %146 = vmatmul.mubr.bf16.gmra.mxu0 %v54
  %v147 = vpop.f32.mrf.mxu0
  %v148 = vadd.f32 %v43, %v147
  %v149 = vpop.f32.mrf.mxu0
  %v150 = vpop.f32.mrf.mxu0
  %v151 = vadd.f32 %v43, %v150
  %v152 = vpop.f32.mrf.mxu0
  %153 = vdwg.mxu0
  %v154 = vld [vmem:[%s3] sm:$0xf]
  %v155 = vld [vmem:[%s3 + $0x4] sm:$0xf]
  %v156 = vld [vmem:[%s3 + $0x8] sm:$0xf]
  %v157 = vld [vmem:[%s3 + $0xc] sm:$0xf]
  %v158 = vunpack.c.l.bf16 %v154
  %v159 = vunpack.c.l.bf16 %v155
  %v160 = vunpack.c.l.bf16 %v156
  %v161 = vunpack.c.l.bf16 %v157
  %v162 = vadd.f32 %v140, %v158
  %v163 = vadd.f32 %v143, %v159
  %v164 = vadd.f32 %v148, %v160
  %v165 = vadd.f32 %v151, %v161
  %v166 = vpack.c.bf16 %v163, %v162
  %v167 = vpack.c.bf16 %v165, %v164
  %v170 = vunpack.c.l.b16 %v166
  %v171 = vunpack.c.h.b16 %v166
  %v172 = vunpack.c.l.b16 %v167
  %v173 = vunpack.c.h.b16 %v167
  %v174 = vpack.c.b16 %v170, %v170
  %v175 = vpack.c.b16 %v171, %v171
  %v176 = vpack.c.b16 %v172, %v172
  %v177 = vpack.c.b16 %v173, %v173
  %182 = vst [vmem:[%s4] sm:$0xf] %v174
  %183 = vst [vmem:[%s4 + $0x4] sm:$0xf] %v175
  %184 = vst [vmem:[%s4 + $0x8] sm:$0xf] %v176
  %185 = vst [vmem:[%s4 + $0xc] sm:$0xf] %v177
  // Predicated region
  $region18: #{vqvae_forward.19} parent=0 // pred_check
    _
  $region19: #{vqvae_forward.19} parent=0 // pred_check_branch
    %187 = sbr.rel (0) target = $region21
  $region20: #{vqvae_forward.19} parent=0 // pred_region
    _
  $region21: #{vqvae_forward.19} parent=0 // pred_fallthru
    _
  // Predicated region
  $region22: #{vqvae_forward.19} parent=0 // pred_check
    _
  $region23: #{vqvae_forward.19} parent=0 // pred_check_branch
    %189 = sbr.rel (0) target = $region25
  $region24: #{vqvae_forward.19} parent=0 // pred_region
    _
  $region25: #{vqvae_forward.19} parent=0 // pred_fallthru
    _

// kernel: vqvae_forward.18
$region0: #{vqvae_forward.18}
  #allocation0 [shape = 'u32[]', space=smem, size = 0x4, offset = 0x4, fixed_abs, tag = 'smem constant byte address 0x4 - core index']
  #allocation1 [shape = 'u32[144,128]{1,0:T(1,128)}', space=vmem, size = 0x12000, scoped, tag = 'internal scratch']
  %s0 = inlined_call_operand.vmem [shape: bf16[32,1152], index: 0, kind: input, shape index: {}]
  %s1 = inlined_call_operand.vmem [shape: bf16[1152,128], index: 1, kind: input, shape index: {}]
  %s2 = inlined_call_operand.vmem [shape: f32[1,128], index: 2, kind: input, shape index: {}]
  %s3 = inlined_call_operand.vmem [shape: bf16[32,128], index: 3, kind: output, shape index: {}]
  %s4 = sld [smem:[#allocation0]]
  $region22: #{vqvae_forward.18} parent=0
    _
  %s6 = ssub.s32 1, %s4
  %s7 = scalar_select 0, %s6, %s4
  // Predicated region
  $region2: #{vqvae_forward.18} parent=0 // pred_check
    _
  $region3: #{vqvae_forward.18} parent=0 // pred_check_branch
    %9 = sbr.rel (0) target = $region5
  $region4: #{vqvae_forward.18} parent=0 // pred_region
    _
  $region5: #{vqvae_forward.18} parent=0 // pred_fallthru
    _
  // Predicated region
  $region6: #{vqvae_forward.18} parent=0 // pred_check
    _
  $region7: #{vqvae_forward.18} parent=0 // pred_check_branch
    %11 = sbr.rel (0) target = $region9
  $region8: #{vqvae_forward.18} parent=0 // pred_region
    _
  $region9: #{vqvae_forward.18} parent=0 // pred_fallthru
    _
  // Predicated region
  $region10: #{vqvae_forward.18} parent=0 // pred_check
    _
  $region11: #{vqvae_forward.18} parent=0 // pred_check_branch
    %13 = sbr.rel (0) target = $region13
  $region12: #{vqvae_forward.18} parent=0 // pred_region
    _
  $region13: #{vqvae_forward.18} parent=0 // pred_fallthru
    _
  %v15 = vld [vmem:[%s0] sm:$0xff]
  %v16 = vld [vmem:[%s0 + $0x8] sm:$0xff]
  %v17 = vld [vmem:[%s0 + $0x10] sm:$0xff]
  %v18 = vld [vmem:[%s0 + $0x18] sm:$0xff]
  %v19 = vld [vmem:[%s0 + $0x20] sm:$0xf]
  %v20 = vld [vmem:[%s0 + $0x24] sm:$0xff]
  %v21 = vld [vmem:[%s0 + $0x2c] sm:$0xff]
  %v22 = vld [vmem:[%s0 + $0x34] sm:$0xff]
  %v23 = vld [vmem:[%s0 + $0x3c] sm:$0xff]
  %v24 = vld [vmem:[%s0 + $0x44] sm:$0xf]
  %v25 = vld [vmem:[%s0 + $0x48] sm:$0xff]
  %v26 = vld [vmem:[%s0 + $0x50] sm:$0xff]
  %v27 = vld [vmem:[%s0 + $0x58] sm:$0xff]
  %v28 = vld [vmem:[%s0 + $0x60] sm:$0xff]
  %v29 = vld [vmem:[%s0 + $0x68] sm:$0xf]
  %v30 = vld [vmem:[%s0 + $0x6c] sm:$0xff]
  %v31 = vld [vmem:[%s0 + $0x74] sm:$0xff]
  %v32 = vld [vmem:[%s0 + $0x7c] sm:$0xff]
  %v33 = vld [vmem:[%s0 + $0x84] sm:$0xff]
  %v34 = vld [vmem:[%s0 + $0x8c] sm:$0xf]
  %v35 = vld [vmem:[%s1] sm:$0xf]
  %v36 = vld [vmem:[%s1 + $0x4] sm:$0xf]
  %v37 = vld [vmem:[%s1 + $0x8] sm:$0xf]
  %v38 = vld [vmem:[%s1 + $0xc] sm:$0xf]
  %v39 = vld [vmem:[%s1 + $0x10] sm:$0xf]
  %v40 = vld [vmem:[%s1 + $0x14] sm:$0xf]
  %v41 = vld [vmem:[%s1 + $0x18] sm:$0xf]
  %v42 = vld [vmem:[%s1 + $0x1c] sm:$0xf]
  %v43 = vld [vmem:[%s1 + $0x20] sm:$0xf]
  %v44 = vld [vmem:[%s1 + $0x24] sm:$0xf]
  %v45 = vld [vmem:[%s1 + $0x28] sm:$0xf]
  %v46 = vld [vmem:[%s1 + $0x2c] sm:$0xf]
  %v47 = vld [vmem:[%s1 + $0x30] sm:$0xf]
  %v48 = vld [vmem:[%s1 + $0x34] sm:$0xf]
  %v49 = vld [vmem:[%s1 + $0x38] sm:$0xf]
  %v50 = vld [vmem:[%s1 + $0x3c] sm:$0xf]
  %v51 = vld [vmem:[%s1 + $0x40] sm:$0xf]
  %v52 = vld [vmem:[%s1 + $0x44] sm:$0xf]
  %v53 = vld [vmem:[%s1 + $0x48] sm:$0xf]
  %v54 = vld [vmem:[%s1 + $0x4c] sm:$0xf]
  %v55 = vld [vmem:[%s1 + $0x50] sm:$0xf]
  %v56 = vld [vmem:[%s1 + $0x54] sm:$0xf]
  %v57 = vld [vmem:[%s1 + $0x58] sm:$0xf]
  %v58 = vld [vmem:[%s1 + $0x5c] sm:$0xf]
  %v59 = vld [vmem:[%s1 + $0x60] sm:$0xf]
  %v60 = vld [vmem:[%s1 + $0x64] sm:$0xf]
  %v61 = vld [vmem:[%s1 + $0x68] sm:$0xf]
  %v62 = vld [vmem:[%s1 + $0x6c] sm:$0xf]
  %v63 = vld [vmem:[%s1 + $0x70] sm:$0xf]
  %v64 = vld [vmem:[%s1 + $0x74] sm:$0xf]
  %v65 = vld [vmem:[%s1 + $0x78] sm:$0xf]
  %v66 = vld [vmem:[%s1 + $0x7c] sm:$0xf]
  %v67 = vld [vmem:[%s1 + $0x80] sm:$0xf]
  %v68 = vld [vmem:[%s1 + $0x84] sm:$0xf]
  %v69 = vld [vmem:[%s1 + $0x88] sm:$0xf]
  %v70 = vld [vmem:[%s1 + $0x8c] sm:$0xf]
  %v71 = vld [vmem:[%s1 + $0x90] sm:$0xf]
  %v72 = vld [vmem:[%s1 + $0x94] sm:$0xf]
  %v73 = vld [vmem:[%s1 + $0x98] sm:$0xf]
  %v74 = vld [vmem:[%s1 + $0x9c] sm:$0xf]
  %v75 = vld [vmem:[%s1 + $0xa0] sm:$0xf]
  %v76 = vld [vmem:[%s1 + $0xa4] sm:$0xf]
  %v77 = vld [vmem:[%s1 + $0xa8] sm:$0xf]
  %v78 = vld [vmem:[%s1 + $0xac] sm:$0xf]
  %v79 = vld [vmem:[%s1 + $0xb0] sm:$0xf]
  %v80 = vld [vmem:[%s1 + $0xb4] sm:$0xf]
  %v81 = vld [vmem:[%s1 + $0xb8] sm:$0xf]
  %v82 = vld [vmem:[%s1 + $0xbc] sm:$0xf]
  %v83 = vld [vmem:[%s1 + $0xc0] sm:$0xf]
  %v84 = vld [vmem:[%s1 + $0xc4] sm:$0xf]
  %v85 = vld [vmem:[%s1 + $0xc8] sm:$0xf]
  %v86 = vld [vmem:[%s1 + $0xcc] sm:$0xf]
  %v87 = vld [vmem:[%s1 + $0xd0] sm:$0xf]
  %v88 = vld [vmem:[%s1 + $0xd4] sm:$0xf]
  %v89 = vld [vmem:[%s1 + $0xd8] sm:$0xf]
  %v90 = vld [vmem:[%s1 + $0xdc] sm:$0xf]
  %v91 = vld [vmem:[%s1 + $0xe0] sm:$0xf]
  %v92 = vld [vmem:[%s1 + $0xe4] sm:$0xf]
  %v93 = vld [vmem:[%s1 + $0xe8] sm:$0xf]
  %v94 = vld [vmem:[%s1 + $0xec] sm:$0xf]
  %v95 = vld [vmem:[%s1 + $0xf0] sm:$0xf]
  %v96 = vld [vmem:[%s1 + $0xf4] sm:$0xf]
  %v97 = vld [vmem:[%s1 + $0xf8] sm:$0xf]
  %v98 = vld [vmem:[%s1 + $0xfc] sm:$0xf]
  %v99 = vld [vmem:[%s1 + $0x100] sm:$0xf]
  %v100 = vld [vmem:[%s1 + $0x104] sm:$0xf]
  %v101 = vld [vmem:[%s1 + $0x108] sm:$0xf]
  %v102 = vld [vmem:[%s1 + $0x10c] sm:$0xf]
  %v103 = vld [vmem:[%s1 + $0x110] sm:$0xf]
  %v104 = vld [vmem:[%s1 + $0x114] sm:$0xf]
  %v105 = vld [vmem:[%s1 + $0x118] sm:$0xf]
  %v106 = vld [vmem:[%s1 + $0x11c] sm:$0xf]
  %v107 = vld [vmem:[%s1 + $0x120] sm:$0xf]
  %v108 = vld [vmem:[%s1 + $0x124] sm:$0xf]
  %v109 = vld [vmem:[%s1 + $0x128] sm:$0xf]
  %v110 = vld [vmem:[%s1 + $0x12c] sm:$0xf]
  %v111 = vld [vmem:[%s1 + $0x130] sm:$0xf]
  %v112 = vld [vmem:[%s1 + $0x134] sm:$0xf]
  %v113 = vld [vmem:[%s1 + $0x138] sm:$0xf]
  %v114 = vld [vmem:[%s1 + $0x13c] sm:$0xf]
  %v115 = vld [vmem:[%s1 + $0x140] sm:$0xf]
  %v116 = vld [vmem:[%s1 + $0x144] sm:$0xf]
  %v117 = vld [vmem:[%s1 + $0x148] sm:$0xf]
  %v118 = vld [vmem:[%s1 + $0x14c] sm:$0xf]
  %v119 = vld [vmem:[%s1 + $0x150] sm:$0xf]
  %v120 = vld [vmem:[%s1 + $0x154] sm:$0xf]
  %v121 = vld [vmem:[%s1 + $0x158] sm:$0xf]
  %v122 = vld [vmem:[%s1 + $0x15c] sm:$0xf]
  %v123 = vld [vmem:[%s1 + $0x160] sm:$0xf]
  %v124 = vld [vmem:[%s1 + $0x164] sm:$0xf]
  %v125 = vld [vmem:[%s1 + $0x168] sm:$0xf]
  %v126 = vld [vmem:[%s1 + $0x16c] sm:$0xf]
  %v127 = vld [vmem:[%s1 + $0x170] sm:$0xf]
  %v128 = vld [vmem:[%s1 + $0x174] sm:$0xf]
  %v129 = vld [vmem:[%s1 + $0x178] sm:$0xf]
  %v130 = vld [vmem:[%s1 + $0x17c] sm:$0xf]
  %v131 = vld [vmem:[%s1 + $0x180] sm:$0xf]
  %v132 = vld [vmem:[%s1 + $0x184] sm:$0xf]
  %v133 = vld [vmem:[%s1 + $0x188] sm:$0xf]
  %v134 = vld [vmem:[%s1 + $0x18c] sm:$0xf]
  %v135 = vld [vmem:[%s1 + $0x190] sm:$0xf]
  %v136 = vld [vmem:[%s1 + $0x194] sm:$0xf]
  %v137 = vld [vmem:[%s1 + $0x198] sm:$0xf]
  %v138 = vld [vmem:[%s1 + $0x19c] sm:$0xf]
  %v139 = vld [vmem:[%s1 + $0x1a0] sm:$0xf]
  %v140 = vld [vmem:[%s1 + $0x1a4] sm:$0xf]
  %v141 = vld [vmem:[%s1 + $0x1a8] sm:$0xf]
  %v142 = vld [vmem:[%s1 + $0x1ac] sm:$0xf]
  %v143 = vld [vmem:[%s1 + $0x1b0] sm:$0xf]
  %v144 = vld [vmem:[%s1 + $0x1b4] sm:$0xf]
  %v145 = vld [vmem:[%s1 + $0x1b8] sm:$0xf]
  %v146 = vld [vmem:[%s1 + $0x1bc] sm:$0xf]
  %v147 = vld [vmem:[%s1 + $0x1c0] sm:$0xf]
  %v148 = vld [vmem:[%s1 + $0x1c4] sm:$0xf]
  %v149 = vld [vmem:[%s1 + $0x1c8] sm:$0xf]
  %v150 = vld [vmem:[%s1 + $0x1cc] sm:$0xf]
  %v151 = vld [vmem:[%s1 + $0x1d0] sm:$0xf]
  %v152 = vld [vmem:[%s1 + $0x1d4] sm:$0xf]
  %v153 = vld [vmem:[%s1 + $0x1d8] sm:$0xf]
  %v154 = vld [vmem:[%s1 + $0x1dc] sm:$0xf]
  %v155 = vld [vmem:[%s1 + $0x1e0] sm:$0xf]
  %v156 = vld [vmem:[%s1 + $0x1e4] sm:$0xf]
  %v157 = vld [vmem:[%s1 + $0x1e8] sm:$0xf]
  %v158 = vld [vmem:[%s1 + $0x1ec] sm:$0xf]
  %v159 = vld [vmem:[%s1 + $0x1f0] sm:$0xf]
  %v160 = vld [vmem:[%s1 + $0x1f4] sm:$0xf]
  %v161 = vld [vmem:[%s1 + $0x1f8] sm:$0xf]
  %v162 = vld [vmem:[%s1 + $0x1fc] sm:$0xf]
  %v163 = vld [vmem:[%s1 + $0x200] sm:$0xf]
  %v164 = vld [vmem:[%s1 + $0x204] sm:$0xf]
  %v165 = vld [vmem:[%s1 + $0x208] sm:$0xf]
  %v166 = vld [vmem:[%s1 + $0x20c] sm:$0xf]
  %v167 = vld [vmem:[%s1 + $0x210] sm:$0xf]
  %v168 = vld [vmem:[%s1 + $0x214] sm:$0xf]
  %v169 = vld [vmem:[%s1 + $0x218] sm:$0xf]
  %v170 = vld [vmem:[%s1 + $0x21c] sm:$0xf]
  %v171 = vld [vmem:[%s1 + $0x220] sm:$0xf]
  %v172 = vld [vmem:[%s1 + $0x224] sm:$0xf]
  %v173 = vld [vmem:[%s1 + $0x228] sm:$0xf]
  %v174 = vld [vmem:[%s1 + $0x22c] sm:$0xf]
  %v175 = vld [vmem:[%s1 + $0x230] sm:$0xf]
  %v176 = vld [vmem:[%s1 + $0x234] sm:$0xf]
  %v177 = vld [vmem:[%s1 + $0x238] sm:$0xf]
  %v178 = vld [vmem:[%s1 + $0x23c] sm:$0xf]
  %v179 = vld [vmem:[%s2] sm:$0x1]
  %v181 = vlaneseq
  %v182 = vshrl.u32 %v181, 7
  %v183 = vsub.s32 0, %v182
  %v184 = vrot.slane %v179, %v183
  %v206 = vunpack.c.l.b16 %v15
  %v207 = vunpack.c.h.b16 %v15
  %v208 = vunpack.c.l.b16 %v16
  %v209 = vunpack.c.h.b16 %v16
  %v210 = vunpack.c.l.b16 %v17
  %v211 = vunpack.c.h.b16 %v17
  %v212 = vunpack.c.l.b16 %v18
  %v213 = vunpack.c.h.b16 %v18
  %v214 = vunpack.c.l.b16 %v19
  %v215 = vunpack.c.l.b16 %v20
  %v216 = vunpack.c.h.b16 %v20
  %v217 = vunpack.c.l.b16 %v21
  %v218 = vunpack.c.h.b16 %v21
  %v219 = vunpack.c.l.b16 %v22
  %v220 = vunpack.c.h.b16 %v22
  %v221 = vunpack.c.l.b16 %v23
  %v222 = vunpack.c.h.b16 %v23
  %v223 = vunpack.c.l.b16 %v24
  %v224 = vunpack.c.l.b16 %v25
  %v225 = vunpack.c.h.b16 %v25
  %v226 = vunpack.c.l.b16 %v26
  %v227 = vunpack.c.h.b16 %v26
  %v228 = vunpack.c.l.b16 %v27
  %v229 = vunpack.c.h.b16 %v27
  %v230 = vunpack.c.l.b16 %v28
  %v231 = vunpack.c.h.b16 %v28
  %v232 = vunpack.c.l.b16 %v29
  %v233 = vunpack.c.l.b16 %v30
  %v234 = vunpack.c.h.b16 %v30
  %v235 = vunpack.c.l.b16 %v31
  %v236 = vunpack.c.h.b16 %v31
  %v237 = vunpack.c.l.b16 %v32
  %v238 = vunpack.c.h.b16 %v32
  %v239 = vunpack.c.l.b16 %v33
  %v240 = vunpack.c.h.b16 %v33
  %v241 = vunpack.c.l.b16 %v34
  %v242 = vpack.c.b16 %v215, %v206
  %v243 = vpack.c.b16 %v216, %v207
  %v244 = vpack.c.b16 %v217, %v208
  %v245 = vpack.c.b16 %v218, %v209
  %v246 = vpack.c.b16 %v219, %v210
  %v247 = vpack.c.b16 %v220, %v211
  %v248 = vpack.c.b16 %v221, %v212
  %v249 = vpack.c.b16 %v222, %v213
  %v250 = vpack.c.b16 %v223, %v214
  %v251 = vpack.c.b16 %v233, %v224
  %v252 = vpack.c.b16 %v234, %v225
  %v253 = vpack.c.b16 %v235, %v226
  %v254 = vpack.c.b16 %v236, %v227
  %v255 = vpack.c.b16 %v237, %v228
  %v256 = vpack.c.b16 %v238, %v229
  %v257 = vpack.c.b16 %v239, %v230
  %v258 = vpack.c.b16 %v240, %v231
  %v259 = vpack.c.b16 %v241, %v232
  %v422 = vunpack.c.l.b16 %v35
  %v423 = vunpack.c.l.b16 %v36
  %v424 = vunpack.c.l.b16 %v37
  %v425 = vunpack.c.l.b16 %v38
  %v426 = vunpack.c.l.b16 %v39
  %v427 = vunpack.c.l.b16 %v40
  %v428 = vunpack.c.l.b16 %v41
  %v429 = vunpack.c.l.b16 %v42
  %v430 = vunpack.c.l.b16 %v43
  %v431 = vunpack.c.l.b16 %v44
  %v432 = vunpack.c.l.b16 %v45
  %v433 = vunpack.c.l.b16 %v46
  %v434 = vunpack.c.l.b16 %v47
  %v435 = vunpack.c.l.b16 %v48
  %v436 = vunpack.c.l.b16 %v49
  %v437 = vunpack.c.l.b16 %v50
  %v438 = vunpack.c.l.b16 %v51
  %v439 = vunpack.c.l.b16 %v52
  %v440 = vunpack.c.l.b16 %v53
  %v441 = vunpack.c.l.b16 %v54
  %v442 = vunpack.c.l.b16 %v55
  %v443 = vunpack.c.l.b16 %v56
  %v444 = vunpack.c.l.b16 %v57
  %v445 = vunpack.c.l.b16 %v58
  %v446 = vunpack.c.l.b16 %v59
  %v447 = vunpack.c.l.b16 %v60
  %v448 = vunpack.c.l.b16 %v61
  %v449 = vunpack.c.l.b16 %v62
  %v450 = vunpack.c.l.b16 %v63
  %v451 = vunpack.c.l.b16 %v64
  %v452 = vunpack.c.l.b16 %v65
  %v453 = vunpack.c.l.b16 %v66
  %v454 = vunpack.c.l.b16 %v67
  %v455 = vunpack.c.l.b16 %v68
  %v456 = vunpack.c.l.b16 %v69
  %v457 = vunpack.c.l.b16 %v70
  %v458 = vunpack.c.l.b16 %v71
  %v459 = vunpack.c.l.b16 %v72
  %v460 = vunpack.c.l.b16 %v73
  %v461 = vunpack.c.l.b16 %v74
  %v462 = vunpack.c.l.b16 %v75
  %v463 = vunpack.c.l.b16 %v76
  %v464 = vunpack.c.l.b16 %v77
  %v465 = vunpack.c.l.b16 %v78
  %v466 = vunpack.c.l.b16 %v79
  %v467 = vunpack.c.l.b16 %v80
  %v468 = vunpack.c.l.b16 %v81
  %v469 = vunpack.c.l.b16 %v82
  %v470 = vunpack.c.l.b16 %v83
  %v471 = vunpack.c.l.b16 %v84
  %v472 = vunpack.c.l.b16 %v85
  %v473 = vunpack.c.l.b16 %v86
  %v474 = vunpack.c.l.b16 %v87
  %v475 = vunpack.c.l.b16 %v88
  %v476 = vunpack.c.l.b16 %v89
  %v477 = vunpack.c.l.b16 %v90
  %v478 = vunpack.c.l.b16 %v91
  %v479 = vunpack.c.l.b16 %v92
  %v480 = vunpack.c.l.b16 %v93
  %v481 = vunpack.c.l.b16 %v94
  %v482 = vunpack.c.l.b16 %v95
  %v483 = vunpack.c.l.b16 %v96
  %v484 = vunpack.c.l.b16 %v97
  %v485 = vunpack.c.l.b16 %v98
  %v486 = vunpack.c.l.b16 %v99
  %v487 = vunpack.c.l.b16 %v100
  %v488 = vunpack.c.l.b16 %v101
  %v489 = vunpack.c.l.b16 %v102
  %v490 = vunpack.c.l.b16 %v103
  %v491 = vunpack.c.l.b16 %v104
  %v492 = vunpack.c.l.b16 %v105
  %v493 = vunpack.c.l.b16 %v106
  %v494 = vunpack.c.l.b16 %v107
  %v495 = vunpack.c.l.b16 %v108
  %v496 = vunpack.c.l.b16 %v109
  %v497 = vunpack.c.l.b16 %v110
  %v498 = vunpack.c.l.b16 %v111
  %v499 = vunpack.c.l.b16 %v112
  %v500 = vunpack.c.l.b16 %v113
  %v501 = vunpack.c.l.b16 %v114
  %v502 = vunpack.c.l.b16 %v115
  %v503 = vunpack.c.l.b16 %v116
  %v504 = vunpack.c.l.b16 %v117
  %v505 = vunpack.c.l.b16 %v118
  %v506 = vunpack.c.l.b16 %v119
  %v507 = vunpack.c.l.b16 %v120
  %v508 = vunpack.c.l.b16 %v121
  %v509 = vunpack.c.l.b16 %v122
  %v510 = vunpack.c.l.b16 %v123
  %v511 = vunpack.c.l.b16 %v124
  %v512 = vunpack.c.l.b16 %v125
  %v513 = vunpack.c.l.b16 %v126
  %v514 = vunpack.c.l.b16 %v127
  %v515 = vunpack.c.l.b16 %v128
  %v516 = vunpack.c.l.b16 %v129
  %v517 = vunpack.c.l.b16 %v130
  %v518 = vunpack.c.l.b16 %v131
  %v519 = vunpack.c.l.b16 %v132
  %v520 = vunpack.c.l.b16 %v133
  %v521 = vunpack.c.l.b16 %v134
  %v522 = vunpack.c.l.b16 %v135
  %v523 = vunpack.c.l.b16 %v136
  %v524 = vunpack.c.l.b16 %v137
  %v525 = vunpack.c.l.b16 %v138
  %v526 = vunpack.c.l.b16 %v139
  %v527 = vunpack.c.l.b16 %v140
  %v528 = vunpack.c.l.b16 %v141
  %v529 = vunpack.c.l.b16 %v142
  %v530 = vunpack.c.l.b16 %v143
  %v531 = vunpack.c.l.b16 %v144
  %v532 = vunpack.c.l.b16 %v145
  %v533 = vunpack.c.l.b16 %v146
  %v534 = vunpack.c.l.b16 %v147
  %v535 = vunpack.c.l.b16 %v148
  %v536 = vunpack.c.l.b16 %v149
  %v537 = vunpack.c.l.b16 %v150
  %v538 = vunpack.c.l.b16 %v151
  %v539 = vunpack.c.l.b16 %v152
  %v540 = vunpack.c.l.b16 %v153
  %v541 = vunpack.c.l.b16 %v154
  %v542 = vunpack.c.l.b16 %v155
  %v543 = vunpack.c.l.b16 %v156
  %v544 = vunpack.c.l.b16 %v157
  %v545 = vunpack.c.l.b16 %v158
  %v546 = vunpack.c.l.b16 %v159
  %v547 = vunpack.c.l.b16 %v160
  %v548 = vunpack.c.l.b16 %v161
  %v549 = vunpack.c.l.b16 %v162
  %v550 = vunpack.c.l.b16 %v163
  %v551 = vunpack.c.l.b16 %v164
  %v552 = vunpack.c.l.b16 %v165
  %v553 = vunpack.c.l.b16 %v166
  %v554 = vunpack.c.l.b16 %v167
  %v555 = vunpack.c.l.b16 %v168
  %v556 = vunpack.c.l.b16 %v169
  %v557 = vunpack.c.l.b16 %v170
  %v558 = vunpack.c.l.b16 %v171
  %v559 = vunpack.c.l.b16 %v172
  %v560 = vunpack.c.l.b16 %v173
  %v561 = vunpack.c.l.b16 %v174
  %v562 = vunpack.c.l.b16 %v175
  %v563 = vunpack.c.l.b16 %v176
  %v564 = vunpack.c.l.b16 %v177
  %v565 = vunpack.c.l.b16 %v178
  %v566 = vpack.c.b16 %v423, %v422
  %v567 = vpack.c.b16 %v425, %v424
  %v568 = vpack.c.b16 %v427, %v426
  %v569 = vpack.c.b16 %v429, %v428
  %v570 = vpack.c.b16 %v431, %v430
  %v571 = vpack.c.b16 %v433, %v432
  %v572 = vpack.c.b16 %v435, %v434
  %v573 = vpack.c.b16 %v437, %v436
  %v574 = vpack.c.b16 %v439, %v438
  %v575 = vpack.c.b16 %v441, %v440
  %v576 = vpack.c.b16 %v443, %v442
  %v577 = vpack.c.b16 %v445, %v444
  %v578 = vpack.c.b16 %v447, %v446
  %v579 = vpack.c.b16 %v449, %v448
  %v580 = vpack.c.b16 %v451, %v450
  %v581 = vpack.c.b16 %v453, %v452
  %v582 = vpack.c.b16 %v455, %v454
  %v583 = vpack.c.b16 %v457, %v456
  %v584 = vpack.c.b16 %v459, %v458
  %v585 = vpack.c.b16 %v461, %v460
  %v586 = vpack.c.b16 %v463, %v462
  %v587 = vpack.c.b16 %v465, %v464
  %v588 = vpack.c.b16 %v467, %v466
  %v589 = vpack.c.b16 %v469, %v468
  %v590 = vpack.c.b16 %v471, %v470
  %v591 = vpack.c.b16 %v473, %v472
  %v592 = vpack.c.b16 %v475, %v474
  %v593 = vpack.c.b16 %v477, %v476
  %v594 = vpack.c.b16 %v479, %v478
  %v595 = vpack.c.b16 %v481, %v480
  %v596 = vpack.c.b16 %v483, %v482
  %v597 = vpack.c.b16 %v485, %v484
  %v598 = vpack.c.b16 %v487, %v486
  %v599 = vpack.c.b16 %v489, %v488
  %v600 = vpack.c.b16 %v491, %v490
  %v601 = vpack.c.b16 %v493, %v492
  %v602 = vpack.c.b16 %v495, %v494
  %v603 = vpack.c.b16 %v497, %v496
  %v604 = vpack.c.b16 %v499, %v498
  %v605 = vpack.c.b16 %v501, %v500
  %v606 = vpack.c.b16 %v503, %v502
  %v607 = vpack.c.b16 %v505, %v504
  %v608 = vpack.c.b16 %v507, %v506
  %v609 = vpack.c.b16 %v509, %v508
  %v610 = vpack.c.b16 %v511, %v510
  %v611 = vpack.c.b16 %v513, %v512
  %v612 = vpack.c.b16 %v515, %v514
  %v613 = vpack.c.b16 %v517, %v516
  %v614 = vpack.c.b16 %v519, %v518
  %v615 = vpack.c.b16 %v521, %v520
  %v616 = vpack.c.b16 %v523, %v522
  %v617 = vpack.c.b16 %v525, %v524
  %v618 = vpack.c.b16 %v527, %v526
  %v619 = vpack.c.b16 %v529, %v528
  %v620 = vpack.c.b16 %v531, %v530
  %v621 = vpack.c.b16 %v533, %v532
  %v622 = vpack.c.b16 %v535, %v534
  %v623 = vpack.c.b16 %v537, %v536
  %v624 = vpack.c.b16 %v539, %v538
  %v625 = vpack.c.b16 %v541, %v540
  %v626 = vpack.c.b16 %v543, %v542
  %v627 = vpack.c.b16 %v545, %v544
  %v628 = vpack.c.b16 %v547, %v546
  %v629 = vpack.c.b16 %v549, %v548
  %v630 = vpack.c.b16 %v551, %v550
  %v631 = vpack.c.b16 %v553, %v552
  %v632 = vpack.c.b16 %v555, %v554
  %v633 = vpack.c.b16 %v557, %v556
  %v634 = vpack.c.b16 %v559, %v558
  %v635 = vpack.c.b16 %v561, %v560
  %v636 = vpack.c.b16 %v563, %v562
  %v637 = vpack.c.b16 %v565, %v564
  %710 = vmatprep.subr.bf16.mxu0 0
  %711 = vmatpush1.bf16.msra.mxu0 %v573
  %712 = vmatprep.subr.bf16.mxu0 0
  %713 = vmatpush1.bf16.msra.mxu0 %v572
  %714 = vmatprep.subr.bf16.mxu0 0
  %715 = vmatpush1.bf16.msra.mxu0 %v571
  %716 = vmatprep.subr.bf16.mxu0 0
  %717 = vmatpush1.bf16.msra.mxu0 %v570
  %718 = vmatprep.subr.bf16.mxu0 0
  %719 = vmatpush1.bf16.msra.mxu0 %v569
  %720 = vmatprep.subr.bf16.mxu0 0
  %721 = vmatpush1.bf16.msra.mxu0 %v568
  %722 = vmatprep.subr.bf16.mxu0 0
  %723 = vmatpush1.bf16.msra.mxu0 %v567
  %724 = vmatprep.subr.bf16.mxu0 0
  %725 = vmatpush1.bf16.msra.mxu0 %v566
  %726 = vmatprep.subr.bf16.mxu0 0
  %727 = vmatpush2.bf16.msra.mxu0 %v581
  %728 = vmatprep.subr.bf16.mxu0 0
  %729 = vmatpush2.bf16.msra.mxu0 %v580
  %730 = vmatprep.subr.bf16.mxu0 0
  %731 = vmatpush2.bf16.msra.mxu0 %v579
  %732 = vmatprep.subr.bf16.mxu0 0
  %733 = vmatpush2.bf16.msra.mxu0 %v578
  %734 = vmatprep.subr.bf16.mxu0 0
  %735 = vmatpush2.bf16.msra.mxu0 %v577
  %736 = vmatprep.subr.bf16.mxu0 0
  %737 = vmatpush2.bf16.msra.mxu0 %v576
  %738 = vmatprep.subr.bf16.mxu0 0
  %739 = vmatpush2.bf16.msra.mxu0 %v575
  %740 = vmatprep.subr.bf16.mxu0 0
  %741 = vmatpush2.bf16.msra.mxu0 %v574
  %742 = vmatprep.mubr.bf16.mxu0 %v243
  %743 = vmatmul.mubr.bf16.gmra.mxu0 %v242
  %v744 = vpop.f32.mrf.mxu0
  %v745 = vadd.f32 %v184, %v744
  %v746 = vpop.f32.mrf.mxu0
  %v747 = vpop.f32.mrf.mxu0
  %v748 = vadd.f32 %v184, %v747
  %v749 = vpop.f32.mrf.mxu0
  %750 = vmatprep.mubr.bf16.mxu0 %v252
  %751 = vmatmul.mubr.bf16.gmra.mxu0 %v251
  %v752 = vpop.f32.mrf.mxu0
  %v753 = vadd.f32 %v184, %v752
  %v754 = vpop.f32.mrf.mxu0
  %v755 = vpop.f32.mrf.mxu0
  %v756 = vadd.f32 %v184, %v755
  %v757 = vpop.f32.mrf.mxu0
  %758 = vdwg.mxu0
  %759 = vmatprep.subr.bf16.mxu0 0
  %760 = vmatpush1.bf16.msra.mxu0 %v589
  %761 = vmatprep.subr.bf16.mxu0 0
  %762 = vmatpush1.bf16.msra.mxu0 %v588
  %763 = vmatprep.subr.bf16.mxu0 0
  %764 = vmatpush1.bf16.msra.mxu0 %v587
  %765 = vmatprep.subr.bf16.mxu0 0
  %766 = vmatpush1.bf16.msra.mxu0 %v586
  %767 = vmatprep.subr.bf16.mxu0 0
  %768 = vmatpush1.bf16.msra.mxu0 %v585
  %769 = vmatprep.subr.bf16.mxu0 0
  %770 = vmatpush1.bf16.msra.mxu0 %v584
  %771 = vmatprep.subr.bf16.mxu0 0
  %772 = vmatpush1.bf16.msra.mxu0 %v583
  %773 = vmatprep.subr.bf16.mxu0 0
  %774 = vmatpush1.bf16.msra.mxu0 %v582
  %775 = vmatprep.subr.bf16.mxu0 0
  %776 = vmatpush2.bf16.msra.mxu0 %v597
  %777 = vmatprep.subr.bf16.mxu0 0
  %778 = vmatpush2.bf16.msra.mxu0 %v596
  %779 = vmatprep.subr.bf16.mxu0 0
  %780 = vmatpush2.bf16.msra.mxu0 %v595
  %781 = vmatprep.subr.bf16.mxu0 0
  %782 = vmatpush2.bf16.msra.mxu0 %v594
  %783 = vmatprep.subr.bf16.mxu0 0
  %784 = vmatpush2.bf16.msra.mxu0 %v593
  %785 = vmatprep.subr.bf16.mxu0 0
  %786 = vmatpush2.bf16.msra.mxu0 %v592
  %787 = vmatprep.subr.bf16.mxu0 0
  %788 = vmatpush2.bf16.msra.mxu0 %v591
  %789 = vmatprep.subr.bf16.mxu0 0
  %790 = vmatpush2.bf16.msra.mxu0 %v590
  %791 = vmatprep.mubr.bf16.mxu0 %v245
  %792 = vmatmul.mubr.bf16.gmra.mxu0 %v244
  %v793 = vpop.f32.mrf.mxu0
  %v794 = vadd.f32 %v745, %v793
  %v795 = vpop.f32.mrf.mxu0
  %v796 = vpop.f32.mrf.mxu0
  %v797 = vadd.f32 %v748, %v796
  %v798 = vpop.f32.mrf.mxu0
  %799 = vmatprep.mubr.bf16.mxu0 %v254
  %800 = vmatmul.mubr.bf16.gmra.mxu0 %v253
  %v801 = vpop.f32.mrf.mxu0
  %v802 = vadd.f32 %v753, %v801
  %v803 = vpop.f32.mrf.mxu0
  %v804 = vpop.f32.mrf.mxu0
  %v805 = vadd.f32 %v756, %v804
  %v806 = vpop.f32.mrf.mxu0
  %807 = vdwg.mxu0
  %808 = vmatprep.subr.bf16.mxu0 0
  %809 = vmatpush1.bf16.msra.mxu0 %v605
  %810 = vmatprep.subr.bf16.mxu0 0
  %811 = vmatpush1.bf16.msra.mxu0 %v604
  %812 = vmatprep.subr.bf16.mxu0 0
  %813 = vmatpush1.bf16.msra.mxu0 %v603
  %814 = vmatprep.subr.bf16.mxu0 0
  %815 = vmatpush1.bf16.msra.mxu0 %v602
  %816 = vmatprep.subr.bf16.mxu0 0
  %817 = vmatpush1.bf16.msra.mxu0 %v601
  %818 = vmatprep.subr.bf16.mxu0 0
  %819 = vmatpush1.bf16.msra.mxu0 %v600
  %820 = vmatprep.subr.bf16.mxu0 0
  %821 = vmatpush1.bf16.msra.mxu0 %v599
  %822 = vmatprep.subr.bf16.mxu0 0
  %823 = vmatpush1.bf16.msra.mxu0 %v598
  %824 = vmatprep.subr.bf16.mxu0 0
  %825 = vmatpush2.bf16.msra.mxu0 %v613
  %826 = vmatprep.subr.bf16.mxu0 0
  %827 = vmatpush2.bf16.msra.mxu0 %v612
  %828 = vmatprep.subr.bf16.mxu0 0
  %829 = vmatpush2.bf16.msra.mxu0 %v611
  %830 = vmatprep.subr.bf16.mxu0 0
  %831 = vmatpush2.bf16.msra.mxu0 %v610
  %832 = vmatprep.subr.bf16.mxu0 0
  %833 = vmatpush2.bf16.msra.mxu0 %v609
  %834 = vmatprep.subr.bf16.mxu0 0
  %835 = vmatpush2.bf16.msra.mxu0 %v608
  %836 = vmatprep.subr.bf16.mxu0 0
  %837 = vmatpush2.bf16.msra.mxu0 %v607
  %838 = vmatprep.subr.bf16.mxu0 0
  %839 = vmatpush2.bf16.msra.mxu0 %v606
  %840 = vmatprep.mubr.bf16.mxu0 %v247
  %841 = vmatmul.mubr.bf16.gmra.mxu0 %v246
  %v842 = vpop.f32.mrf.mxu0
  %v843 = vadd.f32 %v794, %v842
  %v844 = vpop.f32.mrf.mxu0
  %v845 = vpop.f32.mrf.mxu0
  %v846 = vadd.f32 %v797, %v845
  %v847 = vpop.f32.mrf.mxu0
  %848 = vmatprep.mubr.bf16.mxu0 %v256
  %849 = vmatmul.mubr.bf16.gmra.mxu0 %v255
  %v850 = vpop.f32.mrf.mxu0
  %v851 = vadd.f32 %v802, %v850
  %v852 = vpop.f32.mrf.mxu0
  %v853 = vpop.f32.mrf.mxu0
  %v854 = vadd.f32 %v805, %v853
  %v855 = vpop.f32.mrf.mxu0
  %856 = vdwg.mxu0
  %857 = vmatprep.subr.bf16.mxu0 0
  %858 = vmatpush1.bf16.msra.mxu0 %v621
  %859 = vmatprep.subr.bf16.mxu0 0
  %860 = vmatpush1.bf16.msra.mxu0 %v620
  %861 = vmatprep.subr.bf16.mxu0 0
  %862 = vmatpush1.bf16.msra.mxu0 %v619
  %863 = vmatprep.subr.bf16.mxu0 0
  %864 = vmatpush1.bf16.msra.mxu0 %v618
  %865 = vmatprep.subr.bf16.mxu0 0
  %866 = vmatpush1.bf16.msra.mxu0 %v617
  %867 = vmatprep.subr.bf16.mxu0 0
  %868 = vmatpush1.bf16.msra.mxu0 %v616
  %869 = vmatprep.subr.bf16.mxu0 0
  %870 = vmatpush1.bf16.msra.mxu0 %v615
  %871 = vmatprep.subr.bf16.mxu0 0
  %872 = vmatpush1.bf16.msra.mxu0 %v614
  %873 = vmatprep.subr.bf16.mxu0 0
  %874 = vmatpush2.bf16.msra.mxu0 %v629
  %875 = vmatprep.subr.bf16.mxu0 0
  %876 = vmatpush2.bf16.msra.mxu0 %v628
  %877 = vmatprep.subr.bf16.mxu0 0
  %878 = vmatpush2.bf16.msra.mxu0 %v627
  %879 = vmatprep.subr.bf16.mxu0 0
  %880 = vmatpush2.bf16.msra.mxu0 %v626
  %881 = vmatprep.subr.bf16.mxu0 0
  %882 = vmatpush2.bf16.msra.mxu0 %v625
  %883 = vmatprep.subr.bf16.mxu0 0
  %884 = vmatpush2.bf16.msra.mxu0 %v624
  %885 = vmatprep.subr.bf16.mxu0 0
  %886 = vmatpush2.bf16.msra.mxu0 %v623
  %887 = vmatprep.subr.bf16.mxu0 0
  %888 = vmatpush2.bf16.msra.mxu0 %v622
  %889 = vmatprep.mubr.bf16.mxu0 %v249
  %890 = vmatmul.mubr.bf16.gmra.mxu0 %v248
  %v891 = vpop.f32.mrf.mxu0
  %v892 = vadd.f32 %v843, %v891
  %v893 = vpop.f32.mrf.mxu0
  %v894 = vpop.f32.mrf.mxu0
  %v895 = vadd.f32 %v846, %v894
  %v896 = vpop.f32.mrf.mxu0
  %897 = vmatprep.mubr.bf16.mxu0 %v258
  %898 = vmatmul.mubr.bf16.gmra.mxu0 %v257
  %v899 = vpop.f32.mrf.mxu0
  %v900 = vadd.f32 %v851, %v899
  %v901 = vpop.f32.mrf.mxu0
  %v902 = vpop.f32.mrf.mxu0
  %v903 = vadd.f32 %v854, %v902
  %v904 = vpop.f32.mrf.mxu0
  %905 = vdwg.mxu0
  %906 = vmatprep.subr.bf16.mxu0 0
  %907 = vmatpush1.bf16.msra.mxu0 %v637
  %908 = vmatprep.subr.bf16.mxu0 0
  %909 = vmatpush1.bf16.msra.mxu0 %v636
  %910 = vmatprep.subr.bf16.mxu0 0
  %911 = vmatpush1.bf16.msra.mxu0 %v635
  %912 = vmatprep.subr.bf16.mxu0 0
  %913 = vmatpush1.bf16.msra.mxu0 %v634
  %914 = vmatprep.subr.bf16.mxu0 0
  %915 = vmatpush1.bf16.msra.mxu0 %v633
  %916 = vmatprep.subr.bf16.mxu0 0
  %917 = vmatpush1.bf16.msra.mxu0 %v632
  %918 = vmatprep.subr.bf16.mxu0 0
  %919 = vmatpush1.bf16.msra.mxu0 %v631
  %920 = vmatprep.subr.bf16.mxu0 0
  %921 = vmatpush1.bf16.msra.mxu0 %v630
  %922 = vmatprep.subr.bf16.mxu0 0
  %923 = vmatpush2.bf16.msra.mxu0 0
  %924 = vmatprep.subr.bf16.mxu0 0
  %925 = vmatpush2.bf16.msra.mxu0 0
  %926 = vmatprep.subr.bf16.mxu0 0
  %927 = vmatpush2.bf16.msra.mxu0 0
  %928 = vmatprep.subr.bf16.mxu0 0
  %929 = vmatpush2.bf16.msra.mxu0 0
  %930 = vmatprep.subr.bf16.mxu0 0
  %931 = vmatpush2.bf16.msra.mxu0 0
  %932 = vmatprep.subr.bf16.mxu0 0
  %933 = vmatpush2.bf16.msra.mxu0 0
  %934 = vmatprep.subr.bf16.mxu0 0
  %935 = vmatpush2.bf16.msra.mxu0 0
  %936 = vmatprep.subr.bf16.mxu0 0
  %937 = vmatpush2.bf16.msra.mxu0 0
  %938 = vmatprep.mubr.bf16.mxu0 0
  %939 = vmatmul.mubr.bf16.gmra.mxu0 %v250
  %v940 = vpop.f32.mrf.mxu0
  %v941 = vadd.f32 %v892, %v940
  %v942 = vpop.f32.mrf.mxu0
  %v943 = vpop.f32.mrf.mxu0
  %v944 = vadd.f32 %v895, %v943
  %v945 = vpop.f32.mrf.mxu0
  %946 = vmatprep.mubr.bf16.mxu0 0
  %947 = vmatmul.mubr.bf16.gmra.mxu0 %v259
  %v948 = vpop.f32.mrf.mxu0
  %v949 = vadd.f32 %v900, %v948
  %v950 = vpop.f32.mrf.mxu0
  %v951 = vpop.f32.mrf.mxu0
  %v952 = vadd.f32 %v903, %v951
  %v953 = vpop.f32.mrf.mxu0
  %954 = vdwg.mxu0
  %v955 = vmax.f32 %v941, 0.0
  %v956 = vmax.f32 %v944, 0.0
  %v957 = vmax.f32 %v949, 0.0
  %v958 = vmax.f32 %v952, 0.0
  %v959 = vpack.c.bf16 %v956, %v955
  %v960 = vpack.c.bf16 %v958, %v957
  %v963 = vunpack.c.l.b16 %v959
  %v964 = vunpack.c.h.b16 %v959
  %v965 = vunpack.c.l.b16 %v960
  %v966 = vunpack.c.h.b16 %v960
  %v967 = vpack.c.b16 %v963, %v963
  %v968 = vpack.c.b16 %v964, %v964
  %v969 = vpack.c.b16 %v965, %v965
  %v970 = vpack.c.b16 %v966, %v966
  %975 = vst [vmem:[%s3] sm:$0xf] %v967
  %976 = vst [vmem:[%s3 + $0x4] sm:$0xf] %v968
  %977 = vst [vmem:[%s3 + $0x8] sm:$0xf] %v969
  %978 = vst [vmem:[%s3 + $0xc] sm:$0xf] %v970
  // Predicated region
  $region14: #{vqvae_forward.18} parent=0 // pred_check
    _
  $region15: #{vqvae_forward.18} parent=0 // pred_check_branch
    %980 = sbr.rel (0) target = $region17
  $region16: #{vqvae_forward.18} parent=0 // pred_region
    _
  $region17: #{vqvae_forward.18} parent=0 // pred_fallthru
    _
  // Predicated region
  $region18: #{vqvae_forward.18} parent=0 // pred_check
    _
  $region19: #{vqvae_forward.18} parent=0 // pred_check_branch
    %982 = sbr.rel (0) target = $region21
  $region20: #{vqvae_forward.18} parent=0 // pred_region
    _
  $region21: #{vqvae_forward.18} parent=0 // pred_fallthru
    _

// kernel: vqvae_forward.22
$region0: #{vqvae_forward.22}
  #allocation0 [shape = 'u32[]', space=smem, size = 0x4, offset = 0x4, fixed_abs, tag = 'smem constant byte address 0x4 - core index']
  #allocation1 [shape = 'u32[144,128]{1,0:T(1,128)}', space=vmem, size = 0x12000, scoped, tag = 'internal scratch']
  %s0 = inlined_call_operand.vmem [shape: bf16[32,128], index: 0, kind: input, shape index: {}]
  %s1 = inlined_call_operand.vmem [shape: f32[128,128], index: 1, kind: input, shape index: {}]
  %s2 = inlined_call_operand.vmem [shape: f32[1,128], index: 2, kind: input, shape index: {}]
  %s3 = inlined_call_operand.vmem [shape: f32[32,128], index: 3, kind: output, shape index: {}]
  %s4 = sld [smem:[#allocation0]]
  $region22: #{vqvae_forward.22} parent=0
    _
  %s6 = ssub.s32 1, %s4
  %s7 = scalar_select 0, %s6, %s4
  // Predicated region
  $region2: #{vqvae_forward.22} parent=0 // pred_check
    _
  $region3: #{vqvae_forward.22} parent=0 // pred_check_branch
    %9 = sbr.rel (0) target = $region5
  $region4: #{vqvae_forward.22} parent=0 // pred_region
    _
  $region5: #{vqvae_forward.22} parent=0 // pred_fallthru
    _
  // Predicated region
  $region6: #{vqvae_forward.22} parent=0 // pred_check
    _
  $region7: #{vqvae_forward.22} parent=0 // pred_check_branch
    %11 = sbr.rel (0) target = $region9
  $region8: #{vqvae_forward.22} parent=0 // pred_region
    _
  $region9: #{vqvae_forward.22} parent=0 // pred_fallthru
    _
  // Predicated region
  $region10: #{vqvae_forward.22} parent=0 // pred_check
    _
  $region11: #{vqvae_forward.22} parent=0 // pred_check_branch
    %13 = sbr.rel (0) target = $region13
  $region12: #{vqvae_forward.22} parent=0 // pred_region
    _
  $region13: #{vqvae_forward.22} parent=0 // pred_fallthru
    _
  %v14 = vld [vmem:[%s0] sm:$0xf]
  %v15 = vld [vmem:[%s0 + $0x4] sm:$0xf]
  %v16 = vld [vmem:[%s0 + $0x8] sm:$0xf]
  %v17 = vld [vmem:[%s0 + $0xc] sm:$0xf]
  %v18 = vunpack.c.l.bf16 %v14
  %v19 = vunpack.c.l.bf16 %v15
  %v20 = vunpack.c.l.bf16 %v16
  %v21 = vunpack.c.l.bf16 %v17
  %v22 = vmul.f32 %v18, %v18
  %v23 = vmul.f32 %v19, %v19
  %v24 = vmul.f32 %v20, %v20
  %v25 = vmul.f32 %v21, %v21
  %26 = vadd.xlane.f32.xlu0 %v22
  %v27 = vpop.xlane.xlu0 %26
  %28 = vadd.xlane.f32.xlu0 %v23
  %v29 = vpop.xlane.xlu0 %28
  %30 = vadd.xlane.f32.xlu0 %v24
  %v31 = vpop.xlane.xlu0 %30
  %32 = vadd.xlane.f32.xlu0 %v25
  %v33 = vpop.xlane.xlu0 %32
  %v34 = vld [vmem:[%s1] sm:$0xff]
  %v35 = vld [vmem:[%s1 + $0x8] sm:$0xff]
  %v36 = vld [vmem:[%s1 + $0x10] sm:$0xff]
  %v37 = vld [vmem:[%s1 + $0x18] sm:$0xff]
  %v38 = vld [vmem:[%s1 + $0x20] sm:$0xff]
  %v39 = vld [vmem:[%s1 + $0x28] sm:$0xff]
  %v40 = vld [vmem:[%s1 + $0x30] sm:$0xff]
  %v41 = vld [vmem:[%s1 + $0x38] sm:$0xff]
  %v42 = vld [vmem:[%s1 + $0x40] sm:$0xff]
  %v43 = vld [vmem:[%s1 + $0x48] sm:$0xff]
  %v44 = vld [vmem:[%s1 + $0x50] sm:$0xff]
  %v45 = vld [vmem:[%s1 + $0x58] sm:$0xff]
  %v46 = vld [vmem:[%s1 + $0x60] sm:$0xff]
  %v47 = vld [vmem:[%s1 + $0x68] sm:$0xff]
  %v48 = vld [vmem:[%s1 + $0x70] sm:$0xff]
  %v49 = vld [vmem:[%s1 + $0x78] sm:$0xff]
  %50 = vmatprep.subr.mxu0 0.0
  %51 = vmatpush1.xpose.msra.mxu0 %v49
  %52 = vmatprep.subr.mxu0 0.0
  %53 = vmatpush1.xpose.msra.mxu0 %v48
  %54 = vmatprep.subr.mxu0 0.0
  %55 = vmatpush1.xpose.msra.mxu0 %v47
  %56 = vmatprep.subr.mxu0 0.0
  %57 = vmatpush1.xpose.msra.mxu0 %v46
  %58 = vmatprep.subr.mxu0 0.0
  %59 = vmatpush1.xpose.msra.mxu0 %v45
  %60 = vmatprep.subr.mxu0 0.0
  %61 = vmatpush1.xpose.msra.mxu0 %v44
  %62 = vmatprep.subr.mxu0 0.0
  %63 = vmatpush1.xpose.msra.mxu0 %v43
  %64 = vmatprep.subr.mxu0 0.0
  %65 = vmatpush1.xpose.msra.mxu0 %v42
  %66 = vmatprep.subr.mxu0 0.0
  %67 = vmatpush1.xpose.msra.mxu0 %v41
  %68 = vmatprep.subr.mxu0 0.0
  %69 = vmatpush1.xpose.msra.mxu0 %v40
  %70 = vmatprep.subr.mxu0 0.0
  %71 = vmatpush1.xpose.msra.mxu0 %v39
  %72 = vmatprep.subr.mxu0 0.0
  %73 = vmatpush1.xpose.msra.mxu0 %v38
  %74 = vmatprep.subr.mxu0 0.0
  %75 = vmatpush1.xpose.msra.mxu0 %v37
  %76 = vmatprep.subr.mxu0 0.0
  %77 = vmatpush1.xpose.msra.mxu0 %v36
  %78 = vmatprep.subr.mxu0 0.0
  %79 = vmatpush1.xpose.msra.mxu0 %v35
  %80 = vmatprep.subr.mxu0 0.0
  %81 = vmatpush1.xpose.msra.mxu0 %v34
  %82 = vmatprep.subr.mxu0 0.0
  %83 = vmatpush2.xpose.msra.mxu0 0.0
  %84 = vmatprep.subr.mxu0 0.0
  %85 = vmatpush2.xpose.msra.mxu0 0.0
  %86 = vmatprep.subr.mxu0 0.0
  %87 = vmatpush2.xpose.msra.mxu0 0.0
  %88 = vmatprep.subr.mxu0 0.0
  %89 = vmatpush2.xpose.msra.mxu0 0.0
  %90 = vmatprep.subr.mxu0 0.0
  %91 = vmatpush2.xpose.msra.mxu0 0.0
  %92 = vmatprep.subr.mxu0 0.0
  %93 = vmatpush2.xpose.msra.mxu0 0.0
  %94 = vmatprep.subr.mxu0 0.0
  %95 = vmatpush2.xpose.msra.mxu0 0.0
  %96 = vmatprep.subr.mxu0 0.0
  %97 = vmatpush2.xpose.msra.mxu0 0.0
  %98 = vmatprep.subr.mxu0 0.0
  %99 = vmatpush2.xpose.msra.mxu0 0.0
  %100 = vmatprep.subr.mxu0 0.0
  %101 = vmatpush2.xpose.msra.mxu0 0.0
  %102 = vmatprep.subr.mxu0 0.0
  %103 = vmatpush2.xpose.msra.mxu0 0.0
  %104 = vmatprep.subr.mxu0 0.0
  %105 = vmatpush2.xpose.msra.mxu0 0.0
  %106 = vmatprep.subr.mxu0 0.0
  %107 = vmatpush2.xpose.msra.mxu0 0.0
  %108 = vmatprep.subr.mxu0 0.0
  %109 = vmatpush2.xpose.msra.mxu0 0.0
  %110 = vmatprep.subr.mxu0 0.0
  %111 = vmatpush2.xpose.msra.mxu0 0.0
  %112 = vmatprep.subr.mxu0 0.0
  %113 = vmatpush2.xpose.msra.mxu0 0.0
  %114 = vmatprep.mubr.f32.mxu0 0.0
  %115 = vmatmul.mubr.f32.gmra.mxu0 %v18
  %v116 = vpop.f32.mrf.mxu0
  %v117 = vadd.f32 0.0, %v116
  %v118 = vpop.f32.mrf.mxu0
  %119 = vmatprep.mubr.f32.mxu0 0.0
  %120 = vmatmul.mubr.f32.gmra.mxu0 %v19
  %v121 = vpop.f32.mrf.mxu0
  %v122 = vadd.f32 0.0, %v121
  %v123 = vpop.f32.mrf.mxu0
  %124 = vmatprep.mubr.f32.mxu0 0.0
  %125 = vmatmul.mubr.f32.gmra.mxu0 %v20
  %v126 = vpop.f32.mrf.mxu0
  %v127 = vadd.f32 0.0, %v126
  %v128 = vpop.f32.mrf.mxu0
  %129 = vmatprep.mubr.f32.mxu0 0.0
  %130 = vmatmul.mubr.f32.gmra.mxu0 %v21
  %v131 = vpop.f32.mrf.mxu0
  %v132 = vadd.f32 0.0, %v131
  %v133 = vpop.f32.mrf.mxu0
  %134 = vdwg.mxu0
  %v135 = vmul.f32 %v117, 2.0
  %v136 = vmul.f32 %v122, 2.0
  %v137 = vmul.f32 %v127, 2.0
  %v138 = vmul.f32 %v132, 2.0
  %v139 = vsub.f32 %v27, %v135
  %v140 = vsub.f32 %v29, %v136
  %v141 = vsub.f32 %v31, %v137
  %v142 = vsub.f32 %v33, %v138
  %v143 = vld [vmem:[%s2] sm:$0x1]
  %v145 = vlaneseq
  %v146 = vshrl.u32 %v145, 7
  %v147 = vsub.s32 0, %v146
  %v148 = vrot.slane %v143, %v147
  %v150 = vadd.f32 %v139, %v148
  %v151 = vadd.f32 %v140, %v148
  %v152 = vadd.f32 %v141, %v148
  %v153 = vadd.f32 %v142, %v148
  %v154 = vlaneseq
  %v155 = vand.u32 %v154, 127
  %156 = vmin.xlane.f32.xlu0 %v150
  %v157 = vpop.xlane.xlu0 %156
  %158 = vmin.xlane.f32.xlu0 %v151
  %v159 = vpop.xlane.xlu0 %158
  %160 = vmin.xlane.f32.xlu0 %v152
  %v161 = vpop.xlane.xlu0 %160
  %162 = vmin.xlane.f32.xlu0 %v153
  %v163 = vpop.xlane.xlu0 %162
  %vm164 = vcmp.eq.f32.partialorder %v150, %v157
  %vm165 = vcmp.eq.f32.partialorder %v151, %v159
  %vm166 = vcmp.eq.f32.partialorder %v152, %v161
  %vm167 = vcmp.eq.f32.partialorder %v153, %v163
  %v168 = vsel %vm164, %v155, 128
  %v169 = vsel %vm165, %v155, 128
  %v170 = vsel %vm166, %v155, 128
  %v171 = vsel %vm167, %v155, 128
  %v172 = vand.u32 %v168, 65535
  %v173 = vshra.s32 %v168, 16
  %v174 = vcvt.s32.f32 %v172
  %v175 = vcvt.s32.f32 %v173
  %176 = vmin.xlane.f32.xlu0 %v175
  %v177 = vpop.xlane.xlu0 %176
  %vm178 = vcmp.eq.f32.partialorder %v175, %v177
  %v179 = vsel %vm178, %v174, inf
  %180 = vmin.xlane.f32.xlu0 %v179
  %v181 = vpop.xlane.xlu0 %180
  %v182 = vcvt.f32.s32 %v181
  %v183 = vcvt.f32.s32 %v177
  %v184 = vshll.u32 %v183, 16
  %v185 = vadd.s32 %v184, %v182
  %v186 = vand.u32 %v169, 65535
  %v187 = vshra.s32 %v169, 16
  %v188 = vcvt.s32.f32 %v186
  %v189 = vcvt.s32.f32 %v187
  %190 = vmin.xlane.f32.xlu0 %v189
  %v191 = vpop.xlane.xlu0 %190
  %vm192 = vcmp.eq.f32.partialorder %v189, %v191
  %v193 = vsel %vm192, %v188, inf
  %194 = vmin.xlane.f32.xlu0 %v193
  %v195 = vpop.xlane.xlu0 %194
  %v196 = vcvt.f32.s32 %v195
  %v197 = vcvt.f32.s32 %v191
  %v198 = vshll.u32 %v197, 16
  %v199 = vadd.s32 %v198, %v196
  %v200 = vand.u32 %v170, 65535
  %v201 = vshra.s32 %v170, 16
  %v202 = vcvt.s32.f32 %v200
  %v203 = vcvt.s32.f32 %v201
  %204 = vmin.xlane.f32.xlu0 %v203
  %v205 = vpop.xlane.xlu0 %204
  %vm206 = vcmp.eq.f32.partialorder %v203, %v205
  %v207 = vsel %vm206, %v202, inf
  %208 = vmin.xlane.f32.xlu0 %v207
  %v209 = vpop.xlane.xlu0 %208
  %v210 = vcvt.f32.s32 %v209
  %v211 = vcvt.f32.s32 %v205
  %v212 = vshll.u32 %v211, 16
  %v213 = vadd.s32 %v212, %v210
  %v214 = vand.u32 %v171, 65535
  %v215 = vshra.s32 %v171, 16
  %v216 = vcvt.s32.f32 %v214
  %v217 = vcvt.s32.f32 %v215
  %218 = vmin.xlane.f32.xlu0 %v217
  %v219 = vpop.xlane.xlu0 %218
  %vm220 = vcmp.eq.f32.partialorder %v217, %v219
  %v221 = vsel %vm220, %v216, inf
  %222 = vmin.xlane.f32.xlu0 %v221
  %v223 = vpop.xlane.xlu0 %222
  %v224 = vcvt.f32.s32 %v223
  %v225 = vcvt.f32.s32 %v219
  %v226 = vshll.u32 %v225, 16
  %v227 = vadd.s32 %v226, %v224
  %vm228 = vcmp.eq.s32.totalorder %v155, %v185
  %vm229 = vcmp.eq.s32.totalorder %v155, %v199
  %vm230 = vcmp.eq.s32.totalorder %v155, %v213
  %vm231 = vcmp.eq.s32.totalorder %v155, %v227
  %v232 = vsel %vm228, 1, 0
  %v233 = vsel %vm229, 1, 0
  %v234 = vsel %vm230, 1, 0
  %v235 = vsel %vm231, 1, 0
  %v236 = vcvt.s32.f32 %v232
  %v237 = vcvt.s32.f32 %v233
  %v238 = vcvt.s32.f32 %v234
  %v239 = vcvt.s32.f32 %v235
  %240 = vmatprep.subr.mxu0 0.0
  %241 = vmatpush1.msra.mxu0 %v49
  %242 = vmatprep.subr.mxu0 0.0
  %243 = vmatpush1.msra.mxu0 %v48
  %244 = vmatprep.subr.mxu0 0.0
  %245 = vmatpush1.msra.mxu0 %v47
  %246 = vmatprep.subr.mxu0 0.0
  %247 = vmatpush1.msra.mxu0 %v46
  %248 = vmatprep.subr.mxu0 0.0
  %249 = vmatpush1.msra.mxu0 %v45
  %250 = vmatprep.subr.mxu0 0.0
  %251 = vmatpush1.msra.mxu0 %v44
  %252 = vmatprep.subr.mxu0 0.0
  %253 = vmatpush1.msra.mxu0 %v43
  %254 = vmatprep.subr.mxu0 0.0
  %255 = vmatpush1.msra.mxu0 %v42
  %256 = vmatprep.subr.mxu0 0.0
  %257 = vmatpush1.msra.mxu0 %v41
  %258 = vmatprep.subr.mxu0 0.0
  %259 = vmatpush1.msra.mxu0 %v40
  %260 = vmatprep.subr.mxu0 0.0
  %261 = vmatpush1.msra.mxu0 %v39
  %262 = vmatprep.subr.mxu0 0.0
  %263 = vmatpush1.msra.mxu0 %v38
  %264 = vmatprep.subr.mxu0 0.0
  %265 = vmatpush1.msra.mxu0 %v37
  %266 = vmatprep.subr.mxu0 0.0
  %267 = vmatpush1.msra.mxu0 %v36
  %268 = vmatprep.subr.mxu0 0.0
  %269 = vmatpush1.msra.mxu0 %v35
  %270 = vmatprep.subr.mxu0 0.0
  %271 = vmatpush1.msra.mxu0 %v34
  %272 = vmatprep.subr.mxu0 0.0
  %273 = vmatpush2.msra.mxu0 0.0
  %274 = vmatprep.subr.mxu0 0.0
  %275 = vmatpush2.msra.mxu0 0.0
  %276 = vmatprep.subr.mxu0 0.0
  %277 = vmatpush2.msra.mxu0 0.0
  %278 = vmatprep.subr.mxu0 0.0
  %279 = vmatpush2.msra.mxu0 0.0
  %280 = vmatprep.subr.mxu0 0.0
  %281 = vmatpush2.msra.mxu0 0.0
  %282 = vmatprep.subr.mxu0 0.0
  %283 = vmatpush2.msra.mxu0 0.0
  %284 = vmatprep.subr.mxu0 0.0
  %285 = vmatpush2.msra.mxu0 0.0
  %286 = vmatprep.subr.mxu0 0.0
  %287 = vmatpush2.msra.mxu0 0.0
  %288 = vmatprep.subr.mxu0 0.0
  %289 = vmatpush2.msra.mxu0 0.0
  %290 = vmatprep.subr.mxu0 0.0
  %291 = vmatpush2.msra.mxu0 0.0
  %292 = vmatprep.subr.mxu0 0.0
  %293 = vmatpush2.msra.mxu0 0.0
  %294 = vmatprep.subr.mxu0 0.0
  %295 = vmatpush2.msra.mxu0 0.0
  %296 = vmatprep.subr.mxu0 0.0
  %297 = vmatpush2.msra.mxu0 0.0
  %298 = vmatprep.subr.mxu0 0.0
  %299 = vmatpush2.msra.mxu0 0.0
  %300 = vmatprep.subr.mxu0 0.0
  %301 = vmatpush2.msra.mxu0 0.0
  %302 = vmatprep.subr.mxu0 0.0
  %303 = vmatpush2.msra.mxu0 0.0
  %304 = vmatprep.mubr.f32.mxu0 0.0
  %305 = vmatmul.mubr.f32.gmra.mxu0 %v236
  %v306 = vpop.f32.mrf.mxu0
  %v307 = vadd.f32 0.0, %v306
  %v308 = vpop.f32.mrf.mxu0
  %309 = vmatprep.mubr.f32.mxu0 0.0
  %310 = vmatmul.mubr.f32.gmra.mxu0 %v237
  %v311 = vpop.f32.mrf.mxu0
  %v312 = vadd.f32 0.0, %v311
  %v313 = vpop.f32.mrf.mxu0
  %314 = vmatprep.mubr.f32.mxu0 0.0
  %315 = vmatmul.mubr.f32.gmra.mxu0 %v238
  %v316 = vpop.f32.mrf.mxu0
  %v317 = vadd.f32 0.0, %v316
  %v318 = vpop.f32.mrf.mxu0
  %319 = vmatprep.mubr.f32.mxu0 0.0
  %320 = vmatmul.mubr.f32.gmra.mxu0 %v239
  %v321 = vpop.f32.mrf.mxu0
  %v322 = vadd.f32 0.0, %v321
  %v323 = vpop.f32.mrf.mxu0
  %324 = vdwg.mxu0
  %325 = vst [vmem:[%s3] sm:$0xff] %v307
  %326 = vst [vmem:[%s3 + $0x8] sm:$0xff] %v312
  %327 = vst [vmem:[%s3 + $0x10] sm:$0xff] %v317
  %328 = vst [vmem:[%s3 + $0x18] sm:$0xff] %v322
  // Predicated region
  $region14: #{vqvae_forward.22} parent=0 // pred_check
    _
  $region15: #{vqvae_forward.22} parent=0 // pred_check_branch
    %330 = sbr.rel (0) target = $region17
  $region16: #{vqvae_forward.22} parent=0 // pred_region
    _
  $region17: #{vqvae_forward.22} parent=0 // pred_fallthru
    _
  // Predicated region
  $region18: #{vqvae_forward.22} parent=0 // pred_check
    _
  $region19: #{vqvae_forward.22} parent=0 // pred_check_branch
    %332 = sbr.rel (0) target = $region21
  $region20: #{vqvae_forward.22} parent=0 // pred_region
    _
  $region21: #{vqvae_forward.22} parent=0 // pred_fallthru
    _

// kernel: vqvae_forward.28
$region0: #{vqvae_forward.28}
  #allocation0 [shape = 'u32[]', space=smem, size = 0x4, offset = 0x4, fixed_abs, tag = 'smem constant byte address 0x4 - core index']
  #allocation1 [shape = 'u32[144,128]{1,0:T(1,128)}', space=vmem, size = 0x12000, scoped, tag = 'internal scratch']
  %s0 = inlined_call_operand.vmem [shape: bf16[32,1152], index: 0, kind: input, shape index: {}]
  %s1 = inlined_call_operand.vmem [shape: bf16[1152,512], index: 1, kind: input, shape index: {}]
  %s2 = inlined_call_operand.vmem [shape: f32[1,512], index: 2, kind: input, shape index: {}]
  %s3 = inlined_call_operand.vmem [shape: bf16[32,512], index: 3, kind: output, shape index: {}]
  %s4 = sld [smem:[#allocation0]]
  $region117: #{vqvae_forward.28} parent=0
    _
  %s6 = ssub.s32 1, %s4
  %s7 = scalar_select 0, %s6, %s4
  $region1: #{vqvae_forward.28} parent=0
    #allocation2 [shape = 'u8[1179648]{0}', space=vmem, size = 0x120000, scoped, tag = 'input window, operand 1']
    #allocation3 [shape = 'u8[32768]{0}', space=vmem, size = 0x8000, scoped, tag = 'output window, operand 0']
    loop: start=0, step=1, limit=4
    $region2: #{vqvae_forward.28} parent=1 // loop_pre_header
      _
    $region3: #{vqvae_forward.28} parent=1 // loop_header
      %s9 = sphi 0, %s13
      %p10 = scmp.ge.s32.totalorder %s9, 4
      %s16 = sphi 0, %s28
      %s17 = sphi 0, %s24
      %s18 = sphi 0, %s16
      %s19 = sphi 0, %s17
      %s20 = sphi 0, %s18
      %s21 = sphi 0, %s19
      %s31 = sphi 0, %s33
      %s34 = sphi 0, %s31
      %s35 = sphi 0, %s34
      %s51 = sphi 0, %s35
      %s57 = sphi 0, %s59
      %s60 = sphi 0, %s57
      %s61 = sphi 0, %s60
      %s77 = sphi 0, %s61
      %s83 = sphi 0, %s85
      %s86 = sphi 0, %s83
      %s87 = sphi 0, %s86
      %s103 = sphi 0, %s87
      %s111 = sphi 0, %s113
      %s114 = sphi 0, %s111
      %s115 = sphi 0, %s114
      %s131 = sphi 0, %s115
    $region4: #{vqvae_forward.28} parent=1 // loop_header_branch
      %12 = sbr.rel (%p10) target = $region8
    $region5: #{vqvae_forward.28} parent=1 // loop_body
      %s14 = ssub.s32 %s9, 1
      %s15 = ssub.s32 %s9, 2
      %s22 = sadd.s32 1, %s17
      %p23 = scmp.ge.s32.totalorder %s22, 2
      %s24 = scalar_select %p23, 0, %s22
      %s25 = sadd.s32 1, %s16
      %s26 = scalar_select %p23, %s25, %s16
      %p27 = scmp.ge.s32.totalorder %s26, 1
      %s28 = scalar_select %p27, 0, %s26
      %s29 = ssub.s32 %s16, %s28
      %p30 = scmp.eq.s32.totalorder %s29, 0
      %s32 = sadd.s32 %s31, 1
      %s33 = scalar_select %p30, %s31, %s32
      %p36 = pneg %p30
      %p37 = scmp.eq.s32.totalorder %s9, 1
      %p38 = por %p36, %p37
      %p39 = scmp.ne.s32.totalorder %s31, %s34
      %p40 = scmp.eq.s32.totalorder %s9, 0
      %p41 = por %p39, %p40
      %p42 = scmp.ne.s32.totalorder %s31, %s34
      %p43 = scmp.eq.s32.totalorder %s14, 1
      %p44 = por %p42, %p43
      %p45 = scmp.ne.s32.totalorder %s34, %s35
      %p46 = scmp.eq.s32.totalorder %s14, 0
      %p47 = por %p45, %p46
      %p48 = scmp.ne.s32.totalorder %s34, %s35
      %p49 = scmp.eq.s32.totalorder %s15, 1
      %p50 = por %p48, %p49
      %p52 = scmp.ne.s32.totalorder %s35, %s51
      %p53 = scmp.eq.s32.totalorder %s15, 0
      %p54 = por %p52, %p53
      %s55 = ssub.s32 %s17, %s24
      %p56 = scmp.eq.s32.totalorder %s55, 0
      %s58 = sadd.s32 %s57, 1
      %s59 = scalar_select %p56, %s57, %s58
      %p62 = pneg %p56
      %p63 = scmp.eq.s32.totalorder %s9, 1
      %p64 = por %p62, %p63
      %p65 = scmp.ne.s32.totalorder %s57, %s60
      %p66 = scmp.eq.s32.totalorder %s9, 0
      %p67 = por %p65, %p66
      %p68 = scmp.ne.s32.totalorder %s57, %s60
      %p69 = scmp.eq.s32.totalorder %s14, 1
      %p70 = por %p68, %p69
      %p71 = scmp.ne.s32.totalorder %s60, %s61
      %p72 = scmp.eq.s32.totalorder %s14, 0
      %p73 = por %p71, %p72
      %p74 = scmp.ne.s32.totalorder %s60, %s61
      %p75 = scmp.eq.s32.totalorder %s15, 1
      %p76 = por %p74, %p75
      %p78 = scmp.ne.s32.totalorder %s61, %s77
      %p79 = scmp.eq.s32.totalorder %s15, 0
      %p80 = por %p78, %p79
      %s81 = ssub.s32 %s17, %s24
      %p82 = scmp.eq.s32.totalorder %s81, 0
      %s84 = sadd.s32 %s83, 1
      %s85 = scalar_select %p82, %s83, %s84
      %p88 = pneg %p82
      %p89 = scmp.eq.s32.totalorder %s9, 1
      %p90 = por %p88, %p89
      %p91 = scmp.ne.s32.totalorder %s83, %s86
      %p92 = scmp.eq.s32.totalorder %s9, 0
      %p93 = por %p91, %p92
      %p94 = scmp.ne.s32.totalorder %s83, %s86
      %p95 = scmp.eq.s32.totalorder %s14, 1
      %p96 = por %p94, %p95
      %p97 = scmp.ne.s32.totalorder %s86, %s87
      %p98 = scmp.eq.s32.totalorder %s14, 0
      %p99 = por %p97, %p98
      %p100 = scmp.ne.s32.totalorder %s86, %s87
      %p101 = scmp.eq.s32.totalorder %s15, 1
      %p102 = por %p100, %p101
      %p104 = scmp.ne.s32.totalorder %s87, %s103
      %p105 = scmp.eq.s32.totalorder %s15, 0
      %p106 = por %p104, %p105
      %s107 = ssub.s32 %s16, %s28
      %s108 = ssub.s32 %s17, %s24
      %s109 = sor.u32 %s107, %s108
      %p110 = scmp.eq.s32.totalorder %s109, 0
      %s112 = sadd.s32 %s111, 1
      %s113 = scalar_select %p110, %s111, %s112
      %p116 = pneg %p110
      %p117 = scmp.eq.s32.totalorder %s9, 1
      %p118 = por %p116, %p117
      %p119 = scmp.ne.s32.totalorder %s111, %s114
      %p120 = scmp.eq.s32.totalorder %s9, 0
      %p121 = por %p119, %p120
      %p122 = scmp.ne.s32.totalorder %s111, %s114
      %p123 = scmp.eq.s32.totalorder %s14, 1
      %p124 = por %p122, %p123
      %p125 = scmp.ne.s32.totalorder %s114, %s115
      %p126 = scmp.eq.s32.totalorder %s14, 0
      %p127 = por %p125, %p126
      %p128 = scmp.ne.s32.totalorder %s114, %s115
      %p129 = scmp.eq.s32.totalorder %s15, 1
      %p130 = por %p128, %p129
      %p132 = scmp.ne.s32.totalorder %s115, %s131
      %p133 = scmp.eq.s32.totalorder %s15, 0
      %p134 = por %p132, %p133
      %p135 = scmp.le.s32.totalorder 1, %s9
      %p136 = scmp.lt.s32.totalorder %s9, 3
      %p137 = pnand %p135, %p136
      %p138 = pneg %p137
      // Predicated region
      $region9: #{vqvae_forward.28} parent=5 // pred_check
        _
      $region10: #{vqvae_forward.28} parent=5 // pred_check_branch
        %140 = sbr.rel (%p137) target = $region12
      $region11: #{vqvae_forward.28} parent=5 // pred_region
        %s141 = ssub.s32 %s9, 1
        // Predicated region
        $region13: #{vqvae_forward.28} parent=11 // pred_check
          %p142 = pneg %p47
        $region14: #{vqvae_forward.28} parent=11 // pred_check_branch
          %144 = sbr.rel (%p142) target = $region16
        $region15: #{vqvae_forward.28} parent=11 // pred_region
          %s145 = smul.u32 4, %s18
          %p146 = scmp.lt.s32.totalorder %s145, 3
          %s147 = scalar_select %p146, %s145, 3
          %s148 = smul.addr %s147, 9
          %s149 = smul.addr %s148, 4
          %s150 = scalar_lea.vmem %s0, %s149
          %s151 = smul.u32 4, %s18
        $region16: #{vqvae_forward.28} parent=11 // pred_fallthru
          _
      $region12: #{vqvae_forward.28} parent=5 // pred_fallthru
        _
      %p152 = scmp.lt.s32.totalorder %s9, 2
      // Predicated region
      $region17: #{vqvae_forward.28} parent=5 // pred_check
        %p153 = pneg %p152
      $region18: #{vqvae_forward.28} parent=5 // pred_check_branch
        %155 = sbr.rel (%p153) target = $region20
      $region19: #{vqvae_forward.28} parent=5 // pred_region
        // Predicated region
        $region21: #{vqvae_forward.28} parent=19 // pred_check
          %p156 = pneg %p67
        $region22: #{vqvae_forward.28} parent=19 // pred_check_branch
          %158 = sbr.rel (%p156) target = $region24
        $region23: #{vqvae_forward.28} parent=19 // pred_region
          %s159 = sand.u32 %s57, 1
          %s160 = sand.u32 %s57, 1
          %s161 = smul.addr %s160, 1152
          %s162 = scalar_lea.vmem [#allocation2], %s161
          %s163 = smul.u32 2, %s17
          %s164 = smul.addr %s163, 4
          %s165 = scalar_lea.vmem %s1, %s164
          // Predicated region
          $region25: #{vqvae_forward.28} parent=23 // pred_check
            _
          $region26: #{vqvae_forward.28} parent=23 // pred_check_branch
            %167 = sbr.rel (0) target = $region28
          $region27: #{vqvae_forward.28} parent=23 // pred_region
            // Predicated region
            $region29: #{vqvae_forward.28} parent=27 // pred_check
              _
            $region30: #{vqvae_forward.28} parent=27 // pred_check_branch
              %169 = sbr.rel (0) target = $region32
            $region31: #{vqvae_forward.28} parent=27 // pred_region
              // Predicated region
              $region44: #{vqvae_forward.28} parent=31 // pred_check
                _
              $region45: #{vqvae_forward.28} parent=31 // pred_check_branch
                %471 = sbr.rel (0) target = $region47
              $region46: #{vqvae_forward.28} parent=31 // pred_region
                loop: start=0, step=1, limit=1
                $region48: #{vqvae_forward.28} parent=46 // loop_pre_header
                  _
                $region49: #{vqvae_forward.28} parent=46 // loop_header
                  %s473 = sphi 0, %s477
                  %p474 = scmp.ge.s32.totalorder %s473, 1
                  %s478 = sphi %s165, %s165
                  %s479 = sphi %s162, %s162
                $region50: #{vqvae_forward.28} parent=46 // loop_header_branch
                  %476 = sbr.rel (%p474) target = $region54
                $region51: #{vqvae_forward.28} parent=46 // loop_body
                  %v480 = vld [vmem:[%s478] sm:$0xff]
                  %481 = vst [vmem:[%s479] sm:$0xff] %v480
                  %v482 = vld [vmem:[%s478 + $0x10] sm:$0xff]
                  %483 = vst [vmem:[%s479 + $0x8] sm:$0xff] %v482
                  %v484 = vld [vmem:[%s478 + $0x20] sm:$0xff]
                  %485 = vst [vmem:[%s479 + $0x10] sm:$0xff] %v484
                  %v486 = vld [vmem:[%s478 + $0x30] sm:$0xff]
                  %487 = vst [vmem:[%s479 + $0x18] sm:$0xff] %v486
                  %v488 = vld [vmem:[%s478 + $0x40] sm:$0xff]
                  %489 = vst [vmem:[%s479 + $0x20] sm:$0xff] %v488
                  %v490 = vld [vmem:[%s478 + $0x50] sm:$0xff]
                  %491 = vst [vmem:[%s479 + $0x28] sm:$0xff] %v490
                  %v492 = vld [vmem:[%s478 + $0x60] sm:$0xff]
                  %493 = vst [vmem:[%s479 + $0x30] sm:$0xff] %v492
                  %v494 = vld [vmem:[%s478 + $0x70] sm:$0xff]
                  %495 = vst [vmem:[%s479 + $0x38] sm:$0xff] %v494
                  %v496 = vld [vmem:[%s478 + $0x80] sm:$0xff]
                  %497 = vst [vmem:[%s479 + $0x40] sm:$0xff] %v496
                  %v498 = vld [vmem:[%s478 + $0x90] sm:$0xff]
                  %499 = vst [vmem:[%s479 + $0x48] sm:$0xff] %v498
                  %v500 = vld [vmem:[%s478 + $0xa0] sm:$0xff]
                  %501 = vst [vmem:[%s479 + $0x50] sm:$0xff] %v500
                  %v502 = vld [vmem:[%s478 + $0xb0] sm:$0xff]
                  %503 = vst [vmem:[%s479 + $0x58] sm:$0xff] %v502
                  %v504 = vld [vmem:[%s478 + $0xc0] sm:$0xff]
                  %505 = vst [vmem:[%s479 + $0x60] sm:$0xff] %v504
                  %v506 = vld [vmem:[%s478 + $0xd0] sm:$0xff]
                  %507 = vst [vmem:[%s479 + $0x68] sm:$0xff] %v506
                  %v508 = vld [vmem:[%s478 + $0xe0] sm:$0xff]
                  %509 = vst [vmem:[%s479 + $0x70] sm:$0xff] %v508
                  %v510 = vld [vmem:[%s478 + $0xf0] sm:$0xff]
                  %511 = vst [vmem:[%s479 + $0x78] sm:$0xff] %v510
                  %v512 = vld [vmem:[%s478 + $0x100] sm:$0xff]
                  %513 = vst [vmem:[%s479 + $0x80] sm:$0xff] %v512
                  %v514 = vld [vmem:[%s478 + $0x110] sm:$0xff]
                  %515 = vst [vmem:[%s479 + $0x88] sm:$0xff] %v514
                  %v516 = vld [vmem:[%s478 + $0x120] sm:$0xff]
                  %517 = vst [vmem:[%s479 + $0x90] sm:$0xff] %v516
                  %v518 = vld [vmem:[%s478 + $0x130] sm:$0xff]
                  %519 = vst [vmem:[%s479 + $0x98] sm:$0xff] %v518
                  %v520 = vld [vmem:[%s478 + $0x140] sm:$0xff]
                  %521 = vst [vmem:[%s479 + $0xa0] sm:$0xff] %v520
                  %v522 = vld [vmem:[%s478 + $0x150] sm:$0xff]
                  %523 = vst [vmem:[%s479 + $0xa8] sm:$0xff] %v522
                  %v524 = vld [vmem:[%s478 + $0x160] sm:$0xff]
                  %525 = vst [vmem:[%s479 + $0xb0] sm:$0xff] %v524
                  %v526 = vld [vmem:[%s478 + $0x170] sm:$0xff]
                  %527 = vst [vmem:[%s479 + $0xb8] sm:$0xff] %v526
                  %v528 = vld [vmem:[%s478 + $0x180] sm:$0xff]
                  %529 = vst [vmem:[%s479 + $0xc0] sm:$0xff] %v528
                  %v530 = vld [vmem:[%s478 + $0x190] sm:$0xff]
                  %531 = vst [vmem:[%s479 + $0xc8] sm:$0xff] %v530
                  %v532 = vld [vmem:[%s478 + $0x1a0] sm:$0xff]
                  %533 = vst [vmem:[%s479 + $0xd0] sm:$0xff] %v532
                  %v534 = vld [vmem:[%s478 + $0x1b0] sm:$0xff]
                  %535 = vst [vmem:[%s479 + $0xd8] sm:$0xff] %v534
                  %v536 = vld [vmem:[%s478 + $0x1c0] sm:$0xff]
                  %537 = vst [vmem:[%s479 + $0xe0] sm:$0xff] %v536
                  %v538 = vld [vmem:[%s478 + $0x1d0] sm:$0xff]
                  %539 = vst [vmem:[%s479 + $0xe8] sm:$0xff] %v538
                  %v540 = vld [vmem:[%s478 + $0x1e0] sm:$0xff]
                  %541 = vst [vmem:[%s479 + $0xf0] sm:$0xff] %v540
                  %v542 = vld [vmem:[%s478 + $0x1f0] sm:$0xff]
                  %543 = vst [vmem:[%s479 + $0xf8] sm:$0xff] %v542
                  %v544 = vld [vmem:[%s478 + $0x200] sm:$0xff]
                  %545 = vst [vmem:[%s479 + $0x100] sm:$0xff] %v544
                  %v546 = vld [vmem:[%s478 + $0x210] sm:$0xff]
                  %547 = vst [vmem:[%s479 + $0x108] sm:$0xff] %v546
                  %v548 = vld [vmem:[%s478 + $0x220] sm:$0xff]
                  %549 = vst [vmem:[%s479 + $0x110] sm:$0xff] %v548
                  %v550 = vld [vmem:[%s478 + $0x230] sm:$0xff]
                  %551 = vst [vmem:[%s479 + $0x118] sm:$0xff] %v550
                  %v552 = vld [vmem:[%s478 + $0x240] sm:$0xff]
                  %553 = vst [vmem:[%s479 + $0x120] sm:$0xff] %v552
                  %v554 = vld [vmem:[%s478 + $0x250] sm:$0xff]
                  %555 = vst [vmem:[%s479 + $0x128] sm:$0xff] %v554
                  %v556 = vld [vmem:[%s478 + $0x260] sm:$0xff]
                  %557 = vst [vmem:[%s479 + $0x130] sm:$0xff] %v556
                  %v558 = vld [vmem:[%s478 + $0x270] sm:$0xff]
                  %559 = vst [vmem:[%s479 + $0x138] sm:$0xff] %v558
                  %v560 = vld [vmem:[%s478 + $0x280] sm:$0xff]
                  %561 = vst [vmem:[%s479 + $0x140] sm:$0xff] %v560
                  %v562 = vld [vmem:[%s478 + $0x290] sm:$0xff]
                  %563 = vst [vmem:[%s479 + $0x148] sm:$0xff] %v562
                  %v564 = vld [vmem:[%s478 + $0x2a0] sm:$0xff]
                  %565 = vst [vmem:[%s479 + $0x150] sm:$0xff] %v564
                  %v566 = vld [vmem:[%s478 + $0x2b0] sm:$0xff]
                  %567 = vst [vmem:[%s479 + $0x158] sm:$0xff] %v566
                  %v568 = vld [vmem:[%s478 + $0x2c0] sm:$0xff]
                  %569 = vst [vmem:[%s479 + $0x160] sm:$0xff] %v568
                  %v570 = vld [vmem:[%s478 + $0x2d0] sm:$0xff]
                  %571 = vst [vmem:[%s479 + $0x168] sm:$0xff] %v570
                  %v572 = vld [vmem:[%s478 + $0x2e0] sm:$0xff]
                  %573 = vst [vmem:[%s479 + $0x170] sm:$0xff] %v572
                  %v574 = vld [vmem:[%s478 + $0x2f0] sm:$0xff]
                  %575 = vst [vmem:[%s479 + $0x178] sm:$0xff] %v574
                  %v576 = vld [vmem:[%s478 + $0x300] sm:$0xff]
                  %577 = vst [vmem:[%s479 + $0x180] sm:$0xff] %v576
                  %v578 = vld [vmem:[%s478 + $0x310] sm:$0xff]
                  %579 = vst [vmem:[%s479 + $0x188] sm:$0xff] %v578
                  %v580 = vld [vmem:[%s478 + $0x320] sm:$0xff]
                  %581 = vst [vmem:[%s479 + $0x190] sm:$0xff] %v580
                  %v582 = vld [vmem:[%s478 + $0x330] sm:$0xff]
                  %583 = vst [vmem:[%s479 + $0x198] sm:$0xff] %v582
                  %v584 = vld [vmem:[%s478 + $0x340] sm:$0xff]
                  %585 = vst [vmem:[%s479 + $0x1a0] sm:$0xff] %v584
                  %v586 = vld [vmem:[%s478 + $0x350] sm:$0xff]
                  %587 = vst [vmem:[%s479 + $0x1a8] sm:$0xff] %v586
                  %v588 = vld [vmem:[%s478 + $0x360] sm:$0xff]
                  %589 = vst [vmem:[%s479 + $0x1b0] sm:$0xff] %v588
                  %v590 = vld [vmem:[%s478 + $0x370] sm:$0xff]
                  %591 = vst [vmem:[%s479 + $0x1b8] sm:$0xff] %v590
                  %v592 = vld [vmem:[%s478 + $0x380] sm:$0xff]
                  %593 = vst [vmem:[%s479 + $0x1c0] sm:$0xff] %v592
                  %v594 = vld [vmem:[%s478 + $0x390] sm:$0xff]
                  %595 = vst [vmem:[%s479 + $0x1c8] sm:$0xff] %v594
                  %v596 = vld [vmem:[%s478 + $0x3a0] sm:$0xff]
                  %597 = vst [vmem:[%s479 + $0x1d0] sm:$0xff] %v596
                  %v598 = vld [vmem:[%s478 + $0x3b0] sm:$0xff]
                  %599 = vst [vmem:[%s479 + $0x1d8] sm:$0xff] %v598
                  %v600 = vld [vmem:[%s478 + $0x3c0] sm:$0xff]
                  %601 = vst [vmem:[%s479 + $0x1e0] sm:$0xff] %v600
                  %v602 = vld [vmem:[%s478 + $0x3d0] sm:$0xff]
                  %603 = vst [vmem:[%s479 + $0x1e8] sm:$0xff] %v602
                  %v604 = vld [vmem:[%s478 + $0x3e0] sm:$0xff]
                  %605 = vst [vmem:[%s479 + $0x1f0] sm:$0xff] %v604
                  %v606 = vld [vmem:[%s478 + $0x3f0] sm:$0xff]
                  %607 = vst [vmem:[%s479 + $0x1f8] sm:$0xff] %v606
                  %v608 = vld [vmem:[%s478 + $0x400] sm:$0xff]
                  %609 = vst [vmem:[%s479 + $0x200] sm:$0xff] %v608
                  %v610 = vld [vmem:[%s478 + $0x410] sm:$0xff]
                  %611 = vst [vmem:[%s479 + $0x208] sm:$0xff] %v610
                  %v612 = vld [vmem:[%s478 + $0x420] sm:$0xff]
                  %613 = vst [vmem:[%s479 + $0x210] sm:$0xff] %v612
                  %v614 = vld [vmem:[%s478 + $0x430] sm:$0xff]
                  %615 = vst [vmem:[%s479 + $0x218] sm:$0xff] %v614
                  %v616 = vld [vmem:[%s478 + $0x440] sm:$0xff]
                  %617 = vst [vmem:[%s479 + $0x220] sm:$0xff] %v616
                  %v618 = vld [vmem:[%s478 + $0x450] sm:$0xff]
                  %619 = vst [vmem:[%s479 + $0x228] sm:$0xff] %v618
                  %v620 = vld [vmem:[%s478 + $0x460] sm:$0xff]
                  %621 = vst [vmem:[%s479 + $0x230] sm:$0xff] %v620
                  %v622 = vld [vmem:[%s478 + $0x470] sm:$0xff]
                  %623 = vst [vmem:[%s479 + $0x238] sm:$0xff] %v622
                  %v624 = vld [vmem:[%s478 + $0x480] sm:$0xff]
                  %625 = vst [vmem:[%s479 + $0x240] sm:$0xff] %v624
                  %v626 = vld [vmem:[%s478 + $0x490] sm:$0xff]
                  %627 = vst [vmem:[%s479 + $0x248] sm:$0xff] %v626
                  %v628 = vld [vmem:[%s478 + $0x4a0] sm:$0xff]
                  %629 = vst [vmem:[%s479 + $0x250] sm:$0xff] %v628
                  %v630 = vld [vmem:[%s478 + $0x4b0] sm:$0xff]
                  %631 = vst [vmem:[%s479 + $0x258] sm:$0xff] %v630
                  %v632 = vld [vmem:[%s478 + $0x4c0] sm:$0xff]
                  %633 = vst [vmem:[%s479 + $0x260] sm:$0xff] %v632
                  %v634 = vld [vmem:[%s478 + $0x4d0] sm:$0xff]
                  %635 = vst [vmem:[%s479 + $0x268] sm:$0xff] %v634
                  %v636 = vld [vmem:[%s478 + $0x4e0] sm:$0xff]
                  %637 = vst [vmem:[%s479 + $0x270] sm:$0xff] %v636
                  %v638 = vld [vmem:[%s478 + $0x4f0] sm:$0xff]
                  %639 = vst [vmem:[%s479 + $0x278] sm:$0xff] %v638
                  %v640 = vld [vmem:[%s478 + $0x500] sm:$0xff]
                  %641 = vst [vmem:[%s479 + $0x280] sm:$0xff] %v640
                  %v642 = vld [vmem:[%s478 + $0x510] sm:$0xff]
                  %643 = vst [vmem:[%s479 + $0x288] sm:$0xff] %v642
                  %v644 = vld [vmem:[%s478 + $0x520] sm:$0xff]
                  %645 = vst [vmem:[%s479 + $0x290] sm:$0xff] %v644
                  %v646 = vld [vmem:[%s478 + $0x530] sm:$0xff]
                  %647 = vst [vmem:[%s479 + $0x298] sm:$0xff] %v646
                  %v648 = vld [vmem:[%s478 + $0x540] sm:$0xff]
                  %649 = vst [vmem:[%s479 + $0x2a0] sm:$0xff] %v648
                  %v650 = vld [vmem:[%s478 + $0x550] sm:$0xff]
                  %651 = vst [vmem:[%s479 + $0x2a8] sm:$0xff] %v650
                  %v652 = vld [vmem:[%s478 + $0x560] sm:$0xff]
                  %653 = vst [vmem:[%s479 + $0x2b0] sm:$0xff] %v652
                  %v654 = vld [vmem:[%s478 + $0x570] sm:$0xff]
                  %655 = vst [vmem:[%s479 + $0x2b8] sm:$0xff] %v654
                  %v656 = vld [vmem:[%s478 + $0x580] sm:$0xff]
                  %657 = vst [vmem:[%s479 + $0x2c0] sm:$0xff] %v656
                  %v658 = vld [vmem:[%s478 + $0x590] sm:$0xff]
                  %659 = vst [vmem:[%s479 + $0x2c8] sm:$0xff] %v658
                  %v660 = vld [vmem:[%s478 + $0x5a0] sm:$0xff]
                  %661 = vst [vmem:[%s479 + $0x2d0] sm:$0xff] %v660
                  %v662 = vld [vmem:[%s478 + $0x5b0] sm:$0xff]
                  %663 = vst [vmem:[%s479 + $0x2d8] sm:$0xff] %v662
                  %v664 = vld [vmem:[%s478 + $0x5c0] sm:$0xff]
                  %665 = vst [vmem:[%s479 + $0x2e0] sm:$0xff] %v664
                  %v666 = vld [vmem:[%s478 + $0x5d0] sm:$0xff]
                  %667 = vst [vmem:[%s479 + $0x2e8] sm:$0xff] %v666
                  %v668 = vld [vmem:[%s478 + $0x5e0] sm:$0xff]
                  %669 = vst [vmem:[%s479 + $0x2f0] sm:$0xff] %v668
                  %v670 = vld [vmem:[%s478 + $0x5f0] sm:$0xff]
                  %671 = vst [vmem:[%s479 + $0x2f8] sm:$0xff] %v670
                  %v672 = vld [vmem:[%s478 + $0x600] sm:$0xff]
                  %673 = vst [vmem:[%s479 + $0x300] sm:$0xff] %v672
                  %v674 = vld [vmem:[%s478 + $0x610] sm:$0xff]
                  %675 = vst [vmem:[%s479 + $0x308] sm:$0xff] %v674
                  %v676 = vld [vmem:[%s478 + $0x620] sm:$0xff]
                  %677 = vst [vmem:[%s479 + $0x310] sm:$0xff] %v676
                  %v678 = vld [vmem:[%s478 + $0x630] sm:$0xff]
                  %679 = vst [vmem:[%s479 + $0x318] sm:$0xff] %v678
                  %v680 = vld [vmem:[%s478 + $0x640] sm:$0xff]
                  %681 = vst [vmem:[%s479 + $0x320] sm:$0xff] %v680
                  %v682 = vld [vmem:[%s478 + $0x650] sm:$0xff]
                  %683 = vst [vmem:[%s479 + $0x328] sm:$0xff] %v682
                  %v684 = vld [vmem:[%s478 + $0x660] sm:$0xff]
                  %685 = vst [vmem:[%s479 + $0x330] sm:$0xff] %v684
                  %v686 = vld [vmem:[%s478 + $0x670] sm:$0xff]
                  %687 = vst [vmem:[%s479 + $0x338] sm:$0xff] %v686
                  %v688 = vld [vmem:[%s478 + $0x680] sm:$0xff]
                  %689 = vst [vmem:[%s479 + $0x340] sm:$0xff] %v688
                  %v690 = vld [vmem:[%s478 + $0x690] sm:$0xff]
                  %691 = vst [vmem:[%s479 + $0x348] sm:$0xff] %v690
                  %v692 = vld [vmem:[%s478 + $0x6a0] sm:$0xff]
                  %693 = vst [vmem:[%s479 + $0x350] sm:$0xff] %v692
                  %v694 = vld [vmem:[%s478 + $0x6b0] sm:$0xff]
                  %695 = vst [vmem:[%s479 + $0x358] sm:$0xff] %v694
                  %v696 = vld [vmem:[%s478 + $0x6c0] sm:$0xff]
                  %697 = vst [vmem:[%s479 + $0x360] sm:$0xff] %v696
                  %v698 = vld [vmem:[%s478 + $0x6d0] sm:$0xff]
                  %699 = vst [vmem:[%s479 + $0x368] sm:$0xff] %v698
                  %v700 = vld [vmem:[%s478 + $0x6e0] sm:$0xff]
                  %701 = vst [vmem:[%s479 + $0x370] sm:$0xff] %v700
                  %v702 = vld [vmem:[%s478 + $0x6f0] sm:$0xff]
                  %703 = vst [vmem:[%s479 + $0x378] sm:$0xff] %v702
                  %v704 = vld [vmem:[%s478 + $0x700] sm:$0xff]
                  %705 = vst [vmem:[%s479 + $0x380] sm:$0xff] %v704
                  %v706 = vld [vmem:[%s478 + $0x710] sm:$0xff]
                  %707 = vst [vmem:[%s479 + $0x388] sm:$0xff] %v706
                  %v708 = vld [vmem:[%s478 + $0x720] sm:$0xff]
                  %709 = vst [vmem:[%s479 + $0x390] sm:$0xff] %v708
                  %v710 = vld [vmem:[%s478 + $0x730] sm:$0xff]
                  %711 = vst [vmem:[%s479 + $0x398] sm:$0xff] %v710
                  %v712 = vld [vmem:[%s478 + $0x740] sm:$0xff]
                  %713 = vst [vmem:[%s479 + $0x3a0] sm:$0xff] %v712
                  %v714 = vld [vmem:[%s478 + $0x750] sm:$0xff]
                  %715 = vst [vmem:[%s479 + $0x3a8] sm:$0xff] %v714
                  %v716 = vld [vmem:[%s478 + $0x760] sm:$0xff]
                  %717 = vst [vmem:[%s479 + $0x3b0] sm:$0xff] %v716
                  %v718 = vld [vmem:[%s478 + $0x770] sm:$0xff]
                  %719 = vst [vmem:[%s479 + $0x3b8] sm:$0xff] %v718
                  %v720 = vld [vmem:[%s478 + $0x780] sm:$0xff]
                  %721 = vst [vmem:[%s479 + $0x3c0] sm:$0xff] %v720
                  %v722 = vld [vmem:[%s478 + $0x790] sm:$0xff]
                  %723 = vst [vmem:[%s479 + $0x3c8] sm:$0xff] %v722
                  %v724 = vld [vmem:[%s478 + $0x7a0] sm:$0xff]
                  %725 = vst [vmem:[%s479 + $0x3d0] sm:$0xff] %v724
                  %v726 = vld [vmem:[%s478 + $0x7b0] sm:$0xff]
                  %727 = vst [vmem:[%s479 + $0x3d8] sm:$0xff] %v726
                  %v728 = vld [vmem:[%s478 + $0x7c0] sm:$0xff]
                  %729 = vst [vmem:[%s479 + $0x3e0] sm:$0xff] %v728
                  %v730 = vld [vmem:[%s478 + $0x7d0] sm:$0xff]
                  %731 = vst [vmem:[%s479 + $0x3e8] sm:$0xff] %v730
                  %v732 = vld [vmem:[%s478 + $0x7e0] sm:$0xff]
                  %733 = vst [vmem:[%s479 + $0x3f0] sm:$0xff] %v732
                  %v734 = vld [vmem:[%s478 + $0x7f0] sm:$0xff]
                  %735 = vst [vmem:[%s479 + $0x3f8] sm:$0xff] %v734
                  %v736 = vld [vmem:[%s478 + $0x800] sm:$0xff]
                  %737 = vst [vmem:[%s479 + $0x400] sm:$0xff] %v736
                  %v738 = vld [vmem:[%s478 + $0x810] sm:$0xff]
                  %739 = vst [vmem:[%s479 + $0x408] sm:$0xff] %v738
                  %v740 = vld [vmem:[%s478 + $0x820] sm:$0xff]
                  %741 = vst [vmem:[%s479 + $0x410] sm:$0xff] %v740
                  %v742 = vld [vmem:[%s478 + $0x830] sm:$0xff]
                  %743 = vst [vmem:[%s479 + $0x418] sm:$0xff] %v742
                  %v744 = vld [vmem:[%s478 + $0x840] sm:$0xff]
                  %745 = vst [vmem:[%s479 + $0x420] sm:$0xff] %v744
                  %v746 = vld [vmem:[%s478 + $0x850] sm:$0xff]
                  %747 = vst [vmem:[%s479 + $0x428] sm:$0xff] %v746
                  %v748 = vld [vmem:[%s478 + $0x860] sm:$0xff]
                  %749 = vst [vmem:[%s479 + $0x430] sm:$0xff] %v748
                  %v750 = vld [vmem:[%s478 + $0x870] sm:$0xff]
                  %751 = vst [vmem:[%s479 + $0x438] sm:$0xff] %v750
                  %v752 = vld [vmem:[%s478 + $0x880] sm:$0xff]
                  %753 = vst [vmem:[%s479 + $0x440] sm:$0xff] %v752
                  %v754 = vld [vmem:[%s478 + $0x890] sm:$0xff]
                  %755 = vst [vmem:[%s479 + $0x448] sm:$0xff] %v754
                  %v756 = vld [vmem:[%s478 + $0x8a0] sm:$0xff]
                  %757 = vst [vmem:[%s479 + $0x450] sm:$0xff] %v756
                  %v758 = vld [vmem:[%s478 + $0x8b0] sm:$0xff]
                  %759 = vst [vmem:[%s479 + $0x458] sm:$0xff] %v758
                  %v760 = vld [vmem:[%s478 + $0x8c0] sm:$0xff]
                  %761 = vst [vmem:[%s479 + $0x460] sm:$0xff] %v760
                  %v762 = vld [vmem:[%s478 + $0x8d0] sm:$0xff]
                  %763 = vst [vmem:[%s479 + $0x468] sm:$0xff] %v762
                  %v764 = vld [vmem:[%s478 + $0x8e0] sm:$0xff]
                  %765 = vst [vmem:[%s479 + $0x470] sm:$0xff] %v764
                  %v766 = vld [vmem:[%s478 + $0x8f0] sm:$0xff]
                  %767 = vst [vmem:[%s479 + $0x478] sm:$0xff] %v766
                $region52: #{vqvae_forward.28} parent=46 // loop_footer
                  %s477 = sadd.s32 1, %s473
                $region53: #{vqvae_forward.28} parent=46 // loop_footer_branch
                  %472 = sbr.rel target = $region49
                $region54: #{vqvae_forward.28} parent=46 // loop_exit
                  _
              $region47: #{vqvae_forward.28} parent=31 // pred_fallthru
                _
              // Predicated region
              $region55: #{vqvae_forward.28} parent=31 // pred_check
                _
              $region56: #{vqvae_forward.28} parent=31 // pred_check_branch
                %769 = sbr.rel target = $region58
              $region57: #{vqvae_forward.28} parent=31 // pred_region
                _
              $region58: #{vqvae_forward.28} parent=31 // pred_fallthru
                _
            $region32: #{vqvae_forward.28} parent=27 // pred_fallthru
              _
            // Predicated region
            $region33: #{vqvae_forward.28} parent=27 // pred_check
              _
            $region34: #{vqvae_forward.28} parent=27 // pred_check_branch
              %171 = sbr.rel target = $region36
            $region35: #{vqvae_forward.28} parent=27 // pred_region
              %s173 = ssub.s32 256, 1
              loop: start=0, step=1, limit=1
              $region37: #{vqvae_forward.28} parent=35 // loop_pre_header
                _
              $region38: #{vqvae_forward.28} parent=35 // loop_header
                %s175 = sphi 0, %s179
                %p176 = scmp.ge.s32.totalorder %s175, 1
                %s180 = sphi %s165, %s165
                %s181 = sphi %s162, %s162
              $region39: #{vqvae_forward.28} parent=35 // loop_header_branch
                %178 = sbr.rel (%p176) target = $region43
              $region40: #{vqvae_forward.28} parent=35 // loop_body
                %v182 = vld [vmem:[%s180] sm:%s173]
                %183 = vst [vmem:[%s181] sm:%s173] %v182
                %v184 = vld [vmem:[%s180 + $0x10] sm:%s173]
                %185 = vst [vmem:[%s181 + $0x8] sm:%s173] %v184
                %v186 = vld [vmem:[%s180 + $0x20] sm:%s173]
                %187 = vst [vmem:[%s181 + $0x10] sm:%s173] %v186
                %v188 = vld [vmem:[%s180 + $0x30] sm:%s173]
                %189 = vst [vmem:[%s181 + $0x18] sm:%s173] %v188
                %v190 = vld [vmem:[%s180 + $0x40] sm:%s173]
                %191 = vst [vmem:[%s181 + $0x20] sm:%s173] %v190
                %v192 = vld [vmem:[%s180 + $0x50] sm:%s173]
                %193 = vst [vmem:[%s181 + $0x28] sm:%s173] %v192
                %v194 = vld [vmem:[%s180 + $0x60] sm:%s173]
                %195 = vst [vmem:[%s181 + $0x30] sm:%s173] %v194
                %v196 = vld [vmem:[%s180 + $0x70] sm:%s173]
                %197 = vst [vmem:[%s181 + $0x38] sm:%s173] %v196
                %v198 = vld [vmem:[%s180 + $0x80] sm:%s173]
                %199 = vst [vmem:[%s181 + $0x40] sm:%s173] %v198
                %v200 = vld [vmem:[%s180 + $0x90] sm:%s173]
                %201 = vst [vmem:[%s181 + $0x48] sm:%s173] %v200
                %v202 = vld [vmem:[%s180 + $0xa0] sm:%s173]
                %203 = vst [vmem:[%s181 + $0x50] sm:%s173] %v202
                %v204 = vld [vmem:[%s180 + $0xb0] sm:%s173]
                %205 = vst [vmem:[%s181 + $0x58] sm:%s173] %v204
                %v206 = vld [vmem:[%s180 + $0xc0] sm:%s173]
                %207 = vst [vmem:[%s181 + $0x60] sm:%s173] %v206
                %v208 = vld [vmem:[%s180 + $0xd0] sm:%s173]
                %209 = vst [vmem:[%s181 + $0x68] sm:%s173] %v208
                %v210 = vld [vmem:[%s180 + $0xe0] sm:%s173]
                %211 = vst [vmem:[%s181 + $0x70] sm:%s173] %v210
                %v212 = vld [vmem:[%s180 + $0xf0] sm:%s173]
                %213 = vst [vmem:[%s181 + $0x78] sm:%s173] %v212
                %v214 = vld [vmem:[%s180 + $0x100] sm:%s173]
                %215 = vst [vmem:[%s181 + $0x80] sm:%s173] %v214
                %v216 = vld [vmem:[%s180 + $0x110] sm:%s173]
                %217 = vst [vmem:[%s181 + $0x88] sm:%s173] %v216
                %v218 = vld [vmem:[%s180 + $0x120] sm:%s173]
                %219 = vst [vmem:[%s181 + $0x90] sm:%s173] %v218
                %v220 = vld [vmem:[%s180 + $0x130] sm:%s173]
                %221 = vst [vmem:[%s181 + $0x98] sm:%s173] %v220
                %v222 = vld [vmem:[%s180 + $0x140] sm:%s173]
                %223 = vst [vmem:[%s181 + $0xa0] sm:%s173] %v222
                %v224 = vld [vmem:[%s180 + $0x150] sm:%s173]
                %225 = vst [vmem:[%s181 + $0xa8] sm:%s173] %v224
                %v226 = vld [vmem:[%s180 + $0x160] sm:%s173]
                %227 = vst [vmem:[%s181 + $0xb0] sm:%s173] %v226
                %v228 = vld [vmem:[%s180 + $0x170] sm:%s173]
                %229 = vst [vmem:[%s181 + $0xb8] sm:%s173] %v228
                %v230 = vld [vmem:[%s180 + $0x180] sm:%s173]
                %231 = vst [vmem:[%s181 + $0xc0] sm:%s173] %v230
                %v232 = vld [vmem:[%s180 + $0x190] sm:%s173]
                %233 = vst [vmem:[%s181 + $0xc8] sm:%s173] %v232
                %v234 = vld [vmem:[%s180 + $0x1a0] sm:%s173]
                %235 = vst [vmem:[%s181 + $0xd0] sm:%s173] %v234
                %v236 = vld [vmem:[%s180 + $0x1b0] sm:%s173]
                %237 = vst [vmem:[%s181 + $0xd8] sm:%s173] %v236
                %v238 = vld [vmem:[%s180 + $0x1c0] sm:%s173]
                %239 = vst [vmem:[%s181 + $0xe0] sm:%s173] %v238
                %v240 = vld [vmem:[%s180 + $0x1d0] sm:%s173]
                %241 = vst [vmem:[%s181 + $0xe8] sm:%s173] %v240
                %v242 = vld [vmem:[%s180 + $0x1e0] sm:%s173]
                %243 = vst [vmem:[%s181 + $0xf0] sm:%s173] %v242
                %v244 = vld [vmem:[%s180 + $0x1f0] sm:%s173]
                %245 = vst [vmem:[%s181 + $0xf8] sm:%s173] %v244
                %v246 = vld [vmem:[%s180 + $0x200] sm:%s173]
                %247 = vst [vmem:[%s181 + $0x100] sm:%s173] %v246
                %v248 = vld [vmem:[%s180 + $0x210] sm:%s173]
                %249 = vst [vmem:[%s181 + $0x108] sm:%s173] %v248
                %v250 = vld [vmem:[%s180 + $0x220] sm:%s173]
                %251 = vst [vmem:[%s181 + $0x110] sm:%s173] %v250
                %v252 = vld [vmem:[%s180 + $0x230] sm:%s173]
                %253 = vst [vmem:[%s181 + $0x118] sm:%s173] %v252
                %v254 = vld [vmem:[%s180 + $0x240] sm:%s173]
                %255 = vst [vmem:[%s181 + $0x120] sm:%s173] %v254
                %v256 = vld [vmem:[%s180 + $0x250] sm:%s173]
                %257 = vst [vmem:[%s181 + $0x128] sm:%s173] %v256
                %v258 = vld [vmem:[%s180 + $0x260] sm:%s173]
                %259 = vst [vmem:[%s181 + $0x130] sm:%s173] %v258
                %v260 = vld [vmem:[%s180 + $0x270] sm:%s173]
                %261 = vst [vmem:[%s181 + $0x138] sm:%s173] %v260
                %v262 = vld [vmem:[%s180 + $0x280] sm:%s173]
                %263 = vst [vmem:[%s181 + $0x140] sm:%s173] %v262
                %v264 = vld [vmem:[%s180 + $0x290] sm:%s173]
                %265 = vst [vmem:[%s181 + $0x148] sm:%s173] %v264
                %v266 = vld [vmem:[%s180 + $0x2a0] sm:%s173]
                %267 = vst [vmem:[%s181 + $0x150] sm:%s173] %v266
                %v268 = vld [vmem:[%s180 + $0x2b0] sm:%s173]
                %269 = vst [vmem:[%s181 + $0x158] sm:%s173] %v268
                %v270 = vld [vmem:[%s180 + $0x2c0] sm:%s173]
                %271 = vst [vmem:[%s181 + $0x160] sm:%s173] %v270
                %v272 = vld [vmem:[%s180 + $0x2d0] sm:%s173]
                %273 = vst [vmem:[%s181 + $0x168] sm:%s173] %v272
                %v274 = vld [vmem:[%s180 + $0x2e0] sm:%s173]
                %275 = vst [vmem:[%s181 + $0x170] sm:%s173] %v274
                %v276 = vld [vmem:[%s180 + $0x2f0] sm:%s173]
                %277 = vst [vmem:[%s181 + $0x178] sm:%s173] %v276
                %v278 = vld [vmem:[%s180 + $0x300] sm:%s173]
                %279 = vst [vmem:[%s181 + $0x180] sm:%s173] %v278
                %v280 = vld [vmem:[%s180 + $0x310] sm:%s173]
                %281 = vst [vmem:[%s181 + $0x188] sm:%s173] %v280
                %v282 = vld [vmem:[%s180 + $0x320] sm:%s173]
                %283 = vst [vmem:[%s181 + $0x190] sm:%s173] %v282
                %v284 = vld [vmem:[%s180 + $0x330] sm:%s173]
                %285 = vst [vmem:[%s181 + $0x198] sm:%s173] %v284
                %v286 = vld [vmem:[%s180 + $0x340] sm:%s173]
                %287 = vst [vmem:[%s181 + $0x1a0] sm:%s173] %v286
                %v288 = vld [vmem:[%s180 + $0x350] sm:%s173]
                %289 = vst [vmem:[%s181 + $0x1a8] sm:%s173] %v288
                %v290 = vld [vmem:[%s180 + $0x360] sm:%s173]
                %291 = vst [vmem:[%s181 + $0x1b0] sm:%s173] %v290
                %v292 = vld [vmem:[%s180 + $0x370] sm:%s173]
                %293 = vst [vmem:[%s181 + $0x1b8] sm:%s173] %v292
                %v294 = vld [vmem:[%s180 + $0x380] sm:%s173]
                %295 = vst [vmem:[%s181 + $0x1c0] sm:%s173] %v294
                %v296 = vld [vmem:[%s180 + $0x390] sm:%s173]
                %297 = vst [vmem:[%s181 + $0x1c8] sm:%s173] %v296
                %v298 = vld [vmem:[%s180 + $0x3a0] sm:%s173]
                %299 = vst [vmem:[%s181 + $0x1d0] sm:%s173] %v298
                %v300 = vld [vmem:[%s180 + $0x3b0] sm:%s173]
                %301 = vst [vmem:[%s181 + $0x1d8] sm:%s173] %v300
                %v302 = vld [vmem:[%s180 + $0x3c0] sm:%s173]
                %303 = vst [vmem:[%s181 + $0x1e0] sm:%s173] %v302
                %v304 = vld [vmem:[%s180 + $0x3d0] sm:%s173]
                %305 = vst [vmem:[%s181 + $0x1e8] sm:%s173] %v304
                %v306 = vld [vmem:[%s180 + $0x3e0] sm:%s173]
                %307 = vst [vmem:[%s181 + $0x1f0] sm:%s173] %v306
                %v308 = vld [vmem:[%s180 + $0x3f0] sm:%s173]
                %309 = vst [vmem:[%s181 + $0x1f8] sm:%s173] %v308
                %v310 = vld [vmem:[%s180 + $0x400] sm:%s173]
                %311 = vst [vmem:[%s181 + $0x200] sm:%s173] %v310
                %v312 = vld [vmem:[%s180 + $0x410] sm:%s173]
                %313 = vst [vmem:[%s181 + $0x208] sm:%s173] %v312
                %v314 = vld [vmem:[%s180 + $0x420] sm:%s173]
                %315 = vst [vmem:[%s181 + $0x210] sm:%s173] %v314
                %v316 = vld [vmem:[%s180 + $0x430] sm:%s173]
                %317 = vst [vmem:[%s181 + $0x218] sm:%s173] %v316
                %v318 = vld [vmem:[%s180 + $0x440] sm:%s173]
                %319 = vst [vmem:[%s181 + $0x220] sm:%s173] %v318
                %v320 = vld [vmem:[%s180 + $0x450] sm:%s173]
                %321 = vst [vmem:[%s181 + $0x228] sm:%s173] %v320
                %v322 = vld [vmem:[%s180 + $0x460] sm:%s173]
                %323 = vst [vmem:[%s181 + $0x230] sm:%s173] %v322
                %v324 = vld [vmem:[%s180 + $0x470] sm:%s173]
                %325 = vst [vmem:[%s181 + $0x238] sm:%s173] %v324
                %v326 = vld [vmem:[%s180 + $0x480] sm:%s173]
                %327 = vst [vmem:[%s181 + $0x240] sm:%s173] %v326
                %v328 = vld [vmem:[%s180 + $0x490] sm:%s173]
                %329 = vst [vmem:[%s181 + $0x248] sm:%s173] %v328
                %v330 = vld [vmem:[%s180 + $0x4a0] sm:%s173]
                %331 = vst [vmem:[%s181 + $0x250] sm:%s173] %v330
                %v332 = vld [vmem:[%s180 + $0x4b0] sm:%s173]
                %333 = vst [vmem:[%s181 + $0x258] sm:%s173] %v332
                %v334 = vld [vmem:[%s180 + $0x4c0] sm:%s173]
                %335 = vst [vmem:[%s181 + $0x260] sm:%s173] %v334
                %v336 = vld [vmem:[%s180 + $0x4d0] sm:%s173]
                %337 = vst [vmem:[%s181 + $0x268] sm:%s173] %v336
                %v338 = vld [vmem:[%s180 + $0x4e0] sm:%s173]
                %339 = vst [vmem:[%s181 + $0x270] sm:%s173] %v338
                %v340 = vld [vmem:[%s180 + $0x4f0] sm:%s173]
                %341 = vst [vmem:[%s181 + $0x278] sm:%s173] %v340
                %v342 = vld [vmem:[%s180 + $0x500] sm:%s173]
                %343 = vst [vmem:[%s181 + $0x280] sm:%s173] %v342
                %v344 = vld [vmem:[%s180 + $0x510] sm:%s173]
                %345 = vst [vmem:[%s181 + $0x288] sm:%s173] %v344
                %v346 = vld [vmem:[%s180 + $0x520] sm:%s173]
                %347 = vst [vmem:[%s181 + $0x290] sm:%s173] %v346
                %v348 = vld [vmem:[%s180 + $0x530] sm:%s173]
                %349 = vst [vmem:[%s181 + $0x298] sm:%s173] %v348
                %v350 = vld [vmem:[%s180 + $0x540] sm:%s173]
                %351 = vst [vmem:[%s181 + $0x2a0] sm:%s173] %v350
                %v352 = vld [vmem:[%s180 + $0x550] sm:%s173]
                %353 = vst [vmem:[%s181 + $0x2a8] sm:%s173] %v352
                %v354 = vld [vmem:[%s180 + $0x560] sm:%s173]
                %355 = vst [vmem:[%s181 + $0x2b0] sm:%s173] %v354
                %v356 = vld [vmem:[%s180 + $0x570] sm:%s173]
                %357 = vst [vmem:[%s181 + $0x2b8] sm:%s173] %v356
                %v358 = vld [vmem:[%s180 + $0x580] sm:%s173]
                %359 = vst [vmem:[%s181 + $0x2c0] sm:%s173] %v358
                %v360 = vld [vmem:[%s180 + $0x590] sm:%s173]
                %361 = vst [vmem:[%s181 + $0x2c8] sm:%s173] %v360
                %v362 = vld [vmem:[%s180 + $0x5a0] sm:%s173]
                %363 = vst [vmem:[%s181 + $0x2d0] sm:%s173] %v362
                %v364 = vld [vmem:[%s180 + $0x5b0] sm:%s173]
                %365 = vst [vmem:[%s181 + $0x2d8] sm:%s173] %v364
                %v366 = vld [vmem:[%s180 + $0x5c0] sm:%s173]
                %367 = vst [vmem:[%s181 + $0x2e0] sm:%s173] %v366
                %v368 = vld [vmem:[%s180 + $0x5d0] sm:%s173]
                %369 = vst [vmem:[%s181 + $0x2e8] sm:%s173] %v368
                %v370 = vld [vmem:[%s180 + $0x5e0] sm:%s173]
                %371 = vst [vmem:[%s181 + $0x2f0] sm:%s173] %v370
                %v372 = vld [vmem:[%s180 + $0x5f0] sm:%s173]
                %373 = vst [vmem:[%s181 + $0x2f8] sm:%s173] %v372
                %v374 = vld [vmem:[%s180 + $0x600] sm:%s173]
                %375 = vst [vmem:[%s181 + $0x300] sm:%s173] %v374
                %v376 = vld [vmem:[%s180 + $0x610] sm:%s173]
                %377 = vst [vmem:[%s181 + $0x308] sm:%s173] %v376
                %v378 = vld [vmem:[%s180 + $0x620] sm:%s173]
                %379 = vst [vmem:[%s181 + $0x310] sm:%s173] %v378
                %v380 = vld [vmem:[%s180 + $0x630] sm:%s173]
                %381 = vst [vmem:[%s181 + $0x318] sm:%s173] %v380
                %v382 = vld [vmem:[%s180 + $0x640] sm:%s173]
                %383 = vst [vmem:[%s181 + $0x320] sm:%s173] %v382
                %v384 = vld [vmem:[%s180 + $0x650] sm:%s173]
                %385 = vst [vmem:[%s181 + $0x328] sm:%s173] %v384
                %v386 = vld [vmem:[%s180 + $0x660] sm:%s173]
                %387 = vst [vmem:[%s181 + $0x330] sm:%s173] %v386
                %v388 = vld [vmem:[%s180 + $0x670] sm:%s173]
                %389 = vst [vmem:[%s181 + $0x338] sm:%s173] %v388
                %v390 = vld [vmem:[%s180 + $0x680] sm:%s173]
                %391 = vst [vmem:[%s181 + $0x340] sm:%s173] %v390
                %v392 = vld [vmem:[%s180 + $0x690] sm:%s173]
                %393 = vst [vmem:[%s181 + $0x348] sm:%s173] %v392
                %v394 = vld [vmem:[%s180 + $0x6a0] sm:%s173]
                %395 = vst [vmem:[%s181 + $0x350] sm:%s173] %v394
                %v396 = vld [vmem:[%s180 + $0x6b0] sm:%s173]
                %397 = vst [vmem:[%s181 + $0x358] sm:%s173] %v396
                %v398 = vld [vmem:[%s180 + $0x6c0] sm:%s173]
                %399 = vst [vmem:[%s181 + $0x360] sm:%s173] %v398
                %v400 = vld [vmem:[%s180 + $0x6d0] sm:%s173]
                %401 = vst [vmem:[%s181 + $0x368] sm:%s173] %v400
                %v402 = vld [vmem:[%s180 + $0x6e0] sm:%s173]
                %403 = vst [vmem:[%s181 + $0x370] sm:%s173] %v402
                %v404 = vld [vmem:[%s180 + $0x6f0] sm:%s173]
                %405 = vst [vmem:[%s181 + $0x378] sm:%s173] %v404
                %v406 = vld [vmem:[%s180 + $0x700] sm:%s173]
                %407 = vst [vmem:[%s181 + $0x380] sm:%s173] %v406
                %v408 = vld [vmem:[%s180 + $0x710] sm:%s173]
                %409 = vst [vmem:[%s181 + $0x388] sm:%s173] %v408
                %v410 = vld [vmem:[%s180 + $0x720] sm:%s173]
                %411 = vst [vmem:[%s181 + $0x390] sm:%s173] %v410
                %v412 = vld [vmem:[%s180 + $0x730] sm:%s173]
                %413 = vst [vmem:[%s181 + $0x398] sm:%s173] %v412
                %v414 = vld [vmem:[%s180 + $0x740] sm:%s173]
                %415 = vst [vmem:[%s181 + $0x3a0] sm:%s173] %v414
                %v416 = vld [vmem:[%s180 + $0x750] sm:%s173]
                %417 = vst [vmem:[%s181 + $0x3a8] sm:%s173] %v416
                %v418 = vld [vmem:[%s180 + $0x760] sm:%s173]
                %419 = vst [vmem:[%s181 + $0x3b0] sm:%s173] %v418
                %v420 = vld [vmem:[%s180 + $0x770] sm:%s173]
                %421 = vst [vmem:[%s181 + $0x3b8] sm:%s173] %v420
                %v422 = vld [vmem:[%s180 + $0x780] sm:%s173]
                %423 = vst [vmem:[%s181 + $0x3c0] sm:%s173] %v422
                %v424 = vld [vmem:[%s180 + $0x790] sm:%s173]
                %425 = vst [vmem:[%s181 + $0x3c8] sm:%s173] %v424
                %v426 = vld [vmem:[%s180 + $0x7a0] sm:%s173]
                %427 = vst [vmem:[%s181 + $0x3d0] sm:%s173] %v426
                %v428 = vld [vmem:[%s180 + $0x7b0] sm:%s173]
                %429 = vst [vmem:[%s181 + $0x3d8] sm:%s173] %v428
                %v430 = vld [vmem:[%s180 + $0x7c0] sm:%s173]
                %431 = vst [vmem:[%s181 + $0x3e0] sm:%s173] %v430
                %v432 = vld [vmem:[%s180 + $0x7d0] sm:%s173]
                %433 = vst [vmem:[%s181 + $0x3e8] sm:%s173] %v432
                %v434 = vld [vmem:[%s180 + $0x7e0] sm:%s173]
                %435 = vst [vmem:[%s181 + $0x3f0] sm:%s173] %v434
                %v436 = vld [vmem:[%s180 + $0x7f0] sm:%s173]
                %437 = vst [vmem:[%s181 + $0x3f8] sm:%s173] %v436
                %v438 = vld [vmem:[%s180 + $0x800] sm:%s173]
                %439 = vst [vmem:[%s181 + $0x400] sm:%s173] %v438
                %v440 = vld [vmem:[%s180 + $0x810] sm:%s173]
                %441 = vst [vmem:[%s181 + $0x408] sm:%s173] %v440
                %v442 = vld [vmem:[%s180 + $0x820] sm:%s173]
                %443 = vst [vmem:[%s181 + $0x410] sm:%s173] %v442
                %v444 = vld [vmem:[%s180 + $0x830] sm:%s173]
                %445 = vst [vmem:[%s181 + $0x418] sm:%s173] %v444
                %v446 = vld [vmem:[%s180 + $0x840] sm:%s173]
                %447 = vst [vmem:[%s181 + $0x420] sm:%s173] %v446
                %v448 = vld [vmem:[%s180 + $0x850] sm:%s173]
                %449 = vst [vmem:[%s181 + $0x428] sm:%s173] %v448
                %v450 = vld [vmem:[%s180 + $0x860] sm:%s173]
                %451 = vst [vmem:[%s181 + $0x430] sm:%s173] %v450
                %v452 = vld [vmem:[%s180 + $0x870] sm:%s173]
                %453 = vst [vmem:[%s181 + $0x438] sm:%s173] %v452
                %v454 = vld [vmem:[%s180 + $0x880] sm:%s173]
                %455 = vst [vmem:[%s181 + $0x440] sm:%s173] %v454
                %v456 = vld [vmem:[%s180 + $0x890] sm:%s173]
                %457 = vst [vmem:[%s181 + $0x448] sm:%s173] %v456
                %v458 = vld [vmem:[%s180 + $0x8a0] sm:%s173]
                %459 = vst [vmem:[%s181 + $0x450] sm:%s173] %v458
                %v460 = vld [vmem:[%s180 + $0x8b0] sm:%s173]
                %461 = vst [vmem:[%s181 + $0x458] sm:%s173] %v460
                %v462 = vld [vmem:[%s180 + $0x8c0] sm:%s173]
                %463 = vst [vmem:[%s181 + $0x460] sm:%s173] %v462
                %v464 = vld [vmem:[%s180 + $0x8d0] sm:%s173]
                %465 = vst [vmem:[%s181 + $0x468] sm:%s173] %v464
                %v466 = vld [vmem:[%s180 + $0x8e0] sm:%s173]
                %467 = vst [vmem:[%s181 + $0x470] sm:%s173] %v466
                %v468 = vld [vmem:[%s180 + $0x8f0] sm:%s173]
                %469 = vst [vmem:[%s181 + $0x478] sm:%s173] %v468
              $region41: #{vqvae_forward.28} parent=35 // loop_footer
                %s179 = sadd.s32 1, %s175
              $region42: #{vqvae_forward.28} parent=35 // loop_footer_branch
                %174 = sbr.rel target = $region38
              $region43: #{vqvae_forward.28} parent=35 // loop_exit
                _
            $region36: #{vqvae_forward.28} parent=27 // pred_fallthru
              _
          $region28: #{vqvae_forward.28} parent=23 // pred_fallthru
            _
          %770 = vnop
        $region24: #{vqvae_forward.28} parent=19 // pred_fallthru
          _
        // Predicated region
        $region59: #{vqvae_forward.28} parent=19 // pred_check
          %p771 = pneg %p93
        $region60: #{vqvae_forward.28} parent=19 // pred_check_branch
          %773 = sbr.rel (%p771) target = $region62
        $region61: #{vqvae_forward.28} parent=19 // pred_region
          %s774 = smul.u32 2, %s17
          %p775 = scmp.lt.s32.totalorder %s774, 3
          %s776 = scalar_select %p775, %s774, 3
          %s777 = scalar_lea.vmem %s2, %s776
          %s778 = smul.u32 2, %s17
        $region62: #{vqvae_forward.28} parent=19 // pred_fallthru
          _
      $region20: #{vqvae_forward.28} parent=5 // pred_fallthru
        _
      %p779 = scmp.le.s32.totalorder 1, %s9
      %p780 = scmp.lt.s32.totalorder %s9, 3
      %p781 = pnand %p779, %p780
      %p782 = pneg %p781
      // Predicated region
      $region63: #{vqvae_forward.28} parent=5 // pred_check
        _
      $region64: #{vqvae_forward.28} parent=5 // pred_check_branch
        %784 = sbr.rel (%p781) target = $region66
      $region65: #{vqvae_forward.28} parent=5 // pred_region
        %s785 = ssub.s32 %s9, 1
        %s786 = sand.u32 %s60, 1
        %s787 = sand.u32 %s60, 1
        %s788 = smul.addr %s787, 1152
        %s789 = scalar_lea.vmem [#allocation2], %s788
        // Predicated region
        $region67: #{vqvae_forward.28} parent=65 // pred_check
          %p790 = pneg %p73
        $region68: #{vqvae_forward.28} parent=65 // pred_check_branch
          %792 = sbr.rel (%p790) target = $region70
        $region69: #{vqvae_forward.28} parent=65 // pred_region
          _
        $region70: #{vqvae_forward.28} parent=65 // pred_fallthru
          _
        %s793 = smul.u32 4, %s18
        %p794 = scmp.lt.s32.totalorder %s793, 3
        %s795 = scalar_select %p794, %s793, 3
        %s796 = smul.addr %s795, 9
        %s797 = smul.addr %s796, 4
        %s798 = scalar_lea.vmem %s0, %s797
        %p799 = pneg %p47
        %p800 = pneg %p44
        %s801 = sand.u32 %s60, 1
        %s802 = sand.u32 %s60, 1
        %s803 = smul.addr %s802, 1152
        %s804 = scalar_lea.vmem [#allocation2], %s803
        %p805 = pneg %p73
        %p806 = pneg %p70
        %s807 = smul.u32 2, %s19
        %p808 = scmp.lt.s32.totalorder %s807, 3
        %s809 = scalar_select %p808, %s807, 3
        %s810 = scalar_lea.vmem %s2, %s809
        %p811 = pneg %p99
        %p812 = pneg %p96
        %p813 = pneg %p127
        %p814 = pneg %p124
        %s815 = sand.u32 %s114, 1
        %s816 = sand.u32 %s114, 1
        %s817 = smul.addr %s816, 32
        %s818 = scalar_lea.vmem [#allocation3], %s817
        %s819 = smul.u32 4, %s18
        %p820 = scmp.lt.s32.totalorder %s819, 3
        %s821 = scalar_select %p820, %s819, 3
        %s822 = smul.addr %s821, 9
        %s823 = smul.addr %s822, 4
        %s824 = scalar_lea.vmem %s0, %s823
        %s825 = smul.u32 4, %s18
        %s826 = smul.u32 2, %s19
        %s827 = smul.u32 2, %s19
        %p828 = scmp.lt.s32.totalorder %s827, 3
        %s829 = scalar_select %p828, %s827, 3
        %s830 = scalar_lea.vmem %s2, %s829
        %s831 = smul.u32 2, %s19
        %s832 = smul.u32 4, %s18
        %s833 = smul.u32 2, %s19
        %v835 = vld [vmem:[%s824] sm:$0xff]
        %v836 = vld [vmem:[%s824 + $0x8] sm:$0xff]
        %v837 = vld [vmem:[%s824 + $0x10] sm:$0xff]
        %v838 = vld [vmem:[%s824 + $0x18] sm:$0xff]
        %v839 = vld [vmem:[%s824 + $0x20] sm:$0xf]
        %v840 = vld [vmem:[%s824 + $0x24] sm:$0xff]
        %v841 = vld [vmem:[%s824 + $0x2c] sm:$0xff]
        %v842 = vld [vmem:[%s824 + $0x34] sm:$0xff]
        %v843 = vld [vmem:[%s824 + $0x3c] sm:$0xff]
        %v844 = vld [vmem:[%s824 + $0x44] sm:$0xf]
        %v845 = vld [vmem:[%s824 + $0x48] sm:$0xff]
        %v846 = vld [vmem:[%s824 + $0x50] sm:$0xff]
        %v847 = vld [vmem:[%s824 + $0x58] sm:$0xff]
        %v848 = vld [vmem:[%s824 + $0x60] sm:$0xff]
        %v849 = vld [vmem:[%s824 + $0x68] sm:$0xf]
        %v850 = vld [vmem:[%s824 + $0x6c] sm:$0xff]
        %v851 = vld [vmem:[%s824 + $0x74] sm:$0xff]
        %v852 = vld [vmem:[%s824 + $0x7c] sm:$0xff]
        %v853 = vld [vmem:[%s824 + $0x84] sm:$0xff]
        %v854 = vld [vmem:[%s824 + $0x8c] sm:$0xf]
        %v855 = vld [vmem:[%s789] sm:$0xff]
        %v856 = vld [vmem:[%s789 + $0x8] sm:$0xff]
        %v857 = vld [vmem:[%s789 + $0x10] sm:$0xff]
        %v858 = vld [vmem:[%s789 + $0x18] sm:$0xff]
        %v859 = vld [vmem:[%s789 + $0x20] sm:$0xff]
        %v860 = vld [vmem:[%s789 + $0x28] sm:$0xff]
        %v861 = vld [vmem:[%s789 + $0x30] sm:$0xff]
        %v862 = vld [vmem:[%s789 + $0x38] sm:$0xff]
        %v863 = vld [vmem:[%s789 + $0x40] sm:$0xff]
        %v864 = vld [vmem:[%s789 + $0x48] sm:$0xff]
        %v865 = vld [vmem:[%s789 + $0x50] sm:$0xff]
        %v866 = vld [vmem:[%s789 + $0x58] sm:$0xff]
        %v867 = vld [vmem:[%s789 + $0x60] sm:$0xff]
        %v868 = vld [vmem:[%s789 + $0x68] sm:$0xff]
        %v869 = vld [vmem:[%s789 + $0x70] sm:$0xff]
        %v870 = vld [vmem:[%s789 + $0x78] sm:$0xff]
        %v871 = vld [vmem:[%s789 + $0x80] sm:$0xff]
        %v872 = vld [vmem:[%s789 + $0x88] sm:$0xff]
        %v873 = vld [vmem:[%s789 + $0x90] sm:$0xff]
        %v874 = vld [vmem:[%s789 + $0x98] sm:$0xff]
        %v875 = vld [vmem:[%s789 + $0xa0] sm:$0xff]
        %v876 = vld [vmem:[%s789 + $0xa8] sm:$0xff]
        %v877 = vld [vmem:[%s789 + $0xb0] sm:$0xff]
        %v878 = vld [vmem:[%s789 + $0xb8] sm:$0xff]
        %v879 = vld [vmem:[%s789 + $0xc0] sm:$0xff]
        %v880 = vld [vmem:[%s789 + $0xc8] sm:$0xff]
        %v881 = vld [vmem:[%s789 + $0xd0] sm:$0xff]
        %v882 = vld [vmem:[%s789 + $0xd8] sm:$0xff]
        %v883 = vld [vmem:[%s789 + $0xe0] sm:$0xff]
        %v884 = vld [vmem:[%s789 + $0xe8] sm:$0xff]
        %v885 = vld [vmem:[%s789 + $0xf0] sm:$0xff]
        %v886 = vld [vmem:[%s789 + $0xf8] sm:$0xff]
        %v887 = vld [vmem:[%s789 + $0x100] sm:$0xff]
        %v888 = vld [vmem:[%s789 + $0x108] sm:$0xff]
        %v889 = vld [vmem:[%s789 + $0x110] sm:$0xff]
        %v890 = vld [vmem:[%s789 + $0x118] sm:$0xff]
        %v891 = vld [vmem:[%s789 + $0x120] sm:$0xff]
        %v892 = vld [vmem:[%s789 + $0x128] sm:$0xff]
        %v893 = vld [vmem:[%s789 + $0x130] sm:$0xff]
        %v894 = vld [vmem:[%s789 + $0x138] sm:$0xff]
        %v895 = vld [vmem:[%s789 + $0x140] sm:$0xff]
        %v896 = vld [vmem:[%s789 + $0x148] sm:$0xff]
        %v897 = vld [vmem:[%s789 + $0x150] sm:$0xff]
        %v898 = vld [vmem:[%s789 + $0x158] sm:$0xff]
        %v899 = vld [vmem:[%s789 + $0x160] sm:$0xff]
        %v900 = vld [vmem:[%s789 + $0x168] sm:$0xff]
        %v901 = vld [vmem:[%s789 + $0x170] sm:$0xff]
        %v902 = vld [vmem:[%s789 + $0x178] sm:$0xff]
        %v903 = vld [vmem:[%s789 + $0x180] sm:$0xff]
        %v904 = vld [vmem:[%s789 + $0x188] sm:$0xff]
        %v905 = vld [vmem:[%s789 + $0x190] sm:$0xff]
        %v906 = vld [vmem:[%s789 + $0x198] sm:$0xff]
        %v907 = vld [vmem:[%s789 + $0x1a0] sm:$0xff]
        %v908 = vld [vmem:[%s789 + $0x1a8] sm:$0xff]
        %v909 = vld [vmem:[%s789 + $0x1b0] sm:$0xff]
        %v910 = vld [vmem:[%s789 + $0x1b8] sm:$0xff]
        %v911 = vld [vmem:[%s789 + $0x1c0] sm:$0xff]
        %v912 = vld [vmem:[%s789 + $0x1c8] sm:$0xff]
        %v913 = vld [vmem:[%s789 + $0x1d0] sm:$0xff]
        %v914 = vld [vmem:[%s789 + $0x1d8] sm:$0xff]
        %v915 = vld [vmem:[%s789 + $0x1e0] sm:$0xff]
        %v916 = vld [vmem:[%s789 + $0x1e8] sm:$0xff]
        %v917 = vld [vmem:[%s789 + $0x1f0] sm:$0xff]
        %v918 = vld [vmem:[%s789 + $0x1f8] sm:$0xff]
        %v919 = vld [vmem:[%s789 + $0x200] sm:$0xff]
        %v920 = vld [vmem:[%s789 + $0x208] sm:$0xff]
        %v921 = vld [vmem:[%s789 + $0x210] sm:$0xff]
        %v922 = vld [vmem:[%s789 + $0x218] sm:$0xff]
        %v923 = vld [vmem:[%s789 + $0x220] sm:$0xff]
        %v924 = vld [vmem:[%s789 + $0x228] sm:$0xff]
        %v925 = vld [vmem:[%s789 + $0x230] sm:$0xff]
        %v926 = vld [vmem:[%s789 + $0x238] sm:$0xff]
        %v927 = vld [vmem:[%s789 + $0x240] sm:$0xff]
        %v928 = vld [vmem:[%s789 + $0x248] sm:$0xff]
        %v929 = vld [vmem:[%s789 + $0x250] sm:$0xff]
        %v930 = vld [vmem:[%s789 + $0x258] sm:$0xff]
        %v931 = vld [vmem:[%s789 + $0x260] sm:$0xff]
        %v932 = vld [vmem:[%s789 + $0x268] sm:$0xff]
        %v933 = vld [vmem:[%s789 + $0x270] sm:$0xff]
        %v934 = vld [vmem:[%s789 + $0x278] sm:$0xff]
        %v935 = vld [vmem:[%s789 + $0x280] sm:$0xff]
        %v936 = vld [vmem:[%s789 + $0x288] sm:$0xff]
        %v937 = vld [vmem:[%s789 + $0x290] sm:$0xff]
        %v938 = vld [vmem:[%s789 + $0x298] sm:$0xff]
        %v939 = vld [vmem:[%s789 + $0x2a0] sm:$0xff]
        %v940 = vld [vmem:[%s789 + $0x2a8] sm:$0xff]
        %v941 = vld [vmem:[%s789 + $0x2b0] sm:$0xff]
        %v942 = vld [vmem:[%s789 + $0x2b8] sm:$0xff]
        %v943 = vld [vmem:[%s789 + $0x2c0] sm:$0xff]
        %v944 = vld [vmem:[%s789 + $0x2c8] sm:$0xff]
        %v945 = vld [vmem:[%s789 + $0x2d0] sm:$0xff]
        %v946 = vld [vmem:[%s789 + $0x2d8] sm:$0xff]
        %v947 = vld [vmem:[%s789 + $0x2e0] sm:$0xff]
        %v948 = vld [vmem:[%s789 + $0x2e8] sm:$0xff]
        %v949 = vld [vmem:[%s789 + $0x2f0] sm:$0xff]
        %v950 = vld [vmem:[%s789 + $0x2f8] sm:$0xff]
        %v951 = vld [vmem:[%s789 + $0x300] sm:$0xff]
        %v952 = vld [vmem:[%s789 + $0x308] sm:$0xff]
        %v953 = vld [vmem:[%s789 + $0x310] sm:$0xff]
        %v954 = vld [vmem:[%s789 + $0x318] sm:$0xff]
        %v955 = vld [vmem:[%s789 + $0x320] sm:$0xff]
        %v956 = vld [vmem:[%s789 + $0x328] sm:$0xff]
        %v957 = vld [vmem:[%s789 + $0x330] sm:$0xff]
        %v958 = vld [vmem:[%s789 + $0x338] sm:$0xff]
        %v959 = vld [vmem:[%s789 + $0x340] sm:$0xff]
        %v960 = vld [vmem:[%s789 + $0x348] sm:$0xff]
        %v961 = vld [vmem:[%s789 + $0x350] sm:$0xff]
        %v962 = vld [vmem:[%s789 + $0x358] sm:$0xff]
        %v963 = vld [vmem:[%s789 + $0x360] sm:$0xff]
        %v964 = vld [vmem:[%s789 + $0x368] sm:$0xff]
        %v965 = vld [vmem:[%s789 + $0x370] sm:$0xff]
        %v966 = vld [vmem:[%s789 + $0x378] sm:$0xff]
        %v967 = vld [vmem:[%s789 + $0x380] sm:$0xff]
        %v968 = vld [vmem:[%s789 + $0x388] sm:$0xff]
        %v969 = vld [vmem:[%s789 + $0x390] sm:$0xff]
        %v970 = vld [vmem:[%s789 + $0x398] sm:$0xff]
        %v971 = vld [vmem:[%s789 + $0x3a0] sm:$0xff]
        %v972 = vld [vmem:[%s789 + $0x3a8] sm:$0xff]
        %v973 = vld [vmem:[%s789 + $0x3b0] sm:$0xff]
        %v974 = vld [vmem:[%s789 + $0x3b8] sm:$0xff]
        %v975 = vld [vmem:[%s789 + $0x3c0] sm:$0xff]
        %v976 = vld [vmem:[%s789 + $0x3c8] sm:$0xff]
        %v977 = vld [vmem:[%s789 + $0x3d0] sm:$0xff]
        %v978 = vld [vmem:[%s789 + $0x3d8] sm:$0xff]
        %v979 = vld [vmem:[%s789 + $0x3e0] sm:$0xff]
        %v980 = vld [vmem:[%s789 + $0x3e8] sm:$0xff]
        %v981 = vld [vmem:[%s789 + $0x3f0] sm:$0xff]
        %v982 = vld [vmem:[%s789 + $0x3f8] sm:$0xff]
        %v983 = vld [vmem:[%s789 + $0x400] sm:$0xff]
        %v984 = vld [vmem:[%s789 + $0x408] sm:$0xff]
        %v985 = vld [vmem:[%s789 + $0x410] sm:$0xff]
        %v986 = vld [vmem:[%s789 + $0x418] sm:$0xff]
        %v987 = vld [vmem:[%s789 + $0x420] sm:$0xff]
        %v988 = vld [vmem:[%s789 + $0x428] sm:$0xff]
        %v989 = vld [vmem:[%s789 + $0x430] sm:$0xff]
        %v990 = vld [vmem:[%s789 + $0x438] sm:$0xff]
        %v991 = vld [vmem:[%s789 + $0x440] sm:$0xff]
        %v992 = vld [vmem:[%s789 + $0x448] sm:$0xff]
        %v993 = vld [vmem:[%s789 + $0x450] sm:$0xff]
        %v994 = vld [vmem:[%s789 + $0x458] sm:$0xff]
        %v995 = vld [vmem:[%s789 + $0x460] sm:$0xff]
        %v996 = vld [vmem:[%s789 + $0x468] sm:$0xff]
        %v997 = vld [vmem:[%s789 + $0x470] sm:$0xff]
        %v998 = vld [vmem:[%s789 + $0x478] sm:$0xff]
        %v999 = vld [vmem:[%s830] sm:$0x3]
        %v1001 = vlaneseq
        %v1002 = vshrl.u32 %v1001, 7
        %v1003 = vsub.s32 0, %v1002
        %v1004 = vrot.slane %v999, %v1003
        %v1005 = vlaneseq
        %v1006 = vshrl.u32 %v1005, 7
        %v1007 = vsub.s32 1, %v1006
        %v1008 = vrot.slane %v999, %v1007
        %v1031 = vunpack.c.l.b16 %v835
        %v1032 = vunpack.c.h.b16 %v835
        %v1033 = vunpack.c.l.b16 %v836
        %v1034 = vunpack.c.h.b16 %v836
        %v1035 = vunpack.c.l.b16 %v837
        %v1036 = vunpack.c.h.b16 %v837
        %v1037 = vunpack.c.l.b16 %v838
        %v1038 = vunpack.c.h.b16 %v838
        %v1039 = vunpack.c.l.b16 %v839
        %v1040 = vunpack.c.l.b16 %v840
        %v1041 = vunpack.c.h.b16 %v840
        %v1042 = vunpack.c.l.b16 %v841
        %v1043 = vunpack.c.h.b16 %v841
        %v1044 = vunpack.c.l.b16 %v842
        %v1045 = vunpack.c.h.b16 %v842
        %v1046 = vunpack.c.l.b16 %v843
        %v1047 = vunpack.c.h.b16 %v843
        %v1048 = vunpack.c.l.b16 %v844
        %v1049 = vunpack.c.l.b16 %v845
        %v1050 = vunpack.c.h.b16 %v845
        %v1051 = vunpack.c.l.b16 %v846
        %v1052 = vunpack.c.h.b16 %v846
        %v1053 = vunpack.c.l.b16 %v847
        %v1054 = vunpack.c.h.b16 %v847
        %v1055 = vunpack.c.l.b16 %v848
        %v1056 = vunpack.c.h.b16 %v848
        %v1057 = vunpack.c.l.b16 %v849
        %v1058 = vunpack.c.l.b16 %v850
        %v1059 = vunpack.c.h.b16 %v850
        %v1060 = vunpack.c.l.b16 %v851
        %v1061 = vunpack.c.h.b16 %v851
        %v1062 = vunpack.c.l.b16 %v852
        %v1063 = vunpack.c.h.b16 %v852
        %v1064 = vunpack.c.l.b16 %v853
        %v1065 = vunpack.c.h.b16 %v853
        %v1066 = vunpack.c.l.b16 %v854
        %v1067 = vpack.c.b16 %v1040, %v1031
        %v1068 = vpack.c.b16 %v1041, %v1032
        %v1069 = vpack.c.b16 %v1042, %v1033
        %v1070 = vpack.c.b16 %v1043, %v1034
        %v1071 = vpack.c.b16 %v1044, %v1035
        %v1072 = vpack.c.b16 %v1045, %v1036
        %v1073 = vpack.c.b16 %v1046, %v1037
        %v1074 = vpack.c.b16 %v1047, %v1038
        %v1075 = vpack.c.b16 %v1048, %v1039
        %v1076 = vpack.c.b16 %v1058, %v1049
        %v1077 = vpack.c.b16 %v1059, %v1050
        %v1078 = vpack.c.b16 %v1060, %v1051
        %v1079 = vpack.c.b16 %v1061, %v1052
        %v1080 = vpack.c.b16 %v1062, %v1053
        %v1081 = vpack.c.b16 %v1063, %v1054
        %v1082 = vpack.c.b16 %v1064, %v1055
        %v1083 = vpack.c.b16 %v1065, %v1056
        %v1084 = vpack.c.b16 %v1066, %v1057
        %v1247 = vunpack.c.l.b16 %v855
        %v1248 = vunpack.c.h.b16 %v855
        %v1249 = vunpack.c.l.b16 %v856
        %v1250 = vunpack.c.h.b16 %v856
        %v1251 = vunpack.c.l.b16 %v857
        %v1252 = vunpack.c.h.b16 %v857
        %v1253 = vunpack.c.l.b16 %v858
        %v1254 = vunpack.c.h.b16 %v858
        %v1255 = vunpack.c.l.b16 %v859
        %v1256 = vunpack.c.h.b16 %v859
        %v1257 = vunpack.c.l.b16 %v860
        %v1258 = vunpack.c.h.b16 %v860
        %v1259 = vunpack.c.l.b16 %v861
        %v1260 = vunpack.c.h.b16 %v861
        %v1261 = vunpack.c.l.b16 %v862
        %v1262 = vunpack.c.h.b16 %v862
        %v1263 = vunpack.c.l.b16 %v863
        %v1264 = vunpack.c.h.b16 %v863
        %v1265 = vunpack.c.l.b16 %v864
        %v1266 = vunpack.c.h.b16 %v864
        %v1267 = vunpack.c.l.b16 %v865
        %v1268 = vunpack.c.h.b16 %v865
        %v1269 = vunpack.c.l.b16 %v866
        %v1270 = vunpack.c.h.b16 %v866
        %v1271 = vunpack.c.l.b16 %v867
        %v1272 = vunpack.c.h.b16 %v867
        %v1273 = vunpack.c.l.b16 %v868
        %v1274 = vunpack.c.h.b16 %v868
        %v1275 = vunpack.c.l.b16 %v869
        %v1276 = vunpack.c.h.b16 %v869
        %v1277 = vunpack.c.l.b16 %v870
        %v1278 = vunpack.c.h.b16 %v870
        %v1279 = vunpack.c.l.b16 %v871
        %v1280 = vunpack.c.h.b16 %v871
        %v1281 = vunpack.c.l.b16 %v872
        %v1282 = vunpack.c.h.b16 %v872
        %v1283 = vunpack.c.l.b16 %v873
        %v1284 = vunpack.c.h.b16 %v873
        %v1285 = vunpack.c.l.b16 %v874
        %v1286 = vunpack.c.h.b16 %v874
        %v1287 = vunpack.c.l.b16 %v875
        %v1288 = vunpack.c.h.b16 %v875
        %v1289 = vunpack.c.l.b16 %v876
        %v1290 = vunpack.c.h.b16 %v876
        %v1291 = vunpack.c.l.b16 %v877
        %v1292 = vunpack.c.h.b16 %v877
        %v1293 = vunpack.c.l.b16 %v878
        %v1294 = vunpack.c.h.b16 %v878
        %v1295 = vunpack.c.l.b16 %v879
        %v1296 = vunpack.c.h.b16 %v879
        %v1297 = vunpack.c.l.b16 %v880
        %v1298 = vunpack.c.h.b16 %v880
        %v1299 = vunpack.c.l.b16 %v881
        %v1300 = vunpack.c.h.b16 %v881
        %v1301 = vunpack.c.l.b16 %v882
        %v1302 = vunpack.c.h.b16 %v882
        %v1303 = vunpack.c.l.b16 %v883
        %v1304 = vunpack.c.h.b16 %v883
        %v1305 = vunpack.c.l.b16 %v884
        %v1306 = vunpack.c.h.b16 %v884
        %v1307 = vunpack.c.l.b16 %v885
        %v1308 = vunpack.c.h.b16 %v885
        %v1309 = vunpack.c.l.b16 %v886
        %v1310 = vunpack.c.h.b16 %v886
        %v1311 = vunpack.c.l.b16 %v887
        %v1312 = vunpack.c.h.b16 %v887
        %v1313 = vunpack.c.l.b16 %v888
        %v1314 = vunpack.c.h.b16 %v888
        %v1315 = vunpack.c.l.b16 %v889
        %v1316 = vunpack.c.h.b16 %v889
        %v1317 = vunpack.c.l.b16 %v890
        %v1318 = vunpack.c.h.b16 %v890
        %v1319 = vunpack.c.l.b16 %v891
        %v1320 = vunpack.c.h.b16 %v891
        %v1321 = vunpack.c.l.b16 %v892
        %v1322 = vunpack.c.h.b16 %v892
        %v1323 = vunpack.c.l.b16 %v893
        %v1324 = vunpack.c.h.b16 %v893
        %v1325 = vunpack.c.l.b16 %v894
        %v1326 = vunpack.c.h.b16 %v894
        %v1327 = vunpack.c.l.b16 %v895
        %v1328 = vunpack.c.h.b16 %v895
        %v1329 = vunpack.c.l.b16 %v896
        %v1330 = vunpack.c.h.b16 %v896
        %v1331 = vunpack.c.l.b16 %v897
        %v1332 = vunpack.c.h.b16 %v897
        %v1333 = vunpack.c.l.b16 %v898
        %v1334 = vunpack.c.h.b16 %v898
        %v1335 = vunpack.c.l.b16 %v899
        %v1336 = vunpack.c.h.b16 %v899
        %v1337 = vunpack.c.l.b16 %v900
        %v1338 = vunpack.c.h.b16 %v900
        %v1339 = vunpack.c.l.b16 %v901
        %v1340 = vunpack.c.h.b16 %v901
        %v1341 = vunpack.c.l.b16 %v902
        %v1342 = vunpack.c.h.b16 %v902
        %v1343 = vunpack.c.l.b16 %v903
        %v1344 = vunpack.c.h.b16 %v903
        %v1345 = vunpack.c.l.b16 %v904
        %v1346 = vunpack.c.h.b16 %v904
        %v1347 = vunpack.c.l.b16 %v905
        %v1348 = vunpack.c.h.b16 %v905
        %v1349 = vunpack.c.l.b16 %v906
        %v1350 = vunpack.c.h.b16 %v906
        %v1351 = vunpack.c.l.b16 %v907
        %v1352 = vunpack.c.h.b16 %v907
        %v1353 = vunpack.c.l.b16 %v908
        %v1354 = vunpack.c.h.b16 %v908
        %v1355 = vunpack.c.l.b16 %v909
        %v1356 = vunpack.c.h.b16 %v909
        %v1357 = vunpack.c.l.b16 %v910
        %v1358 = vunpack.c.h.b16 %v910
        %v1359 = vunpack.c.l.b16 %v911
        %v1360 = vunpack.c.h.b16 %v911
        %v1361 = vunpack.c.l.b16 %v912
        %v1362 = vunpack.c.h.b16 %v912
        %v1363 = vunpack.c.l.b16 %v913
        %v1364 = vunpack.c.h.b16 %v913
        %v1365 = vunpack.c.l.b16 %v914
        %v1366 = vunpack.c.h.b16 %v914
        %v1367 = vunpack.c.l.b16 %v915
        %v1368 = vunpack.c.h.b16 %v915
        %v1369 = vunpack.c.l.b16 %v916
        %v1370 = vunpack.c.h.b16 %v916
        %v1371 = vunpack.c.l.b16 %v917
        %v1372 = vunpack.c.h.b16 %v917
        %v1373 = vunpack.c.l.b16 %v918
        %v1374 = vunpack.c.h.b16 %v918
        %v1375 = vunpack.c.l.b16 %v919
        %v1376 = vunpack.c.h.b16 %v919
        %v1377 = vunpack.c.l.b16 %v920
        %v1378 = vunpack.c.h.b16 %v920
        %v1379 = vunpack.c.l.b16 %v921
        %v1380 = vunpack.c.h.b16 %v921
        %v1381 = vunpack.c.l.b16 %v922
        %v1382 = vunpack.c.h.b16 %v922
        %v1383 = vunpack.c.l.b16 %v923
        %v1384 = vunpack.c.h.b16 %v923
        %v1385 = vunpack.c.l.b16 %v924
        %v1386 = vunpack.c.h.b16 %v924
        %v1387 = vunpack.c.l.b16 %v925
        %v1388 = vunpack.c.h.b16 %v925
        %v1389 = vunpack.c.l.b16 %v926
        %v1390 = vunpack.c.h.b16 %v926
        %v1391 = vunpack.c.l.b16 %v927
        %v1392 = vunpack.c.h.b16 %v927
        %v1393 = vunpack.c.l.b16 %v928
        %v1394 = vunpack.c.h.b16 %v928
        %v1395 = vunpack.c.l.b16 %v929
        %v1396 = vunpack.c.h.b16 %v929
        %v1397 = vunpack.c.l.b16 %v930
        %v1398 = vunpack.c.h.b16 %v930
        %v1399 = vunpack.c.l.b16 %v931
        %v1400 = vunpack.c.h.b16 %v931
        %v1401 = vunpack.c.l.b16 %v932
        %v1402 = vunpack.c.h.b16 %v932
        %v1403 = vunpack.c.l.b16 %v933
        %v1404 = vunpack.c.h.b16 %v933
        %v1405 = vunpack.c.l.b16 %v934
        %v1406 = vunpack.c.h.b16 %v934
        %v1407 = vunpack.c.l.b16 %v935
        %v1408 = vunpack.c.h.b16 %v935
        %v1409 = vunpack.c.l.b16 %v936
        %v1410 = vunpack.c.h.b16 %v936
        %v1411 = vunpack.c.l.b16 %v937
        %v1412 = vunpack.c.h.b16 %v937
        %v1413 = vunpack.c.l.b16 %v938
        %v1414 = vunpack.c.h.b16 %v938
        %v1415 = vunpack.c.l.b16 %v939
        %v1416 = vunpack.c.h.b16 %v939
        %v1417 = vunpack.c.l.b16 %v940
        %v1418 = vunpack.c.h.b16 %v940
        %v1419 = vunpack.c.l.b16 %v941
        %v1420 = vunpack.c.h.b16 %v941
        %v1421 = vunpack.c.l.b16 %v942
        %v1422 = vunpack.c.h.b16 %v942
        %v1423 = vunpack.c.l.b16 %v943
        %v1424 = vunpack.c.h.b16 %v943
        %v1425 = vunpack.c.l.b16 %v944
        %v1426 = vunpack.c.h.b16 %v944
        %v1427 = vunpack.c.l.b16 %v945
        %v1428 = vunpack.c.h.b16 %v945
        %v1429 = vunpack.c.l.b16 %v946
        %v1430 = vunpack.c.h.b16 %v946
        %v1431 = vunpack.c.l.b16 %v947
        %v1432 = vunpack.c.h.b16 %v947
        %v1433 = vunpack.c.l.b16 %v948
        %v1434 = vunpack.c.h.b16 %v948
        %v1435 = vunpack.c.l.b16 %v949
        %v1436 = vunpack.c.h.b16 %v949
        %v1437 = vunpack.c.l.b16 %v950
        %v1438 = vunpack.c.h.b16 %v950
        %v1439 = vunpack.c.l.b16 %v951
        %v1440 = vunpack.c.h.b16 %v951
        %v1441 = vunpack.c.l.b16 %v952
        %v1442 = vunpack.c.h.b16 %v952
        %v1443 = vunpack.c.l.b16 %v953
        %v1444 = vunpack.c.h.b16 %v953
        %v1445 = vunpack.c.l.b16 %v954
        %v1446 = vunpack.c.h.b16 %v954
        %v1447 = vunpack.c.l.b16 %v955
        %v1448 = vunpack.c.h.b16 %v955
        %v1449 = vunpack.c.l.b16 %v956
        %v1450 = vunpack.c.h.b16 %v956
        %v1451 = vunpack.c.l.b16 %v957
        %v1452 = vunpack.c.h.b16 %v957
        %v1453 = vunpack.c.l.b16 %v958
        %v1454 = vunpack.c.h.b16 %v958
        %v1455 = vunpack.c.l.b16 %v959
        %v1456 = vunpack.c.h.b16 %v959
        %v1457 = vunpack.c.l.b16 %v960
        %v1458 = vunpack.c.h.b16 %v960
        %v1459 = vunpack.c.l.b16 %v961
        %v1460 = vunpack.c.h.b16 %v961
        %v1461 = vunpack.c.l.b16 %v962
        %v1462 = vunpack.c.h.b16 %v962
        %v1463 = vunpack.c.l.b16 %v963
        %v1464 = vunpack.c.h.b16 %v963
        %v1465 = vunpack.c.l.b16 %v964
        %v1466 = vunpack.c.h.b16 %v964
        %v1467 = vunpack.c.l.b16 %v965
        %v1468 = vunpack.c.h.b16 %v965
        %v1469 = vunpack.c.l.b16 %v966
        %v1470 = vunpack.c.h.b16 %v966
        %v1471 = vunpack.c.l.b16 %v967
        %v1472 = vunpack.c.h.b16 %v967
        %v1473 = vunpack.c.l.b16 %v968
        %v1474 = vunpack.c.h.b16 %v968
        %v1475 = vunpack.c.l.b16 %v969
        %v1476 = vunpack.c.h.b16 %v969
        %v1477 = vunpack.c.l.b16 %v970
        %v1478 = vunpack.c.h.b16 %v970
        %v1479 = vunpack.c.l.b16 %v971
        %v1480 = vunpack.c.h.b16 %v971
        %v1481 = vunpack.c.l.b16 %v972
        %v1482 = vunpack.c.h.b16 %v972
        %v1483 = vunpack.c.l.b16 %v973
        %v1484 = vunpack.c.h.b16 %v973
        %v1485 = vunpack.c.l.b16 %v974
        %v1486 = vunpack.c.h.b16 %v974
        %v1487 = vunpack.c.l.b16 %v975
        %v1488 = vunpack.c.h.b16 %v975
        %v1489 = vunpack.c.l.b16 %v976
        %v1490 = vunpack.c.h.b16 %v976
        %v1491 = vunpack.c.l.b16 %v977
        %v1492 = vunpack.c.h.b16 %v977
        %v1493 = vunpack.c.l.b16 %v978
        %v1494 = vunpack.c.h.b16 %v978
        %v1495 = vunpack.c.l.b16 %v979
        %v1496 = vunpack.c.h.b16 %v979
        %v1497 = vunpack.c.l.b16 %v980
        %v1498 = vunpack.c.h.b16 %v980
        %v1499 = vunpack.c.l.b16 %v981
        %v1500 = vunpack.c.h.b16 %v981
        %v1501 = vunpack.c.l.b16 %v982
        %v1502 = vunpack.c.h.b16 %v982
        %v1503 = vunpack.c.l.b16 %v983
        %v1504 = vunpack.c.h.b16 %v983
        %v1505 = vunpack.c.l.b16 %v984
        %v1506 = vunpack.c.h.b16 %v984
        %v1507 = vunpack.c.l.b16 %v985
        %v1508 = vunpack.c.h.b16 %v985
        %v1509 = vunpack.c.l.b16 %v986
        %v1510 = vunpack.c.h.b16 %v986
        %v1511 = vunpack.c.l.b16 %v987
        %v1512 = vunpack.c.h.b16 %v987
        %v1513 = vunpack.c.l.b16 %v988
        %v1514 = vunpack.c.h.b16 %v988
        %v1515 = vunpack.c.l.b16 %v989
        %v1516 = vunpack.c.h.b16 %v989
        %v1517 = vunpack.c.l.b16 %v990
        %v1518 = vunpack.c.h.b16 %v990
        %v1519 = vunpack.c.l.b16 %v991
        %v1520 = vunpack.c.h.b16 %v991
        %v1521 = vunpack.c.l.b16 %v992
        %v1522 = vunpack.c.h.b16 %v992
        %v1523 = vunpack.c.l.b16 %v993
        %v1524 = vunpack.c.h.b16 %v993
        %v1525 = vunpack.c.l.b16 %v994
        %v1526 = vunpack.c.h.b16 %v994
        %v1527 = vunpack.c.l.b16 %v995
        %v1528 = vunpack.c.h.b16 %v995
        %v1529 = vunpack.c.l.b16 %v996
        %v1530 = vunpack.c.h.b16 %v996
        %v1531 = vunpack.c.l.b16 %v997
        %v1532 = vunpack.c.h.b16 %v997
        %v1533 = vunpack.c.l.b16 %v998
        %v1534 = vunpack.c.h.b16 %v998
        %v1535 = vpack.c.b16 %v1249, %v1247
        %v1536 = vpack.c.b16 %v1250, %v1248
        %v1537 = vpack.c.b16 %v1253, %v1251
        %v1538 = vpack.c.b16 %v1254, %v1252
        %v1539 = vpack.c.b16 %v1257, %v1255
        %v1540 = vpack.c.b16 %v1258, %v1256
        %v1541 = vpack.c.b16 %v1261, %v1259
        %v1542 = vpack.c.b16 %v1262, %v1260
        %v1543 = vpack.c.b16 %v1265, %v1263
        %v1544 = vpack.c.b16 %v1266, %v1264
        %v1545 = vpack.c.b16 %v1269, %v1267
        %v1546 = vpack.c.b16 %v1270, %v1268
        %v1547 = vpack.c.b16 %v1273, %v1271
        %v1548 = vpack.c.b16 %v1274, %v1272
        %v1549 = vpack.c.b16 %v1277, %v1275
        %v1550 = vpack.c.b16 %v1278, %v1276
        %v1551 = vpack.c.b16 %v1281, %v1279
        %v1552 = vpack.c.b16 %v1282, %v1280
        %v1553 = vpack.c.b16 %v1285, %v1283
        %v1554 = vpack.c.b16 %v1286, %v1284
        %v1555 = vpack.c.b16 %v1289, %v1287
        %v1556 = vpack.c.b16 %v1290, %v1288
        %v1557 = vpack.c.b16 %v1293, %v1291
        %v1558 = vpack.c.b16 %v1294, %v1292
        %v1559 = vpack.c.b16 %v1297, %v1295
        %v1560 = vpack.c.b16 %v1298, %v1296
        %v1561 = vpack.c.b16 %v1301, %v1299
        %v1562 = vpack.c.b16 %v1302, %v1300
        %v1563 = vpack.c.b16 %v1305, %v1303
        %v1564 = vpack.c.b16 %v1306, %v1304
        %v1565 = vpack.c.b16 %v1309, %v1307
        %v1566 = vpack.c.b16 %v1310, %v1308
        %v1567 = vpack.c.b16 %v1313, %v1311
        %v1568 = vpack.c.b16 %v1314, %v1312
        %v1569 = vpack.c.b16 %v1317, %v1315
        %v1570 = vpack.c.b16 %v1318, %v1316
        %v1571 = vpack.c.b16 %v1321, %v1319
        %v1572 = vpack.c.b16 %v1322, %v1320
        %v1573 = vpack.c.b16 %v1325, %v1323
        %v1574 = vpack.c.b16 %v1326, %v1324
        %v1575 = vpack.c.b16 %v1329, %v1327
        %v1576 = vpack.c.b16 %v1330, %v1328
        %v1577 = vpack.c.b16 %v1333, %v1331
        %v1578 = vpack.c.b16 %v1334, %v1332
        %v1579 = vpack.c.b16 %v1337, %v1335
        %v1580 = vpack.c.b16 %v1338, %v1336
        %v1581 = vpack.c.b16 %v1341, %v1339
        %v1582 = vpack.c.b16 %v1342, %v1340
        %v1583 = vpack.c.b16 %v1345, %v1343
        %v1584 = vpack.c.b16 %v1346, %v1344
        %v1585 = vpack.c.b16 %v1349, %v1347
        %v1586 = vpack.c.b16 %v1350, %v1348
        %v1587 = vpack.c.b16 %v1353, %v1351
        %v1588 = vpack.c.b16 %v1354, %v1352
        %v1589 = vpack.c.b16 %v1357, %v1355
        %v1590 = vpack.c.b16 %v1358, %v1356
        %v1591 = vpack.c.b16 %v1361, %v1359
        %v1592 = vpack.c.b16 %v1362, %v1360
        %v1593 = vpack.c.b16 %v1365, %v1363
        %v1594 = vpack.c.b16 %v1366, %v1364
        %v1595 = vpack.c.b16 %v1369, %v1367
        %v1596 = vpack.c.b16 %v1370, %v1368
        %v1597 = vpack.c.b16 %v1373, %v1371
        %v1598 = vpack.c.b16 %v1374, %v1372
        %v1599 = vpack.c.b16 %v1377, %v1375
        %v1600 = vpack.c.b16 %v1378, %v1376
        %v1601 = vpack.c.b16 %v1381, %v1379
        %v1602 = vpack.c.b16 %v1382, %v1380
        %v1603 = vpack.c.b16 %v1385, %v1383
        %v1604 = vpack.c.b16 %v1386, %v1384
        %v1605 = vpack.c.b16 %v1389, %v1387
        %v1606 = vpack.c.b16 %v1390, %v1388
        %v1607 = vpack.c.b16 %v1393, %v1391
        %v1608 = vpack.c.b16 %v1394, %v1392
        %v1609 = vpack.c.b16 %v1397, %v1395
        %v1610 = vpack.c.b16 %v1398, %v1396
        %v1611 = vpack.c.b16 %v1401, %v1399
        %v1612 = vpack.c.b16 %v1402, %v1400
        %v1613 = vpack.c.b16 %v1405, %v1403
        %v1614 = vpack.c.b16 %v1406, %v1404
        %v1615 = vpack.c.b16 %v1409, %v1407
        %v1616 = vpack.c.b16 %v1410, %v1408
        %v1617 = vpack.c.b16 %v1413, %v1411
        %v1618 = vpack.c.b16 %v1414, %v1412
        %v1619 = vpack.c.b16 %v1417, %v1415
        %v1620 = vpack.c.b16 %v1418, %v1416
        %v1621 = vpack.c.b16 %v1421, %v1419
        %v1622 = vpack.c.b16 %v1422, %v1420
        %v1623 = vpack.c.b16 %v1425, %v1423
        %v1624 = vpack.c.b16 %v1426, %v1424
        %v1625 = vpack.c.b16 %v1429, %v1427
        %v1626 = vpack.c.b16 %v1430, %v1428
        %v1627 = vpack.c.b16 %v1433, %v1431
        %v1628 = vpack.c.b16 %v1434, %v1432
        %v1629 = vpack.c.b16 %v1437, %v1435
        %v1630 = vpack.c.b16 %v1438, %v1436
        %v1631 = vpack.c.b16 %v1441, %v1439
        %v1632 = vpack.c.b16 %v1442, %v1440
        %v1633 = vpack.c.b16 %v1445, %v1443
        %v1634 = vpack.c.b16 %v1446, %v1444
        %v1635 = vpack.c.b16 %v1449, %v1447
        %v1636 = vpack.c.b16 %v1450, %v1448
        %v1637 = vpack.c.b16 %v1453, %v1451
        %v1638 = vpack.c.b16 %v1454, %v1452
        %v1639 = vpack.c.b16 %v1457, %v1455
        %v1640 = vpack.c.b16 %v1458, %v1456
        %v1641 = vpack.c.b16 %v1461, %v1459
        %v1642 = vpack.c.b16 %v1462, %v1460
        %v1643 = vpack.c.b16 %v1465, %v1463
        %v1644 = vpack.c.b16 %v1466, %v1464
        %v1645 = vpack.c.b16 %v1469, %v1467
        %v1646 = vpack.c.b16 %v1470, %v1468
        %v1647 = vpack.c.b16 %v1473, %v1471
        %v1648 = vpack.c.b16 %v1474, %v1472
        %v1649 = vpack.c.b16 %v1477, %v1475
        %v1650 = vpack.c.b16 %v1478, %v1476
        %v1651 = vpack.c.b16 %v1481, %v1479
        %v1652 = vpack.c.b16 %v1482, %v1480
        %v1653 = vpack.c.b16 %v1485, %v1483
        %v1654 = vpack.c.b16 %v1486, %v1484
        %v1655 = vpack.c.b16 %v1489, %v1487
        %v1656 = vpack.c.b16 %v1490, %v1488
        %v1657 = vpack.c.b16 %v1493, %v1491
        %v1658 = vpack.c.b16 %v1494, %v1492
        %v1659 = vpack.c.b16 %v1497, %v1495
        %v1660 = vpack.c.b16 %v1498, %v1496
        %v1661 = vpack.c.b16 %v1501, %v1499
        %v1662 = vpack.c.b16 %v1502, %v1500
        %v1663 = vpack.c.b16 %v1505, %v1503
        %v1664 = vpack.c.b16 %v1506, %v1504
        %v1665 = vpack.c.b16 %v1509, %v1507
        %v1666 = vpack.c.b16 %v1510, %v1508
        %v1667 = vpack.c.b16 %v1513, %v1511
        %v1668 = vpack.c.b16 %v1514, %v1512
        %v1669 = vpack.c.b16 %v1517, %v1515
        %v1670 = vpack.c.b16 %v1518, %v1516
        %v1671 = vpack.c.b16 %v1521, %v1519
        %v1672 = vpack.c.b16 %v1522, %v1520
        %v1673 = vpack.c.b16 %v1525, %v1523
        %v1674 = vpack.c.b16 %v1526, %v1524
        %v1675 = vpack.c.b16 %v1529, %v1527
        %v1676 = vpack.c.b16 %v1530, %v1528
        %v1677 = vpack.c.b16 %v1533, %v1531
        %v1678 = vpack.c.b16 %v1534, %v1532
        %1823 = vmatprep.subr.bf16.mxu0 %v1550
        %1824 = vmatpush1.bf16.msra.mxu0 %v1549
        %1825 = vmatprep.subr.bf16.mxu0 %v1548
        %1826 = vmatpush1.bf16.msra.mxu0 %v1547
        %1827 = vmatprep.subr.bf16.mxu0 %v1546
        %1828 = vmatpush1.bf16.msra.mxu0 %v1545
        %1829 = vmatprep.subr.bf16.mxu0 %v1544
        %1830 = vmatpush1.bf16.msra.mxu0 %v1543
        %1831 = vmatprep.subr.bf16.mxu0 %v1542
        %1832 = vmatpush1.bf16.msra.mxu0 %v1541
        %1833 = vmatprep.subr.bf16.mxu0 %v1540
        %1834 = vmatpush1.bf16.msra.mxu0 %v1539
        %1835 = vmatprep.subr.bf16.mxu0 %v1538
        %1836 = vmatpush1.bf16.msra.mxu0 %v1537
        %1837 = vmatprep.subr.bf16.mxu0 %v1536
        %1838 = vmatpush1.bf16.msra.mxu0 %v1535
        %1839 = vmatprep.subr.bf16.mxu0 %v1566
        %1840 = vmatpush2.bf16.msra.mxu0 %v1565
        %1841 = vmatprep.subr.bf16.mxu0 %v1564
        %1842 = vmatpush2.bf16.msra.mxu0 %v1563
        %1843 = vmatprep.subr.bf16.mxu0 %v1562
        %1844 = vmatpush2.bf16.msra.mxu0 %v1561
        %1845 = vmatprep.subr.bf16.mxu0 %v1560
        %1846 = vmatpush2.bf16.msra.mxu0 %v1559
        %1847 = vmatprep.subr.bf16.mxu0 %v1558
        %1848 = vmatpush2.bf16.msra.mxu0 %v1557
        %1849 = vmatprep.subr.bf16.mxu0 %v1556
        %1850 = vmatpush2.bf16.msra.mxu0 %v1555
        %1851 = vmatprep.subr.bf16.mxu0 %v1554
        %1852 = vmatpush2.bf16.msra.mxu0 %v1553
        %1853 = vmatprep.subr.bf16.mxu0 %v1552
        %1854 = vmatpush2.bf16.msra.mxu0 %v1551
        %1855 = vmatprep.mubr.bf16.mxu0 %v1068
        %1856 = vmatmul.mubr.bf16.gmra.mxu0 %v1067
        %v1857 = vpop.f32.mrf.mxu0
        %v1858 = vadd.f32 %v1004, %v1857
        %v1859 = vpop.f32.mrf.mxu0
        %v1860 = vadd.f32 %v1008, %v1859
        %v1861 = vpop.f32.mrf.mxu0
        %v1862 = vadd.f32 %v1004, %v1861
        %v1863 = vpop.f32.mrf.mxu0
        %v1864 = vadd.f32 %v1008, %v1863
        %1865 = vmatprep.mubr.bf16.mxu0 %v1077
        %1866 = vmatmul.mubr.bf16.gmra.mxu0 %v1076
        %v1867 = vpop.f32.mrf.mxu0
        %v1868 = vadd.f32 %v1004, %v1867
        %v1869 = vpop.f32.mrf.mxu0
        %v1870 = vadd.f32 %v1008, %v1869
        %v1871 = vpop.f32.mrf.mxu0
        %v1872 = vadd.f32 %v1004, %v1871
        %v1873 = vpop.f32.mrf.mxu0
        %v1874 = vadd.f32 %v1008, %v1873
        %1875 = vdwg.mxu0
        %1876 = vmatprep.subr.bf16.mxu0 %v1582
        %1877 = vmatpush1.bf16.msra.mxu0 %v1581
        %1878 = vmatprep.subr.bf16.mxu0 %v1580
        %1879 = vmatpush1.bf16.msra.mxu0 %v1579
        %1880 = vmatprep.subr.bf16.mxu0 %v1578
        %1881 = vmatpush1.bf16.msra.mxu0 %v1577
        %1882 = vmatprep.subr.bf16.mxu0 %v1576
        %1883 = vmatpush1.bf16.msra.mxu0 %v1575
        %1884 = vmatprep.subr.bf16.mxu0 %v1574
        %1885 = vmatpush1.bf16.msra.mxu0 %v1573
        %1886 = vmatprep.subr.bf16.mxu0 %v1572
        %1887 = vmatpush1.bf16.msra.mxu0 %v1571
        %1888 = vmatprep.subr.bf16.mxu0 %v1570
        %1889 = vmatpush1.bf16.msra.mxu0 %v1569
        %1890 = vmatprep.subr.bf16.mxu0 %v1568
        %1891 = vmatpush1.bf16.msra.mxu0 %v1567
        %1892 = vmatprep.subr.bf16.mxu0 %v1598
        %1893 = vmatpush2.bf16.msra.mxu0 %v1597
        %1894 = vmatprep.subr.bf16.mxu0 %v1596
        %1895 = vmatpush2.bf16.msra.mxu0 %v1595
        %1896 = vmatprep.subr.bf16.mxu0 %v1594
        %1897 = vmatpush2.bf16.msra.mxu0 %v1593
        %1898 = vmatprep.subr.bf16.mxu0 %v1592
        %1899 = vmatpush2.bf16.msra.mxu0 %v1591
        %1900 = vmatprep.subr.bf16.mxu0 %v1590
        %1901 = vmatpush2.bf16.msra.mxu0 %v1589
        %1902 = vmatprep.subr.bf16.mxu0 %v1588
        %1903 = vmatpush2.bf16.msra.mxu0 %v1587
        %1904 = vmatprep.subr.bf16.mxu0 %v1586
        %1905 = vmatpush2.bf16.msra.mxu0 %v1585
        %1906 = vmatprep.subr.bf16.mxu0 %v1584
        %1907 = vmatpush2.bf16.msra.mxu0 %v1583
        %1908 = vmatprep.mubr.bf16.mxu0 %v1070
        %1909 = vmatmul.mubr.bf16.gmra.mxu0 %v1069
        %v1910 = vpop.f32.mrf.mxu0
        %v1911 = vadd.f32 %v1858, %v1910
        %v1912 = vpop.f32.mrf.mxu0
        %v1913 = vadd.f32 %v1860, %v1912
        %v1914 = vpop.f32.mrf.mxu0
        %v1915 = vadd.f32 %v1862, %v1914
        %v1916 = vpop.f32.mrf.mxu0
        %v1917 = vadd.f32 %v1864, %v1916
        %1918 = vmatprep.mubr.bf16.mxu0 %v1079
        %1919 = vmatmul.mubr.bf16.gmra.mxu0 %v1078
        %v1920 = vpop.f32.mrf.mxu0
        %v1921 = vadd.f32 %v1868, %v1920
        %v1922 = vpop.f32.mrf.mxu0
        %v1923 = vadd.f32 %v1870, %v1922
        %v1924 = vpop.f32.mrf.mxu0
        %v1925 = vadd.f32 %v1872, %v1924
        %v1926 = vpop.f32.mrf.mxu0
        %v1927 = vadd.f32 %v1874, %v1926
        %1928 = vdwg.mxu0
        %1929 = vmatprep.subr.bf16.mxu0 %v1614
        %1930 = vmatpush1.bf16.msra.mxu0 %v1613
        %1931 = vmatprep.subr.bf16.mxu0 %v1612
        %1932 = vmatpush1.bf16.msra.mxu0 %v1611
        %1933 = vmatprep.subr.bf16.mxu0 %v1610
        %1934 = vmatpush1.bf16.msra.mxu0 %v1609
        %1935 = vmatprep.subr.bf16.mxu0 %v1608
        %1936 = vmatpush1.bf16.msra.mxu0 %v1607
        %1937 = vmatprep.subr.bf16.mxu0 %v1606
        %1938 = vmatpush1.bf16.msra.mxu0 %v1605
        %1939 = vmatprep.subr.bf16.mxu0 %v1604
        %1940 = vmatpush1.bf16.msra.mxu0 %v1603
        %1941 = vmatprep.subr.bf16.mxu0 %v1602
        %1942 = vmatpush1.bf16.msra.mxu0 %v1601
        %1943 = vmatprep.subr.bf16.mxu0 %v1600
        %1944 = vmatpush1.bf16.msra.mxu0 %v1599
        %1945 = vmatprep.subr.bf16.mxu0 %v1630
        %1946 = vmatpush2.bf16.msra.mxu0 %v1629
        %1947 = vmatprep.subr.bf16.mxu0 %v1628
        %1948 = vmatpush2.bf16.msra.mxu0 %v1627
        %1949 = vmatprep.subr.bf16.mxu0 %v1626
        %1950 = vmatpush2.bf16.msra.mxu0 %v1625
        %1951 = vmatprep.subr.bf16.mxu0 %v1624
        %1952 = vmatpush2.bf16.msra.mxu0 %v1623
        %1953 = vmatprep.subr.bf16.mxu0 %v1622
        %1954 = vmatpush2.bf16.msra.mxu0 %v1621
        %1955 = vmatprep.subr.bf16.mxu0 %v1620
        %1956 = vmatpush2.bf16.msra.mxu0 %v1619
        %1957 = vmatprep.subr.bf16.mxu0 %v1618
        %1958 = vmatpush2.bf16.msra.mxu0 %v1617
        %1959 = vmatprep.subr.bf16.mxu0 %v1616
        %1960 = vmatpush2.bf16.msra.mxu0 %v1615
        %1961 = vmatprep.mubr.bf16.mxu0 %v1072
        %1962 = vmatmul.mubr.bf16.gmra.mxu0 %v1071
        %v1963 = vpop.f32.mrf.mxu0
        %v1964 = vadd.f32 %v1911, %v1963
        %v1965 = vpop.f32.mrf.mxu0
        %v1966 = vadd.f32 %v1913, %v1965
        %v1967 = vpop.f32.mrf.mxu0
        %v1968 = vadd.f32 %v1915, %v1967
        %v1969 = vpop.f32.mrf.mxu0
        %v1970 = vadd.f32 %v1917, %v1969
        %1971 = vmatprep.mubr.bf16.mxu0 %v1081
        %1972 = vmatmul.mubr.bf16.gmra.mxu0 %v1080
        %v1973 = vpop.f32.mrf.mxu0
        %v1974 = vadd.f32 %v1921, %v1973
        %v1975 = vpop.f32.mrf.mxu0
        %v1976 = vadd.f32 %v1923, %v1975
        %v1977 = vpop.f32.mrf.mxu0
        %v1978 = vadd.f32 %v1925, %v1977
        %v1979 = vpop.f32.mrf.mxu0
        %v1980 = vadd.f32 %v1927, %v1979
        %1981 = vdwg.mxu0
        %1982 = vmatprep.subr.bf16.mxu0 %v1646
        %1983 = vmatpush1.bf16.msra.mxu0 %v1645
        %1984 = vmatprep.subr.bf16.mxu0 %v1644
        %1985 = vmatpush1.bf16.msra.mxu0 %v1643
        %1986 = vmatprep.subr.bf16.mxu0 %v1642
        %1987 = vmatpush1.bf16.msra.mxu0 %v1641
        %1988 = vmatprep.subr.bf16.mxu0 %v1640
        %1989 = vmatpush1.bf16.msra.mxu0 %v1639
        %1990 = vmatprep.subr.bf16.mxu0 %v1638
        %1991 = vmatpush1.bf16.msra.mxu0 %v1637
        %1992 = vmatprep.subr.bf16.mxu0 %v1636
        %1993 = vmatpush1.bf16.msra.mxu0 %v1635
        %1994 = vmatprep.subr.bf16.mxu0 %v1634
        %1995 = vmatpush1.bf16.msra.mxu0 %v1633
        %1996 = vmatprep.subr.bf16.mxu0 %v1632
        %1997 = vmatpush1.bf16.msra.mxu0 %v1631
        %1998 = vmatprep.subr.bf16.mxu0 %v1662
        %1999 = vmatpush2.bf16.msra.mxu0 %v1661
        %2000 = vmatprep.subr.bf16.mxu0 %v1660
        %2001 = vmatpush2.bf16.msra.mxu0 %v1659
        %2002 = vmatprep.subr.bf16.mxu0 %v1658
        %2003 = vmatpush2.bf16.msra.mxu0 %v1657
        %2004 = vmatprep.subr.bf16.mxu0 %v1656
        %2005 = vmatpush2.bf16.msra.mxu0 %v1655
        %2006 = vmatprep.subr.bf16.mxu0 %v1654
        %2007 = vmatpush2.bf16.msra.mxu0 %v1653
        %2008 = vmatprep.subr.bf16.mxu0 %v1652
        %2009 = vmatpush2.bf16.msra.mxu0 %v1651
        %2010 = vmatprep.subr.bf16.mxu0 %v1650
        %2011 = vmatpush2.bf16.msra.mxu0 %v1649
        %2012 = vmatprep.subr.bf16.mxu0 %v1648
        %2013 = vmatpush2.bf16.msra.mxu0 %v1647
        %2014 = vmatprep.mubr.bf16.mxu0 %v1074
        %2015 = vmatmul.mubr.bf16.gmra.mxu0 %v1073
        %v2016 = vpop.f32.mrf.mxu0
        %v2017 = vadd.f32 %v1964, %v2016
        %v2018 = vpop.f32.mrf.mxu0
        %v2019 = vadd.f32 %v1966, %v2018
        %v2020 = vpop.f32.mrf.mxu0
        %v2021 = vadd.f32 %v1968, %v2020
        %v2022 = vpop.f32.mrf.mxu0
        %v2023 = vadd.f32 %v1970, %v2022
        %2024 = vmatprep.mubr.bf16.mxu0 %v1083
        %2025 = vmatmul.mubr.bf16.gmra.mxu0 %v1082
        %v2026 = vpop.f32.mrf.mxu0
        %v2027 = vadd.f32 %v1974, %v2026
        %v2028 = vpop.f32.mrf.mxu0
        %v2029 = vadd.f32 %v1976, %v2028
        %v2030 = vpop.f32.mrf.mxu0
        %v2031 = vadd.f32 %v1978, %v2030
        %v2032 = vpop.f32.mrf.mxu0
        %v2033 = vadd.f32 %v1980, %v2032
        %2034 = vdwg.mxu0
        %2035 = vmatprep.subr.bf16.mxu0 %v1678
        %2036 = vmatpush1.bf16.msra.mxu0 %v1677
        %2037 = vmatprep.subr.bf16.mxu0 %v1676
        %2038 = vmatpush1.bf16.msra.mxu0 %v1675
        %2039 = vmatprep.subr.bf16.mxu0 %v1674
        %2040 = vmatpush1.bf16.msra.mxu0 %v1673
        %2041 = vmatprep.subr.bf16.mxu0 %v1672
        %2042 = vmatpush1.bf16.msra.mxu0 %v1671
        %2043 = vmatprep.subr.bf16.mxu0 %v1670
        %2044 = vmatpush1.bf16.msra.mxu0 %v1669
        %2045 = vmatprep.subr.bf16.mxu0 %v1668
        %2046 = vmatpush1.bf16.msra.mxu0 %v1667
        %2047 = vmatprep.subr.bf16.mxu0 %v1666
        %2048 = vmatpush1.bf16.msra.mxu0 %v1665
        %2049 = vmatprep.subr.bf16.mxu0 %v1664
        %2050 = vmatpush1.bf16.msra.mxu0 %v1663
        %2051 = vmatprep.subr.bf16.mxu0 0
        %2052 = vmatpush2.bf16.msra.mxu0 0
        %2053 = vmatprep.subr.bf16.mxu0 0
        %2054 = vmatpush2.bf16.msra.mxu0 0
        %2055 = vmatprep.subr.bf16.mxu0 0
        %2056 = vmatpush2.bf16.msra.mxu0 0
        %2057 = vmatprep.subr.bf16.mxu0 0
        %2058 = vmatpush2.bf16.msra.mxu0 0
        %2059 = vmatprep.subr.bf16.mxu0 0
        %2060 = vmatpush2.bf16.msra.mxu0 0
        %2061 = vmatprep.subr.bf16.mxu0 0
        %2062 = vmatpush2.bf16.msra.mxu0 0
        %2063 = vmatprep.subr.bf16.mxu0 0
        %2064 = vmatpush2.bf16.msra.mxu0 0
        %2065 = vmatprep.subr.bf16.mxu0 0
        %2066 = vmatpush2.bf16.msra.mxu0 0
        %2067 = vmatprep.mubr.bf16.mxu0 0
        %2068 = vmatmul.mubr.bf16.gmra.mxu0 %v1075
        %v2069 = vpop.f32.mrf.mxu0
        %v2070 = vadd.f32 %v2017, %v2069
        %v2071 = vpop.f32.mrf.mxu0
        %v2072 = vadd.f32 %v2019, %v2071
        %v2073 = vpop.f32.mrf.mxu0
        %v2074 = vadd.f32 %v2021, %v2073
        %v2075 = vpop.f32.mrf.mxu0
        %v2076 = vadd.f32 %v2023, %v2075
        %2077 = vmatprep.mubr.bf16.mxu0 0
        %2078 = vmatmul.mubr.bf16.gmra.mxu0 %v1084
        %v2079 = vpop.f32.mrf.mxu0
        %v2080 = vadd.f32 %v2027, %v2079
        %v2081 = vpop.f32.mrf.mxu0
        %v2082 = vadd.f32 %v2029, %v2081
        %v2083 = vpop.f32.mrf.mxu0
        %v2084 = vadd.f32 %v2031, %v2083
        %v2085 = vpop.f32.mrf.mxu0
        %v2086 = vadd.f32 %v2033, %v2085
        %2087 = vdwg.mxu0
        %v2088 = vmax.f32 %v2070, 0.0
        %v2089 = vmax.f32 %v2072, 0.0
        %v2090 = vmax.f32 %v2074, 0.0
        %v2091 = vmax.f32 %v2076, 0.0
        %v2092 = vmax.f32 %v2080, 0.0
        %v2093 = vmax.f32 %v2082, 0.0
        %v2094 = vmax.f32 %v2084, 0.0
        %v2095 = vmax.f32 %v2086, 0.0
        %v2096 = vpack.c.bf16 %v2090, %v2088
        %v2097 = vpack.c.bf16 %v2091, %v2089
        %v2098 = vpack.c.bf16 %v2094, %v2092
        %v2099 = vpack.c.bf16 %v2095, %v2093
        %v2104 = vunpack.c.l.b16 %v2096
        %v2105 = vunpack.c.l.b16 %v2097
        %v2106 = vunpack.c.h.b16 %v2096
        %v2107 = vunpack.c.h.b16 %v2097
        %v2108 = vunpack.c.l.b16 %v2098
        %v2109 = vunpack.c.l.b16 %v2099
        %v2110 = vunpack.c.h.b16 %v2098
        %v2111 = vunpack.c.h.b16 %v2099
        %v2112 = vpack.c.b16 %v2105, %v2104
        %v2113 = vpack.c.b16 %v2107, %v2106
        %v2114 = vpack.c.b16 %v2109, %v2108
        %v2115 = vpack.c.b16 %v2111, %v2110
        %2120 = vst [vmem:[%s818] sm:$0xff] %v2112
        %2121 = vst [vmem:[%s818 + $0x8] sm:$0xff] %v2113
        %2122 = vst [vmem:[%s818 + $0x10] sm:$0xff] %v2114
        %2123 = vst [vmem:[%s818 + $0x18] sm:$0xff] %v2115
        %s2124 = sand.u32 %s114, 1
        %s2125 = sand.u32 %s114, 1
        %s2126 = smul.addr %s2125, 32
        %s2127 = scalar_lea.vmem [#allocation3], %s2126
        // Predicated region
        $region71: #{vqvae_forward.28} parent=65 // pred_check
          %p2128 = pneg %p124
        $region72: #{vqvae_forward.28} parent=65 // pred_check_branch
          %2130 = sbr.rel (%p2128) target = $region74
        $region73: #{vqvae_forward.28} parent=65 // pred_region
          %s2131 = smul.u32 4, %s18
          %s2132 = smul.u32 2, %s19
          %s2133 = smul.addr %s2131, 4
          %s2134 = sadd.s32 %s2132, %s2133
          %s2135 = smul.addr %s2134, 4
          %s2136 = scalar_lea.vmem %s3, %s2135
          // Predicated region
          $region75: #{vqvae_forward.28} parent=73 // pred_check
            _
          $region76: #{vqvae_forward.28} parent=73 // pred_check_branch
            %2138 = sbr.rel (0) target = $region78
          $region77: #{vqvae_forward.28} parent=73 // pred_region
            // Predicated region
            $region79: #{vqvae_forward.28} parent=77 // pred_check
              _
            $region80: #{vqvae_forward.28} parent=77 // pred_check_branch
              %2140 = sbr.rel (0) target = $region82
            $region81: #{vqvae_forward.28} parent=77 // pred_region
              // Predicated region
              $region94: #{vqvae_forward.28} parent=81 // pred_check
                _
              $region95: #{vqvae_forward.28} parent=81 // pred_check_branch
                %2162 = sbr.rel (0) target = $region97
              $region96: #{vqvae_forward.28} parent=81 // pred_region
                loop: start=0, step=1, limit=1
                $region98: #{vqvae_forward.28} parent=96 // loop_pre_header
                  _
                $region99: #{vqvae_forward.28} parent=96 // loop_header
                  %s2164 = sphi 0, %s2168
                  %p2165 = scmp.ge.s32.totalorder %s2164, 1
                  %s2169 = sphi %s2127, %s2127
                  %s2170 = sphi %s2136, %s2136
                $region100: #{vqvae_forward.28} parent=96 // loop_header_branch
                  %2167 = sbr.rel (%p2165) target = $region104
                $region101: #{vqvae_forward.28} parent=96 // loop_body
                  %v2171 = vld [vmem:[%s2169] sm:$0xff]
                  %2172 = vst [vmem:[%s2170] sm:$0xff] %v2171
                  %v2173 = vld [vmem:[%s2169 + $0x8] sm:$0xff]
                  %2174 = vst [vmem:[%s2170 + $0x10] sm:$0xff] %v2173
                  %v2175 = vld [vmem:[%s2169 + $0x10] sm:$0xff]
                  %2176 = vst [vmem:[%s2170 + $0x20] sm:$0xff] %v2175
                  %v2177 = vld [vmem:[%s2169 + $0x18] sm:$0xff]
                  %2178 = vst [vmem:[%s2170 + $0x30] sm:$0xff] %v2177
                $region102: #{vqvae_forward.28} parent=96 // loop_footer
                  %s2168 = sadd.s32 1, %s2164
                $region103: #{vqvae_forward.28} parent=96 // loop_footer_branch
                  %2163 = sbr.rel target = $region99
                $region104: #{vqvae_forward.28} parent=96 // loop_exit
                  _
              $region97: #{vqvae_forward.28} parent=81 // pred_fallthru
                _
              // Predicated region
              $region105: #{vqvae_forward.28} parent=81 // pred_check
                _
              $region106: #{vqvae_forward.28} parent=81 // pred_check_branch
                %2180 = sbr.rel target = $region108
              $region107: #{vqvae_forward.28} parent=81 // pred_region
                _
              $region108: #{vqvae_forward.28} parent=81 // pred_fallthru
                _
            $region82: #{vqvae_forward.28} parent=77 // pred_fallthru
              _
            // Predicated region
            $region83: #{vqvae_forward.28} parent=77 // pred_check
              _
            $region84: #{vqvae_forward.28} parent=77 // pred_check_branch
              %2142 = sbr.rel target = $region86
            $region85: #{vqvae_forward.28} parent=77 // pred_region
              %s2144 = ssub.s32 256, 1
              loop: start=0, step=1, limit=1
              $region87: #{vqvae_forward.28} parent=85 // loop_pre_header
                _
              $region88: #{vqvae_forward.28} parent=85 // loop_header
                %s2146 = sphi 0, %s2150
                %p2147 = scmp.ge.s32.totalorder %s2146, 1
                %s2151 = sphi %s2127, %s2127
                %s2152 = sphi %s2136, %s2136
              $region89: #{vqvae_forward.28} parent=85 // loop_header_branch
                %2149 = sbr.rel (%p2147) target = $region93
              $region90: #{vqvae_forward.28} parent=85 // loop_body
                %v2153 = vld [vmem:[%s2151] sm:%s2144]
                %2154 = vst [vmem:[%s2152] sm:%s2144] %v2153
                %v2155 = vld [vmem:[%s2151 + $0x8] sm:%s2144]
                %2156 = vst [vmem:[%s2152 + $0x10] sm:%s2144] %v2155
                %v2157 = vld [vmem:[%s2151 + $0x10] sm:%s2144]
                %2158 = vst [vmem:[%s2152 + $0x20] sm:%s2144] %v2157
                %v2159 = vld [vmem:[%s2151 + $0x18] sm:%s2144]
                %2160 = vst [vmem:[%s2152 + $0x30] sm:%s2144] %v2159
              $region91: #{vqvae_forward.28} parent=85 // loop_footer
                %s2150 = sadd.s32 1, %s2146
              $region92: #{vqvae_forward.28} parent=85 // loop_footer_branch
                %2145 = sbr.rel target = $region88
              $region93: #{vqvae_forward.28} parent=85 // loop_exit
                _
            $region86: #{vqvae_forward.28} parent=77 // pred_fallthru
              _
          $region78: #{vqvae_forward.28} parent=73 // pred_fallthru
            _
          %2181 = vnop
        $region74: #{vqvae_forward.28} parent=65 // pred_fallthru
          _
      $region66: #{vqvae_forward.28} parent=5 // pred_fallthru
        _
      %p2182 = scmp.le.s32.totalorder 2, %s9
      // Predicated region
      $region109: #{vqvae_forward.28} parent=5 // pred_check
        %p2183 = pneg %p2182
      $region110: #{vqvae_forward.28} parent=5 // pred_check_branch
        %2185 = sbr.rel (%p2183) target = $region112
      $region111: #{vqvae_forward.28} parent=5 // pred_region
        %s2186 = ssub.s32 %s9, 2
        // Predicated region
        $region113: #{vqvae_forward.28} parent=111 // pred_check
          %p2187 = pneg %p130
        $region114: #{vqvae_forward.28} parent=111 // pred_check_branch
          %2189 = sbr.rel (%p2187) target = $region116
        $region115: #{vqvae_forward.28} parent=111 // pred_region
          %s2190 = sand.u32 %s115, 1
          %s2191 = sand.u32 %s115, 1
          %s2192 = smul.addr %s2191, 32
          %s2193 = scalar_lea.vmem [#allocation3], %s2192
        $region116: #{vqvae_forward.28} parent=111 // pred_fallthru
          _
      $region112: #{vqvae_forward.28} parent=5 // pred_fallthru
        _
    $region6: #{vqvae_forward.28} parent=1 // loop_footer
      %s13 = sadd.s32 1, %s9
    $region7: #{vqvae_forward.28} parent=1 // loop_footer_branch
      %8 = sbr.rel target = $region3
    $region8: #{vqvae_forward.28} parent=1 // loop_exit
      _

// kernel: vqvae_forward.29
$region0: #{vqvae_forward.29}
  #allocation0 [shape = 'u32[]', space=smem, size = 0x4, offset = 0x4, fixed_abs, tag = 'smem constant byte address 0x4 - core index']
  #allocation1 [shape = 'u32[144,128]{1,0:T(1,128)}', space=vmem, size = 0x12000, scoped, tag = 'internal scratch']
  %s0 = inlined_call_operand.vmem [shape: bf16[128,1152], index: 0, kind: input, shape index: {}]
  %s1 = inlined_call_operand.vmem [shape: bf16[1152,512], index: 1, kind: input, shape index: {}]
  %s2 = inlined_call_operand.vmem [shape: f32[1,512], index: 2, kind: input, shape index: {}]
  %s3 = inlined_call_operand.vmem [shape: bf16[128,512], index: 3, kind: output, shape index: {}]
  %s4 = sld [smem:[#allocation0]]
  $region117: #{vqvae_forward.29} parent=0
    _
  %s6 = ssub.s32 1, %s4
  %s7 = scalar_select 0, %s6, %s4
  $region1: #{vqvae_forward.29} parent=0
    #allocation2 [shape = 'u8[1179648]{0}', space=vmem, size = 0x120000, scoped, tag = 'input window, operand 1']
    #allocation3 [shape = 'u8[131072]{0}', space=vmem, size = 0x20000, scoped, tag = 'output window, operand 0']
    loop: start=0, step=1, limit=4
    $region2: #{vqvae_forward.29} parent=1 // loop_pre_header
      _
    $region3: #{vqvae_forward.29} parent=1 // loop_header
      %s9 = sphi 0, %s13
      %p10 = scmp.ge.s32.totalorder %s9, 4
      %s16 = sphi 0, %s28
      %s17 = sphi 0, %s24
      %s18 = sphi 0, %s16
      %s19 = sphi 0, %s17
      %s20 = sphi 0, %s18
      %s21 = sphi 0, %s19
      %s31 = sphi 0, %s33
      %s34 = sphi 0, %s31
      %s35 = sphi 0, %s34
      %s51 = sphi 0, %s35
      %s57 = sphi 0, %s59
      %s60 = sphi 0, %s57
      %s61 = sphi 0, %s60
      %s77 = sphi 0, %s61
      %s83 = sphi 0, %s85
      %s86 = sphi 0, %s83
      %s87 = sphi 0, %s86
      %s103 = sphi 0, %s87
      %s111 = sphi 0, %s113
      %s114 = sphi 0, %s111
      %s115 = sphi 0, %s114
      %s131 = sphi 0, %s115
    $region4: #{vqvae_forward.29} parent=1 // loop_header_branch
      %12 = sbr.rel (%p10) target = $region8
    $region5: #{vqvae_forward.29} parent=1 // loop_body
      %s14 = ssub.s32 %s9, 1
      %s15 = ssub.s32 %s9, 2
      %s22 = sadd.s32 1, %s17
      %p23 = scmp.ge.s32.totalorder %s22, 2
      %s24 = scalar_select %p23, 0, %s22
      %s25 = sadd.s32 1, %s16
      %s26 = scalar_select %p23, %s25, %s16
      %p27 = scmp.ge.s32.totalorder %s26, 1
      %s28 = scalar_select %p27, 0, %s26
      %s29 = ssub.s32 %s16, %s28
      %p30 = scmp.eq.s32.totalorder %s29, 0
      %s32 = sadd.s32 %s31, 1
      %s33 = scalar_select %p30, %s31, %s32
      %p36 = pneg %p30
      %p37 = scmp.eq.s32.totalorder %s9, 1
      %p38 = por %p36, %p37
      %p39 = scmp.ne.s32.totalorder %s31, %s34
      %p40 = scmp.eq.s32.totalorder %s9, 0
      %p41 = por %p39, %p40
      %p42 = scmp.ne.s32.totalorder %s31, %s34
      %p43 = scmp.eq.s32.totalorder %s14, 1
      %p44 = por %p42, %p43
      %p45 = scmp.ne.s32.totalorder %s34, %s35
      %p46 = scmp.eq.s32.totalorder %s14, 0
      %p47 = por %p45, %p46
      %p48 = scmp.ne.s32.totalorder %s34, %s35
      %p49 = scmp.eq.s32.totalorder %s15, 1
      %p50 = por %p48, %p49
      %p52 = scmp.ne.s32.totalorder %s35, %s51
      %p53 = scmp.eq.s32.totalorder %s15, 0
      %p54 = por %p52, %p53
      %s55 = ssub.s32 %s17, %s24
      %p56 = scmp.eq.s32.totalorder %s55, 0
      %s58 = sadd.s32 %s57, 1
      %s59 = scalar_select %p56, %s57, %s58
      %p62 = pneg %p56
      %p63 = scmp.eq.s32.totalorder %s9, 1
      %p64 = por %p62, %p63
      %p65 = scmp.ne.s32.totalorder %s57, %s60
      %p66 = scmp.eq.s32.totalorder %s9, 0
      %p67 = por %p65, %p66
      %p68 = scmp.ne.s32.totalorder %s57, %s60
      %p69 = scmp.eq.s32.totalorder %s14, 1
      %p70 = por %p68, %p69
      %p71 = scmp.ne.s32.totalorder %s60, %s61
      %p72 = scmp.eq.s32.totalorder %s14, 0
      %p73 = por %p71, %p72
      %p74 = scmp.ne.s32.totalorder %s60, %s61
      %p75 = scmp.eq.s32.totalorder %s15, 1
      %p76 = por %p74, %p75
      %p78 = scmp.ne.s32.totalorder %s61, %s77
      %p79 = scmp.eq.s32.totalorder %s15, 0
      %p80 = por %p78, %p79
      %s81 = ssub.s32 %s17, %s24
      %p82 = scmp.eq.s32.totalorder %s81, 0
      %s84 = sadd.s32 %s83, 1
      %s85 = scalar_select %p82, %s83, %s84
      %p88 = pneg %p82
      %p89 = scmp.eq.s32.totalorder %s9, 1
      %p90 = por %p88, %p89
      %p91 = scmp.ne.s32.totalorder %s83, %s86
      %p92 = scmp.eq.s32.totalorder %s9, 0
      %p93 = por %p91, %p92
      %p94 = scmp.ne.s32.totalorder %s83, %s86
      %p95 = scmp.eq.s32.totalorder %s14, 1
      %p96 = por %p94, %p95
      %p97 = scmp.ne.s32.totalorder %s86, %s87
      %p98 = scmp.eq.s32.totalorder %s14, 0
      %p99 = por %p97, %p98
      %p100 = scmp.ne.s32.totalorder %s86, %s87
      %p101 = scmp.eq.s32.totalorder %s15, 1
      %p102 = por %p100, %p101
      %p104 = scmp.ne.s32.totalorder %s87, %s103
      %p105 = scmp.eq.s32.totalorder %s15, 0
      %p106 = por %p104, %p105
      %s107 = ssub.s32 %s16, %s28
      %s108 = ssub.s32 %s17, %s24
      %s109 = sor.u32 %s107, %s108
      %p110 = scmp.eq.s32.totalorder %s109, 0
      %s112 = sadd.s32 %s111, 1
      %s113 = scalar_select %p110, %s111, %s112
      %p116 = pneg %p110
      %p117 = scmp.eq.s32.totalorder %s9, 1
      %p118 = por %p116, %p117
      %p119 = scmp.ne.s32.totalorder %s111, %s114
      %p120 = scmp.eq.s32.totalorder %s9, 0
      %p121 = por %p119, %p120
      %p122 = scmp.ne.s32.totalorder %s111, %s114
      %p123 = scmp.eq.s32.totalorder %s14, 1
      %p124 = por %p122, %p123
      %p125 = scmp.ne.s32.totalorder %s114, %s115
      %p126 = scmp.eq.s32.totalorder %s14, 0
      %p127 = por %p125, %p126
      %p128 = scmp.ne.s32.totalorder %s114, %s115
      %p129 = scmp.eq.s32.totalorder %s15, 1
      %p130 = por %p128, %p129
      %p132 = scmp.ne.s32.totalorder %s115, %s131
      %p133 = scmp.eq.s32.totalorder %s15, 0
      %p134 = por %p132, %p133
      %p135 = scmp.le.s32.totalorder 1, %s9
      %p136 = scmp.lt.s32.totalorder %s9, 3
      %p137 = pnand %p135, %p136
      %p138 = pneg %p137
      // Predicated region
      $region9: #{vqvae_forward.29} parent=5 // pred_check
        _
      $region10: #{vqvae_forward.29} parent=5 // pred_check_branch
        %140 = sbr.rel (%p137) target = $region12
      $region11: #{vqvae_forward.29} parent=5 // pred_region
        %s141 = ssub.s32 %s9, 1
        // Predicated region
        $region13: #{vqvae_forward.29} parent=11 // pred_check
          %p142 = pneg %p47
        $region14: #{vqvae_forward.29} parent=11 // pred_check_branch
          %144 = sbr.rel (%p142) target = $region16
        $region15: #{vqvae_forward.29} parent=11 // pred_region
          %s145 = smul.u32 16, %s18
          %p146 = scmp.lt.s32.totalorder %s145, 15
          %s147 = scalar_select %p146, %s145, 15
          %s148 = smul.addr %s147, 9
          %s149 = smul.addr %s148, 4
          %s150 = scalar_lea.vmem %s0, %s149
          %s151 = smul.u32 16, %s18
        $region16: #{vqvae_forward.29} parent=11 // pred_fallthru
          _
      $region12: #{vqvae_forward.29} parent=5 // pred_fallthru
        _
      %p152 = scmp.lt.s32.totalorder %s9, 2
      // Predicated region
      $region17: #{vqvae_forward.29} parent=5 // pred_check
        %p153 = pneg %p152
      $region18: #{vqvae_forward.29} parent=5 // pred_check_branch
        %155 = sbr.rel (%p153) target = $region20
      $region19: #{vqvae_forward.29} parent=5 // pred_region
        // Predicated region
        $region21: #{vqvae_forward.29} parent=19 // pred_check
          %p156 = pneg %p67
        $region22: #{vqvae_forward.29} parent=19 // pred_check_branch
          %158 = sbr.rel (%p156) target = $region24
        $region23: #{vqvae_forward.29} parent=19 // pred_region
          %s159 = sand.u32 %s57, 1
          %s160 = sand.u32 %s57, 1
          %s161 = smul.addr %s160, 1152
          %s162 = scalar_lea.vmem [#allocation2], %s161
          %s163 = smul.u32 2, %s17
          %s164 = smul.addr %s163, 4
          %s165 = scalar_lea.vmem %s1, %s164
          // Predicated region
          $region25: #{vqvae_forward.29} parent=23 // pred_check
            _
          $region26: #{vqvae_forward.29} parent=23 // pred_check_branch
            %167 = sbr.rel (0) target = $region28
          $region27: #{vqvae_forward.29} parent=23 // pred_region
            // Predicated region
            $region29: #{vqvae_forward.29} parent=27 // pred_check
              _
            $region30: #{vqvae_forward.29} parent=27 // pred_check_branch
              %169 = sbr.rel (0) target = $region32
            $region31: #{vqvae_forward.29} parent=27 // pred_region
              // Predicated region
              $region44: #{vqvae_forward.29} parent=31 // pred_check
                _
              $region45: #{vqvae_forward.29} parent=31 // pred_check_branch
                %471 = sbr.rel (0) target = $region47
              $region46: #{vqvae_forward.29} parent=31 // pred_region
                loop: start=0, step=1, limit=1
                $region48: #{vqvae_forward.29} parent=46 // loop_pre_header
                  _
                $region49: #{vqvae_forward.29} parent=46 // loop_header
                  %s473 = sphi 0, %s477
                  %p474 = scmp.ge.s32.totalorder %s473, 1
                  %s478 = sphi %s165, %s165
                  %s479 = sphi %s162, %s162
                $region50: #{vqvae_forward.29} parent=46 // loop_header_branch
                  %476 = sbr.rel (%p474) target = $region54
                $region51: #{vqvae_forward.29} parent=46 // loop_body
                  %v480 = vld [vmem:[%s478] sm:$0xff]
                  %481 = vst [vmem:[%s479] sm:$0xff] %v480
                  %v482 = vld [vmem:[%s478 + $0x10] sm:$0xff]
                  %483 = vst [vmem:[%s479 + $0x8] sm:$0xff] %v482
                  %v484 = vld [vmem:[%s478 + $0x20] sm:$0xff]
                  %485 = vst [vmem:[%s479 + $0x10] sm:$0xff] %v484
                  %v486 = vld [vmem:[%s478 + $0x30] sm:$0xff]
                  %487 = vst [vmem:[%s479 + $0x18] sm:$0xff] %v486
                  %v488 = vld [vmem:[%s478 + $0x40] sm:$0xff]
                  %489 = vst [vmem:[%s479 + $0x20] sm:$0xff] %v488
                  %v490 = vld [vmem:[%s478 + $0x50] sm:$0xff]
                  %491 = vst [vmem:[%s479 + $0x28] sm:$0xff] %v490
                  %v492 = vld [vmem:[%s478 + $0x60] sm:$0xff]
                  %493 = vst [vmem:[%s479 + $0x30] sm:$0xff] %v492
                  %v494 = vld [vmem:[%s478 + $0x70] sm:$0xff]
                  %495 = vst [vmem:[%s479 + $0x38] sm:$0xff] %v494
                  %v496 = vld [vmem:[%s478 + $0x80] sm:$0xff]
                  %497 = vst [vmem:[%s479 + $0x40] sm:$0xff] %v496
                  %v498 = vld [vmem:[%s478 + $0x90] sm:$0xff]
                  %499 = vst [vmem:[%s479 + $0x48] sm:$0xff] %v498
                  %v500 = vld [vmem:[%s478 + $0xa0] sm:$0xff]
                  %501 = vst [vmem:[%s479 + $0x50] sm:$0xff] %v500
                  %v502 = vld [vmem:[%s478 + $0xb0] sm:$0xff]
                  %503 = vst [vmem:[%s479 + $0x58] sm:$0xff] %v502
                  %v504 = vld [vmem:[%s478 + $0xc0] sm:$0xff]
                  %505 = vst [vmem:[%s479 + $0x60] sm:$0xff] %v504
                  %v506 = vld [vmem:[%s478 + $0xd0] sm:$0xff]
                  %507 = vst [vmem:[%s479 + $0x68] sm:$0xff] %v506
                  %v508 = vld [vmem:[%s478 + $0xe0] sm:$0xff]
                  %509 = vst [vmem:[%s479 + $0x70] sm:$0xff] %v508
                  %v510 = vld [vmem:[%s478 + $0xf0] sm:$0xff]
                  %511 = vst [vmem:[%s479 + $0x78] sm:$0xff] %v510
                  %v512 = vld [vmem:[%s478 + $0x100] sm:$0xff]
                  %513 = vst [vmem:[%s479 + $0x80] sm:$0xff] %v512
                  %v514 = vld [vmem:[%s478 + $0x110] sm:$0xff]
                  %515 = vst [vmem:[%s479 + $0x88] sm:$0xff] %v514
                  %v516 = vld [vmem:[%s478 + $0x120] sm:$0xff]
                  %517 = vst [vmem:[%s479 + $0x90] sm:$0xff] %v516
                  %v518 = vld [vmem:[%s478 + $0x130] sm:$0xff]
                  %519 = vst [vmem:[%s479 + $0x98] sm:$0xff] %v518
                  %v520 = vld [vmem:[%s478 + $0x140] sm:$0xff]
                  %521 = vst [vmem:[%s479 + $0xa0] sm:$0xff] %v520
                  %v522 = vld [vmem:[%s478 + $0x150] sm:$0xff]
                  %523 = vst [vmem:[%s479 + $0xa8] sm:$0xff] %v522
                  %v524 = vld [vmem:[%s478 + $0x160] sm:$0xff]
                  %525 = vst [vmem:[%s479 + $0xb0] sm:$0xff] %v524
                  %v526 = vld [vmem:[%s478 + $0x170] sm:$0xff]
                  %527 = vst [vmem:[%s479 + $0xb8] sm:$0xff] %v526
                  %v528 = vld [vmem:[%s478 + $0x180] sm:$0xff]
                  %529 = vst [vmem:[%s479 + $0xc0] sm:$0xff] %v528
                  %v530 = vld [vmem:[%s478 + $0x190] sm:$0xff]
                  %531 = vst [vmem:[%s479 + $0xc8] sm:$0xff] %v530
                  %v532 = vld [vmem:[%s478 + $0x1a0] sm:$0xff]
                  %533 = vst [vmem:[%s479 + $0xd0] sm:$0xff] %v532
                  %v534 = vld [vmem:[%s478 + $0x1b0] sm:$0xff]
                  %535 = vst [vmem:[%s479 + $0xd8] sm:$0xff] %v534
                  %v536 = vld [vmem:[%s478 + $0x1c0] sm:$0xff]
                  %537 = vst [vmem:[%s479 + $0xe0] sm:$0xff] %v536
                  %v538 = vld [vmem:[%s478 + $0x1d0] sm:$0xff]
                  %539 = vst [vmem:[%s479 + $0xe8] sm:$0xff] %v538
                  %v540 = vld [vmem:[%s478 + $0x1e0] sm:$0xff]
                  %541 = vst [vmem:[%s479 + $0xf0] sm:$0xff] %v540
                  %v542 = vld [vmem:[%s478 + $0x1f0] sm:$0xff]
                  %543 = vst [vmem:[%s479 + $0xf8] sm:$0xff] %v542
                  %v544 = vld [vmem:[%s478 + $0x200] sm:$0xff]
                  %545 = vst [vmem:[%s479 + $0x100] sm:$0xff] %v544
                  %v546 = vld [vmem:[%s478 + $0x210] sm:$0xff]
                  %547 = vst [vmem:[%s479 + $0x108] sm:$0xff] %v546
                  %v548 = vld [vmem:[%s478 + $0x220] sm:$0xff]
                  %549 = vst [vmem:[%s479 + $0x110] sm:$0xff] %v548
                  %v550 = vld [vmem:[%s478 + $0x230] sm:$0xff]
                  %551 = vst [vmem:[%s479 + $0x118] sm:$0xff] %v550
                  %v552 = vld [vmem:[%s478 + $0x240] sm:$0xff]
                  %553 = vst [vmem:[%s479 + $0x120] sm:$0xff] %v552
                  %v554 = vld [vmem:[%s478 + $0x250] sm:$0xff]
                  %555 = vst [vmem:[%s479 + $0x128] sm:$0xff] %v554
                  %v556 = vld [vmem:[%s478 + $0x260] sm:$0xff]
                  %557 = vst [vmem:[%s479 + $0x130] sm:$0xff] %v556
                  %v558 = vld [vmem:[%s478 + $0x270] sm:$0xff]
                  %559 = vst [vmem:[%s479 + $0x138] sm:$0xff] %v558
                  %v560 = vld [vmem:[%s478 + $0x280] sm:$0xff]
                  %561 = vst [vmem:[%s479 + $0x140] sm:$0xff] %v560
                  %v562 = vld [vmem:[%s478 + $0x290] sm:$0xff]
                  %563 = vst [vmem:[%s479 + $0x148] sm:$0xff] %v562
                  %v564 = vld [vmem:[%s478 + $0x2a0] sm:$0xff]
                  %565 = vst [vmem:[%s479 + $0x150] sm:$0xff] %v564
                  %v566 = vld [vmem:[%s478 + $0x2b0] sm:$0xff]
                  %567 = vst [vmem:[%s479 + $0x158] sm:$0xff] %v566
                  %v568 = vld [vmem:[%s478 + $0x2c0] sm:$0xff]
                  %569 = vst [vmem:[%s479 + $0x160] sm:$0xff] %v568
                  %v570 = vld [vmem:[%s478 + $0x2d0] sm:$0xff]
                  %571 = vst [vmem:[%s479 + $0x168] sm:$0xff] %v570
                  %v572 = vld [vmem:[%s478 + $0x2e0] sm:$0xff]
                  %573 = vst [vmem:[%s479 + $0x170] sm:$0xff] %v572
                  %v574 = vld [vmem:[%s478 + $0x2f0] sm:$0xff]
                  %575 = vst [vmem:[%s479 + $0x178] sm:$0xff] %v574
                  %v576 = vld [vmem:[%s478 + $0x300] sm:$0xff]
                  %577 = vst [vmem:[%s479 + $0x180] sm:$0xff] %v576
                  %v578 = vld [vmem:[%s478 + $0x310] sm:$0xff]
                  %579 = vst [vmem:[%s479 + $0x188] sm:$0xff] %v578
                  %v580 = vld [vmem:[%s478 + $0x320] sm:$0xff]
                  %581 = vst [vmem:[%s479 + $0x190] sm:$0xff] %v580
                  %v582 = vld [vmem:[%s478 + $0x330] sm:$0xff]
                  %583 = vst [vmem:[%s479 + $0x198] sm:$0xff] %v582
                  %v584 = vld [vmem:[%s478 + $0x340] sm:$0xff]
                  %585 = vst [vmem:[%s479 + $0x1a0] sm:$0xff] %v584
                  %v586 = vld [vmem:[%s478 + $0x350] sm:$0xff]
                  %587 = vst [vmem:[%s479 + $0x1a8] sm:$0xff] %v586
                  %v588 = vld [vmem:[%s478 + $0x360] sm:$0xff]
                  %589 = vst [vmem:[%s479 + $0x1b0] sm:$0xff] %v588
                  %v590 = vld [vmem:[%s478 + $0x370] sm:$0xff]
                  %591 = vst [vmem:[%s479 + $0x1b8] sm:$0xff] %v590
                  %v592 = vld [vmem:[%s478 + $0x380] sm:$0xff]
                  %593 = vst [vmem:[%s479 + $0x1c0] sm:$0xff] %v592
                  %v594 = vld [vmem:[%s478 + $0x390] sm:$0xff]
                  %595 = vst [vmem:[%s479 + $0x1c8] sm:$0xff] %v594
                  %v596 = vld [vmem:[%s478 + $0x3a0] sm:$0xff]
                  %597 = vst [vmem:[%s479 + $0x1d0] sm:$0xff] %v596
                  %v598 = vld [vmem:[%s478 + $0x3b0] sm:$0xff]
                  %599 = vst [vmem:[%s479 + $0x1d8] sm:$0xff] %v598
                  %v600 = vld [vmem:[%s478 + $0x3c0] sm:$0xff]
                  %601 = vst [vmem:[%s479 + $0x1e0] sm:$0xff] %v600
                  %v602 = vld [vmem:[%s478 + $0x3d0] sm:$0xff]
                  %603 = vst [vmem:[%s479 + $0x1e8] sm:$0xff] %v602
                  %v604 = vld [vmem:[%s478 + $0x3e0] sm:$0xff]
                  %605 = vst [vmem:[%s479 + $0x1f0] sm:$0xff] %v604
                  %v606 = vld [vmem:[%s478 + $0x3f0] sm:$0xff]
                  %607 = vst [vmem:[%s479 + $0x1f8] sm:$0xff] %v606
                  %v608 = vld [vmem:[%s478 + $0x400] sm:$0xff]
                  %609 = vst [vmem:[%s479 + $0x200] sm:$0xff] %v608
                  %v610 = vld [vmem:[%s478 + $0x410] sm:$0xff]
                  %611 = vst [vmem:[%s479 + $0x208] sm:$0xff] %v610
                  %v612 = vld [vmem:[%s478 + $0x420] sm:$0xff]
                  %613 = vst [vmem:[%s479 + $0x210] sm:$0xff] %v612
                  %v614 = vld [vmem:[%s478 + $0x430] sm:$0xff]
                  %615 = vst [vmem:[%s479 + $0x218] sm:$0xff] %v614
                  %v616 = vld [vmem:[%s478 + $0x440] sm:$0xff]
                  %617 = vst [vmem:[%s479 + $0x220] sm:$0xff] %v616
                  %v618 = vld [vmem:[%s478 + $0x450] sm:$0xff]
                  %619 = vst [vmem:[%s479 + $0x228] sm:$0xff] %v618
                  %v620 = vld [vmem:[%s478 + $0x460] sm:$0xff]
                  %621 = vst [vmem:[%s479 + $0x230] sm:$0xff] %v620
                  %v622 = vld [vmem:[%s478 + $0x470] sm:$0xff]
                  %623 = vst [vmem:[%s479 + $0x238] sm:$0xff] %v622
                  %v624 = vld [vmem:[%s478 + $0x480] sm:$0xff]
                  %625 = vst [vmem:[%s479 + $0x240] sm:$0xff] %v624
                  %v626 = vld [vmem:[%s478 + $0x490] sm:$0xff]
                  %627 = vst [vmem:[%s479 + $0x248] sm:$0xff] %v626
                  %v628 = vld [vmem:[%s478 + $0x4a0] sm:$0xff]
                  %629 = vst [vmem:[%s479 + $0x250] sm:$0xff] %v628
                  %v630 = vld [vmem:[%s478 + $0x4b0] sm:$0xff]
                  %631 = vst [vmem:[%s479 + $0x258] sm:$0xff] %v630
                  %v632 = vld [vmem:[%s478 + $0x4c0] sm:$0xff]
                  %633 = vst [vmem:[%s479 + $0x260] sm:$0xff] %v632
                  %v634 = vld [vmem:[%s478 + $0x4d0] sm:$0xff]
                  %635 = vst [vmem:[%s479 + $0x268] sm:$0xff] %v634
                  %v636 = vld [vmem:[%s478 + $0x4e0] sm:$0xff]
                  %637 = vst [vmem:[%s479 + $0x270] sm:$0xff] %v636
                  %v638 = vld [vmem:[%s478 + $0x4f0] sm:$0xff]
                  %639 = vst [vmem:[%s479 + $0x278] sm:$0xff] %v638
                  %v640 = vld [vmem:[%s478 + $0x500] sm:$0xff]
                  %641 = vst [vmem:[%s479 + $0x280] sm:$0xff] %v640
                  %v642 = vld [vmem:[%s478 + $0x510] sm:$0xff]
                  %643 = vst [vmem:[%s479 + $0x288] sm:$0xff] %v642
                  %v644 = vld [vmem:[%s478 + $0x520] sm:$0xff]
                  %645 = vst [vmem:[%s479 + $0x290] sm:$0xff] %v644
                  %v646 = vld [vmem:[%s478 + $0x530] sm:$0xff]
                  %647 = vst [vmem:[%s479 + $0x298] sm:$0xff] %v646
                  %v648 = vld [vmem:[%s478 + $0x540] sm:$0xff]
                  %649 = vst [vmem:[%s479 + $0x2a0] sm:$0xff] %v648
                  %v650 = vld [vmem:[%s478 + $0x550] sm:$0xff]
                  %651 = vst [vmem:[%s479 + $0x2a8] sm:$0xff] %v650
                  %v652 = vld [vmem:[%s478 + $0x560] sm:$0xff]
                  %653 = vst [vmem:[%s479 + $0x2b0] sm:$0xff] %v652
                  %v654 = vld [vmem:[%s478 + $0x570] sm:$0xff]
                  %655 = vst [vmem:[%s479 + $0x2b8] sm:$0xff] %v654
                  %v656 = vld [vmem:[%s478 + $0x580] sm:$0xff]
                  %657 = vst [vmem:[%s479 + $0x2c0] sm:$0xff] %v656
                  %v658 = vld [vmem:[%s478 + $0x590] sm:$0xff]
                  %659 = vst [vmem:[%s479 + $0x2c8] sm:$0xff] %v658
                  %v660 = vld [vmem:[%s478 + $0x5a0] sm:$0xff]
                  %661 = vst [vmem:[%s479 + $0x2d0] sm:$0xff] %v660
                  %v662 = vld [vmem:[%s478 + $0x5b0] sm:$0xff]
                  %663 = vst [vmem:[%s479 + $0x2d8] sm:$0xff] %v662
                  %v664 = vld [vmem:[%s478 + $0x5c0] sm:$0xff]
                  %665 = vst [vmem:[%s479 + $0x2e0] sm:$0xff] %v664
                  %v666 = vld [vmem:[%s478 + $0x5d0] sm:$0xff]
                  %667 = vst [vmem:[%s479 + $0x2e8] sm:$0xff] %v666
                  %v668 = vld [vmem:[%s478 + $0x5e0] sm:$0xff]
                  %669 = vst [vmem:[%s479 + $0x2f0] sm:$0xff] %v668
                  %v670 = vld [vmem:[%s478 + $0x5f0] sm:$0xff]
                  %671 = vst [vmem:[%s479 + $0x2f8] sm:$0xff] %v670
                  %v672 = vld [vmem:[%s478 + $0x600] sm:$0xff]
                  %673 = vst [vmem:[%s479 + $0x300] sm:$0xff] %v672
                  %v674 = vld [vmem:[%s478 + $0x610] sm:$0xff]
                  %675 = vst [vmem:[%s479 + $0x308] sm:$0xff] %v674
                  %v676 = vld [vmem:[%s478 + $0x620] sm:$0xff]
                  %677 = vst [vmem:[%s479 + $0x310] sm:$0xff] %v676
                  %v678 = vld [vmem:[%s478 + $0x630] sm:$0xff]
                  %679 = vst [vmem:[%s479 + $0x318] sm:$0xff] %v678
                  %v680 = vld [vmem:[%s478 + $0x640] sm:$0xff]
                  %681 = vst [vmem:[%s479 + $0x320] sm:$0xff] %v680
                  %v682 = vld [vmem:[%s478 + $0x650] sm:$0xff]
                  %683 = vst [vmem:[%s479 + $0x328] sm:$0xff] %v682
                  %v684 = vld [vmem:[%s478 + $0x660] sm:$0xff]
                  %685 = vst [vmem:[%s479 + $0x330] sm:$0xff] %v684
                  %v686 = vld [vmem:[%s478 + $0x670] sm:$0xff]
                  %687 = vst [vmem:[%s479 + $0x338] sm:$0xff] %v686
                  %v688 = vld [vmem:[%s478 + $0x680] sm:$0xff]
                  %689 = vst [vmem:[%s479 + $0x340] sm:$0xff] %v688
                  %v690 = vld [vmem:[%s478 + $0x690] sm:$0xff]
                  %691 = vst [vmem:[%s479 + $0x348] sm:$0xff] %v690
                  %v692 = vld [vmem:[%s478 + $0x6a0] sm:$0xff]
                  %693 = vst [vmem:[%s479 + $0x350] sm:$0xff] %v692
                  %v694 = vld [vmem:[%s478 + $0x6b0] sm:$0xff]
                  %695 = vst [vmem:[%s479 + $0x358] sm:$0xff] %v694
                  %v696 = vld [vmem:[%s478 + $0x6c0] sm:$0xff]
                  %697 = vst [vmem:[%s479 + $0x360] sm:$0xff] %v696
                  %v698 = vld [vmem:[%s478 + $0x6d0] sm:$0xff]
                  %699 = vst [vmem:[%s479 + $0x368] sm:$0xff] %v698
                  %v700 = vld [vmem:[%s478 + $0x6e0] sm:$0xff]
                  %701 = vst [vmem:[%s479 + $0x370] sm:$0xff] %v700
                  %v702 = vld [vmem:[%s478 + $0x6f0] sm:$0xff]
                  %703 = vst [vmem:[%s479 + $0x378] sm:$0xff] %v702
                  %v704 = vld [vmem:[%s478 + $0x700] sm:$0xff]
                  %705 = vst [vmem:[%s479 + $0x380] sm:$0xff] %v704
                  %v706 = vld [vmem:[%s478 + $0x710] sm:$0xff]
                  %707 = vst [vmem:[%s479 + $0x388] sm:$0xff] %v706
                  %v708 = vld [vmem:[%s478 + $0x720] sm:$0xff]
                  %709 = vst [vmem:[%s479 + $0x390] sm:$0xff] %v708
                  %v710 = vld [vmem:[%s478 + $0x730] sm:$0xff]
                  %711 = vst [vmem:[%s479 + $0x398] sm:$0xff] %v710
                  %v712 = vld [vmem:[%s478 + $0x740] sm:$0xff]
                  %713 = vst [vmem:[%s479 + $0x3a0] sm:$0xff] %v712
                  %v714 = vld [vmem:[%s478 + $0x750] sm:$0xff]
                  %715 = vst [vmem:[%s479 + $0x3a8] sm:$0xff] %v714
                  %v716 = vld [vmem:[%s478 + $0x760] sm:$0xff]
                  %717 = vst [vmem:[%s479 + $0x3b0] sm:$0xff] %v716
                  %v718 = vld [vmem:[%s478 + $0x770] sm:$0xff]
                  %719 = vst [vmem:[%s479 + $0x3b8] sm:$0xff] %v718
                  %v720 = vld [vmem:[%s478 + $0x780] sm:$0xff]
                  %721 = vst [vmem:[%s479 + $0x3c0] sm:$0xff] %v720
                  %v722 = vld [vmem:[%s478 + $0x790] sm:$0xff]
                  %723 = vst [vmem:[%s479 + $0x3c8] sm:$0xff] %v722
                  %v724 = vld [vmem:[%s478 + $0x7a0] sm:$0xff]
                  %725 = vst [vmem:[%s479 + $0x3d0] sm:$0xff] %v724
                  %v726 = vld [vmem:[%s478 + $0x7b0] sm:$0xff]
                  %727 = vst [vmem:[%s479 + $0x3d8] sm:$0xff] %v726
                  %v728 = vld [vmem:[%s478 + $0x7c0] sm:$0xff]
                  %729 = vst [vmem:[%s479 + $0x3e0] sm:$0xff] %v728
                  %v730 = vld [vmem:[%s478 + $0x7d0] sm:$0xff]
                  %731 = vst [vmem:[%s479 + $0x3e8] sm:$0xff] %v730
                  %v732 = vld [vmem:[%s478 + $0x7e0] sm:$0xff]
                  %733 = vst [vmem:[%s479 + $0x3f0] sm:$0xff] %v732
                  %v734 = vld [vmem:[%s478 + $0x7f0] sm:$0xff]
                  %735 = vst [vmem:[%s479 + $0x3f8] sm:$0xff] %v734
                  %v736 = vld [vmem:[%s478 + $0x800] sm:$0xff]
                  %737 = vst [vmem:[%s479 + $0x400] sm:$0xff] %v736
                  %v738 = vld [vmem:[%s478 + $0x810] sm:$0xff]
                  %739 = vst [vmem:[%s479 + $0x408] sm:$0xff] %v738
                  %v740 = vld [vmem:[%s478 + $0x820] sm:$0xff]
                  %741 = vst [vmem:[%s479 + $0x410] sm:$0xff] %v740
                  %v742 = vld [vmem:[%s478 + $0x830] sm:$0xff]
                  %743 = vst [vmem:[%s479 + $0x418] sm:$0xff] %v742
                  %v744 = vld [vmem:[%s478 + $0x840] sm:$0xff]
                  %745 = vst [vmem:[%s479 + $0x420] sm:$0xff] %v744
                  %v746 = vld [vmem:[%s478 + $0x850] sm:$0xff]
                  %747 = vst [vmem:[%s479 + $0x428] sm:$0xff] %v746
                  %v748 = vld [vmem:[%s478 + $0x860] sm:$0xff]
                  %749 = vst [vmem:[%s479 + $0x430] sm:$0xff] %v748
                  %v750 = vld [vmem:[%s478 + $0x870] sm:$0xff]
                  %751 = vst [vmem:[%s479 + $0x438] sm:$0xff] %v750
                  %v752 = vld [vmem:[%s478 + $0x880] sm:$0xff]
                  %753 = vst [vmem:[%s479 + $0x440] sm:$0xff] %v752
                  %v754 = vld [vmem:[%s478 + $0x890] sm:$0xff]
                  %755 = vst [vmem:[%s479 + $0x448] sm:$0xff] %v754
                  %v756 = vld [vmem:[%s478 + $0x8a0] sm:$0xff]
                  %757 = vst [vmem:[%s479 + $0x450] sm:$0xff] %v756
                  %v758 = vld [vmem:[%s478 + $0x8b0] sm:$0xff]
                  %759 = vst [vmem:[%s479 + $0x458] sm:$0xff] %v758
                  %v760 = vld [vmem:[%s478 + $0x8c0] sm:$0xff]
                  %761 = vst [vmem:[%s479 + $0x460] sm:$0xff] %v760
                  %v762 = vld [vmem:[%s478 + $0x8d0] sm:$0xff]
                  %763 = vst [vmem:[%s479 + $0x468] sm:$0xff] %v762
                  %v764 = vld [vmem:[%s478 + $0x8e0] sm:$0xff]
                  %765 = vst [vmem:[%s479 + $0x470] sm:$0xff] %v764
                  %v766 = vld [vmem:[%s478 + $0x8f0] sm:$0xff]
                  %767 = vst [vmem:[%s479 + $0x478] sm:$0xff] %v766
                $region52: #{vqvae_forward.29} parent=46 // loop_footer
                  %s477 = sadd.s32 1, %s473
                $region53: #{vqvae_forward.29} parent=46 // loop_footer_branch
                  %472 = sbr.rel target = $region49
                $region54: #{vqvae_forward.29} parent=46 // loop_exit
                  _
              $region47: #{vqvae_forward.29} parent=31 // pred_fallthru
                _
              // Predicated region
              $region55: #{vqvae_forward.29} parent=31 // pred_check
                _
              $region56: #{vqvae_forward.29} parent=31 // pred_check_branch
                %769 = sbr.rel target = $region58
              $region57: #{vqvae_forward.29} parent=31 // pred_region
                _
              $region58: #{vqvae_forward.29} parent=31 // pred_fallthru
                _
            $region32: #{vqvae_forward.29} parent=27 // pred_fallthru
              _
            // Predicated region
            $region33: #{vqvae_forward.29} parent=27 // pred_check
              _
            $region34: #{vqvae_forward.29} parent=27 // pred_check_branch
              %171 = sbr.rel target = $region36
            $region35: #{vqvae_forward.29} parent=27 // pred_region
              %s173 = ssub.s32 256, 1
              loop: start=0, step=1, limit=1
              $region37: #{vqvae_forward.29} parent=35 // loop_pre_header
                _
              $region38: #{vqvae_forward.29} parent=35 // loop_header
                %s175 = sphi 0, %s179
                %p176 = scmp.ge.s32.totalorder %s175, 1
                %s180 = sphi %s165, %s165
                %s181 = sphi %s162, %s162
              $region39: #{vqvae_forward.29} parent=35 // loop_header_branch
                %178 = sbr.rel (%p176) target = $region43
              $region40: #{vqvae_forward.29} parent=35 // loop_body
                %v182 = vld [vmem:[%s180] sm:%s173]
                %183 = vst [vmem:[%s181] sm:%s173] %v182
                %v184 = vld [vmem:[%s180 + $0x10] sm:%s173]
                %185 = vst [vmem:[%s181 + $0x8] sm:%s173] %v184
                %v186 = vld [vmem:[%s180 + $0x20] sm:%s173]
                %187 = vst [vmem:[%s181 + $0x10] sm:%s173] %v186
                %v188 = vld [vmem:[%s180 + $0x30] sm:%s173]
                %189 = vst [vmem:[%s181 + $0x18] sm:%s173] %v188
                %v190 = vld [vmem:[%s180 + $0x40] sm:%s173]
                %191 = vst [vmem:[%s181 + $0x20] sm:%s173] %v190
                %v192 = vld [vmem:[%s180 + $0x50] sm:%s173]
                %193 = vst [vmem:[%s181 + $0x28] sm:%s173] %v192
                %v194 = vld [vmem:[%s180 + $0x60] sm:%s173]
                %195 = vst [vmem:[%s181 + $0x30] sm:%s173] %v194
                %v196 = vld [vmem:[%s180 + $0x70] sm:%s173]
                %197 = vst [vmem:[%s181 + $0x38] sm:%s173] %v196
                %v198 = vld [vmem:[%s180 + $0x80] sm:%s173]
                %199 = vst [vmem:[%s181 + $0x40] sm:%s173] %v198
                %v200 = vld [vmem:[%s180 + $0x90] sm:%s173]
                %201 = vst [vmem:[%s181 + $0x48] sm:%s173] %v200
                %v202 = vld [vmem:[%s180 + $0xa0] sm:%s173]
                %203 = vst [vmem:[%s181 + $0x50] sm:%s173] %v202
                %v204 = vld [vmem:[%s180 + $0xb0] sm:%s173]
                %205 = vst [vmem:[%s181 + $0x58] sm:%s173] %v204
                %v206 = vld [vmem:[%s180 + $0xc0] sm:%s173]
                %207 = vst [vmem:[%s181 + $0x60] sm:%s173] %v206
                %v208 = vld [vmem:[%s180 + $0xd0] sm:%s173]
                %209 = vst [vmem:[%s181 + $0x68] sm:%s173] %v208
                %v210 = vld [vmem:[%s180 + $0xe0] sm:%s173]
                %211 = vst [vmem:[%s181 + $0x70] sm:%s173] %v210
                %v212 = vld [vmem:[%s180 + $0xf0] sm:%s173]
                %213 = vst [vmem:[%s181 + $0x78] sm:%s173] %v212
                %v214 = vld [vmem:[%s180 + $0x100] sm:%s173]
                %215 = vst [vmem:[%s181 + $0x80] sm:%s173] %v214
                %v216 = vld [vmem:[%s180 + $0x110] sm:%s173]
                %217 = vst [vmem:[%s181 + $0x88] sm:%s173] %v216
                %v218 = vld [vmem:[%s180 + $0x120] sm:%s173]
                %219 = vst [vmem:[%s181 + $0x90] sm:%s173] %v218
                %v220 = vld [vmem:[%s180 + $0x130] sm:%s173]
                %221 = vst [vmem:[%s181 + $0x98] sm:%s173] %v220
                %v222 = vld [vmem:[%s180 + $0x140] sm:%s173]
                %223 = vst [vmem:[%s181 + $0xa0] sm:%s173] %v222
                %v224 = vld [vmem:[%s180 + $0x150] sm:%s173]
                %225 = vst [vmem:[%s181 + $0xa8] sm:%s173] %v224
                %v226 = vld [vmem:[%s180 + $0x160] sm:%s173]
                %227 = vst [vmem:[%s181 + $0xb0] sm:%s173] %v226
                %v228 = vld [vmem:[%s180 + $0x170] sm:%s173]
                %229 = vst [vmem:[%s181 + $0xb8] sm:%s173] %v228
                %v230 = vld [vmem:[%s180 + $0x180] sm:%s173]
                %231 = vst [vmem:[%s181 + $0xc0] sm:%s173] %v230
                %v232 = vld [vmem:[%s180 + $0x190] sm:%s173]
                %233 = vst [vmem:[%s181 + $0xc8] sm:%s173] %v232
                %v234 = vld [vmem:[%s180 + $0x1a0] sm:%s173]
                %235 = vst [vmem:[%s181 + $0xd0] sm:%s173] %v234
                %v236 = vld [vmem:[%s180 + $0x1b0] sm:%s173]
                %237 = vst [vmem:[%s181 + $0xd8] sm:%s173] %v236
                %v238 = vld [vmem:[%s180 + $0x1c0] sm:%s173]
                %239 = vst [vmem:[%s181 + $0xe0] sm:%s173] %v238
                %v240 = vld [vmem:[%s180 + $0x1d0] sm:%s173]
                %241 = vst [vmem:[%s181 + $0xe8] sm:%s173] %v240
                %v242 = vld [vmem:[%s180 + $0x1e0] sm:%s173]
                %243 = vst [vmem:[%s181 + $0xf0] sm:%s173] %v242
                %v244 = vld [vmem:[%s180 + $0x1f0] sm:%s173]
                %245 = vst [vmem:[%s181 + $0xf8] sm:%s173] %v244
                %v246 = vld [vmem:[%s180 + $0x200] sm:%s173]
                %247 = vst [vmem:[%s181 + $0x100] sm:%s173] %v246
                %v248 = vld [vmem:[%s180 + $0x210] sm:%s173]
                %249 = vst [vmem:[%s181 + $0x108] sm:%s173] %v248
                %v250 = vld [vmem:[%s180 + $0x220] sm:%s173]
                %251 = vst [vmem:[%s181 + $0x110] sm:%s173] %v250
                %v252 = vld [vmem:[%s180 + $0x230] sm:%s173]
                %253 = vst [vmem:[%s181 + $0x118] sm:%s173] %v252
                %v254 = vld [vmem:[%s180 + $0x240] sm:%s173]
                %255 = vst [vmem:[%s181 + $0x120] sm:%s173] %v254
                %v256 = vld [vmem:[%s180 + $0x250] sm:%s173]
                %257 = vst [vmem:[%s181 + $0x128] sm:%s173] %v256
                %v258 = vld [vmem:[%s180 + $0x260] sm:%s173]
                %259 = vst [vmem:[%s181 + $0x130] sm:%s173] %v258
                %v260 = vld [vmem:[%s180 + $0x270] sm:%s173]
                %261 = vst [vmem:[%s181 + $0x138] sm:%s173] %v260
                %v262 = vld [vmem:[%s180 + $0x280] sm:%s173]
                %263 = vst [vmem:[%s181 + $0x140] sm:%s173] %v262
                %v264 = vld [vmem:[%s180 + $0x290] sm:%s173]
                %265 = vst [vmem:[%s181 + $0x148] sm:%s173] %v264
                %v266 = vld [vmem:[%s180 + $0x2a0] sm:%s173]
                %267 = vst [vmem:[%s181 + $0x150] sm:%s173] %v266
                %v268 = vld [vmem:[%s180 + $0x2b0] sm:%s173]
                %269 = vst [vmem:[%s181 + $0x158] sm:%s173] %v268
                %v270 = vld [vmem:[%s180 + $0x2c0] sm:%s173]
                %271 = vst [vmem:[%s181 + $0x160] sm:%s173] %v270
                %v272 = vld [vmem:[%s180 + $0x2d0] sm:%s173]
                %273 = vst [vmem:[%s181 + $0x168] sm:%s173] %v272
                %v274 = vld [vmem:[%s180 + $0x2e0] sm:%s173]
                %275 = vst [vmem:[%s181 + $0x170] sm:%s173] %v274
                %v276 = vld [vmem:[%s180 + $0x2f0] sm:%s173]
                %277 = vst [vmem:[%s181 + $0x178] sm:%s173] %v276
                %v278 = vld [vmem:[%s180 + $0x300] sm:%s173]
                %279 = vst [vmem:[%s181 + $0x180] sm:%s173] %v278
                %v280 = vld [vmem:[%s180 + $0x310] sm:%s173]
                %281 = vst [vmem:[%s181 + $0x188] sm:%s173] %v280
                %v282 = vld [vmem:[%s180 + $0x320] sm:%s173]
                %283 = vst [vmem:[%s181 + $0x190] sm:%s173] %v282
                %v284 = vld [vmem:[%s180 + $0x330] sm:%s173]
                %285 = vst [vmem:[%s181 + $0x198] sm:%s173] %v284
                %v286 = vld [vmem:[%s180 + $0x340] sm:%s173]
                %287 = vst [vmem:[%s181 + $0x1a0] sm:%s173] %v286
                %v288 = vld [vmem:[%s180 + $0x350] sm:%s173]
                %289 = vst [vmem:[%s181 + $0x1a8] sm:%s173] %v288
                %v290 = vld [vmem:[%s180 + $0x360] sm:%s173]
                %291 = vst [vmem:[%s181 + $0x1b0] sm:%s173] %v290
                %v292 = vld [vmem:[%s180 + $0x370] sm:%s173]
                %293 = vst [vmem:[%s181 + $0x1b8] sm:%s173] %v292
                %v294 = vld [vmem:[%s180 + $0x380] sm:%s173]
                %295 = vst [vmem:[%s181 + $0x1c0] sm:%s173] %v294
                %v296 = vld [vmem:[%s180 + $0x390] sm:%s173]
                %297 = vst [vmem:[%s181 + $0x1c8] sm:%s173] %v296
                %v298 = vld [vmem:[%s180 + $0x3a0] sm:%s173]
                %299 = vst [vmem:[%s181 + $0x1d0] sm:%s173] %v298
                %v300 = vld [vmem:[%s180 + $0x3b0] sm:%s173]
                %301 = vst [vmem:[%s181 + $0x1d8] sm:%s173] %v300
                %v302 = vld [vmem:[%s180 + $0x3c0] sm:%s173]
                %303 = vst [vmem:[%s181 + $0x1e0] sm:%s173] %v302
                %v304 = vld [vmem:[%s180 + $0x3d0] sm:%s173]
                %305 = vst [vmem:[%s181 + $0x1e8] sm:%s173] %v304
                %v306 = vld [vmem:[%s180 + $0x3e0] sm:%s173]
                %307 = vst [vmem:[%s181 + $0x1f0] sm:%s173] %v306
                %v308 = vld [vmem:[%s180 + $0x3f0] sm:%s173]
                %309 = vst [vmem:[%s181 + $0x1f8] sm:%s173] %v308
                %v310 = vld [vmem:[%s180 + $0x400] sm:%s173]
                %311 = vst [vmem:[%s181 + $0x200] sm:%s173] %v310
                %v312 = vld [vmem:[%s180 + $0x410] sm:%s173]
                %313 = vst [vmem:[%s181 + $0x208] sm:%s173] %v312
                %v314 = vld [vmem:[%s180 + $0x420] sm:%s173]
                %315 = vst [vmem:[%s181 + $0x210] sm:%s173] %v314
                %v316 = vld [vmem:[%s180 + $0x430] sm:%s173]
                %317 = vst [vmem:[%s181 + $0x218] sm:%s173] %v316
                %v318 = vld [vmem:[%s180 + $0x440] sm:%s173]
                %319 = vst [vmem:[%s181 + $0x220] sm:%s173] %v318
                %v320 = vld [vmem:[%s180 + $0x450] sm:%s173]
                %321 = vst [vmem:[%s181 + $0x228] sm:%s173] %v320
                %v322 = vld [vmem:[%s180 + $0x460] sm:%s173]
                %323 = vst [vmem:[%s181 + $0x230] sm:%s173] %v322
                %v324 = vld [vmem:[%s180 + $0x470] sm:%s173]
                %325 = vst [vmem:[%s181 + $0x238] sm:%s173] %v324
                %v326 = vld [vmem:[%s180 + $0x480] sm:%s173]
                %327 = vst [vmem:[%s181 + $0x240] sm:%s173] %v326
                %v328 = vld [vmem:[%s180 + $0x490] sm:%s173]
                %329 = vst [vmem:[%s181 + $0x248] sm:%s173] %v328
                %v330 = vld [vmem:[%s180 + $0x4a0] sm:%s173]
                %331 = vst [vmem:[%s181 + $0x250] sm:%s173] %v330
                %v332 = vld [vmem:[%s180 + $0x4b0] sm:%s173]
                %333 = vst [vmem:[%s181 + $0x258] sm:%s173] %v332
                %v334 = vld [vmem:[%s180 + $0x4c0] sm:%s173]
                %335 = vst [vmem:[%s181 + $0x260] sm:%s173] %v334
                %v336 = vld [vmem:[%s180 + $0x4d0] sm:%s173]
                %337 = vst [vmem:[%s181 + $0x268] sm:%s173] %v336
                %v338 = vld [vmem:[%s180 + $0x4e0] sm:%s173]
                %339 = vst [vmem:[%s181 + $0x270] sm:%s173] %v338
                %v340 = vld [vmem:[%s180 + $0x4f0] sm:%s173]
                %341 = vst [vmem:[%s181 + $0x278] sm:%s173] %v340
                %v342 = vld [vmem:[%s180 + $0x500] sm:%s173]
                %343 = vst [vmem:[%s181 + $0x280] sm:%s173] %v342
                %v344 = vld [vmem:[%s180 + $0x510] sm:%s173]
                %345 = vst [vmem:[%s181 + $0x288] sm:%s173] %v344
                %v346 = vld [vmem:[%s180 + $0x520] sm:%s173]
                %347 = vst [vmem:[%s181 + $0x290] sm:%s173] %v346
                %v348 = vld [vmem:[%s180 + $0x530] sm:%s173]
                %349 = vst [vmem:[%s181 + $0x298] sm:%s173] %v348
                %v350 = vld [vmem:[%s180 + $0x540] sm:%s173]
                %351 = vst [vmem:[%s181 + $0x2a0] sm:%s173] %v350
                %v352 = vld [vmem:[%s180 + $0x550] sm:%s173]
                %353 = vst [vmem:[%s181 + $0x2a8] sm:%s173] %v352
                %v354 = vld [vmem:[%s180 + $0x560] sm:%s173]
                %355 = vst [vmem:[%s181 + $0x2b0] sm:%s173] %v354
                %v356 = vld [vmem:[%s180 + $0x570] sm:%s173]
                %357 = vst [vmem:[%s181 + $0x2b8] sm:%s173] %v356
                %v358 = vld [vmem:[%s180 + $0x580] sm:%s173]
                %359 = vst [vmem:[%s181 + $0x2c0] sm:%s173] %v358
                %v360 = vld [vmem:[%s180 + $0x590] sm:%s173]
                %361 = vst [vmem:[%s181 + $0x2c8] sm:%s173] %v360
                %v362 = vld [vmem:[%s180 + $0x5a0] sm:%s173]
                %363 = vst [vmem:[%s181 + $0x2d0] sm:%s173] %v362
                %v364 = vld [vmem:[%s180 + $0x5b0] sm:%s173]
                %365 = vst [vmem:[%s181 + $0x2d8] sm:%s173] %v364
                %v366 = vld [vmem:[%s180 + $0x5c0] sm:%s173]
                %367 = vst [vmem:[%s181 + $0x2e0] sm:%s173] %v366
                %v368 = vld [vmem:[%s180 + $0x5d0] sm:%s173]
                %369 = vst [vmem:[%s181 + $0x2e8] sm:%s173] %v368
                %v370 = vld [vmem:[%s180 + $0x5e0] sm:%s173]
                %371 = vst [vmem:[%s181 + $0x2f0] sm:%s173] %v370
                %v372 = vld [vmem:[%s180 + $0x5f0] sm:%s173]
                %373 = vst [vmem:[%s181 + $0x2f8] sm:%s173] %v372
                %v374 = vld [vmem:[%s180 + $0x600] sm:%s173]
                %375 = vst [vmem:[%s181 + $0x300] sm:%s173] %v374
                %v376 = vld [vmem:[%s180 + $0x610] sm:%s173]
                %377 = vst [vmem:[%s181 + $0x308] sm:%s173] %v376
                %v378 = vld [vmem:[%s180 + $0x620] sm:%s173]
                %379 = vst [vmem:[%s181 + $0x310] sm:%s173] %v378
                %v380 = vld [vmem:[%s180 + $0x630] sm:%s173]
                %381 = vst [vmem:[%s181 + $0x318] sm:%s173] %v380
                %v382 = vld [vmem:[%s180 + $0x640] sm:%s173]
                %383 = vst [vmem:[%s181 + $0x320] sm:%s173] %v382
                %v384 = vld [vmem:[%s180 + $0x650] sm:%s173]
                %385 = vst [vmem:[%s181 + $0x328] sm:%s173] %v384
                %v386 = vld [vmem:[%s180 + $0x660] sm:%s173]
                %387 = vst [vmem:[%s181 + $0x330] sm:%s173] %v386
                %v388 = vld [vmem:[%s180 + $0x670] sm:%s173]
                %389 = vst [vmem:[%s181 + $0x338] sm:%s173] %v388
                %v390 = vld [vmem:[%s180 + $0x680] sm:%s173]
                %391 = vst [vmem:[%s181 + $0x340] sm:%s173] %v390
                %v392 = vld [vmem:[%s180 + $0x690] sm:%s173]
                %393 = vst [vmem:[%s181 + $0x348] sm:%s173] %v392
                %v394 = vld [vmem:[%s180 + $0x6a0] sm:%s173]
                %395 = vst [vmem:[%s181 + $0x350] sm:%s173] %v394
                %v396 = vld [vmem:[%s180 + $0x6b0] sm:%s173]
                %397 = vst [vmem:[%s181 + $0x358] sm:%s173] %v396
                %v398 = vld [vmem:[%s180 + $0x6c0] sm:%s173]
                %399 = vst [vmem:[%s181 + $0x360] sm:%s173] %v398
                %v400 = vld [vmem:[%s180 + $0x6d0] sm:%s173]
                %401 = vst [vmem:[%s181 + $0x368] sm:%s173] %v400
                %v402 = vld [vmem:[%s180 + $0x6e0] sm:%s173]
                %403 = vst [vmem:[%s181 + $0x370] sm:%s173] %v402
                %v404 = vld [vmem:[%s180 + $0x6f0] sm:%s173]
                %405 = vst [vmem:[%s181 + $0x378] sm:%s173] %v404
                %v406 = vld [vmem:[%s180 + $0x700] sm:%s173]
                %407 = vst [vmem:[%s181 + $0x380] sm:%s173] %v406
                %v408 = vld [vmem:[%s180 + $0x710] sm:%s173]
                %409 = vst [vmem:[%s181 + $0x388] sm:%s173] %v408
                %v410 = vld [vmem:[%s180 + $0x720] sm:%s173]
                %411 = vst [vmem:[%s181 + $0x390] sm:%s173] %v410
                %v412 = vld [vmem:[%s180 + $0x730] sm:%s173]
                %413 = vst [vmem:[%s181 + $0x398] sm:%s173] %v412
                %v414 = vld [vmem:[%s180 + $0x740] sm:%s173]
                %415 = vst [vmem:[%s181 + $0x3a0] sm:%s173] %v414
                %v416 = vld [vmem:[%s180 + $0x750] sm:%s173]
                %417 = vst [vmem:[%s181 + $0x3a8] sm:%s173] %v416
                %v418 = vld [vmem:[%s180 + $0x760] sm:%s173]
                %419 = vst [vmem:[%s181 + $0x3b0] sm:%s173] %v418
                %v420 = vld [vmem:[%s180 + $0x770] sm:%s173]
                %421 = vst [vmem:[%s181 + $0x3b8] sm:%s173] %v420
                %v422 = vld [vmem:[%s180 + $0x780] sm:%s173]
                %423 = vst [vmem:[%s181 + $0x3c0] sm:%s173] %v422
                %v424 = vld [vmem:[%s180 + $0x790] sm:%s173]
                %425 = vst [vmem:[%s181 + $0x3c8] sm:%s173] %v424
                %v426 = vld [vmem:[%s180 + $0x7a0] sm:%s173]
                %427 = vst [vmem:[%s181 + $0x3d0] sm:%s173] %v426
                %v428 = vld [vmem:[%s180 + $0x7b0] sm:%s173]
                %429 = vst [vmem:[%s181 + $0x3d8] sm:%s173] %v428
                %v430 = vld [vmem:[%s180 + $0x7c0] sm:%s173]
                %431 = vst [vmem:[%s181 + $0x3e0] sm:%s173] %v430
                %v432 = vld [vmem:[%s180 + $0x7d0] sm:%s173]
                %433 = vst [vmem:[%s181 + $0x3e8] sm:%s173] %v432
                %v434 = vld [vmem:[%s180 + $0x7e0] sm:%s173]
                %435 = vst [vmem:[%s181 + $0x3f0] sm:%s173] %v434
                %v436 = vld [vmem:[%s180 + $0x7f0] sm:%s173]
                %437 = vst [vmem:[%s181 + $0x3f8] sm:%s173] %v436
                %v438 = vld [vmem:[%s180 + $0x800] sm:%s173]
                %439 = vst [vmem:[%s181 + $0x400] sm:%s173] %v438
                %v440 = vld [vmem:[%s180 + $0x810] sm:%s173]
                %441 = vst [vmem:[%s181 + $0x408] sm:%s173] %v440
                %v442 = vld [vmem:[%s180 + $0x820] sm:%s173]
                %443 = vst [vmem:[%s181 + $0x410] sm:%s173] %v442
                %v444 = vld [vmem:[%s180 + $0x830] sm:%s173]
                %445 = vst [vmem:[%s181 + $0x418] sm:%s173] %v444
                %v446 = vld [vmem:[%s180 + $0x840] sm:%s173]
                %447 = vst [vmem:[%s181 + $0x420] sm:%s173] %v446
                %v448 = vld [vmem:[%s180 + $0x850] sm:%s173]
                %449 = vst [vmem:[%s181 + $0x428] sm:%s173] %v448
                %v450 = vld [vmem:[%s180 + $0x860] sm:%s173]
                %451 = vst [vmem:[%s181 + $0x430] sm:%s173] %v450
                %v452 = vld [vmem:[%s180 + $0x870] sm:%s173]
                %453 = vst [vmem:[%s181 + $0x438] sm:%s173] %v452
                %v454 = vld [vmem:[%s180 + $0x880] sm:%s173]
                %455 = vst [vmem:[%s181 + $0x440] sm:%s173] %v454
                %v456 = vld [vmem:[%s180 + $0x890] sm:%s173]
                %457 = vst [vmem:[%s181 + $0x448] sm:%s173] %v456
                %v458 = vld [vmem:[%s180 + $0x8a0] sm:%s173]
                %459 = vst [vmem:[%s181 + $0x450] sm:%s173] %v458
                %v460 = vld [vmem:[%s180 + $0x8b0] sm:%s173]
                %461 = vst [vmem:[%s181 + $0x458] sm:%s173] %v460
                %v462 = vld [vmem:[%s180 + $0x8c0] sm:%s173]
                %463 = vst [vmem:[%s181 + $0x460] sm:%s173] %v462
                %v464 = vld [vmem:[%s180 + $0x8d0] sm:%s173]
                %465 = vst [vmem:[%s181 + $0x468] sm:%s173] %v464
                %v466 = vld [vmem:[%s180 + $0x8e0] sm:%s173]
                %467 = vst [vmem:[%s181 + $0x470] sm:%s173] %v466
                %v468 = vld [vmem:[%s180 + $0x8f0] sm:%s173]
                %469 = vst [vmem:[%s181 + $0x478] sm:%s173] %v468
              $region41: #{vqvae_forward.29} parent=35 // loop_footer
                %s179 = sadd.s32 1, %s175
              $region42: #{vqvae_forward.29} parent=35 // loop_footer_branch
                %174 = sbr.rel target = $region38
              $region43: #{vqvae_forward.29} parent=35 // loop_exit
                _
            $region36: #{vqvae_forward.29} parent=27 // pred_fallthru
              _
          $region28: #{vqvae_forward.29} parent=23 // pred_fallthru
            _
          %770 = vnop
        $region24: #{vqvae_forward.29} parent=19 // pred_fallthru
          _
        // Predicated region
        $region59: #{vqvae_forward.29} parent=19 // pred_check
          %p771 = pneg %p93
        $region60: #{vqvae_forward.29} parent=19 // pred_check_branch
          %773 = sbr.rel (%p771) target = $region62
        $region61: #{vqvae_forward.29} parent=19 // pred_region
          %s774 = smul.u32 2, %s17
          %p775 = scmp.lt.s32.totalorder %s774, 3
          %s776 = scalar_select %p775, %s774, 3
          %s777 = scalar_lea.vmem %s2, %s776
          %s778 = smul.u32 2, %s17
        $region62: #{vqvae_forward.29} parent=19 // pred_fallthru
          _
      $region20: #{vqvae_forward.29} parent=5 // pred_fallthru
        _
      %p779 = scmp.le.s32.totalorder 1, %s9
      %p780 = scmp.lt.s32.totalorder %s9, 3
      %p781 = pnand %p779, %p780
      %p782 = pneg %p781
      // Predicated region
      $region63: #{vqvae_forward.29} parent=5 // pred_check
        _
      $region64: #{vqvae_forward.29} parent=5 // pred_check_branch
        %784 = sbr.rel (%p781) target = $region66
      $region65: #{vqvae_forward.29} parent=5 // pred_region
        %s785 = ssub.s32 %s9, 1
        %s786 = sand.u32 %s60, 1
        %s787 = sand.u32 %s60, 1
        %s788 = smul.addr %s787, 1152
        %s789 = scalar_lea.vmem [#allocation2], %s788
        // Predicated region
        $region67: #{vqvae_forward.29} parent=65 // pred_check
          %p790 = pneg %p73
        $region68: #{vqvae_forward.29} parent=65 // pred_check_branch
          %792 = sbr.rel (%p790) target = $region70
        $region69: #{vqvae_forward.29} parent=65 // pred_region
          _
        $region70: #{vqvae_forward.29} parent=65 // pred_fallthru
          _
        %s793 = smul.u32 16, %s18
        %p794 = scmp.lt.s32.totalorder %s793, 15
        %s795 = scalar_select %p794, %s793, 15
        %s796 = smul.addr %s795, 9
        %s797 = smul.addr %s796, 4
        %s798 = scalar_lea.vmem %s0, %s797
        %p799 = pneg %p47
        %p800 = pneg %p44
        %s801 = sand.u32 %s60, 1
        %s802 = sand.u32 %s60, 1
        %s803 = smul.addr %s802, 1152
        %s804 = scalar_lea.vmem [#allocation2], %s803
        %p805 = pneg %p73
        %p806 = pneg %p70
        %s807 = smul.u32 2, %s19
        %p808 = scmp.lt.s32.totalorder %s807, 3
        %s809 = scalar_select %p808, %s807, 3
        %s810 = scalar_lea.vmem %s2, %s809
        %p811 = pneg %p99
        %p812 = pneg %p96
        %p813 = pneg %p127
        %p814 = pneg %p124
        %s815 = sand.u32 %s114, 1
        %s816 = sand.u32 %s114, 1
        %s817 = smul.addr %s816, 128
        %s818 = scalar_lea.vmem [#allocation3], %s817
        %s819 = smul.u32 16, %s18
        %p820 = scmp.lt.s32.totalorder %s819, 15
        %s821 = scalar_select %p820, %s819, 15
        %s822 = smul.addr %s821, 9
        %s823 = smul.addr %s822, 4
        %s824 = scalar_lea.vmem %s0, %s823
        %s825 = smul.u32 16, %s18
        %s826 = smul.u32 2, %s19
        %s827 = smul.u32 2, %s19
        %p828 = scmp.lt.s32.totalorder %s827, 3
        %s829 = scalar_select %p828, %s827, 3
        %s830 = scalar_lea.vmem %s2, %s829
        %s831 = smul.u32 2, %s19
        %s832 = smul.u32 16, %s18
        %s833 = smul.u32 2, %s19
        %v835 = vld [vmem:[%s824] sm:$0xff]
        %v836 = vld [vmem:[%s824 + $0x8] sm:$0xff]
        %v837 = vld [vmem:[%s824 + $0x10] sm:$0xff]
        %v838 = vld [vmem:[%s824 + $0x18] sm:$0xff]
        %v839 = vld [vmem:[%s824 + $0x20] sm:$0xf]
        %v840 = vld [vmem:[%s824 + $0x24] sm:$0xff]
        %v841 = vld [vmem:[%s824 + $0x2c] sm:$0xff]
        %v842 = vld [vmem:[%s824 + $0x34] sm:$0xff]
        %v843 = vld [vmem:[%s824 + $0x3c] sm:$0xff]
        %v844 = vld [vmem:[%s824 + $0x44] sm:$0xf]
        %v845 = vld [vmem:[%s824 + $0x48] sm:$0xff]
        %v846 = vld [vmem:[%s824 + $0x50] sm:$0xff]
        %v847 = vld [vmem:[%s824 + $0x58] sm:$0xff]
        %v848 = vld [vmem:[%s824 + $0x60] sm:$0xff]
        %v849 = vld [vmem:[%s824 + $0x68] sm:$0xf]
        %v850 = vld [vmem:[%s824 + $0x6c] sm:$0xff]
        %v851 = vld [vmem:[%s824 + $0x74] sm:$0xff]
        %v852 = vld [vmem:[%s824 + $0x7c] sm:$0xff]
        %v853 = vld [vmem:[%s824 + $0x84] sm:$0xff]
        %v854 = vld [vmem:[%s824 + $0x8c] sm:$0xf]
        %v855 = vld [vmem:[%s824 + $0x90] sm:$0xff]
        %v856 = vld [vmem:[%s824 + $0x98] sm:$0xff]
        %v857 = vld [vmem:[%s824 + $0xa0] sm:$0xff]
        %v858 = vld [vmem:[%s824 + $0xa8] sm:$0xff]
        %v859 = vld [vmem:[%s824 + $0xb0] sm:$0xf]
        %v860 = vld [vmem:[%s824 + $0xb4] sm:$0xff]
        %v861 = vld [vmem:[%s824 + $0xbc] sm:$0xff]
        %v862 = vld [vmem:[%s824 + $0xc4] sm:$0xff]
        %v863 = vld [vmem:[%s824 + $0xcc] sm:$0xff]
        %v864 = vld [vmem:[%s824 + $0xd4] sm:$0xf]
        %v865 = vld [vmem:[%s824 + $0xd8] sm:$0xff]
        %v866 = vld [vmem:[%s824 + $0xe0] sm:$0xff]
        %v867 = vld [vmem:[%s824 + $0xe8] sm:$0xff]
        %v868 = vld [vmem:[%s824 + $0xf0] sm:$0xff]
        %v869 = vld [vmem:[%s824 + $0xf8] sm:$0xf]
        %v870 = vld [vmem:[%s824 + $0xfc] sm:$0xff]
        %v871 = vld [vmem:[%s824 + $0x104] sm:$0xff]
        %v872 = vld [vmem:[%s824 + $0x10c] sm:$0xff]
        %v873 = vld [vmem:[%s824 + $0x114] sm:$0xff]
        %v874 = vld [vmem:[%s824 + $0x11c] sm:$0xf]
        %v875 = vld [vmem:[%s824 + $0x120] sm:$0xff]
        %v876 = vld [vmem:[%s824 + $0x128] sm:$0xff]
        %v877 = vld [vmem:[%s824 + $0x130] sm:$0xff]
        %v878 = vld [vmem:[%s824 + $0x138] sm:$0xff]
        %v879 = vld [vmem:[%s824 + $0x140] sm:$0xf]
        %v880 = vld [vmem:[%s824 + $0x144] sm:$0xff]
        %v881 = vld [vmem:[%s824 + $0x14c] sm:$0xff]
        %v882 = vld [vmem:[%s824 + $0x154] sm:$0xff]
        %v883 = vld [vmem:[%s824 + $0x15c] sm:$0xff]
        %v884 = vld [vmem:[%s824 + $0x164] sm:$0xf]
        %v885 = vld [vmem:[%s824 + $0x168] sm:$0xff]
        %v886 = vld [vmem:[%s824 + $0x170] sm:$0xff]
        %v887 = vld [vmem:[%s824 + $0x178] sm:$0xff]
        %v888 = vld [vmem:[%s824 + $0x180] sm:$0xff]
        %v889 = vld [vmem:[%s824 + $0x188] sm:$0xf]
        %v890 = vld [vmem:[%s824 + $0x18c] sm:$0xff]
        %v891 = vld [vmem:[%s824 + $0x194] sm:$0xff]
        %v892 = vld [vmem:[%s824 + $0x19c] sm:$0xff]
        %v893 = vld [vmem:[%s824 + $0x1a4] sm:$0xff]
        %v894 = vld [vmem:[%s824 + $0x1ac] sm:$0xf]
        %v895 = vld [vmem:[%s824 + $0x1b0] sm:$0xff]
        %v896 = vld [vmem:[%s824 + $0x1b8] sm:$0xff]
        %v897 = vld [vmem:[%s824 + $0x1c0] sm:$0xff]
        %v898 = vld [vmem:[%s824 + $0x1c8] sm:$0xff]
        %v899 = vld [vmem:[%s824 + $0x1d0] sm:$0xf]
        %v900 = vld [vmem:[%s824 + $0x1d4] sm:$0xff]
        %v901 = vld [vmem:[%s824 + $0x1dc] sm:$0xff]
        %v902 = vld [vmem:[%s824 + $0x1e4] sm:$0xff]
        %v903 = vld [vmem:[%s824 + $0x1ec] sm:$0xff]
        %v904 = vld [vmem:[%s824 + $0x1f4] sm:$0xf]
        %v905 = vld [vmem:[%s824 + $0x1f8] sm:$0xff]
        %v906 = vld [vmem:[%s824 + $0x200] sm:$0xff]
        %v907 = vld [vmem:[%s824 + $0x208] sm:$0xff]
        %v908 = vld [vmem:[%s824 + $0x210] sm:$0xff]
        %v909 = vld [vmem:[%s824 + $0x218] sm:$0xf]
        %v910 = vld [vmem:[%s824 + $0x21c] sm:$0xff]
        %v911 = vld [vmem:[%s824 + $0x224] sm:$0xff]
        %v912 = vld [vmem:[%s824 + $0x22c] sm:$0xff]
        %v913 = vld [vmem:[%s824 + $0x234] sm:$0xff]
        %v914 = vld [vmem:[%s824 + $0x23c] sm:$0xf]
        %v915 = vld [vmem:[%s789] sm:$0xff]
        %v916 = vld [vmem:[%s789 + $0x8] sm:$0xff]
        %v917 = vld [vmem:[%s789 + $0x10] sm:$0xff]
        %v918 = vld [vmem:[%s789 + $0x18] sm:$0xff]
        %v919 = vld [vmem:[%s789 + $0x20] sm:$0xff]
        %v920 = vld [vmem:[%s789 + $0x28] sm:$0xff]
        %v921 = vld [vmem:[%s789 + $0x30] sm:$0xff]
        %v922 = vld [vmem:[%s789 + $0x38] sm:$0xff]
        %v923 = vld [vmem:[%s789 + $0x40] sm:$0xff]
        %v924 = vld [vmem:[%s789 + $0x48] sm:$0xff]
        %v925 = vld [vmem:[%s789 + $0x50] sm:$0xff]
        %v926 = vld [vmem:[%s789 + $0x58] sm:$0xff]
        %v927 = vld [vmem:[%s789 + $0x60] sm:$0xff]
        %v928 = vld [vmem:[%s789 + $0x68] sm:$0xff]
        %v929 = vld [vmem:[%s789 + $0x70] sm:$0xff]
        %v930 = vld [vmem:[%s789 + $0x78] sm:$0xff]
        %v931 = vld [vmem:[%s789 + $0x80] sm:$0xff]
        %v932 = vld [vmem:[%s789 + $0x88] sm:$0xff]
        %v933 = vld [vmem:[%s789 + $0x90] sm:$0xff]
        %v934 = vld [vmem:[%s789 + $0x98] sm:$0xff]
        %v935 = vld [vmem:[%s789 + $0xa0] sm:$0xff]
        %v936 = vld [vmem:[%s789 + $0xa8] sm:$0xff]
        %v937 = vld [vmem:[%s789 + $0xb0] sm:$0xff]
        %v938 = vld [vmem:[%s789 + $0xb8] sm:$0xff]
        %v939 = vld [vmem:[%s789 + $0xc0] sm:$0xff]
        %v940 = vld [vmem:[%s789 + $0xc8] sm:$0xff]
        %v941 = vld [vmem:[%s789 + $0xd0] sm:$0xff]
        %v942 = vld [vmem:[%s789 + $0xd8] sm:$0xff]
        %v943 = vld [vmem:[%s789 + $0xe0] sm:$0xff]
        %v944 = vld [vmem:[%s789 + $0xe8] sm:$0xff]
        %v945 = vld [vmem:[%s789 + $0xf0] sm:$0xff]
        %v946 = vld [vmem:[%s789 + $0xf8] sm:$0xff]
        %v947 = vld [vmem:[%s789 + $0x100] sm:$0xff]
        %v948 = vld [vmem:[%s789 + $0x108] sm:$0xff]
        %v949 = vld [vmem:[%s789 + $0x110] sm:$0xff]
        %v950 = vld [vmem:[%s789 + $0x118] sm:$0xff]
        %v951 = vld [vmem:[%s789 + $0x120] sm:$0xff]
        %v952 = vld [vmem:[%s789 + $0x128] sm:$0xff]
        %v953 = vld [vmem:[%s789 + $0x130] sm:$0xff]
        %v954 = vld [vmem:[%s789 + $0x138] sm:$0xff]
        %v955 = vld [vmem:[%s789 + $0x140] sm:$0xff]
        %v956 = vld [vmem:[%s789 + $0x148] sm:$0xff]
        %v957 = vld [vmem:[%s789 + $0x150] sm:$0xff]
        %v958 = vld [vmem:[%s789 + $0x158] sm:$0xff]
        %v959 = vld [vmem:[%s789 + $0x160] sm:$0xff]
        %v960 = vld [vmem:[%s789 + $0x168] sm:$0xff]
        %v961 = vld [vmem:[%s789 + $0x170] sm:$0xff]
        %v962 = vld [vmem:[%s789 + $0x178] sm:$0xff]
        %v963 = vld [vmem:[%s789 + $0x180] sm:$0xff]
        %v964 = vld [vmem:[%s789 + $0x188] sm:$0xff]
        %v965 = vld [vmem:[%s789 + $0x190] sm:$0xff]
        %v966 = vld [vmem:[%s789 + $0x198] sm:$0xff]
        %v967 = vld [vmem:[%s789 + $0x1a0] sm:$0xff]
        %v968 = vld [vmem:[%s789 + $0x1a8] sm:$0xff]
        %v969 = vld [vmem:[%s789 + $0x1b0] sm:$0xff]
        %v970 = vld [vmem:[%s789 + $0x1b8] sm:$0xff]
        %v971 = vld [vmem:[%s789 + $0x1c0] sm:$0xff]
        %v972 = vld [vmem:[%s789 + $0x1c8] sm:$0xff]
        %v973 = vld [vmem:[%s789 + $0x1d0] sm:$0xff]
        %v974 = vld [vmem:[%s789 + $0x1d8] sm:$0xff]
        %v975 = vld [vmem:[%s789 + $0x1e0] sm:$0xff]
        %v976 = vld [vmem:[%s789 + $0x1e8] sm:$0xff]
        %v977 = vld [vmem:[%s789 + $0x1f0] sm:$0xff]
        %v978 = vld [vmem:[%s789 + $0x1f8] sm:$0xff]
        %v979 = vld [vmem:[%s789 + $0x200] sm:$0xff]
        %v980 = vld [vmem:[%s789 + $0x208] sm:$0xff]
        %v981 = vld [vmem:[%s789 + $0x210] sm:$0xff]
        %v982 = vld [vmem:[%s789 + $0x218] sm:$0xff]
        %v983 = vld [vmem:[%s789 + $0x220] sm:$0xff]
        %v984 = vld [vmem:[%s789 + $0x228] sm:$0xff]
        %v985 = vld [vmem:[%s789 + $0x230] sm:$0xff]
        %v986 = vld [vmem:[%s789 + $0x238] sm:$0xff]
        %v987 = vld [vmem:[%s789 + $0x240] sm:$0xff]
        %v988 = vld [vmem:[%s789 + $0x248] sm:$0xff]
        %v989 = vld [vmem:[%s789 + $0x250] sm:$0xff]
        %v990 = vld [vmem:[%s789 + $0x258] sm:$0xff]
        %v991 = vld [vmem:[%s789 + $0x260] sm:$0xff]
        %v992 = vld [vmem:[%s789 + $0x268] sm:$0xff]
        %v993 = vld [vmem:[%s789 + $0x270] sm:$0xff]
        %v994 = vld [vmem:[%s789 + $0x278] sm:$0xff]
        %v995 = vld [vmem:[%s789 + $0x280] sm:$0xff]
        %v996 = vld [vmem:[%s789 + $0x288] sm:$0xff]
        %v997 = vld [vmem:[%s789 + $0x290] sm:$0xff]
        %v998 = vld [vmem:[%s789 + $0x298] sm:$0xff]
        %v999 = vld [vmem:[%s789 + $0x2a0] sm:$0xff]
        %v1000 = vld [vmem:[%s789 + $0x2a8] sm:$0xff]
        %v1001 = vld [vmem:[%s789 + $0x2b0] sm:$0xff]
        %v1002 = vld [vmem:[%s789 + $0x2b8] sm:$0xff]
        %v1003 = vld [vmem:[%s789 + $0x2c0] sm:$0xff]
        %v1004 = vld [vmem:[%s789 + $0x2c8] sm:$0xff]
        %v1005 = vld [vmem:[%s789 + $0x2d0] sm:$0xff]
        %v1006 = vld [vmem:[%s789 + $0x2d8] sm:$0xff]
        %v1007 = vld [vmem:[%s789 + $0x2e0] sm:$0xff]
        %v1008 = vld [vmem:[%s789 + $0x2e8] sm:$0xff]
        %v1009 = vld [vmem:[%s789 + $0x2f0] sm:$0xff]
        %v1010 = vld [vmem:[%s789 + $0x2f8] sm:$0xff]
        %v1011 = vld [vmem:[%s789 + $0x300] sm:$0xff]
        %v1012 = vld [vmem:[%s789 + $0x308] sm:$0xff]
        %v1013 = vld [vmem:[%s789 + $0x310] sm:$0xff]
        %v1014 = vld [vmem:[%s789 + $0x318] sm:$0xff]
        %v1015 = vld [vmem:[%s789 + $0x320] sm:$0xff]
        %v1016 = vld [vmem:[%s789 + $0x328] sm:$0xff]
        %v1017 = vld [vmem:[%s789 + $0x330] sm:$0xff]
        %v1018 = vld [vmem:[%s789 + $0x338] sm:$0xff]
        %v1019 = vld [vmem:[%s789 + $0x340] sm:$0xff]
        %v1020 = vld [vmem:[%s789 + $0x348] sm:$0xff]
        %v1021 = vld [vmem:[%s789 + $0x350] sm:$0xff]
        %v1022 = vld [vmem:[%s789 + $0x358] sm:$0xff]
        %v1023 = vld [vmem:[%s789 + $0x360] sm:$0xff]
        %v1024 = vld [vmem:[%s789 + $0x368] sm:$0xff]
        %v1025 = vld [vmem:[%s789 + $0x370] sm:$0xff]
        %v1026 = vld [vmem:[%s789 + $0x378] sm:$0xff]
        %v1027 = vld [vmem:[%s789 + $0x380] sm:$0xff]
        %v1028 = vld [vmem:[%s789 + $0x388] sm:$0xff]
        %v1029 = vld [vmem:[%s789 + $0x390] sm:$0xff]
        %v1030 = vld [vmem:[%s789 + $0x398] sm:$0xff]
        %v1031 = vld [vmem:[%s789 + $0x3a0] sm:$0xff]
        %v1032 = vld [vmem:[%s789 + $0x3a8] sm:$0xff]
        %v1033 = vld [vmem:[%s789 + $0x3b0] sm:$0xff]
        %v1034 = vld [vmem:[%s789 + $0x3b8] sm:$0xff]
        %v1035 = vld [vmem:[%s789 + $0x3c0] sm:$0xff]
        %v1036 = vld [vmem:[%s789 + $0x3c8] sm:$0xff]
        %v1037 = vld [vmem:[%s789 + $0x3d0] sm:$0xff]
        %v1038 = vld [vmem:[%s789 + $0x3d8] sm:$0xff]
        %v1039 = vld [vmem:[%s789 + $0x3e0] sm:$0xff]
        %v1040 = vld [vmem:[%s789 + $0x3e8] sm:$0xff]
        %v1041 = vld [vmem:[%s789 + $0x3f0] sm:$0xff]
        %v1042 = vld [vmem:[%s789 + $0x3f8] sm:$0xff]
        %v1043 = vld [vmem:[%s789 + $0x400] sm:$0xff]
        %v1044 = vld [vmem:[%s789 + $0x408] sm:$0xff]
        %v1045 = vld [vmem:[%s789 + $0x410] sm:$0xff]
        %v1046 = vld [vmem:[%s789 + $0x418] sm:$0xff]
        %v1047 = vld [vmem:[%s789 + $0x420] sm:$0xff]
        %v1048 = vld [vmem:[%s789 + $0x428] sm:$0xff]
        %v1049 = vld [vmem:[%s789 + $0x430] sm:$0xff]
        %v1050 = vld [vmem:[%s789 + $0x438] sm:$0xff]
        %v1051 = vld [vmem:[%s789 + $0x440] sm:$0xff]
        %v1052 = vld [vmem:[%s789 + $0x448] sm:$0xff]
        %v1053 = vld [vmem:[%s789 + $0x450] sm:$0xff]
        %v1054 = vld [vmem:[%s789 + $0x458] sm:$0xff]
        %v1055 = vld [vmem:[%s789 + $0x460] sm:$0xff]
        %v1056 = vld [vmem:[%s789 + $0x468] sm:$0xff]
        %v1057 = vld [vmem:[%s789 + $0x470] sm:$0xff]
        %v1058 = vld [vmem:[%s789 + $0x478] sm:$0xff]
        %v1059 = vld [vmem:[%s830] sm:$0x3]
        %v1061 = vlaneseq
        %v1062 = vshrl.u32 %v1061, 7
        %v1063 = vsub.s32 0, %v1062
        %v1064 = vrot.slane %v1059, %v1063
        %v1065 = vlaneseq
        %v1066 = vshrl.u32 %v1065, 7
        %v1067 = vsub.s32 1, %v1066
        %v1068 = vrot.slane %v1059, %v1067
        %v1151 = vunpack.c.l.b16 %v835
        %v1152 = vunpack.c.h.b16 %v835
        %v1153 = vunpack.c.l.b16 %v836
        %v1154 = vunpack.c.h.b16 %v836
        %v1155 = vunpack.c.l.b16 %v837
        %v1156 = vunpack.c.h.b16 %v837
        %v1157 = vunpack.c.l.b16 %v838
        %v1158 = vunpack.c.h.b16 %v838
        %v1159 = vunpack.c.l.b16 %v839
        %v1160 = vunpack.c.l.b16 %v840
        %v1161 = vunpack.c.h.b16 %v840
        %v1162 = vunpack.c.l.b16 %v841
        %v1163 = vunpack.c.h.b16 %v841
        %v1164 = vunpack.c.l.b16 %v842
        %v1165 = vunpack.c.h.b16 %v842
        %v1166 = vunpack.c.l.b16 %v843
        %v1167 = vunpack.c.h.b16 %v843
        %v1168 = vunpack.c.l.b16 %v844
        %v1169 = vunpack.c.l.b16 %v845
        %v1170 = vunpack.c.h.b16 %v845
        %v1171 = vunpack.c.l.b16 %v846
        %v1172 = vunpack.c.h.b16 %v846
        %v1173 = vunpack.c.l.b16 %v847
        %v1174 = vunpack.c.h.b16 %v847
        %v1175 = vunpack.c.l.b16 %v848
        %v1176 = vunpack.c.h.b16 %v848
        %v1177 = vunpack.c.l.b16 %v849
        %v1178 = vunpack.c.l.b16 %v850
        %v1179 = vunpack.c.h.b16 %v850
        %v1180 = vunpack.c.l.b16 %v851
        %v1181 = vunpack.c.h.b16 %v851
        %v1182 = vunpack.c.l.b16 %v852
        %v1183 = vunpack.c.h.b16 %v852
        %v1184 = vunpack.c.l.b16 %v853
        %v1185 = vunpack.c.h.b16 %v853
        %v1186 = vunpack.c.l.b16 %v854
        %v1187 = vunpack.c.l.b16 %v855
        %v1188 = vunpack.c.h.b16 %v855
        %v1189 = vunpack.c.l.b16 %v856
        %v1190 = vunpack.c.h.b16 %v856
        %v1191 = vunpack.c.l.b16 %v857
        %v1192 = vunpack.c.h.b16 %v857
        %v1193 = vunpack.c.l.b16 %v858
        %v1194 = vunpack.c.h.b16 %v858
        %v1195 = vunpack.c.l.b16 %v859
        %v1196 = vunpack.c.l.b16 %v860
        %v1197 = vunpack.c.h.b16 %v860
        %v1198 = vunpack.c.l.b16 %v861
        %v1199 = vunpack.c.h.b16 %v861
        %v1200 = vunpack.c.l.b16 %v862
        %v1201 = vunpack.c.h.b16 %v862
        %v1202 = vunpack.c.l.b16 %v863
        %v1203 = vunpack.c.h.b16 %v863
        %v1204 = vunpack.c.l.b16 %v864
        %v1205 = vunpack.c.l.b16 %v865
        %v1206 = vunpack.c.h.b16 %v865
        %v1207 = vunpack.c.l.b16 %v866
        %v1208 = vunpack.c.h.b16 %v866
        %v1209 = vunpack.c.l.b16 %v867
        %v1210 = vunpack.c.h.b16 %v867
        %v1211 = vunpack.c.l.b16 %v868
        %v1212 = vunpack.c.h.b16 %v868
        %v1213 = vunpack.c.l.b16 %v869
        %v1214 = vunpack.c.l.b16 %v870
        %v1215 = vunpack.c.h.b16 %v870
        %v1216 = vunpack.c.l.b16 %v871
        %v1217 = vunpack.c.h.b16 %v871
        %v1218 = vunpack.c.l.b16 %v872
        %v1219 = vunpack.c.h.b16 %v872
        %v1220 = vunpack.c.l.b16 %v873
        %v1221 = vunpack.c.h.b16 %v873
        %v1222 = vunpack.c.l.b16 %v874
        %v1223 = vunpack.c.l.b16 %v875
        %v1224 = vunpack.c.h.b16 %v875
        %v1225 = vunpack.c.l.b16 %v876
        %v1226 = vunpack.c.h.b16 %v876
        %v1227 = vunpack.c.l.b16 %v877
        %v1228 = vunpack.c.h.b16 %v877
        %v1229 = vunpack.c.l.b16 %v878
        %v1230 = vunpack.c.h.b16 %v878
        %v1231 = vunpack.c.l.b16 %v879
        %v1232 = vunpack.c.l.b16 %v880
        %v1233 = vunpack.c.h.b16 %v880
        %v1234 = vunpack.c.l.b16 %v881
        %v1235 = vunpack.c.h.b16 %v881
        %v1236 = vunpack.c.l.b16 %v882
        %v1237 = vunpack.c.h.b16 %v882
        %v1238 = vunpack.c.l.b16 %v883
        %v1239 = vunpack.c.h.b16 %v883
        %v1240 = vunpack.c.l.b16 %v884
        %v1241 = vunpack.c.l.b16 %v885
        %v1242 = vunpack.c.h.b16 %v885
        %v1243 = vunpack.c.l.b16 %v886
        %v1244 = vunpack.c.h.b16 %v886
        %v1245 = vunpack.c.l.b16 %v887
        %v1246 = vunpack.c.h.b16 %v887
        %v1247 = vunpack.c.l.b16 %v888
        %v1248 = vunpack.c.h.b16 %v888
        %v1249 = vunpack.c.l.b16 %v889
        %v1250 = vunpack.c.l.b16 %v890
        %v1251 = vunpack.c.h.b16 %v890
        %v1252 = vunpack.c.l.b16 %v891
        %v1253 = vunpack.c.h.b16 %v891
        %v1254 = vunpack.c.l.b16 %v892
        %v1255 = vunpack.c.h.b16 %v892
        %v1256 = vunpack.c.l.b16 %v893
        %v1257 = vunpack.c.h.b16 %v893
        %v1258 = vunpack.c.l.b16 %v894
        %v1259 = vunpack.c.l.b16 %v895
        %v1260 = vunpack.c.h.b16 %v895
        %v1261 = vunpack.c.l.b16 %v896
        %v1262 = vunpack.c.h.b16 %v896
        %v1263 = vunpack.c.l.b16 %v897
        %v1264 = vunpack.c.h.b16 %v897
        %v1265 = vunpack.c.l.b16 %v898
        %v1266 = vunpack.c.h.b16 %v898
        %v1267 = vunpack.c.l.b16 %v899
        %v1268 = vunpack.c.l.b16 %v900
        %v1269 = vunpack.c.h.b16 %v900
        %v1270 = vunpack.c.l.b16 %v901
        %v1271 = vunpack.c.h.b16 %v901
        %v1272 = vunpack.c.l.b16 %v902
        %v1273 = vunpack.c.h.b16 %v902
        %v1274 = vunpack.c.l.b16 %v903
        %v1275 = vunpack.c.h.b16 %v903
        %v1276 = vunpack.c.l.b16 %v904
        %v1277 = vunpack.c.l.b16 %v905
        %v1278 = vunpack.c.h.b16 %v905
        %v1279 = vunpack.c.l.b16 %v906
        %v1280 = vunpack.c.h.b16 %v906
        %v1281 = vunpack.c.l.b16 %v907
        %v1282 = vunpack.c.h.b16 %v907
        %v1283 = vunpack.c.l.b16 %v908
        %v1284 = vunpack.c.h.b16 %v908
        %v1285 = vunpack.c.l.b16 %v909
        %v1286 = vunpack.c.l.b16 %v910
        %v1287 = vunpack.c.h.b16 %v910
        %v1288 = vunpack.c.l.b16 %v911
        %v1289 = vunpack.c.h.b16 %v911
        %v1290 = vunpack.c.l.b16 %v912
        %v1291 = vunpack.c.h.b16 %v912
        %v1292 = vunpack.c.l.b16 %v913
        %v1293 = vunpack.c.h.b16 %v913
        %v1294 = vunpack.c.l.b16 %v914
        %v1295 = vpack.c.b16 %v1160, %v1151
        %v1296 = vpack.c.b16 %v1161, %v1152
        %v1297 = vpack.c.b16 %v1162, %v1153
        %v1298 = vpack.c.b16 %v1163, %v1154
        %v1299 = vpack.c.b16 %v1164, %v1155
        %v1300 = vpack.c.b16 %v1165, %v1156
        %v1301 = vpack.c.b16 %v1166, %v1157
        %v1302 = vpack.c.b16 %v1167, %v1158
        %v1303 = vpack.c.b16 %v1168, %v1159
        %v1304 = vpack.c.b16 %v1178, %v1169
        %v1305 = vpack.c.b16 %v1179, %v1170
        %v1306 = vpack.c.b16 %v1180, %v1171
        %v1307 = vpack.c.b16 %v1181, %v1172
        %v1308 = vpack.c.b16 %v1182, %v1173
        %v1309 = vpack.c.b16 %v1183, %v1174
        %v1310 = vpack.c.b16 %v1184, %v1175
        %v1311 = vpack.c.b16 %v1185, %v1176
        %v1312 = vpack.c.b16 %v1186, %v1177
        %v1313 = vpack.c.b16 %v1196, %v1187
        %v1314 = vpack.c.b16 %v1197, %v1188
        %v1315 = vpack.c.b16 %v1198, %v1189
        %v1316 = vpack.c.b16 %v1199, %v1190
        %v1317 = vpack.c.b16 %v1200, %v1191
        %v1318 = vpack.c.b16 %v1201, %v1192
        %v1319 = vpack.c.b16 %v1202, %v1193
        %v1320 = vpack.c.b16 %v1203, %v1194
        %v1321 = vpack.c.b16 %v1204, %v1195
        %v1322 = vpack.c.b16 %v1214, %v1205
        %v1323 = vpack.c.b16 %v1215, %v1206
        %v1324 = vpack.c.b16 %v1216, %v1207
        %v1325 = vpack.c.b16 %v1217, %v1208
        %v1326 = vpack.c.b16 %v1218, %v1209
        %v1327 = vpack.c.b16 %v1219, %v1210
        %v1328 = vpack.c.b16 %v1220, %v1211
        %v1329 = vpack.c.b16 %v1221, %v1212
        %v1330 = vpack.c.b16 %v1222, %v1213
        %v1331 = vpack.c.b16 %v1232, %v1223
        %v1332 = vpack.c.b16 %v1233, %v1224
        %v1333 = vpack.c.b16 %v1234, %v1225
        %v1334 = vpack.c.b16 %v1235, %v1226
        %v1335 = vpack.c.b16 %v1236, %v1227
        %v1336 = vpack.c.b16 %v1237, %v1228
        %v1337 = vpack.c.b16 %v1238, %v1229
        %v1338 = vpack.c.b16 %v1239, %v1230
        %v1339 = vpack.c.b16 %v1240, %v1231
        %v1340 = vpack.c.b16 %v1250, %v1241
        %v1341 = vpack.c.b16 %v1251, %v1242
        %v1342 = vpack.c.b16 %v1252, %v1243
        %v1343 = vpack.c.b16 %v1253, %v1244
        %v1344 = vpack.c.b16 %v1254, %v1245
        %v1345 = vpack.c.b16 %v1255, %v1246
        %v1346 = vpack.c.b16 %v1256, %v1247
        %v1347 = vpack.c.b16 %v1257, %v1248
        %v1348 = vpack.c.b16 %v1258, %v1249
        %v1349 = vpack.c.b16 %v1268, %v1259
        %v1350 = vpack.c.b16 %v1269, %v1260
        %v1351 = vpack.c.b16 %v1270, %v1261
        %v1352 = vpack.c.b16 %v1271, %v1262
        %v1353 = vpack.c.b16 %v1272, %v1263
        %v1354 = vpack.c.b16 %v1273, %v1264
        %v1355 = vpack.c.b16 %v1274, %v1265
        %v1356 = vpack.c.b16 %v1275, %v1266
        %v1357 = vpack.c.b16 %v1276, %v1267
        %v1358 = vpack.c.b16 %v1286, %v1277
        %v1359 = vpack.c.b16 %v1287, %v1278
        %v1360 = vpack.c.b16 %v1288, %v1279
        %v1361 = vpack.c.b16 %v1289, %v1280
        %v1362 = vpack.c.b16 %v1290, %v1281
        %v1363 = vpack.c.b16 %v1291, %v1282
        %v1364 = vpack.c.b16 %v1292, %v1283
        %v1365 = vpack.c.b16 %v1293, %v1284
        %v1366 = vpack.c.b16 %v1294, %v1285
        %v1583 = vunpack.c.l.b16 %v915
        %v1584 = vunpack.c.h.b16 %v915
        %v1585 = vunpack.c.l.b16 %v916
        %v1586 = vunpack.c.h.b16 %v916
        %v1587 = vunpack.c.l.b16 %v917
        %v1588 = vunpack.c.h.b16 %v917
        %v1589 = vunpack.c.l.b16 %v918
        %v1590 = vunpack.c.h.b16 %v918
        %v1591 = vunpack.c.l.b16 %v919
        %v1592 = vunpack.c.h.b16 %v919
        %v1593 = vunpack.c.l.b16 %v920
        %v1594 = vunpack.c.h.b16 %v920
        %v1595 = vunpack.c.l.b16 %v921
        %v1596 = vunpack.c.h.b16 %v921
        %v1597 = vunpack.c.l.b16 %v922
        %v1598 = vunpack.c.h.b16 %v922
        %v1599 = vunpack.c.l.b16 %v923
        %v1600 = vunpack.c.h.b16 %v923
        %v1601 = vunpack.c.l.b16 %v924
        %v1602 = vunpack.c.h.b16 %v924
        %v1603 = vunpack.c.l.b16 %v925
        %v1604 = vunpack.c.h.b16 %v925
        %v1605 = vunpack.c.l.b16 %v926
        %v1606 = vunpack.c.h.b16 %v926
        %v1607 = vunpack.c.l.b16 %v927
        %v1608 = vunpack.c.h.b16 %v927
        %v1609 = vunpack.c.l.b16 %v928
        %v1610 = vunpack.c.h.b16 %v928
        %v1611 = vunpack.c.l.b16 %v929
        %v1612 = vunpack.c.h.b16 %v929
        %v1613 = vunpack.c.l.b16 %v930
        %v1614 = vunpack.c.h.b16 %v930
        %v1615 = vunpack.c.l.b16 %v931
        %v1616 = vunpack.c.h.b16 %v931
        %v1617 = vunpack.c.l.b16 %v932
        %v1618 = vunpack.c.h.b16 %v932
        %v1619 = vunpack.c.l.b16 %v933
        %v1620 = vunpack.c.h.b16 %v933
        %v1621 = vunpack.c.l.b16 %v934
        %v1622 = vunpack.c.h.b16 %v934
        %v1623 = vunpack.c.l.b16 %v935
        %v1624 = vunpack.c.h.b16 %v935
        %v1625 = vunpack.c.l.b16 %v936
        %v1626 = vunpack.c.h.b16 %v936
        %v1627 = vunpack.c.l.b16 %v937
        %v1628 = vunpack.c.h.b16 %v937
        %v1629 = vunpack.c.l.b16 %v938
        %v1630 = vunpack.c.h.b16 %v938
        %v1631 = vunpack.c.l.b16 %v939
        %v1632 = vunpack.c.h.b16 %v939
        %v1633 = vunpack.c.l.b16 %v940
        %v1634 = vunpack.c.h.b16 %v940
        %v1635 = vunpack.c.l.b16 %v941
        %v1636 = vunpack.c.h.b16 %v941
        %v1637 = vunpack.c.l.b16 %v942
        %v1638 = vunpack.c.h.b16 %v942
        %v1639 = vunpack.c.l.b16 %v943
        %v1640 = vunpack.c.h.b16 %v943
        %v1641 = vunpack.c.l.b16 %v944
        %v1642 = vunpack.c.h.b16 %v944
        %v1643 = vunpack.c.l.b16 %v945
        %v1644 = vunpack.c.h.b16 %v945
        %v1645 = vunpack.c.l.b16 %v946
        %v1646 = vunpack.c.h.b16 %v946
        %v1647 = vunpack.c.l.b16 %v947
        %v1648 = vunpack.c.h.b16 %v947
        %v1649 = vunpack.c.l.b16 %v948
        %v1650 = vunpack.c.h.b16 %v948
        %v1651 = vunpack.c.l.b16 %v949
        %v1652 = vunpack.c.h.b16 %v949
        %v1653 = vunpack.c.l.b16 %v950
        %v1654 = vunpack.c.h.b16 %v950
        %v1655 = vunpack.c.l.b16 %v951
        %v1656 = vunpack.c.h.b16 %v951
        %v1657 = vunpack.c.l.b16 %v952
        %v1658 = vunpack.c.h.b16 %v952
        %v1659 = vunpack.c.l.b16 %v953
        %v1660 = vunpack.c.h.b16 %v953
        %v1661 = vunpack.c.l.b16 %v954
        %v1662 = vunpack.c.h.b16 %v954
        %v1663 = vunpack.c.l.b16 %v955
        %v1664 = vunpack.c.h.b16 %v955
        %v1665 = vunpack.c.l.b16 %v956
        %v1666 = vunpack.c.h.b16 %v956
        %v1667 = vunpack.c.l.b16 %v957
        %v1668 = vunpack.c.h.b16 %v957
        %v1669 = vunpack.c.l.b16 %v958
        %v1670 = vunpack.c.h.b16 %v958
        %v1671 = vunpack.c.l.b16 %v959
        %v1672 = vunpack.c.h.b16 %v959
        %v1673 = vunpack.c.l.b16 %v960
        %v1674 = vunpack.c.h.b16 %v960
        %v1675 = vunpack.c.l.b16 %v961
        %v1676 = vunpack.c.h.b16 %v961
        %v1677 = vunpack.c.l.b16 %v962
        %v1678 = vunpack.c.h.b16 %v962
        %v1679 = vunpack.c.l.b16 %v963
        %v1680 = vunpack.c.h.b16 %v963
        %v1681 = vunpack.c.l.b16 %v964
        %v1682 = vunpack.c.h.b16 %v964
        %v1683 = vunpack.c.l.b16 %v965
        %v1684 = vunpack.c.h.b16 %v965
        %v1685 = vunpack.c.l.b16 %v966
        %v1686 = vunpack.c.h.b16 %v966
        %v1687 = vunpack.c.l.b16 %v967
        %v1688 = vunpack.c.h.b16 %v967
        %v1689 = vunpack.c.l.b16 %v968
        %v1690 = vunpack.c.h.b16 %v968
        %v1691 = vunpack.c.l.b16 %v969
        %v1692 = vunpack.c.h.b16 %v969
        %v1693 = vunpack.c.l.b16 %v970
        %v1694 = vunpack.c.h.b16 %v970
        %v1695 = vunpack.c.l.b16 %v971
        %v1696 = vunpack.c.h.b16 %v971
        %v1697 = vunpack.c.l.b16 %v972
        %v1698 = vunpack.c.h.b16 %v972
        %v1699 = vunpack.c.l.b16 %v973
        %v1700 = vunpack.c.h.b16 %v973
        %v1701 = vunpack.c.l.b16 %v974
        %v1702 = vunpack.c.h.b16 %v974
        %v1703 = vunpack.c.l.b16 %v975
        %v1704 = vunpack.c.h.b16 %v975
        %v1705 = vunpack.c.l.b16 %v976
        %v1706 = vunpack.c.h.b16 %v976
        %v1707 = vunpack.c.l.b16 %v977
        %v1708 = vunpack.c.h.b16 %v977
        %v1709 = vunpack.c.l.b16 %v978
        %v1710 = vunpack.c.h.b16 %v978
        %v1711 = vunpack.c.l.b16 %v979
        %v1712 = vunpack.c.h.b16 %v979
        %v1713 = vunpack.c.l.b16 %v980
        %v1714 = vunpack.c.h.b16 %v980
        %v1715 = vunpack.c.l.b16 %v981
        %v1716 = vunpack.c.h.b16 %v981
        %v1717 = vunpack.c.l.b16 %v982
        %v1718 = vunpack.c.h.b16 %v982
        %v1719 = vunpack.c.l.b16 %v983
        %v1720 = vunpack.c.h.b16 %v983
        %v1721 = vunpack.c.l.b16 %v984
        %v1722 = vunpack.c.h.b16 %v984
        %v1723 = vunpack.c.l.b16 %v985
        %v1724 = vunpack.c.h.b16 %v985
        %v1725 = vunpack.c.l.b16 %v986
        %v1726 = vunpack.c.h.b16 %v986
        %v1727 = vunpack.c.l.b16 %v987
        %v1728 = vunpack.c.h.b16 %v987
        %v1729 = vunpack.c.l.b16 %v988
        %v1730 = vunpack.c.h.b16 %v988
        %v1731 = vunpack.c.l.b16 %v989
        %v1732 = vunpack.c.h.b16 %v989
        %v1733 = vunpack.c.l.b16 %v990
        %v1734 = vunpack.c.h.b16 %v990
        %v1735 = vunpack.c.l.b16 %v991
        %v1736 = vunpack.c.h.b16 %v991
        %v1737 = vunpack.c.l.b16 %v992
        %v1738 = vunpack.c.h.b16 %v992
        %v1739 = vunpack.c.l.b16 %v993
        %v1740 = vunpack.c.h.b16 %v993
        %v1741 = vunpack.c.l.b16 %v994
        %v1742 = vunpack.c.h.b16 %v994
        %v1743 = vunpack.c.l.b16 %v995
        %v1744 = vunpack.c.h.b16 %v995
        %v1745 = vunpack.c.l.b16 %v996
        %v1746 = vunpack.c.h.b16 %v996
        %v1747 = vunpack.c.l.b16 %v997
        %v1748 = vunpack.c.h.b16 %v997
        %v1749 = vunpack.c.l.b16 %v998
        %v1750 = vunpack.c.h.b16 %v998
        %v1751 = vunpack.c.l.b16 %v999
        %v1752 = vunpack.c.h.b16 %v999
        %v1753 = vunpack.c.l.b16 %v1000
        %v1754 = vunpack.c.h.b16 %v1000
        %v1755 = vunpack.c.l.b16 %v1001
        %v1756 = vunpack.c.h.b16 %v1001
        %v1757 = vunpack.c.l.b16 %v1002
        %v1758 = vunpack.c.h.b16 %v1002
        %v1759 = vunpack.c.l.b16 %v1003
        %v1760 = vunpack.c.h.b16 %v1003
        %v1761 = vunpack.c.l.b16 %v1004
        %v1762 = vunpack.c.h.b16 %v1004
        %v1763 = vunpack.c.l.b16 %v1005
        %v1764 = vunpack.c.h.b16 %v1005
        %v1765 = vunpack.c.l.b16 %v1006
        %v1766 = vunpack.c.h.b16 %v1006
        %v1767 = vunpack.c.l.b16 %v1007
        %v1768 = vunpack.c.h.b16 %v1007
        %v1769 = vunpack.c.l.b16 %v1008
        %v1770 = vunpack.c.h.b16 %v1008
        %v1771 = vunpack.c.l.b16 %v1009
        %v1772 = vunpack.c.h.b16 %v1009
        %v1773 = vunpack.c.l.b16 %v1010
        %v1774 = vunpack.c.h.b16 %v1010
        %v1775 = vunpack.c.l.b16 %v1011
        %v1776 = vunpack.c.h.b16 %v1011
        %v1777 = vunpack.c.l.b16 %v1012
        %v1778 = vunpack.c.h.b16 %v1012
        %v1779 = vunpack.c.l.b16 %v1013
        %v1780 = vunpack.c.h.b16 %v1013
        %v1781 = vunpack.c.l.b16 %v1014
        %v1782 = vunpack.c.h.b16 %v1014
        %v1783 = vunpack.c.l.b16 %v1015
        %v1784 = vunpack.c.h.b16 %v1015
        %v1785 = vunpack.c.l.b16 %v1016
        %v1786 = vunpack.c.h.b16 %v1016
        %v1787 = vunpack.c.l.b16 %v1017
        %v1788 = vunpack.c.h.b16 %v1017
        %v1789 = vunpack.c.l.b16 %v1018
        %v1790 = vunpack.c.h.b16 %v1018
        %v1791 = vunpack.c.l.b16 %v1019
        %v1792 = vunpack.c.h.b16 %v1019
        %v1793 = vunpack.c.l.b16 %v1020
        %v1794 = vunpack.c.h.b16 %v1020
        %v1795 = vunpack.c.l.b16 %v1021
        %v1796 = vunpack.c.h.b16 %v1021
        %v1797 = vunpack.c.l.b16 %v1022
        %v1798 = vunpack.c.h.b16 %v1022
        %v1799 = vunpack.c.l.b16 %v1023
        %v1800 = vunpack.c.h.b16 %v1023
        %v1801 = vunpack.c.l.b16 %v1024
        %v1802 = vunpack.c.h.b16 %v1024
        %v1803 = vunpack.c.l.b16 %v1025
        %v1804 = vunpack.c.h.b16 %v1025
        %v1805 = vunpack.c.l.b16 %v1026
        %v1806 = vunpack.c.h.b16 %v1026
        %v1807 = vunpack.c.l.b16 %v1027
        %v1808 = vunpack.c.h.b16 %v1027
        %v1809 = vunpack.c.l.b16 %v1028
        %v1810 = vunpack.c.h.b16 %v1028
        %v1811 = vunpack.c.l.b16 %v1029
        %v1812 = vunpack.c.h.b16 %v1029
        %v1813 = vunpack.c.l.b16 %v1030
        %v1814 = vunpack.c.h.b16 %v1030
        %v1815 = vunpack.c.l.b16 %v1031
        %v1816 = vunpack.c.h.b16 %v1031
        %v1817 = vunpack.c.l.b16 %v1032
        %v1818 = vunpack.c.h.b16 %v1032
        %v1819 = vunpack.c.l.b16 %v1033
        %v1820 = vunpack.c.h.b16 %v1033
        %v1821 = vunpack.c.l.b16 %v1034
        %v1822 = vunpack.c.h.b16 %v1034
        %v1823 = vunpack.c.l.b16 %v1035
        %v1824 = vunpack.c.h.b16 %v1035
        %v1825 = vunpack.c.l.b16 %v1036
        %v1826 = vunpack.c.h.b16 %v1036
        %v1827 = vunpack.c.l.b16 %v1037
        %v1828 = vunpack.c.h.b16 %v1037
        %v1829 = vunpack.c.l.b16 %v1038
        %v1830 = vunpack.c.h.b16 %v1038
        %v1831 = vunpack.c.l.b16 %v1039
        %v1832 = vunpack.c.h.b16 %v1039
        %v1833 = vunpack.c.l.b16 %v1040
        %v1834 = vunpack.c.h.b16 %v1040
        %v1835 = vunpack.c.l.b16 %v1041
        %v1836 = vunpack.c.h.b16 %v1041
        %v1837 = vunpack.c.l.b16 %v1042
        %v1838 = vunpack.c.h.b16 %v1042
        %v1839 = vunpack.c.l.b16 %v1043
        %v1840 = vunpack.c.h.b16 %v1043
        %v1841 = vunpack.c.l.b16 %v1044
        %v1842 = vunpack.c.h.b16 %v1044
        %v1843 = vunpack.c.l.b16 %v1045
        %v1844 = vunpack.c.h.b16 %v1045
        %v1845 = vunpack.c.l.b16 %v1046
        %v1846 = vunpack.c.h.b16 %v1046
        %v1847 = vunpack.c.l.b16 %v1047
        %v1848 = vunpack.c.h.b16 %v1047
        %v1849 = vunpack.c.l.b16 %v1048
        %v1850 = vunpack.c.h.b16 %v1048
        %v1851 = vunpack.c.l.b16 %v1049
        %v1852 = vunpack.c.h.b16 %v1049
        %v1853 = vunpack.c.l.b16 %v1050
        %v1854 = vunpack.c.h.b16 %v1050
        %v1855 = vunpack.c.l.b16 %v1051
        %v1856 = vunpack.c.h.b16 %v1051
        %v1857 = vunpack.c.l.b16 %v1052
        %v1858 = vunpack.c.h.b16 %v1052
        %v1859 = vunpack.c.l.b16 %v1053
        %v1860 = vunpack.c.h.b16 %v1053
        %v1861 = vunpack.c.l.b16 %v1054
        %v1862 = vunpack.c.h.b16 %v1054
        %v1863 = vunpack.c.l.b16 %v1055
        %v1864 = vunpack.c.h.b16 %v1055
        %v1865 = vunpack.c.l.b16 %v1056
        %v1866 = vunpack.c.h.b16 %v1056
        %v1867 = vunpack.c.l.b16 %v1057
        %v1868 = vunpack.c.h.b16 %v1057
        %v1869 = vunpack.c.l.b16 %v1058
        %v1870 = vunpack.c.h.b16 %v1058
        %v1871 = vpack.c.b16 %v1585, %v1583
        %v1872 = vpack.c.b16 %v1586, %v1584
        %v1873 = vpack.c.b16 %v1589, %v1587
        %v1874 = vpack.c.b16 %v1590, %v1588
        %v1875 = vpack.c.b16 %v1593, %v1591
        %v1876 = vpack.c.b16 %v1594, %v1592
        %v1877 = vpack.c.b16 %v1597, %v1595
        %v1878 = vpack.c.b16 %v1598, %v1596
        %v1879 = vpack.c.b16 %v1601, %v1599
        %v1880 = vpack.c.b16 %v1602, %v1600
        %v1881 = vpack.c.b16 %v1605, %v1603
        %v1882 = vpack.c.b16 %v1606, %v1604
        %v1883 = vpack.c.b16 %v1609, %v1607
        %v1884 = vpack.c.b16 %v1610, %v1608
        %v1885 = vpack.c.b16 %v1613, %v1611
        %v1886 = vpack.c.b16 %v1614, %v1612
        %v1887 = vpack.c.b16 %v1617, %v1615
        %v1888 = vpack.c.b16 %v1618, %v1616
        %v1889 = vpack.c.b16 %v1621, %v1619
        %v1890 = vpack.c.b16 %v1622, %v1620
        %v1891 = vpack.c.b16 %v1625, %v1623
        %v1892 = vpack.c.b16 %v1626, %v1624
        %v1893 = vpack.c.b16 %v1629, %v1627
        %v1894 = vpack.c.b16 %v1630, %v1628
        %v1895 = vpack.c.b16 %v1633, %v1631
        %v1896 = vpack.c.b16 %v1634, %v1632
        %v1897 = vpack.c.b16 %v1637, %v1635
        %v1898 = vpack.c.b16 %v1638, %v1636
        %v1899 = vpack.c.b16 %v1641, %v1639
        %v1900 = vpack.c.b16 %v1642, %v1640
        %v1901 = vpack.c.b16 %v1645, %v1643
        %v1902 = vpack.c.b16 %v1646, %v1644
        %v1903 = vpack.c.b16 %v1649, %v1647
        %v1904 = vpack.c.b16 %v1650, %v1648
        %v1905 = vpack.c.b16 %v1653, %v1651
        %v1906 = vpack.c.b16 %v1654, %v1652
        %v1907 = vpack.c.b16 %v1657, %v1655
        %v1908 = vpack.c.b16 %v1658, %v1656
        %v1909 = vpack.c.b16 %v1661, %v1659
        %v1910 = vpack.c.b16 %v1662, %v1660
        %v1911 = vpack.c.b16 %v1665, %v1663
        %v1912 = vpack.c.b16 %v1666, %v1664
        %v1913 = vpack.c.b16 %v1669, %v1667
        %v1914 = vpack.c.b16 %v1670, %v1668
        %v1915 = vpack.c.b16 %v1673, %v1671
        %v1916 = vpack.c.b16 %v1674, %v1672
        %v1917 = vpack.c.b16 %v1677, %v1675
        %v1918 = vpack.c.b16 %v1678, %v1676
        %v1919 = vpack.c.b16 %v1681, %v1679
        %v1920 = vpack.c.b16 %v1682, %v1680
        %v1921 = vpack.c.b16 %v1685, %v1683
        %v1922 = vpack.c.b16 %v1686, %v1684
        %v1923 = vpack.c.b16 %v1689, %v1687
        %v1924 = vpack.c.b16 %v1690, %v1688
        %v1925 = vpack.c.b16 %v1693, %v1691
        %v1926 = vpack.c.b16 %v1694, %v1692
        %v1927 = vpack.c.b16 %v1697, %v1695
        %v1928 = vpack.c.b16 %v1698, %v1696
        %v1929 = vpack.c.b16 %v1701, %v1699
        %v1930 = vpack.c.b16 %v1702, %v1700
        %v1931 = vpack.c.b16 %v1705, %v1703
        %v1932 = vpack.c.b16 %v1706, %v1704
        %v1933 = vpack.c.b16 %v1709, %v1707
        %v1934 = vpack.c.b16 %v1710, %v1708
        %v1935 = vpack.c.b16 %v1713, %v1711
        %v1936 = vpack.c.b16 %v1714, %v1712
        %v1937 = vpack.c.b16 %v1717, %v1715
        %v1938 = vpack.c.b16 %v1718, %v1716
        %v1939 = vpack.c.b16 %v1721, %v1719
        %v1940 = vpack.c.b16 %v1722, %v1720
        %v1941 = vpack.c.b16 %v1725, %v1723
        %v1942 = vpack.c.b16 %v1726, %v1724
        %v1943 = vpack.c.b16 %v1729, %v1727
        %v1944 = vpack.c.b16 %v1730, %v1728
        %v1945 = vpack.c.b16 %v1733, %v1731
        %v1946 = vpack.c.b16 %v1734, %v1732
        %v1947 = vpack.c.b16 %v1737, %v1735
        %v1948 = vpack.c.b16 %v1738, %v1736
        %v1949 = vpack.c.b16 %v1741, %v1739
        %v1950 = vpack.c.b16 %v1742, %v1740
        %v1951 = vpack.c.b16 %v1745, %v1743
        %v1952 = vpack.c.b16 %v1746, %v1744
        %v1953 = vpack.c.b16 %v1749, %v1747
        %v1954 = vpack.c.b16 %v1750, %v1748
        %v1955 = vpack.c.b16 %v1753, %v1751
        %v1956 = vpack.c.b16 %v1754, %v1752
        %v1957 = vpack.c.b16 %v1757, %v1755
        %v1958 = vpack.c.b16 %v1758, %v1756
        %v1959 = vpack.c.b16 %v1761, %v1759
        %v1960 = vpack.c.b16 %v1762, %v1760
        %v1961 = vpack.c.b16 %v1765, %v1763
        %v1962 = vpack.c.b16 %v1766, %v1764
        %v1963 = vpack.c.b16 %v1769, %v1767
        %v1964 = vpack.c.b16 %v1770, %v1768
        %v1965 = vpack.c.b16 %v1773, %v1771
        %v1966 = vpack.c.b16 %v1774, %v1772
        %v1967 = vpack.c.b16 %v1777, %v1775
        %v1968 = vpack.c.b16 %v1778, %v1776
        %v1969 = vpack.c.b16 %v1781, %v1779
        %v1970 = vpack.c.b16 %v1782, %v1780
        %v1971 = vpack.c.b16 %v1785, %v1783
        %v1972 = vpack.c.b16 %v1786, %v1784
        %v1973 = vpack.c.b16 %v1789, %v1787
        %v1974 = vpack.c.b16 %v1790, %v1788
        %v1975 = vpack.c.b16 %v1793, %v1791
        %v1976 = vpack.c.b16 %v1794, %v1792
        %v1977 = vpack.c.b16 %v1797, %v1795
        %v1978 = vpack.c.b16 %v1798, %v1796
        %v1979 = vpack.c.b16 %v1801, %v1799
        %v1980 = vpack.c.b16 %v1802, %v1800
        %v1981 = vpack.c.b16 %v1805, %v1803
        %v1982 = vpack.c.b16 %v1806, %v1804
        %v1983 = vpack.c.b16 %v1809, %v1807
        %v1984 = vpack.c.b16 %v1810, %v1808
        %v1985 = vpack.c.b16 %v1813, %v1811
        %v1986 = vpack.c.b16 %v1814, %v1812
        %v1987 = vpack.c.b16 %v1817, %v1815
        %v1988 = vpack.c.b16 %v1818, %v1816
        %v1989 = vpack.c.b16 %v1821, %v1819
        %v1990 = vpack.c.b16 %v1822, %v1820
        %v1991 = vpack.c.b16 %v1825, %v1823
        %v1992 = vpack.c.b16 %v1826, %v1824
        %v1993 = vpack.c.b16 %v1829, %v1827
        %v1994 = vpack.c.b16 %v1830, %v1828
        %v1995 = vpack.c.b16 %v1833, %v1831
        %v1996 = vpack.c.b16 %v1834, %v1832
        %v1997 = vpack.c.b16 %v1837, %v1835
        %v1998 = vpack.c.b16 %v1838, %v1836
        %v1999 = vpack.c.b16 %v1841, %v1839
        %v2000 = vpack.c.b16 %v1842, %v1840
        %v2001 = vpack.c.b16 %v1845, %v1843
        %v2002 = vpack.c.b16 %v1846, %v1844
        %v2003 = vpack.c.b16 %v1849, %v1847
        %v2004 = vpack.c.b16 %v1850, %v1848
        %v2005 = vpack.c.b16 %v1853, %v1851
        %v2006 = vpack.c.b16 %v1854, %v1852
        %v2007 = vpack.c.b16 %v1857, %v1855
        %v2008 = vpack.c.b16 %v1858, %v1856
        %v2009 = vpack.c.b16 %v1861, %v1859
        %v2010 = vpack.c.b16 %v1862, %v1860
        %v2011 = vpack.c.b16 %v1865, %v1863
        %v2012 = vpack.c.b16 %v1866, %v1864
        %v2013 = vpack.c.b16 %v1869, %v1867
        %v2014 = vpack.c.b16 %v1870, %v1868
        %2159 = vmatprep.subr.bf16.mxu0 %v1886
        %2160 = vmatpush1.bf16.msra.mxu0 %v1885
        %2161 = vmatprep.subr.bf16.mxu0 %v1884
        %2162 = vmatpush1.bf16.msra.mxu0 %v1883
        %2163 = vmatprep.subr.bf16.mxu0 %v1882
        %2164 = vmatpush1.bf16.msra.mxu0 %v1881
        %2165 = vmatprep.subr.bf16.mxu0 %v1880
        %2166 = vmatpush1.bf16.msra.mxu0 %v1879
        %2167 = vmatprep.subr.bf16.mxu0 %v1878
        %2168 = vmatpush1.bf16.msra.mxu0 %v1877
        %2169 = vmatprep.subr.bf16.mxu0 %v1876
        %2170 = vmatpush1.bf16.msra.mxu0 %v1875
        %2171 = vmatprep.subr.bf16.mxu0 %v1874
        %2172 = vmatpush1.bf16.msra.mxu0 %v1873
        %2173 = vmatprep.subr.bf16.mxu0 %v1872
        %2174 = vmatpush1.bf16.msra.mxu0 %v1871
        %2175 = vmatprep.subr.bf16.mxu0 %v1902
        %2176 = vmatpush2.bf16.msra.mxu0 %v1901
        %2177 = vmatprep.subr.bf16.mxu0 %v1900
        %2178 = vmatpush2.bf16.msra.mxu0 %v1899
        %2179 = vmatprep.subr.bf16.mxu0 %v1898
        %2180 = vmatpush2.bf16.msra.mxu0 %v1897
        %2181 = vmatprep.subr.bf16.mxu0 %v1896
        %2182 = vmatpush2.bf16.msra.mxu0 %v1895
        %2183 = vmatprep.subr.bf16.mxu0 %v1894
        %2184 = vmatpush2.bf16.msra.mxu0 %v1893
        %2185 = vmatprep.subr.bf16.mxu0 %v1892
        %2186 = vmatpush2.bf16.msra.mxu0 %v1891
        %2187 = vmatprep.subr.bf16.mxu0 %v1890
        %2188 = vmatpush2.bf16.msra.mxu0 %v1889
        %2189 = vmatprep.subr.bf16.mxu0 %v1888
        %2190 = vmatpush2.bf16.msra.mxu0 %v1887
        %2191 = vmatprep.mubr.bf16.mxu0 %v1296
        %2192 = vmatmul.mubr.bf16.gmra.mxu0 %v1295
        %v2193 = vpop.f32.mrf.mxu0
        %v2194 = vadd.f32 %v1064, %v2193
        %v2195 = vpop.f32.mrf.mxu0
        %v2196 = vadd.f32 %v1068, %v2195
        %v2197 = vpop.f32.mrf.mxu0
        %v2198 = vadd.f32 %v1064, %v2197
        %v2199 = vpop.f32.mrf.mxu0
        %v2200 = vadd.f32 %v1068, %v2199
        %2201 = vmatprep.mubr.bf16.mxu0 %v1305
        %2202 = vmatmul.mubr.bf16.gmra.mxu0 %v1304
        %v2203 = vpop.f32.mrf.mxu0
        %v2204 = vadd.f32 %v1064, %v2203
        %v2205 = vpop.f32.mrf.mxu0
        %v2206 = vadd.f32 %v1068, %v2205
        %v2207 = vpop.f32.mrf.mxu0
        %v2208 = vadd.f32 %v1064, %v2207
        %v2209 = vpop.f32.mrf.mxu0
        %v2210 = vadd.f32 %v1068, %v2209
        %2211 = vmatprep.mubr.bf16.mxu0 %v1314
        %2212 = vmatmul.mubr.bf16.gmra.mxu0 %v1313
        %v2213 = vpop.f32.mrf.mxu0
        %v2214 = vadd.f32 %v1064, %v2213
        %v2215 = vpop.f32.mrf.mxu0
        %v2216 = vadd.f32 %v1068, %v2215
        %v2217 = vpop.f32.mrf.mxu0
        %v2218 = vadd.f32 %v1064, %v2217
        %v2219 = vpop.f32.mrf.mxu0
        %v2220 = vadd.f32 %v1068, %v2219
        %2221 = vmatprep.mubr.bf16.mxu0 %v1323
        %2222 = vmatmul.mubr.bf16.gmra.mxu0 %v1322
        %v2223 = vpop.f32.mrf.mxu0
        %v2224 = vadd.f32 %v1064, %v2223
        %v2225 = vpop.f32.mrf.mxu0
        %v2226 = vadd.f32 %v1068, %v2225
        %v2227 = vpop.f32.mrf.mxu0
        %v2228 = vadd.f32 %v1064, %v2227
        %v2229 = vpop.f32.mrf.mxu0
        %v2230 = vadd.f32 %v1068, %v2229
        %2231 = vmatprep.mubr.bf16.mxu0 %v1332
        %2232 = vmatmul.mubr.bf16.gmra.mxu0 %v1331
        %v2233 = vpop.f32.mrf.mxu0
        %v2234 = vadd.f32 %v1064, %v2233
        %v2235 = vpop.f32.mrf.mxu0
        %v2236 = vadd.f32 %v1068, %v2235
        %v2237 = vpop.f32.mrf.mxu0
        %v2238 = vadd.f32 %v1064, %v2237
        %v2239 = vpop.f32.mrf.mxu0
        %v2240 = vadd.f32 %v1068, %v2239
        %2241 = vmatprep.mubr.bf16.mxu0 %v1341
        %2242 = vmatmul.mubr.bf16.gmra.mxu0 %v1340
        %v2243 = vpop.f32.mrf.mxu0
        %v2244 = vadd.f32 %v1064, %v2243
        %v2245 = vpop.f32.mrf.mxu0
        %v2246 = vadd.f32 %v1068, %v2245
        %v2247 = vpop.f32.mrf.mxu0
        %v2248 = vadd.f32 %v1064, %v2247
        %v2249 = vpop.f32.mrf.mxu0
        %v2250 = vadd.f32 %v1068, %v2249
        %2251 = vmatprep.mubr.bf16.mxu0 %v1350
        %2252 = vmatmul.mubr.bf16.gmra.mxu0 %v1349
        %v2253 = vpop.f32.mrf.mxu0
        %v2254 = vadd.f32 %v1064, %v2253
        %v2255 = vpop.f32.mrf.mxu0
        %v2256 = vadd.f32 %v1068, %v2255
        %v2257 = vpop.f32.mrf.mxu0
        %v2258 = vadd.f32 %v1064, %v2257
        %v2259 = vpop.f32.mrf.mxu0
        %v2260 = vadd.f32 %v1068, %v2259
        %2261 = vmatprep.mubr.bf16.mxu0 %v1359
        %2262 = vmatmul.mubr.bf16.gmra.mxu0 %v1358
        %v2263 = vpop.f32.mrf.mxu0
        %v2264 = vadd.f32 %v1064, %v2263
        %v2265 = vpop.f32.mrf.mxu0
        %v2266 = vadd.f32 %v1068, %v2265
        %v2267 = vpop.f32.mrf.mxu0
        %v2268 = vadd.f32 %v1064, %v2267
        %v2269 = vpop.f32.mrf.mxu0
        %v2270 = vadd.f32 %v1068, %v2269
        %2271 = vdwg.mxu0
        %2272 = vmatprep.subr.bf16.mxu0 %v1918
        %2273 = vmatpush1.bf16.msra.mxu0 %v1917
        %2274 = vmatprep.subr.bf16.mxu0 %v1916
        %2275 = vmatpush1.bf16.msra.mxu0 %v1915
        %2276 = vmatprep.subr.bf16.mxu0 %v1914
        %2277 = vmatpush1.bf16.msra.mxu0 %v1913
        %2278 = vmatprep.subr.bf16.mxu0 %v1912
        %2279 = vmatpush1.bf16.msra.mxu0 %v1911
        %2280 = vmatprep.subr.bf16.mxu0 %v1910
        %2281 = vmatpush1.bf16.msra.mxu0 %v1909
        %2282 = vmatprep.subr.bf16.mxu0 %v1908
        %2283 = vmatpush1.bf16.msra.mxu0 %v1907
        %2284 = vmatprep.subr.bf16.mxu0 %v1906
        %2285 = vmatpush1.bf16.msra.mxu0 %v1905
        %2286 = vmatprep.subr.bf16.mxu0 %v1904
        %2287 = vmatpush1.bf16.msra.mxu0 %v1903
        %2288 = vmatprep.subr.bf16.mxu0 %v1934
        %2289 = vmatpush2.bf16.msra.mxu0 %v1933
        %2290 = vmatprep.subr.bf16.mxu0 %v1932
        %2291 = vmatpush2.bf16.msra.mxu0 %v1931
        %2292 = vmatprep.subr.bf16.mxu0 %v1930
        %2293 = vmatpush2.bf16.msra.mxu0 %v1929
        %2294 = vmatprep.subr.bf16.mxu0 %v1928
        %2295 = vmatpush2.bf16.msra.mxu0 %v1927
        %2296 = vmatprep.subr.bf16.mxu0 %v1926
        %2297 = vmatpush2.bf16.msra.mxu0 %v1925
        %2298 = vmatprep.subr.bf16.mxu0 %v1924
        %2299 = vmatpush2.bf16.msra.mxu0 %v1923
        %2300 = vmatprep.subr.bf16.mxu0 %v1922
        %2301 = vmatpush2.bf16.msra.mxu0 %v1921
        %2302 = vmatprep.subr.bf16.mxu0 %v1920
        %2303 = vmatpush2.bf16.msra.mxu0 %v1919
        %2304 = vmatprep.mubr.bf16.mxu0 %v1298
        %2305 = vmatmul.mubr.bf16.gmra.mxu0 %v1297
        %v2306 = vpop.f32.mrf.mxu0
        %v2307 = vadd.f32 %v2194, %v2306
        %v2308 = vpop.f32.mrf.mxu0
        %v2309 = vadd.f32 %v2196, %v2308
        %v2310 = vpop.f32.mrf.mxu0
        %v2311 = vadd.f32 %v2198, %v2310
        %v2312 = vpop.f32.mrf.mxu0
        %v2313 = vadd.f32 %v2200, %v2312
        %2314 = vmatprep.mubr.bf16.mxu0 %v1307
        %2315 = vmatmul.mubr.bf16.gmra.mxu0 %v1306
        %v2316 = vpop.f32.mrf.mxu0
        %v2317 = vadd.f32 %v2204, %v2316
        %v2318 = vpop.f32.mrf.mxu0
        %v2319 = vadd.f32 %v2206, %v2318
        %v2320 = vpop.f32.mrf.mxu0
        %v2321 = vadd.f32 %v2208, %v2320
        %v2322 = vpop.f32.mrf.mxu0
        %v2323 = vadd.f32 %v2210, %v2322
        %2324 = vmatprep.mubr.bf16.mxu0 %v1316
        %2325 = vmatmul.mubr.bf16.gmra.mxu0 %v1315
        %v2326 = vpop.f32.mrf.mxu0
        %v2327 = vadd.f32 %v2214, %v2326
        %v2328 = vpop.f32.mrf.mxu0
        %v2329 = vadd.f32 %v2216, %v2328
        %v2330 = vpop.f32.mrf.mxu0
        %v2331 = vadd.f32 %v2218, %v2330
        %v2332 = vpop.f32.mrf.mxu0
        %v2333 = vadd.f32 %v2220, %v2332
        %2334 = vmatprep.mubr.bf16.mxu0 %v1325
        %2335 = vmatmul.mubr.bf16.gmra.mxu0 %v1324
        %v2336 = vpop.f32.mrf.mxu0
        %v2337 = vadd.f32 %v2224, %v2336
        %v2338 = vpop.f32.mrf.mxu0
        %v2339 = vadd.f32 %v2226, %v2338
        %v2340 = vpop.f32.mrf.mxu0
        %v2341 = vadd.f32 %v2228, %v2340
        %v2342 = vpop.f32.mrf.mxu0
        %v2343 = vadd.f32 %v2230, %v2342
        %2344 = vmatprep.mubr.bf16.mxu0 %v1334
        %2345 = vmatmul.mubr.bf16.gmra.mxu0 %v1333
        %v2346 = vpop.f32.mrf.mxu0
        %v2347 = vadd.f32 %v2234, %v2346
        %v2348 = vpop.f32.mrf.mxu0
        %v2349 = vadd.f32 %v2236, %v2348
        %v2350 = vpop.f32.mrf.mxu0
        %v2351 = vadd.f32 %v2238, %v2350
        %v2352 = vpop.f32.mrf.mxu0
        %v2353 = vadd.f32 %v2240, %v2352
        %2354 = vmatprep.mubr.bf16.mxu0 %v1343
        %2355 = vmatmul.mubr.bf16.gmra.mxu0 %v1342
        %v2356 = vpop.f32.mrf.mxu0
        %v2357 = vadd.f32 %v2244, %v2356
        %v2358 = vpop.f32.mrf.mxu0
        %v2359 = vadd.f32 %v2246, %v2358
        %v2360 = vpop.f32.mrf.mxu0
        %v2361 = vadd.f32 %v2248, %v2360
        %v2362 = vpop.f32.mrf.mxu0
        %v2363 = vadd.f32 %v2250, %v2362
        %2364 = vmatprep.mubr.bf16.mxu0 %v1352
        %2365 = vmatmul.mubr.bf16.gmra.mxu0 %v1351
        %v2366 = vpop.f32.mrf.mxu0
        %v2367 = vadd.f32 %v2254, %v2366
        %v2368 = vpop.f32.mrf.mxu0
        %v2369 = vadd.f32 %v2256, %v2368
        %v2370 = vpop.f32.mrf.mxu0
        %v2371 = vadd.f32 %v2258, %v2370
        %v2372 = vpop.f32.mrf.mxu0
        %v2373 = vadd.f32 %v2260, %v2372
        %2374 = vmatprep.mubr.bf16.mxu0 %v1361
        %2375 = vmatmul.mubr.bf16.gmra.mxu0 %v1360
        %v2376 = vpop.f32.mrf.mxu0
        %v2377 = vadd.f32 %v2264, %v2376
        %v2378 = vpop.f32.mrf.mxu0
        %v2379 = vadd.f32 %v2266, %v2378
        %v2380 = vpop.f32.mrf.mxu0
        %v2381 = vadd.f32 %v2268, %v2380
        %v2382 = vpop.f32.mrf.mxu0
        %v2383 = vadd.f32 %v2270, %v2382
        %2384 = vdwg.mxu0
        %2385 = vmatprep.subr.bf16.mxu0 %v1950
        %2386 = vmatpush1.bf16.msra.mxu0 %v1949
        %2387 = vmatprep.subr.bf16.mxu0 %v1948
        %2388 = vmatpush1.bf16.msra.mxu0 %v1947
        %2389 = vmatprep.subr.bf16.mxu0 %v1946
        %2390 = vmatpush1.bf16.msra.mxu0 %v1945
        %2391 = vmatprep.subr.bf16.mxu0 %v1944
        %2392 = vmatpush1.bf16.msra.mxu0 %v1943
        %2393 = vmatprep.subr.bf16.mxu0 %v1942
        %2394 = vmatpush1.bf16.msra.mxu0 %v1941
        %2395 = vmatprep.subr.bf16.mxu0 %v1940
        %2396 = vmatpush1.bf16.msra.mxu0 %v1939
        %2397 = vmatprep.subr.bf16.mxu0 %v1938
        %2398 = vmatpush1.bf16.msra.mxu0 %v1937
        %2399 = vmatprep.subr.bf16.mxu0 %v1936
        %2400 = vmatpush1.bf16.msra.mxu0 %v1935
        %2401 = vmatprep.subr.bf16.mxu0 %v1966
        %2402 = vmatpush2.bf16.msra.mxu0 %v1965
        %2403 = vmatprep.subr.bf16.mxu0 %v1964
        %2404 = vmatpush2.bf16.msra.mxu0 %v1963
        %2405 = vmatprep.subr.bf16.mxu0 %v1962
        %2406 = vmatpush2.bf16.msra.mxu0 %v1961
        %2407 = vmatprep.subr.bf16.mxu0 %v1960
        %2408 = vmatpush2.bf16.msra.mxu0 %v1959
        %2409 = vmatprep.subr.bf16.mxu0 %v1958
        %2410 = vmatpush2.bf16.msra.mxu0 %v1957
        %2411 = vmatprep.subr.bf16.mxu0 %v1956
        %2412 = vmatpush2.bf16.msra.mxu0 %v1955
        %2413 = vmatprep.subr.bf16.mxu0 %v1954
        %2414 = vmatpush2.bf16.msra.mxu0 %v1953
        %2415 = vmatprep.subr.bf16.mxu0 %v1952
        %2416 = vmatpush2.bf16.msra.mxu0 %v1951
        %2417 = vmatprep.mubr.bf16.mxu0 %v1300
        %2418 = vmatmul.mubr.bf16.gmra.mxu0 %v1299
        %v2419 = vpop.f32.mrf.mxu0
        %v2420 = vadd.f32 %v2307, %v2419
        %v2421 = vpop.f32.mrf.mxu0
        %v2422 = vadd.f32 %v2309, %v2421
        %v2423 = vpop.f32.mrf.mxu0
        %v2424 = vadd.f32 %v2311, %v2423
        %v2425 = vpop.f32.mrf.mxu0
        %v2426 = vadd.f32 %v2313, %v2425
        %2427 = vmatprep.mubr.bf16.mxu0 %v1309
        %2428 = vmatmul.mubr.bf16.gmra.mxu0 %v1308
        %v2429 = vpop.f32.mrf.mxu0
        %v2430 = vadd.f32 %v2317, %v2429
        %v2431 = vpop.f32.mrf.mxu0
        %v2432 = vadd.f32 %v2319, %v2431
        %v2433 = vpop.f32.mrf.mxu0
        %v2434 = vadd.f32 %v2321, %v2433
        %v2435 = vpop.f32.mrf.mxu0
        %v2436 = vadd.f32 %v2323, %v2435
        %2437 = vmatprep.mubr.bf16.mxu0 %v1318
        %2438 = vmatmul.mubr.bf16.gmra.mxu0 %v1317
        %v2439 = vpop.f32.mrf.mxu0
        %v2440 = vadd.f32 %v2327, %v2439
        %v2441 = vpop.f32.mrf.mxu0
        %v2442 = vadd.f32 %v2329, %v2441
        %v2443 = vpop.f32.mrf.mxu0
        %v2444 = vadd.f32 %v2331, %v2443
        %v2445 = vpop.f32.mrf.mxu0
        %v2446 = vadd.f32 %v2333, %v2445
        %2447 = vmatprep.mubr.bf16.mxu0 %v1327
        %2448 = vmatmul.mubr.bf16.gmra.mxu0 %v1326
        %v2449 = vpop.f32.mrf.mxu0
        %v2450 = vadd.f32 %v2337, %v2449
        %v2451 = vpop.f32.mrf.mxu0
        %v2452 = vadd.f32 %v2339, %v2451
        %v2453 = vpop.f32.mrf.mxu0
        %v2454 = vadd.f32 %v2341, %v2453
        %v2455 = vpop.f32.mrf.mxu0
        %v2456 = vadd.f32 %v2343, %v2455
        %2457 = vmatprep.mubr.bf16.mxu0 %v1336
        %2458 = vmatmul.mubr.bf16.gmra.mxu0 %v1335
        %v2459 = vpop.f32.mrf.mxu0
        %v2460 = vadd.f32 %v2347, %v2459
        %v2461 = vpop.f32.mrf.mxu0
        %v2462 = vadd.f32 %v2349, %v2461
        %v2463 = vpop.f32.mrf.mxu0
        %v2464 = vadd.f32 %v2351, %v2463
        %v2465 = vpop.f32.mrf.mxu0
        %v2466 = vadd.f32 %v2353, %v2465
        %2467 = vmatprep.mubr.bf16.mxu0 %v1345
        %2468 = vmatmul.mubr.bf16.gmra.mxu0 %v1344
        %v2469 = vpop.f32.mrf.mxu0
        %v2470 = vadd.f32 %v2357, %v2469
        %v2471 = vpop.f32.mrf.mxu0
        %v2472 = vadd.f32 %v2359, %v2471
        %v2473 = vpop.f32.mrf.mxu0
        %v2474 = vadd.f32 %v2361, %v2473
        %v2475 = vpop.f32.mrf.mxu0
        %v2476 = vadd.f32 %v2363, %v2475
        %2477 = vmatprep.mubr.bf16.mxu0 %v1354
        %2478 = vmatmul.mubr.bf16.gmra.mxu0 %v1353
        %v2479 = vpop.f32.mrf.mxu0
        %v2480 = vadd.f32 %v2367, %v2479
        %v2481 = vpop.f32.mrf.mxu0
        %v2482 = vadd.f32 %v2369, %v2481
        %v2483 = vpop.f32.mrf.mxu0
        %v2484 = vadd.f32 %v2371, %v2483
        %v2485 = vpop.f32.mrf.mxu0
        %v2486 = vadd.f32 %v2373, %v2485
        %2487 = vmatprep.mubr.bf16.mxu0 %v1363
        %2488 = vmatmul.mubr.bf16.gmra.mxu0 %v1362
        %v2489 = vpop.f32.mrf.mxu0
        %v2490 = vadd.f32 %v2377, %v2489
        %v2491 = vpop.f32.mrf.mxu0
        %v2492 = vadd.f32 %v2379, %v2491
        %v2493 = vpop.f32.mrf.mxu0
        %v2494 = vadd.f32 %v2381, %v2493
        %v2495 = vpop.f32.mrf.mxu0
        %v2496 = vadd.f32 %v2383, %v2495
        %2497 = vdwg.mxu0
        %2498 = vmatprep.subr.bf16.mxu0 %v1982
        %2499 = vmatpush1.bf16.msra.mxu0 %v1981
        %2500 = vmatprep.subr.bf16.mxu0 %v1980
        %2501 = vmatpush1.bf16.msra.mxu0 %v1979
        %2502 = vmatprep.subr.bf16.mxu0 %v1978
        %2503 = vmatpush1.bf16.msra.mxu0 %v1977
        %2504 = vmatprep.subr.bf16.mxu0 %v1976
        %2505 = vmatpush1.bf16.msra.mxu0 %v1975
        %2506 = vmatprep.subr.bf16.mxu0 %v1974
        %2507 = vmatpush1.bf16.msra.mxu0 %v1973
        %2508 = vmatprep.subr.bf16.mxu0 %v1972
        %2509 = vmatpush1.bf16.msra.mxu0 %v1971
        %2510 = vmatprep.subr.bf16.mxu0 %v1970
        %2511 = vmatpush1.bf16.msra.mxu0 %v1969
        %2512 = vmatprep.subr.bf16.mxu0 %v1968
        %2513 = vmatpush1.bf16.msra.mxu0 %v1967
        %2514 = vmatprep.subr.bf16.mxu0 %v1998
        %2515 = vmatpush2.bf16.msra.mxu0 %v1997
        %2516 = vmatprep.subr.bf16.mxu0 %v1996
        %2517 = vmatpush2.bf16.msra.mxu0 %v1995
        %2518 = vmatprep.subr.bf16.mxu0 %v1994
        %2519 = vmatpush2.bf16.msra.mxu0 %v1993
        %2520 = vmatprep.subr.bf16.mxu0 %v1992
        %2521 = vmatpush2.bf16.msra.mxu0 %v1991
        %2522 = vmatprep.subr.bf16.mxu0 %v1990
        %2523 = vmatpush2.bf16.msra.mxu0 %v1989
        %2524 = vmatprep.subr.bf16.mxu0 %v1988
        %2525 = vmatpush2.bf16.msra.mxu0 %v1987
        %2526 = vmatprep.subr.bf16.mxu0 %v1986
        %2527 = vmatpush2.bf16.msra.mxu0 %v1985
        %2528 = vmatprep.subr.bf16.mxu0 %v1984
        %2529 = vmatpush2.bf16.msra.mxu0 %v1983
        %2530 = vmatprep.mubr.bf16.mxu0 %v1302
        %2531 = vmatmul.mubr.bf16.gmra.mxu0 %v1301
        %v2532 = vpop.f32.mrf.mxu0
        %v2533 = vadd.f32 %v2420, %v2532
        %v2534 = vpop.f32.mrf.mxu0
        %v2535 = vadd.f32 %v2422, %v2534
        %v2536 = vpop.f32.mrf.mxu0
        %v2537 = vadd.f32 %v2424, %v2536
        %v2538 = vpop.f32.mrf.mxu0
        %v2539 = vadd.f32 %v2426, %v2538
        %2540 = vmatprep.mubr.bf16.mxu0 %v1311
        %2541 = vmatmul.mubr.bf16.gmra.mxu0 %v1310
        %v2542 = vpop.f32.mrf.mxu0
        %v2543 = vadd.f32 %v2430, %v2542
        %v2544 = vpop.f32.mrf.mxu0
        %v2545 = vadd.f32 %v2432, %v2544
        %v2546 = vpop.f32.mrf.mxu0
        %v2547 = vadd.f32 %v2434, %v2546
        %v2548 = vpop.f32.mrf.mxu0
        %v2549 = vadd.f32 %v2436, %v2548
        %2550 = vmatprep.mubr.bf16.mxu0 %v1320
        %2551 = vmatmul.mubr.bf16.gmra.mxu0 %v1319
        %v2552 = vpop.f32.mrf.mxu0
        %v2553 = vadd.f32 %v2440, %v2552
        %v2554 = vpop.f32.mrf.mxu0
        %v2555 = vadd.f32 %v2442, %v2554
        %v2556 = vpop.f32.mrf.mxu0
        %v2557 = vadd.f32 %v2444, %v2556
        %v2558 = vpop.f32.mrf.mxu0
        %v2559 = vadd.f32 %v2446, %v2558
        %2560 = vmatprep.mubr.bf16.mxu0 %v1329
        %2561 = vmatmul.mubr.bf16.gmra.mxu0 %v1328
        %v2562 = vpop.f32.mrf.mxu0
        %v2563 = vadd.f32 %v2450, %v2562
        %v2564 = vpop.f32.mrf.mxu0
        %v2565 = vadd.f32 %v2452, %v2564
        %v2566 = vpop.f32.mrf.mxu0
        %v2567 = vadd.f32 %v2454, %v2566
        %v2568 = vpop.f32.mrf.mxu0
        %v2569 = vadd.f32 %v2456, %v2568
        %2570 = vmatprep.mubr.bf16.mxu0 %v1338
        %2571 = vmatmul.mubr.bf16.gmra.mxu0 %v1337
        %v2572 = vpop.f32.mrf.mxu0
        %v2573 = vadd.f32 %v2460, %v2572
        %v2574 = vpop.f32.mrf.mxu0
        %v2575 = vadd.f32 %v2462, %v2574
        %v2576 = vpop.f32.mrf.mxu0
        %v2577 = vadd.f32 %v2464, %v2576
        %v2578 = vpop.f32.mrf.mxu0
        %v2579 = vadd.f32 %v2466, %v2578
        %2580 = vmatprep.mubr.bf16.mxu0 %v1347
        %2581 = vmatmul.mubr.bf16.gmra.mxu0 %v1346
        %v2582 = vpop.f32.mrf.mxu0
        %v2583 = vadd.f32 %v2470, %v2582
        %v2584 = vpop.f32.mrf.mxu0
        %v2585 = vadd.f32 %v2472, %v2584
        %v2586 = vpop.f32.mrf.mxu0
        %v2587 = vadd.f32 %v2474, %v2586
        %v2588 = vpop.f32.mrf.mxu0
        %v2589 = vadd.f32 %v2476, %v2588
        %2590 = vmatprep.mubr.bf16.mxu0 %v1356
        %2591 = vmatmul.mubr.bf16.gmra.mxu0 %v1355
        %v2592 = vpop.f32.mrf.mxu0
        %v2593 = vadd.f32 %v2480, %v2592
        %v2594 = vpop.f32.mrf.mxu0
        %v2595 = vadd.f32 %v2482, %v2594
        %v2596 = vpop.f32.mrf.mxu0
        %v2597 = vadd.f32 %v2484, %v2596
        %v2598 = vpop.f32.mrf.mxu0
        %v2599 = vadd.f32 %v2486, %v2598
        %2600 = vmatprep.mubr.bf16.mxu0 %v1365
        %2601 = vmatmul.mubr.bf16.gmra.mxu0 %v1364
        %v2602 = vpop.f32.mrf.mxu0
        %v2603 = vadd.f32 %v2490, %v2602
        %v2604 = vpop.f32.mrf.mxu0
        %v2605 = vadd.f32 %v2492, %v2604
        %v2606 = vpop.f32.mrf.mxu0
        %v2607 = vadd.f32 %v2494, %v2606
        %v2608 = vpop.f32.mrf.mxu0
        %v2609 = vadd.f32 %v2496, %v2608
        %2610 = vdwg.mxu0
        %2611 = vmatprep.subr.bf16.mxu0 %v2014
        %2612 = vmatpush1.bf16.msra.mxu0 %v2013
        %2613 = vmatprep.subr.bf16.mxu0 %v2012
        %2614 = vmatpush1.bf16.msra.mxu0 %v2011
        %2615 = vmatprep.subr.bf16.mxu0 %v2010
        %2616 = vmatpush1.bf16.msra.mxu0 %v2009
        %2617 = vmatprep.subr.bf16.mxu0 %v2008
        %2618 = vmatpush1.bf16.msra.mxu0 %v2007
        %2619 = vmatprep.subr.bf16.mxu0 %v2006
        %2620 = vmatpush1.bf16.msra.mxu0 %v2005
        %2621 = vmatprep.subr.bf16.mxu0 %v2004
        %2622 = vmatpush1.bf16.msra.mxu0 %v2003
        %2623 = vmatprep.subr.bf16.mxu0 %v2002
        %2624 = vmatpush1.bf16.msra.mxu0 %v2001
        %2625 = vmatprep.subr.bf16.mxu0 %v2000
        %2626 = vmatpush1.bf16.msra.mxu0 %v1999
        %2627 = vmatprep.subr.bf16.mxu0 0
        %2628 = vmatpush2.bf16.msra.mxu0 0
        %2629 = vmatprep.subr.bf16.mxu0 0
        %2630 = vmatpush2.bf16.msra.mxu0 0
        %2631 = vmatprep.subr.bf16.mxu0 0
        %2632 = vmatpush2.bf16.msra.mxu0 0
        %2633 = vmatprep.subr.bf16.mxu0 0
        %2634 = vmatpush2.bf16.msra.mxu0 0
        %2635 = vmatprep.subr.bf16.mxu0 0
        %2636 = vmatpush2.bf16.msra.mxu0 0
        %2637 = vmatprep.subr.bf16.mxu0 0
        %2638 = vmatpush2.bf16.msra.mxu0 0
        %2639 = vmatprep.subr.bf16.mxu0 0
        %2640 = vmatpush2.bf16.msra.mxu0 0
        %2641 = vmatprep.subr.bf16.mxu0 0
        %2642 = vmatpush2.bf16.msra.mxu0 0
        %2643 = vmatprep.mubr.bf16.mxu0 0
        %2644 = vmatmul.mubr.bf16.gmra.mxu0 %v1303
        %v2645 = vpop.f32.mrf.mxu0
        %v2646 = vadd.f32 %v2533, %v2645
        %v2647 = vpop.f32.mrf.mxu0
        %v2648 = vadd.f32 %v2535, %v2647
        %v2649 = vpop.f32.mrf.mxu0
        %v2650 = vadd.f32 %v2537, %v2649
        %v2651 = vpop.f32.mrf.mxu0
        %v2652 = vadd.f32 %v2539, %v2651
        %2653 = vmatprep.mubr.bf16.mxu0 0
        %2654 = vmatmul.mubr.bf16.gmra.mxu0 %v1312
        %v2655 = vpop.f32.mrf.mxu0
        %v2656 = vadd.f32 %v2543, %v2655
        %v2657 = vpop.f32.mrf.mxu0
        %v2658 = vadd.f32 %v2545, %v2657
        %v2659 = vpop.f32.mrf.mxu0
        %v2660 = vadd.f32 %v2547, %v2659
        %v2661 = vpop.f32.mrf.mxu0
        %v2662 = vadd.f32 %v2549, %v2661
        %2663 = vmatprep.mubr.bf16.mxu0 0
        %2664 = vmatmul.mubr.bf16.gmra.mxu0 %v1321
        %v2665 = vpop.f32.mrf.mxu0
        %v2666 = vadd.f32 %v2553, %v2665
        %v2667 = vpop.f32.mrf.mxu0
        %v2668 = vadd.f32 %v2555, %v2667
        %v2669 = vpop.f32.mrf.mxu0
        %v2670 = vadd.f32 %v2557, %v2669
        %v2671 = vpop.f32.mrf.mxu0
        %v2672 = vadd.f32 %v2559, %v2671
        %2673 = vmatprep.mubr.bf16.mxu0 0
        %2674 = vmatmul.mubr.bf16.gmra.mxu0 %v1330
        %v2675 = vpop.f32.mrf.mxu0
        %v2676 = vadd.f32 %v2563, %v2675
        %v2677 = vpop.f32.mrf.mxu0
        %v2678 = vadd.f32 %v2565, %v2677
        %v2679 = vpop.f32.mrf.mxu0
        %v2680 = vadd.f32 %v2567, %v2679
        %v2681 = vpop.f32.mrf.mxu0
        %v2682 = vadd.f32 %v2569, %v2681
        %2683 = vmatprep.mubr.bf16.mxu0 0
        %2684 = vmatmul.mubr.bf16.gmra.mxu0 %v1339
        %v2685 = vpop.f32.mrf.mxu0
        %v2686 = vadd.f32 %v2573, %v2685
        %v2687 = vpop.f32.mrf.mxu0
        %v2688 = vadd.f32 %v2575, %v2687
        %v2689 = vpop.f32.mrf.mxu0
        %v2690 = vadd.f32 %v2577, %v2689
        %v2691 = vpop.f32.mrf.mxu0
        %v2692 = vadd.f32 %v2579, %v2691
        %2693 = vmatprep.mubr.bf16.mxu0 0
        %2694 = vmatmul.mubr.bf16.gmra.mxu0 %v1348
        %v2695 = vpop.f32.mrf.mxu0
        %v2696 = vadd.f32 %v2583, %v2695
        %v2697 = vpop.f32.mrf.mxu0
        %v2698 = vadd.f32 %v2585, %v2697
        %v2699 = vpop.f32.mrf.mxu0
        %v2700 = vadd.f32 %v2587, %v2699
        %v2701 = vpop.f32.mrf.mxu0
        %v2702 = vadd.f32 %v2589, %v2701
        %2703 = vmatprep.mubr.bf16.mxu0 0
        %2704 = vmatmul.mubr.bf16.gmra.mxu0 %v1357
        %v2705 = vpop.f32.mrf.mxu0
        %v2706 = vadd.f32 %v2593, %v2705
        %v2707 = vpop.f32.mrf.mxu0
        %v2708 = vadd.f32 %v2595, %v2707
        %v2709 = vpop.f32.mrf.mxu0
        %v2710 = vadd.f32 %v2597, %v2709
        %v2711 = vpop.f32.mrf.mxu0
        %v2712 = vadd.f32 %v2599, %v2711
        %2713 = vmatprep.mubr.bf16.mxu0 0
        %2714 = vmatmul.mubr.bf16.gmra.mxu0 %v1366
        %v2715 = vpop.f32.mrf.mxu0
        %v2716 = vadd.f32 %v2603, %v2715
        %v2717 = vpop.f32.mrf.mxu0
        %v2718 = vadd.f32 %v2605, %v2717
        %v2719 = vpop.f32.mrf.mxu0
        %v2720 = vadd.f32 %v2607, %v2719
        %v2721 = vpop.f32.mrf.mxu0
        %v2722 = vadd.f32 %v2609, %v2721
        %2723 = vdwg.mxu0
        %v2724 = vpack.c.bf16 %v2650, %v2646
        %v2725 = vpack.c.bf16 %v2652, %v2648
        %v2726 = vpack.c.bf16 %v2660, %v2656
        %v2727 = vpack.c.bf16 %v2662, %v2658
        %v2728 = vpack.c.bf16 %v2670, %v2666
        %v2729 = vpack.c.bf16 %v2672, %v2668
        %v2730 = vpack.c.bf16 %v2680, %v2676
        %v2731 = vpack.c.bf16 %v2682, %v2678
        %v2732 = vpack.c.bf16 %v2690, %v2686
        %v2733 = vpack.c.bf16 %v2692, %v2688
        %v2734 = vpack.c.bf16 %v2700, %v2696
        %v2735 = vpack.c.bf16 %v2702, %v2698
        %v2736 = vpack.c.bf16 %v2710, %v2706
        %v2737 = vpack.c.bf16 %v2712, %v2708
        %v2738 = vpack.c.bf16 %v2720, %v2716
        %v2739 = vpack.c.bf16 %v2722, %v2718
        %v2756 = vunpack.c.l.b16 %v2724
        %v2757 = vunpack.c.l.b16 %v2725
        %v2758 = vunpack.c.h.b16 %v2724
        %v2759 = vunpack.c.h.b16 %v2725
        %v2760 = vunpack.c.l.b16 %v2726
        %v2761 = vunpack.c.l.b16 %v2727
        %v2762 = vunpack.c.h.b16 %v2726
        %v2763 = vunpack.c.h.b16 %v2727
        %v2764 = vunpack.c.l.b16 %v2728
        %v2765 = vunpack.c.l.b16 %v2729
        %v2766 = vunpack.c.h.b16 %v2728
        %v2767 = vunpack.c.h.b16 %v2729
        %v2768 = vunpack.c.l.b16 %v2730
        %v2769 = vunpack.c.l.b16 %v2731
        %v2770 = vunpack.c.h.b16 %v2730
        %v2771 = vunpack.c.h.b16 %v2731
        %v2772 = vunpack.c.l.b16 %v2732
        %v2773 = vunpack.c.l.b16 %v2733
        %v2774 = vunpack.c.h.b16 %v2732
        %v2775 = vunpack.c.h.b16 %v2733
        %v2776 = vunpack.c.l.b16 %v2734
        %v2777 = vunpack.c.l.b16 %v2735
        %v2778 = vunpack.c.h.b16 %v2734
        %v2779 = vunpack.c.h.b16 %v2735
        %v2780 = vunpack.c.l.b16 %v2736
        %v2781 = vunpack.c.l.b16 %v2737
        %v2782 = vunpack.c.h.b16 %v2736
        %v2783 = vunpack.c.h.b16 %v2737
        %v2784 = vunpack.c.l.b16 %v2738
        %v2785 = vunpack.c.l.b16 %v2739
        %v2786 = vunpack.c.h.b16 %v2738
        %v2787 = vunpack.c.h.b16 %v2739
        %v2788 = vpack.c.b16 %v2757, %v2756
        %v2789 = vpack.c.b16 %v2759, %v2758
        %v2790 = vpack.c.b16 %v2761, %v2760
        %v2791 = vpack.c.b16 %v2763, %v2762
        %v2792 = vpack.c.b16 %v2765, %v2764
        %v2793 = vpack.c.b16 %v2767, %v2766
        %v2794 = vpack.c.b16 %v2769, %v2768
        %v2795 = vpack.c.b16 %v2771, %v2770
        %v2796 = vpack.c.b16 %v2773, %v2772
        %v2797 = vpack.c.b16 %v2775, %v2774
        %v2798 = vpack.c.b16 %v2777, %v2776
        %v2799 = vpack.c.b16 %v2779, %v2778
        %v2800 = vpack.c.b16 %v2781, %v2780
        %v2801 = vpack.c.b16 %v2783, %v2782
        %v2802 = vpack.c.b16 %v2785, %v2784
        %v2803 = vpack.c.b16 %v2787, %v2786
        %2820 = vst [vmem:[%s818] sm:$0xff] %v2788
        %2821 = vst [vmem:[%s818 + $0x8] sm:$0xff] %v2789
        %2822 = vst [vmem:[%s818 + $0x10] sm:$0xff] %v2790
        %2823 = vst [vmem:[%s818 + $0x18] sm:$0xff] %v2791
        %2824 = vst [vmem:[%s818 + $0x20] sm:$0xff] %v2792
        %2825 = vst [vmem:[%s818 + $0x28] sm:$0xff] %v2793
        %2826 = vst [vmem:[%s818 + $0x30] sm:$0xff] %v2794
        %2827 = vst [vmem:[%s818 + $0x38] sm:$0xff] %v2795
        %2828 = vst [vmem:[%s818 + $0x40] sm:$0xff] %v2796
        %2829 = vst [vmem:[%s818 + $0x48] sm:$0xff] %v2797
        %2830 = vst [vmem:[%s818 + $0x50] sm:$0xff] %v2798
        %2831 = vst [vmem:[%s818 + $0x58] sm:$0xff] %v2799
        %2832 = vst [vmem:[%s818 + $0x60] sm:$0xff] %v2800
        %2833 = vst [vmem:[%s818 + $0x68] sm:$0xff] %v2801
        %2834 = vst [vmem:[%s818 + $0x70] sm:$0xff] %v2802
        %2835 = vst [vmem:[%s818 + $0x78] sm:$0xff] %v2803
        %s2836 = sand.u32 %s114, 1
        %s2837 = sand.u32 %s114, 1
        %s2838 = smul.addr %s2837, 128
        %s2839 = scalar_lea.vmem [#allocation3], %s2838
        // Predicated region
        $region71: #{vqvae_forward.29} parent=65 // pred_check
          %p2840 = pneg %p124
        $region72: #{vqvae_forward.29} parent=65 // pred_check_branch
          %2842 = sbr.rel (%p2840) target = $region74
        $region73: #{vqvae_forward.29} parent=65 // pred_region
          %s2843 = smul.u32 16, %s18
          %s2844 = smul.u32 2, %s19
          %s2845 = smul.addr %s2843, 4
          %s2846 = sadd.s32 %s2844, %s2845
          %s2847 = smul.addr %s2846, 4
          %s2848 = scalar_lea.vmem %s3, %s2847
          // Predicated region
          $region75: #{vqvae_forward.29} parent=73 // pred_check
            _
          $region76: #{vqvae_forward.29} parent=73 // pred_check_branch
            %2850 = sbr.rel (0) target = $region78
          $region77: #{vqvae_forward.29} parent=73 // pred_region
            // Predicated region
            $region79: #{vqvae_forward.29} parent=77 // pred_check
              _
            $region80: #{vqvae_forward.29} parent=77 // pred_check_branch
              %2852 = sbr.rel (0) target = $region82
            $region81: #{vqvae_forward.29} parent=77 // pred_region
              // Predicated region
              $region94: #{vqvae_forward.29} parent=81 // pred_check
                _
              $region95: #{vqvae_forward.29} parent=81 // pred_check_branch
                %2898 = sbr.rel (0) target = $region97
              $region96: #{vqvae_forward.29} parent=81 // pred_region
                loop: start=0, step=1, limit=1
                $region98: #{vqvae_forward.29} parent=96 // loop_pre_header
                  _
                $region99: #{vqvae_forward.29} parent=96 // loop_header
                  %s2900 = sphi 0, %s2904
                  %p2901 = scmp.ge.s32.totalorder %s2900, 1
                  %s2905 = sphi %s2839, %s2839
                  %s2906 = sphi %s2848, %s2848
                $region100: #{vqvae_forward.29} parent=96 // loop_header_branch
                  %2903 = sbr.rel (%p2901) target = $region104
                $region101: #{vqvae_forward.29} parent=96 // loop_body
                  %v2907 = vld [vmem:[%s2905] sm:$0xff]
                  %2908 = vst [vmem:[%s2906] sm:$0xff] %v2907
                  %v2909 = vld [vmem:[%s2905 + $0x8] sm:$0xff]
                  %2910 = vst [vmem:[%s2906 + $0x10] sm:$0xff] %v2909
                  %v2911 = vld [vmem:[%s2905 + $0x10] sm:$0xff]
                  %2912 = vst [vmem:[%s2906 + $0x20] sm:$0xff] %v2911
                  %v2913 = vld [vmem:[%s2905 + $0x18] sm:$0xff]
                  %2914 = vst [vmem:[%s2906 + $0x30] sm:$0xff] %v2913
                  %v2915 = vld [vmem:[%s2905 + $0x20] sm:$0xff]
                  %2916 = vst [vmem:[%s2906 + $0x40] sm:$0xff] %v2915
                  %v2917 = vld [vmem:[%s2905 + $0x28] sm:$0xff]
                  %2918 = vst [vmem:[%s2906 + $0x50] sm:$0xff] %v2917
                  %v2919 = vld [vmem:[%s2905 + $0x30] sm:$0xff]
                  %2920 = vst [vmem:[%s2906 + $0x60] sm:$0xff] %v2919
                  %v2921 = vld [vmem:[%s2905 + $0x38] sm:$0xff]
                  %2922 = vst [vmem:[%s2906 + $0x70] sm:$0xff] %v2921
                  %v2923 = vld [vmem:[%s2905 + $0x40] sm:$0xff]
                  %2924 = vst [vmem:[%s2906 + $0x80] sm:$0xff] %v2923
                  %v2925 = vld [vmem:[%s2905 + $0x48] sm:$0xff]
                  %2926 = vst [vmem:[%s2906 + $0x90] sm:$0xff] %v2925
                  %v2927 = vld [vmem:[%s2905 + $0x50] sm:$0xff]
                  %2928 = vst [vmem:[%s2906 + $0xa0] sm:$0xff] %v2927
                  %v2929 = vld [vmem:[%s2905 + $0x58] sm:$0xff]
                  %2930 = vst [vmem:[%s2906 + $0xb0] sm:$0xff] %v2929
                  %v2931 = vld [vmem:[%s2905 + $0x60] sm:$0xff]
                  %2932 = vst [vmem:[%s2906 + $0xc0] sm:$0xff] %v2931
                  %v2933 = vld [vmem:[%s2905 + $0x68] sm:$0xff]
                  %2934 = vst [vmem:[%s2906 + $0xd0] sm:$0xff] %v2933
                  %v2935 = vld [vmem:[%s2905 + $0x70] sm:$0xff]
                  %2936 = vst [vmem:[%s2906 + $0xe0] sm:$0xff] %v2935
                  %v2937 = vld [vmem:[%s2905 + $0x78] sm:$0xff]
                  %2938 = vst [vmem:[%s2906 + $0xf0] sm:$0xff] %v2937
                $region102: #{vqvae_forward.29} parent=96 // loop_footer
                  %s2904 = sadd.s32 1, %s2900
                $region103: #{vqvae_forward.29} parent=96 // loop_footer_branch
                  %2899 = sbr.rel target = $region99
                $region104: #{vqvae_forward.29} parent=96 // loop_exit
                  _
              $region97: #{vqvae_forward.29} parent=81 // pred_fallthru
                _
              // Predicated region
              $region105: #{vqvae_forward.29} parent=81 // pred_check
                _
              $region106: #{vqvae_forward.29} parent=81 // pred_check_branch
                %2940 = sbr.rel target = $region108
              $region107: #{vqvae_forward.29} parent=81 // pred_region
                _
              $region108: #{vqvae_forward.29} parent=81 // pred_fallthru
                _
            $region82: #{vqvae_forward.29} parent=77 // pred_fallthru
              _
            // Predicated region
            $region83: #{vqvae_forward.29} parent=77 // pred_check
              _
            $region84: #{vqvae_forward.29} parent=77 // pred_check_branch
              %2854 = sbr.rel target = $region86
            $region85: #{vqvae_forward.29} parent=77 // pred_region
              %s2856 = ssub.s32 256, 1
              loop: start=0, step=1, limit=1
              $region87: #{vqvae_forward.29} parent=85 // loop_pre_header
                _
              $region88: #{vqvae_forward.29} parent=85 // loop_header
                %s2858 = sphi 0, %s2862
                %p2859 = scmp.ge.s32.totalorder %s2858, 1
                %s2863 = sphi %s2839, %s2839
                %s2864 = sphi %s2848, %s2848
              $region89: #{vqvae_forward.29} parent=85 // loop_header_branch
                %2861 = sbr.rel (%p2859) target = $region93
              $region90: #{vqvae_forward.29} parent=85 // loop_body
                %v2865 = vld [vmem:[%s2863] sm:%s2856]
                %2866 = vst [vmem:[%s2864] sm:%s2856] %v2865
                %v2867 = vld [vmem:[%s2863 + $0x8] sm:%s2856]
                %2868 = vst [vmem:[%s2864 + $0x10] sm:%s2856] %v2867
                %v2869 = vld [vmem:[%s2863 + $0x10] sm:%s2856]
                %2870 = vst [vmem:[%s2864 + $0x20] sm:%s2856] %v2869
                %v2871 = vld [vmem:[%s2863 + $0x18] sm:%s2856]
                %2872 = vst [vmem:[%s2864 + $0x30] sm:%s2856] %v2871
                %v2873 = vld [vmem:[%s2863 + $0x20] sm:%s2856]
                %2874 = vst [vmem:[%s2864 + $0x40] sm:%s2856] %v2873
                %v2875 = vld [vmem:[%s2863 + $0x28] sm:%s2856]
                %2876 = vst [vmem:[%s2864 + $0x50] sm:%s2856] %v2875
                %v2877 = vld [vmem:[%s2863 + $0x30] sm:%s2856]
                %2878 = vst [vmem:[%s2864 + $0x60] sm:%s2856] %v2877
                %v2879 = vld [vmem:[%s2863 + $0x38] sm:%s2856]
                %2880 = vst [vmem:[%s2864 + $0x70] sm:%s2856] %v2879
                %v2881 = vld [vmem:[%s2863 + $0x40] sm:%s2856]
                %2882 = vst [vmem:[%s2864 + $0x80] sm:%s2856] %v2881
                %v2883 = vld [vmem:[%s2863 + $0x48] sm:%s2856]
                %2884 = vst [vmem:[%s2864 + $0x90] sm:%s2856] %v2883
                %v2885 = vld [vmem:[%s2863 + $0x50] sm:%s2856]
                %2886 = vst [vmem:[%s2864 + $0xa0] sm:%s2856] %v2885
                %v2887 = vld [vmem:[%s2863 + $0x58] sm:%s2856]
                %2888 = vst [vmem:[%s2864 + $0xb0] sm:%s2856] %v2887
                %v2889 = vld [vmem:[%s2863 + $0x60] sm:%s2856]
                %2890 = vst [vmem:[%s2864 + $0xc0] sm:%s2856] %v2889
                %v2891 = vld [vmem:[%s2863 + $0x68] sm:%s2856]
                %2892 = vst [vmem:[%s2864 + $0xd0] sm:%s2856] %v2891
                %v2893 = vld [vmem:[%s2863 + $0x70] sm:%s2856]
                %2894 = vst [vmem:[%s2864 + $0xe0] sm:%s2856] %v2893
                %v2895 = vld [vmem:[%s2863 + $0x78] sm:%s2856]
                %2896 = vst [vmem:[%s2864 + $0xf0] sm:%s2856] %v2895
              $region91: #{vqvae_forward.29} parent=85 // loop_footer
                %s2862 = sadd.s32 1, %s2858
              $region92: #{vqvae_forward.29} parent=85 // loop_footer_branch
                %2857 = sbr.rel target = $region88
              $region93: #{vqvae_forward.29} parent=85 // loop_exit
                _
            $region86: #{vqvae_forward.29} parent=77 // pred_fallthru
              _
          $region78: #{vqvae_forward.29} parent=73 // pred_fallthru
            _
          %2941 = vnop
        $region74: #{vqvae_forward.29} parent=65 // pred_fallthru
          _
      $region66: #{vqvae_forward.29} parent=5 // pred_fallthru
        _
      %p2942 = scmp.le.s32.totalorder 2, %s9
      // Predicated region
      $region109: #{vqvae_forward.29} parent=5 // pred_check
        %p2943 = pneg %p2942
      $region110: #{vqvae_forward.29} parent=5 // pred_check_branch
        %2945 = sbr.rel (%p2943) target = $region112
      $region111: #{vqvae_forward.29} parent=5 // pred_region
        %s2946 = ssub.s32 %s9, 2
        // Predicated region
        $region113: #{vqvae_forward.29} parent=111 // pred_check
          %p2947 = pneg %p130
        $region114: #{vqvae_forward.29} parent=111 // pred_check_branch
          %2949 = sbr.rel (%p2947) target = $region116
        $region115: #{vqvae_forward.29} parent=111 // pred_region
          %s2950 = sand.u32 %s115, 1
          %s2951 = sand.u32 %s115, 1
          %s2952 = smul.addr %s2951, 128
          %s2953 = scalar_lea.vmem [#allocation3], %s2952
        $region116: #{vqvae_forward.29} parent=111 // pred_fallthru
          _
      $region112: #{vqvae_forward.29} parent=5 // pred_fallthru
        _
    $region6: #{vqvae_forward.29} parent=1 // loop_footer
      %s13 = sadd.s32 1, %s9
    $region7: #{vqvae_forward.29} parent=1 // loop_footer_branch
      %8 = sbr.rel target = $region3
    $region8: #{vqvae_forward.29} parent=1 // loop_exit
      _

</llo_original>
